<compile_context>
chip_gen: v7x
topology: tpu7x:2x2x1
jax: 0.10.0
libtpu: 0.0.40
codegen_flags: <defaults>
</compile_context>

<pallas_src>
import jax
import jax.numpy as jnp
from jax import lax
from jax.experimental import pallas as pl
from jax.experimental.pallas import tpu as pltpu


# --------------------------------------------------------------------------
# Fused Pallas kernel: 2-layer BiLSTM + edge scorer
# --------------------------------------------------------------------------
def parser_fused_kernel(
    # inputs
    x_ref,
    wih_f0_ref, whh_f0_ref, b_f0_ref, wih_b0_ref, whh_b0_ref, b_b0_ref,
    wih_f1_ref, whh_f1_ref, b_f1_ref, wih_b1_ref, whh_b1_ref, b_b1_ref,
    wh_ref, wm_ref, bm_ref, w1t_ref, b1_ref,
    # outputs
    out_ref,
    # scratch (all VMEM-resident across the whole forward)
    gx_f, gx_b, h_f, h_b, c_f, c_b,
    outf0, outb0, outf1, outb1,
):
    seq = x_ref.shape[0]
    H = whh_f0_ref.shape[0]

    def lstm_cell(gates, c_prev):
        i_g = jax.nn.sigmoid(gates[:, 0 * H:1 * H])
        f_g = jax.nn.sigmoid(gates[:, 1 * H:2 * H])
        g_g = jnp.tanh(gates[:, 2 * H:3 * H])
        o_g = jax.nn.sigmoid(gates[:, 3 * H:4 * H])
        c_new = f_g * c_prev + i_g * g_g
        h_new = o_g * jnp.tanh(c_new)
        return h_new, c_new

    def bilstm_layer(x_arr, wih_f_r, whh_f_r, b_f_r, wih_b_r, whh_b_r, b_b_r,
                     outf_sc, outb_sc):
        # Hoisted input projections (+ bias fold): one well-shaped MXU matmul
        # per direction, outside the serial recurrence.
        gx_f[...] = jnp.dot(x_arr, wih_f_r[...],
                            preferred_element_type=jnp.float32) + b_f_r[...]
        gx_b[...] = jnp.dot(x_arr, wih_b_r[...],
                            preferred_element_type=jnp.float32) + b_b_r[...]

        h_f[...] = jnp.zeros((1, H), jnp.float32)
        h_b[...] = jnp.zeros((1, H), jnp.float32)
        c_f[...] = jnp.zeros((1, H), jnp.float32)
        c_b[...] = jnp.zeros((1, H), jnp.float32)

        def step(t, carry):
            tb = seq - 1 - t
            # Recurrence: only h @ W_hh remains on the serial chain.
            gates_f = gx_f[pl.ds(t, 1), :] + jnp.dot(
                h_f[...], whh_f_r[...], preferred_element_type=jnp.float32)
            gates_b = gx_b[pl.ds(tb, 1), :] + jnp.dot(
                h_b[...], whh_b_r[...], preferred_element_type=jnp.float32)
            hf_new, cf_new = lstm_cell(gates_f, c_f[...])
            hb_new, cb_new = lstm_cell(gates_b, c_b[...])
            h_f[...] = hf_new
            c_f[...] = cf_new
            h_b[...] = hb_new
            c_b[...] = cb_new
            outf_sc[pl.ds(t, 1), :] = hf_new
            outb_sc[pl.ds(tb, 1), :] = hb_new
            return carry

        # Fully unrolled: short fixed trip count, gives the scheduler
        # cross-iteration visibility.
        lax.fori_loop(0, seq, step, 0, unroll=True)

    # ---- layer 0 : input x (seq, D) ----
    bilstm_layer(x_ref[...],
                 wih_f0_ref, whh_f0_ref, b_f0_ref,
                 wih_b0_ref, whh_b0_ref, b_b0_ref,
                 outf0, outb0)
    enc0 = jnp.concatenate([outf0[...], outb0[...]], axis=-1)   # (seq, 2H)

    # ---- layer 1 : input enc0 (seq, 2H) ----
    bilstm_layer(enc0,
                 wih_f1_ref, whh_f1_ref, b_f1_ref,
                 wih_b1_ref, whh_b1_ref, b_b1_ref,
                 outf1, outb1)
    enc = jnp.concatenate([outf1[...], outb1[...]], axis=-1)    # (seq, 2H)

    # ---- edge scorer ----
    head_lin = jnp.dot(enc, wh_ref[...],
                       preferred_element_type=jnp.float32)                  # (n, hid)
    mod_lin = jnp.dot(enc, wm_ref[...],
                      preferred_element_type=jnp.float32) + bm_ref[...]      # (n, hid)
    w1t = w1t_ref[...]                                                       # (hid, 1)
    b1 = b1_ref[...]                                                         # (1, 1)

    # scores[m, h] = w1 . tanh(head_lin[h] + mod_lin[m]) + b1
    # Per head column h: (n, hid) tanh (EUP) followed by an MXU contraction
    # (n, hid) x (hid, 1) -> (n, 1); no (n, n, hid) intermediate, no XLU reduce.
    for h in range(seq):
        x_h = jnp.tanh(mod_lin + head_lin[h:h + 1, :])                       # (n, hid)
        col = jnp.dot(x_h, w1t, preferred_element_type=jnp.float32) + b1     # (n, 1)
        out_ref[:, h:h + 1] = col.astype(out_ref.dtype)


# --------------------------------------------------------------------------
# pallas_call wrapper
# --------------------------------------------------------------------------
def _full_spec(shape):
    nd = len(shape)
    return pl.BlockSpec(shape, lambda i: (0,) * nd)


def run_parser_fused(x, l0, l1, edge):
    seq, _ = x.shape
    H = l0["whh_f"].shape[0]
    hid = edge["wh"].shape[1]
    w1t = edge["w1"].T  # (hid, 1) for MXU contraction

    args = (
        x,
        l0["wih_f"], l0["whh_f"], l0["b_f"], l0["wih_b"], l0["whh_b"], l0["b_b"],
        l1["wih_f"], l1["whh_f"], l1["b_f"], l1["wih_b"], l1["whh_b"], l1["b_b"],
        edge["wh"], edge["wm"], edge["bm"], w1t, edge["b1"],
    )

    return pl.pallas_call(
        parser_fused_kernel,
        grid=(1,),
        in_specs=[_full_spec(a.shape) for a in args],
        out_specs=_full_spec((seq, seq)),
        out_shape=jax.ShapeDtypeStruct((seq, seq), jnp.float32),
        scratch_shapes=[
            pltpu.VMEM((seq, 4 * H), jnp.float32),   # gx_f (hoisted x @ W_ih, fwd)
            pltpu.VMEM((seq, 4 * H), jnp.float32),   # gx_b (hoisted x @ W_ih, bwd)
            pltpu.VMEM((1, H), jnp.float32),         # h_f
            pltpu.VMEM((1, H), jnp.float32),         # h_b
            pltpu.VMEM((1, H), jnp.float32),         # c_f
            pltpu.VMEM((1, H), jnp.float32),         # c_b
            pltpu.VMEM((seq, H), jnp.float32),       # layer0 fwd outputs
            pltpu.VMEM((seq, H), jnp.float32),       # layer0 bwd outputs
            pltpu.VMEM((seq, H), jnp.float32),       # layer1 fwd outputs
            pltpu.VMEM((seq, H), jnp.float32),       # layer1 bwd outputs
        ],
        compiler_params=pltpu.CompilerParams(
            dimension_semantics=("arbitrary",)),
    )(*args)


# --------------------------------------------------------------------------
# Params + full model forward
# --------------------------------------------------------------------------
def init_params(key, word_vocab, tag_vocab, word_dim, tag_dim, hidden_dim):
    D = word_dim + tag_dim          # LSTM hidden size == input_dim (as in the module)
    ks = jax.random.split(key, 32)
    ki = iter(ks)
    s = 0.1

    def rnd(shape):
        return (s * jax.random.normal(next(ki), shape)).astype(jnp.float32)

    params = {
        "word_emb": rnd((word_vocab, word_dim)),
        "pos_emb": rnd((tag_vocab, tag_dim)),
        "lstm": [],
        "edge": {},
    }
    # 2 layers, bidirectional; layer 0 input = D, layer 1 input = 2D
    for layer in range(2):
        din = D if layer == 0 else 2 * D
        layer_p = {}
        for d in ("f", "b"):
            layer_p[f"wih_{d}"] = rnd((din, 4 * D))
            layer_p[f"whh_{d}"] = rnd((D, 4 * D))
            layer_p[f"b_{d}"] = rnd((1, 4 * D))      # b_ih + b_hh combined
        params["lstm"].append(layer_p)

    params["edge"] = {
        "wh": rnd((2 * D, hidden_dim)),
        "wm": rnd((2 * D, hidden_dim)),
        "bm": rnd((1, hidden_dim)),
        "w1": rnd((1, hidden_dim)),
        "b1": rnd((1, 1)),
    }
    return params


def parser_forward(params, word_idx, pos_idx, true_heads=None):
    # --- embeddings (glue: gather) ---
    we = jnp.take(params["word_emb"], word_idx, axis=0)   # (seq, word_dim)
    te = jnp.take(params["pos_emb"], pos_idx, axis=0)     # (seq, tag_dim)
    x = jnp.concatenate([we, te], axis=-1).astype(jnp.float32)  # (seq, D)

    # --- fused BiLSTM(2 layers) + edge scorer (single Pallas kernel) ---
    scores = run_parser_fused(x, params["lstm"][0], params["lstm"][1],
                              params["edge"])

    # --- loss-augmented inference (glue: tiny elementwise add) ---
    if true_heads is not None:
        n = scores.shape[0]
        ones = jnp.ones((n, n), jnp.float32)
        ones = ones.at[jnp.arange(n), true_heads].set(0.0)
        scores = scores + ones
    return scores


# --------------------------------------------------------------------------
# Pure-JAX reference (for correctness check)
# --------------------------------------------------------------------------
def _lstm_dir_ref(x, wih, whh, b):
    seq = x.shape[0]
    H = whh.shape[0]
    h = jnp.zeros((1, H), jnp.float32)
    c = jnp.zeros((1, H), jnp.float32)
    outs = []
    for t in range(seq):
        gates = x[t:t + 1] @ wih + h @ whh + b
        i_g = jax.nn.sigmoid(gates[:, 0 * H:1 * H])
        f_g = jax.nn.sigmoid(gates[:, 1 * H:2 * H])
        g_g = jnp.tanh(gates[:, 2 * H:3 * H])
        o_g = jax.nn.sigmoid(gates[:, 3 * H:4 * H])
        c = f_g * c + i_g * g_g
        h = o_g * jnp.tanh(c)
        outs.append(h)
    return jnp.concatenate(outs, axis=0)


def parser_forward_ref(params, word_idx, pos_idx, true_heads=None):
    we = jnp.take(params["word_emb"], word_idx, axis=0)
    te = jnp.take(params["pos_emb"], pos_idx, axis=0)
    h = jnp.concatenate([we, te], axis=-1).astype(jnp.float32)
    for layer_p in params["lstm"]:
        fwd = _lstm_dir_ref(h, layer_p["wih_f"], layer_p["whh_f"], layer_p["b_f"])
        bwd = _lstm_dir_ref(h[::-1], layer_p["wih_b"], layer_p["whh_b"], layer_p["b_b"])[::-1]
        h = jnp.concatenate([fwd, bwd], axis=-1)
    e = params["edge"]
    head_lin = h @ e["wh"]
    mod_lin = h @ e["wm"] + e["bm"]
    t = jnp.tanh(head_lin[None, :, :] + mod_lin[:, None, :])
    scores = jnp.sum(t * e["w1"].reshape(1, 1, -1), axis=-1) + e["b1"][0, 0]
    if true_heads is not None:
        n = scores.shape[0]
        ones = jnp.ones((n, n), jnp.float32)
        ones = ones.at[jnp.arange(n), true_heads].set(0.0)
        scores = scores + ones
    return scores


# --------------------------------------------------------------------------
# main
# --------------------------------------------------------------------------
if __name__ == "__main__":
    key = jax.random.PRNGKey(0)
    k_param, k_word, k_pos, k_head = jax.random.split(key, 4)

    word_vocab_size = 100
    tag_vocab_size = 20
    word_embedding_dim = 16
    tag_embedding_dim = 16
    hidden_dim = 32
    seq = 8

    params = init_params(k_param, word_vocab_size, tag_vocab_size,
                         word_embedding_dim, tag_embedding_dim, hidden_dim)

    word_idx = jax.random.randint(k_word, (seq,), 0, word_vocab_size, dtype=jnp.int32)
    pos_idx = jax.random.randint(k_pos, (seq,), 0, tag_vocab_size, dtype=jnp.int32)
    true_heads = jax.random.randint(k_head, (seq,), 0, seq, dtype=jnp.int32)

    scores = parser_forward(params, word_idx, pos_idx, true_heads)
    scores = jax.block_until_ready(scores)

    scores_ref = parser_forward_ref(params, word_idx, pos_idx, true_heads)
    scores_ref = jax.block_until_ready(scores_ref)

    assert scores.shape == (seq, seq)
    assert jnp.allclose(scores, scores_ref, atol=1e-4, rtol=1e-4), (
        f"max abs diff = {jnp.max(jnp.abs(scores - scores_ref))}")

    print("KERNEL_OK")
</pallas_src>

<mosaic_0001>
module attributes {stable_mosaic.version = 11 : i64} {
  func.func @parser_fused_kernel(%arg0: i32, %arg1: memref<8x32xf32, #tpu.memory_space<vmem>>, %arg2: memref<32x128xf32, #tpu.memory_space<vmem>>, %arg3: memref<32x128xf32, #tpu.memory_space<vmem>>, %arg4: memref<1x128xf32, #tpu.memory_space<vmem>>, %arg5: memref<32x128xf32, #tpu.memory_space<vmem>>, %arg6: memref<32x128xf32, #tpu.memory_space<vmem>>, %arg7: memref<1x128xf32, #tpu.memory_space<vmem>>, %arg8: memref<64x128xf32, #tpu.memory_space<vmem>>, %arg9: memref<32x128xf32, #tpu.memory_space<vmem>>, %arg10: memref<1x128xf32, #tpu.memory_space<vmem>>, %arg11: memref<64x128xf32, #tpu.memory_space<vmem>>, %arg12: memref<32x128xf32, #tpu.memory_space<vmem>>, %arg13: memref<1x128xf32, #tpu.memory_space<vmem>>, %arg14: memref<64x32xf32, #tpu.memory_space<vmem>>, %arg15: memref<64x32xf32, #tpu.memory_space<vmem>>, %arg16: memref<1x32xf32, #tpu.memory_space<vmem>>, %arg17: memref<32x1xf32, #tpu.memory_space<vmem>>, %arg18: memref<1x1xf32, #tpu.memory_space<vmem>>, %arg19: memref<8x8xf32, #tpu.memory_space<vmem>>, %arg20: memref<8x128xf32, #tpu.memory_space<vmem>>, %arg21: memref<8x128xf32, #tpu.memory_space<vmem>>, %arg22: memref<1x32xf32, #tpu.memory_space<vmem>>, %arg23: memref<1x32xf32, #tpu.memory_space<vmem>>, %arg24: memref<1x32xf32, #tpu.memory_space<vmem>>, %arg25: memref<1x32xf32, #tpu.memory_space<vmem>>, %arg26: memref<8x32xf32, #tpu.memory_space<vmem>>, %arg27: memref<8x32xf32, #tpu.memory_space<vmem>>, %arg28: memref<8x32xf32, #tpu.memory_space<vmem>>, %arg29: memref<8x32xf32, #tpu.memory_space<vmem>>) attributes {dimension_semantics = [#tpu.dimension_semantics<arbitrary>], iteration_bounds = array<i64: 1>, scalar_prefetch = 0 : i64, scratch_operands = 10 : i64, tpu.core_type = #tpu.core_type<tc>, window_params = [{pipeline_mode = #tpu.pipeline_mode<synchronous>, transform_indices = @transform_0, window_bounds = array<i64: 8, 32>}, {pipeline_mode = #tpu.pipeline_mode<synchronous>, transform_indices = @transform_1, window_bounds = array<i64: 32, 128>}, {pipeline_mode = #tpu.pipeline_mode<synchronous>, transform_indices = @transform_2, window_bounds = array<i64: 32, 128>}, {pipeline_mode = #tpu.pipeline_mode<synchronous>, transform_indices = @transform_3, window_bounds = array<i64: 1, 128>}, {pipeline_mode = #tpu.pipeline_mode<synchronous>, transform_indices = @transform_4, window_bounds = array<i64: 32, 128>}, {pipeline_mode = #tpu.pipeline_mode<synchronous>, transform_indices = @transform_5, window_bounds = array<i64: 32, 128>}, {pipeline_mode = #tpu.pipeline_mode<synchronous>, transform_indices = @transform_6, window_bounds = array<i64: 1, 128>}, {pipeline_mode = #tpu.pipeline_mode<synchronous>, transform_indices = @transform_7, window_bounds = array<i64: 64, 128>}, {pipeline_mode = #tpu.pipeline_mode<synchronous>, transform_indices = @transform_8, window_bounds = array<i64: 32, 128>}, {pipeline_mode = #tpu.pipeline_mode<synchronous>, transform_indices = @transform_9, window_bounds = array<i64: 1, 128>}, {pipeline_mode = #tpu.pipeline_mode<synchronous>, transform_indices = @transform_10, window_bounds = array<i64: 64, 128>}, {pipeline_mode = #tpu.pipeline_mode<synchronous>, transform_indices = @transform_11, window_bounds = array<i64: 32, 128>}, {pipeline_mode = #tpu.pipeline_mode<synchronous>, transform_indices = @transform_12, window_bounds = array<i64: 1, 128>}, {pipeline_mode = #tpu.pipeline_mode<synchronous>, transform_indices = @transform_13, window_bounds = array<i64: 64, 32>}, {pipeline_mode = #tpu.pipeline_mode<synchronous>, transform_indices = @transform_14, window_bounds = array<i64: 64, 32>}, {pipeline_mode = #tpu.pipeline_mode<synchronous>, transform_indices = @transform_15, window_bounds = array<i64: 1, 32>}, {pipeline_mode = #tpu.pipeline_mode<synchronous>, transform_indices = @transform_16, window_bounds = array<i64: 32, 1>}, {pipeline_mode = #tpu.pipeline_mode<synchronous>, transform_indices = @transform_17, window_bounds = array<i64: 1, 1>}, {pipeline_mode = #tpu.pipeline_mode<synchronous>, transform_indices = @transform_18, window_bounds = array<i64: 8, 8>}]} {
    %c0 = arith.constant 0 : index
    %c0_0 = arith.constant 0 : index
    %0 = vector.load %arg1[%c0, %c0_0] : memref<8x32xf32, #tpu.memory_space<vmem>>, vector<8x32xf32>
    %c0_1 = arith.constant 0 : index
    %c0_2 = arith.constant 0 : index
    %1 = vector.load %arg2[%c0_1, %c0_2] : memref<32x128xf32, #tpu.memory_space<vmem>>, vector<32x128xf32>
    %cst = arith.constant dense<0.000000e+00> : vector<8x128xf32>
    %2 = tpu.matmul %0, %1, %cst {dimension_numbers = #tpu.dot_dimension_numbers<[1], [0], [0], [1], [0, 0, 1, 1], [], []>} : vector<8x32xf32>, vector<32x128xf32>, vector<8x128xf32> -> vector<8x128xf32>
    %c0_3 = arith.constant 0 : index
    %c0_4 = arith.constant 0 : index
    %3 = vector.load %arg4[%c0_3, %c0_4] : memref<1x128xf32, #tpu.memory_space<vmem>>, vector<1x128xf32>
    %4 = vector.broadcast %3 : vector<1x128xf32> to vector<8x128xf32>
    %5 = arith.addf %2, %4 : vector<8x128xf32>
    %c0_5 = arith.constant 0 : index
    %c0_6 = arith.constant 0 : index
    %6 = vector.load %arg20[%c0_5, %c0_6] : memref<8x128xf32, #tpu.memory_space<vmem>>, vector<8x128xf32>
    tpu.vector_store %arg20[%c0_5, %c0_6], %5 {strides = array<i32>} : memref<8x128xf32, #tpu.memory_space<vmem>>, vector<8x128xf32>,
    %c0_7 = arith.constant 0 : index
    %c0_8 = arith.constant 0 : index
    %7 = vector.load %arg5[%c0_7, %c0_8] : memref<32x128xf32, #tpu.memory_space<vmem>>, vector<32x128xf32>
    %cst_9 = arith.constant dense<0.000000e+00> : vector<8x128xf32>
    %8 = tpu.matmul %0, %7, %cst_9 {dimension_numbers = #tpu.dot_dimension_numbers<[1], [0], [0], [1], [0, 0, 1, 1], [], []>} : vector<8x32xf32>, vector<32x128xf32>, vector<8x128xf32> -> vector<8x128xf32>
    %c0_10 = arith.constant 0 : index
    %c0_11 = arith.constant 0 : index
    %9 = vector.load %arg7[%c0_10, %c0_11] : memref<1x128xf32, #tpu.memory_space<vmem>>, vector<1x128xf32>
    %10 = vector.broadcast %9 : vector<1x128xf32> to vector<8x128xf32>
    %11 = arith.addf %8, %10 : vector<8x128xf32>
    %c0_12 = arith.constant 0 : index
    %c0_13 = arith.constant 0 : index
    %12 = vector.load %arg21[%c0_12, %c0_13] : memref<8x128xf32, #tpu.memory_space<vmem>>, vector<8x128xf32>
    tpu.vector_store %arg21[%c0_12, %c0_13], %11 {strides = array<i32>} : memref<8x128xf32, #tpu.memory_space<vmem>>, vector<8x128xf32>,
    %cst_14 = arith.constant 0.000000e+00 : f32
    %13 = vector.broadcast %cst_14 : f32 to vector<1x32xf32>
    %c0_15 = arith.constant 0 : index
    %c0_16 = arith.constant 0 : index
    %14 = vector.load %arg22[%c0_15, %c0_16] : memref<1x32xf32, #tpu.memory_space<vmem>>, vector<1x32xf32>
    tpu.vector_store %arg22[%c0_15, %c0_16], %13 {strides = array<i32>} : memref<1x32xf32, #tpu.memory_space<vmem>>, vector<1x32xf32>,
    %cst_17 = arith.constant 0.000000e+00 : f32
    %15 = vector.broadcast %cst_17 : f32 to vector<1x32xf32>
    %c0_18 = arith.constant 0 : index
    %c0_19 = arith.constant 0 : index
    %16 = vector.load %arg23[%c0_18, %c0_19] : memref<1x32xf32, #tpu.memory_space<vmem>>, vector<1x32xf32>
    tpu.vector_store %arg23[%c0_18, %c0_19], %15 {strides = array<i32>} : memref<1x32xf32, #tpu.memory_space<vmem>>, vector<1x32xf32>,
    %cst_20 = arith.constant 0.000000e+00 : f32
    %17 = vector.broadcast %cst_20 : f32 to vector<1x32xf32>
    %c0_21 = arith.constant 0 : index
    %c0_22 = arith.constant 0 : index
    %18 = vector.load %arg24[%c0_21, %c0_22] : memref<1x32xf32, #tpu.memory_space<vmem>>, vector<1x32xf32>
    tpu.vector_store %arg24[%c0_21, %c0_22], %17 {strides = array<i32>} : memref<1x32xf32, #tpu.memory_space<vmem>>, vector<1x32xf32>,
    %cst_23 = arith.constant 0.000000e+00 : f32
    %19 = vector.broadcast %cst_23 : f32 to vector<1x32xf32>
    %c0_24 = arith.constant 0 : index
    %c0_25 = arith.constant 0 : index
    %20 = vector.load %arg25[%c0_24, %c0_25] : memref<1x32xf32, #tpu.memory_space<vmem>>, vector<1x32xf32>
    tpu.vector_store %arg25[%c0_24, %c0_25], %19 {strides = array<i32>} : memref<1x32xf32, #tpu.memory_space<vmem>>, vector<1x32xf32>,
    %c0_i32 = arith.constant 0 : i32
    %c7_i32 = arith.constant 7 : i32
    %21 = arith.subi %c7_i32, %c0_i32 : i32
    %22 = arith.index_cast %c0_i32 : i32 to index
    %c0_26 = arith.constant 0 : index
    %23 = vector.load %arg20[%22, %c0_26] : memref<8x128xf32, #tpu.memory_space<vmem>>, vector<1x128xf32>
    %c0_27 = arith.constant 0 : index
    %c0_28 = arith.constant 0 : index
    %24 = vector.load %arg22[%c0_27, %c0_28] : memref<1x32xf32, #tpu.memory_space<vmem>>, vector<1x32xf32>
    %c0_29 = arith.constant 0 : index
    %c0_30 = arith.constant 0 : index
    %25 = vector.load %arg3[%c0_29, %c0_30] : memref<32x128xf32, #tpu.memory_space<vmem>>, vector<32x128xf32>
    %cst_31 = arith.constant dense<0.000000e+00> : vector<1x128xf32>
    %26 = tpu.matmul %24, %25, %cst_31 {dimension_numbers = #tpu.dot_dimension_numbers<[1], [0], [0], [1], [0, 0, 1, 1], [], []>} : vector<1x32xf32>, vector<32x128xf32>, vector<1x128xf32> -> vector<1x128xf32>
    %27 = arith.addf %23, %26 : vector<1x128xf32>
    %28 = arith.index_cast %21 : i32 to index
    %c0_32 = arith.constant 0 : index
    %29 = vector.load %arg21[%28, %c0_32] : memref<8x128xf32, #tpu.memory_space<vmem>>, vector<1x128xf32>
    %c0_33 = arith.constant 0 : index
    %c0_34 = arith.constant 0 : index
    %30 = vector.load %arg23[%c0_33, %c0_34] : memref<1x32xf32, #tpu.memory_space<vmem>>, vector<1x32xf32>
    %c0_35 = arith.constant 0 : index
    %c0_36 = arith.constant 0 : index
    %31 = vector.load %arg6[%c0_35, %c0_36] : memref<32x128xf32, #tpu.memory_space<vmem>>, vector<32x128xf32>
    %cst_37 = arith.constant dense<0.000000e+00> : vector<1x128xf32>
    %32 = tpu.matmul %30, %31, %cst_37 {dimension_numbers = #tpu.dot_dimension_numbers<[1], [0], [0], [1], [0, 0, 1, 1], [], []>} : vector<1x32xf32>, vector<32x128xf32>, vector<1x128xf32> -> vector<1x128xf32>
    %33 = arith.addf %29, %32 : vector<1x128xf32>
    %c0_38 = arith.constant 0 : index
    %c0_39 = arith.constant 0 : index
    %34 = vector.load %arg24[%c0_38, %c0_39] : memref<1x32xf32, #tpu.memory_space<vmem>>, vector<1x32xf32>
    %35 = vector.extract_strided_slice %27 {offsets = [0, 0], sizes = [1, 32], strides = [1, 1]} : vector<1x128xf32> to vector<1x32xf32>
    %36 = arith.negf %35 : vector<1x32xf32>
    %37 = math.exp %36 : vector<1x32xf32>
    %cst_40 = arith.constant 1.000000e+00 : f32
    %38 = vector.broadcast %cst_40 : f32 to vector<1x32xf32>
    %39 = arith.addf %38, %37 : vector<1x32xf32>
    %40 = arith.divf %38, %39 : vector<1x32xf32>
    %41 = vector.extract_strided_slice %27 {offsets = [0, 32], sizes = [1, 32], strides = [1, 1]} : vector<1x128xf32> to vector<1x32xf32>
    %42 = arith.negf %41 : vector<1x32xf32>
    %43 = math.exp %42 : vector<1x32xf32>
    %cst_41 = arith.constant 1.000000e+00 : f32
    %44 = vector.broadcast %cst_41 : f32 to vector<1x32xf32>
    %45 = arith.addf %44, %43 : vector<1x32xf32>
    %46 = arith.divf %44, %45 : vector<1x32xf32>
    %47 = vector.extract_strided_slice %27 {offsets = [0, 64], sizes = [1, 32], strides = [1, 1]} : vector<1x128xf32> to vector<1x32xf32>
    %48 = math.tanh %47 : vector<1x32xf32>
    %49 = vector.extract_strided_slice %27 {offsets = [0, 96], sizes = [1, 32], strides = [1, 1]} : vector<1x128xf32> to vector<1x32xf32>
    %50 = arith.negf %49 : vector<1x32xf32>
    %51 = math.exp %50 : vector<1x32xf32>
    %cst_42 = arith.constant 1.000000e+00 : f32
    %52 = vector.broadcast %cst_42 : f32 to vector<1x32xf32>
    %53 = arith.addf %52, %51 : vector<1x32xf32>
    %54 = arith.divf %52, %53 : vector<1x32xf32>
    %55 = arith.mulf %46, %34 : vector<1x32xf32>
    %56 = arith.mulf %40, %48 : vector<1x32xf32>
    %57 = arith.addf %55, %56 : vector<1x32xf32>
    %58 = math.tanh %57 : vector<1x32xf32>
    %59 = arith.mulf %54, %58 : vector<1x32xf32>
    %c0_43 = arith.constant 0 : index
    %c0_44 = arith.constant 0 : index
    %60 = vector.load %arg25[%c0_43, %c0_44] : memref<1x32xf32, #tpu.memory_space<vmem>>, vector<1x32xf32>
    %61 = vector.extract_strided_slice %33 {offsets = [0, 0], sizes = [1, 32], strides = [1, 1]} : vector<1x128xf32> to vector<1x32xf32>
    %62 = arith.negf %61 : vector<1x32xf32>
    %63 = math.exp %62 : vector<1x32xf32>
    %cst_45 = arith.constant 1.000000e+00 : f32
    %64 = vector.broadcast %cst_45 : f32 to vector<1x32xf32>
    %65 = arith.addf %64, %63 : vector<1x32xf32>
    %66 = arith.divf %64, %65 : vector<1x32xf32>
    %67 = vector.extract_strided_slice %33 {offsets = [0, 32], sizes = [1, 32], strides = [1, 1]} : vector<1x128xf32> to vector<1x32xf32>
    %68 = arith.negf %67 : vector<1x32xf32>
    %69 = math.exp %68 : vector<1x32xf32>
    %cst_46 = arith.constant 1.000000e+00 : f32
    %70 = vector.broadcast %cst_46 : f32 to vector<1x32xf32>
    %71 = arith.addf %70, %69 : vector<1x32xf32>
    %72 = arith.divf %70, %71 : vector<1x32xf32>
    %73 = vector.extract_strided_slice %33 {offsets = [0, 64], sizes = [1, 32], strides = [1, 1]} : vector<1x128xf32> to vector<1x32xf32>
    %74 = math.tanh %73 : vector<1x32xf32>
    %75 = vector.extract_strided_slice %33 {offsets = [0, 96], sizes = [1, 32], strides = [1, 1]} : vector<1x128xf32> to vector<1x32xf32>
    %76 = arith.negf %75 : vector<1x32xf32>
    %77 = math.exp %76 : vector<1x32xf32>
    %cst_47 = arith.constant 1.000000e+00 : f32
    %78 = vector.broadcast %cst_47 : f32 to vector<1x32xf32>
    %79 = arith.addf %78, %77 : vector<1x32xf32>
    %80 = arith.divf %78, %79 : vector<1x32xf32>
    %81 = arith.mulf %72, %60 : vector<1x32xf32>
    %82 = arith.mulf %66, %74 : vector<1x32xf32>
    %83 = arith.addf %81, %82 : vector<1x32xf32>
    %84 = math.tanh %83 : vector<1x32xf32>
    %85 = arith.mulf %80, %84 : vector<1x32xf32>
    %c0_48 = arith.constant 0 : index
    %c0_49 = arith.constant 0 : index
    %86 = vector.load %arg22[%c0_48, %c0_49] : memref<1x32xf32, #tpu.memory_space<vmem>>, vector<1x32xf32>
    tpu.vector_store %arg22[%c0_48, %c0_49], %59 {strides = array<i32>} : memref<1x32xf32, #tpu.memory_space<vmem>>, vector<1x32xf32>,
    %c0_50 = arith.constant 0 : index
    %c0_51 = arith.constant 0 : index
    %87 = vector.load %arg24[%c0_50, %c0_51] : memref<1x32xf32, #tpu.memory_space<vmem>>, vector<1x32xf32>
    tpu.vector_store %arg24[%c0_50, %c0_51], %57 {strides = array<i32>} : memref<1x32xf32, #tpu.memory_space<vmem>>, vector<1x32xf32>,
    %c0_52 = arith.constant 0 : index
    %c0_53 = arith.constant 0 : index
    %88 = vector.load %arg23[%c0_52, %c0_53] : memref<1x32xf32, #tpu.memory_space<vmem>>, vector<1x32xf32>
    tpu.vector_store %arg23[%c0_52, %c0_53], %85 {strides = array<i32>} : memref<1x32xf32, #tpu.memory_space<vmem>>, vector<1x32xf32>,
    %c0_54 = arith.constant 0 : index
    %c0_55 = arith.constant 0 : index
    %89 = vector.load %arg25[%c0_54, %c0_55] : memref<1x32xf32, #tpu.memory_space<vmem>>, vector<1x32xf32>
    tpu.vector_store %arg25[%c0_54, %c0_55], %83 {strides = array<i32>} : memref<1x32xf32, #tpu.memory_space<vmem>>, vector<1x32xf32>,
    %90 = arith.index_cast %c0_i32 : i32 to index
    %c0_56 = arith.constant 0 : index
    %91 = vector.load %arg26[%90, %c0_56] : memref<8x32xf32, #tpu.memory_space<vmem>>, vector<1x32xf32>
    tpu.vector_store %arg26[%90, %c0_56], %59 {strides = array<i32>} : memref<8x32xf32, #tpu.memory_space<vmem>>, vector<1x32xf32>,
    %92 = arith.index_cast %21 : i32 to index
    %c0_57 = arith.constant 0 : index
    %93 = vector.load %arg27[%92, %c0_57] : memref<8x32xf32, #tpu.memory_space<vmem>>, vector<1x32xf32>
    tpu.vector_store %arg27[%92, %c0_57], %85 {strides = array<i32>} : memref<8x32xf32, #tpu.memory_space<vmem>>, vector<1x32xf32>,
    %c1_i32 = arith.constant 1 : i32
    %c7_i32_58 = arith.constant 7 : i32
    %94 = arith.subi %c7_i32_58, %c1_i32 : i32
    %95 = arith.index_cast %c1_i32 : i32 to index
    %c0_59 = arith.constant 0 : index
    %96 = vector.load %arg20[%95, %c0_59] : memref<8x128xf32, #tpu.memory_space<vmem>>, vector<1x128xf32>
    %c0_60 = arith.constant 0 : index
    %c0_61 = arith.constant 0 : index
    %97 = vector.load %arg22[%c0_60, %c0_61] : memref<1x32xf32, #tpu.memory_space<vmem>>, vector<1x32xf32>
    %c0_62 = arith.constant 0 : index
    %c0_63 = arith.constant 0 : index
    %98 = vector.load %arg3[%c0_62, %c0_63] : memref<32x128xf32, #tpu.memory_space<vmem>>, vector<32x128xf32>
    %cst_64 = arith.constant dense<0.000000e+00> : vector<1x128xf32>
    %99 = tpu.matmul %97, %98, %cst_64 {dimension_numbers = #tpu.dot_dimension_numbers<[1], [0], [0], [1], [0, 0, 1, 1], [], []>} : vector<1x32xf32>, vector<32x128xf32>, vector<1x128xf32> -> vector<1x128xf32>
    %100 = arith.addf %96, %99 : vector<1x128xf32>
    %101 = arith.index_cast %94 : i32 to index
    %c0_65 = arith.constant 0 : index
    %102 = vector.load %arg21[%101, %c0_65] : memref<8x128xf32, #tpu.memory_space<vmem>>, vector<1x128xf32>
    %c0_66 = arith.constant 0 : index
    %c0_67 = arith.constant 0 : index
    %103 = vector.load %arg23[%c0_66, %c0_67] : memref<1x32xf32, #tpu.memory_space<vmem>>, vector<1x32xf32>
    %c0_68 = arith.constant 0 : index
    %c0_69 = arith.constant 0 : index
    %104 = vector.load %arg6[%c0_68, %c0_69] : memref<32x128xf32, #tpu.memory_space<vmem>>, vector<32x128xf32>
    %cst_70 = arith.constant dense<0.000000e+00> : vector<1x128xf32>
    %105 = tpu.matmul %103, %104, %cst_70 {dimension_numbers = #tpu.dot_dimension_numbers<[1], [0], [0], [1], [0, 0, 1, 1], [], []>} : vector<1x32xf32>, vector<32x128xf32>, vector<1x128xf32> -> vector<1x128xf32>
    %106 = arith.addf %102, %105 : vector<1x128xf32>
    %c0_71 = arith.constant 0 : index
    %c0_72 = arith.constant 0 : index
    %107 = vector.load %arg24[%c0_71, %c0_72] : memref<1x32xf32, #tpu.memory_space<vmem>>, vector<1x32xf32>
    %108 = vector.extract_strided_slice %100 {offsets = [0, 0], sizes = [1, 32], strides = [1, 1]} : vector<1x128xf32> to vector<1x32xf32>
    %109 = arith.negf %108 : vector<1x32xf32>
    %110 = math.exp %109 : vector<1x32xf32>
    %cst_73 = arith.constant 1.000000e+00 : f32
    %111 = vector.broadcast %cst_73 : f32 to vector<1x32xf32>
    %112 = arith.addf %111, %110 : vector<1x32xf32>
    %113 = arith.divf %111, %112 : vector<1x32xf32>
    %114 = vector.extract_strided_slice %100 {offsets = [0, 32], sizes = [1, 32], strides = [1, 1]} : vector<1x128xf32> to vector<1x32xf32>
    %115 = arith.negf %114 : vector<1x32xf32>
    %116 = math.exp %115 : vector<1x32xf32>
    %cst_74 = arith.constant 1.000000e+00 : f32
    %117 = vector.broadcast %cst_74 : f32 to vector<1x32xf32>
    %118 = arith.addf %117, %116 : vector<1x32xf32>
    %119 = arith.divf %117, %118 : vector<1x32xf32>
    %120 = vector.extract_strided_slice %100 {offsets = [0, 64], sizes = [1, 32], strides = [1, 1]} : vector<1x128xf32> to vector<1x32xf32>
    %121 = math.tanh %120 : vector<1x32xf32>
    %122 = vector.extract_strided_slice %100 {offsets = [0, 96], sizes = [1, 32], strides = [1, 1]} : vector<1x128xf32> to vector<1x32xf32>
    %123 = arith.negf %122 : vector<1x32xf32>
    %124 = math.exp %123 : vector<1x32xf32>
    %cst_75 = arith.constant 1.000000e+00 : f32
    %125 = vector.broadcast %cst_75 : f32 to vector<1x32xf32>
    %126 = arith.addf %125, %124 : vector<1x32xf32>
    %127 = arith.divf %125, %126 : vector<1x32xf32>
    %128 = arith.mulf %119, %107 : vector<1x32xf32>
    %129 = arith.mulf %113, %121 : vector<1x32xf32>
    %130 = arith.addf %128, %129 : vector<1x32xf32>
    %131 = math.tanh %130 : vector<1x32xf32>
    %132 = arith.mulf %127, %131 : vector<1x32xf32>
    %c0_76 = arith.constant 0 : index
    %c0_77 = arith.constant 0 : index
    %133 = vector.load %arg25[%c0_76, %c0_77] : memref<1x32xf32, #tpu.memory_space<vmem>>, vector<1x32xf32>
    %134 = vector.extract_strided_slice %106 {offsets = [0, 0], sizes = [1, 32], strides = [1, 1]} : vector<1x128xf32> to vector<1x32xf32>
    %135 = arith.negf %134 : vector<1x32xf32>
    %136 = math.exp %135 : vector<1x32xf32>
    %cst_78 = arith.constant 1.000000e+00 : f32
    %137 = vector.broadcast %cst_78 : f32 to vector<1x32xf32>
    %138 = arith.addf %137, %136 : vector<1x32xf32>
    %139 = arith.divf %137, %138 : vector<1x32xf32>
    %140 = vector.extract_strided_slice %106 {offsets = [0, 32], sizes = [1, 32], strides = [1, 1]} : vector<1x128xf32> to vector<1x32xf32>
    %141 = arith.negf %140 : vector<1x32xf32>
    %142 = math.exp %141 : vector<1x32xf32>
    %cst_79 = arith.constant 1.000000e+00 : f32
    %143 = vector.broadcast %cst_79 : f32 to vector<1x32xf32>
    %144 = arith.addf %143, %142 : vector<1x32xf32>
    %145 = arith.divf %143, %144 : vector<1x32xf32>
    %146 = vector.extract_strided_slice %106 {offsets = [0, 64], sizes = [1, 32], strides = [1, 1]} : vector<1x128xf32> to vector<1x32xf32>
    %147 = math.tanh %146 : vector<1x32xf32>
    %148 = vector.extract_strided_slice %106 {offsets = [0, 96], sizes = [1, 32], strides = [1, 1]} : vector<1x128xf32> to vector<1x32xf32>
    %149 = arith.negf %148 : vector<1x32xf32>
    %150 = math.exp %149 : vector<1x32xf32>
    %cst_80 = arith.constant 1.000000e+00 : f32
    %151 = vector.broadcast %cst_80 : f32 to vector<1x32xf32>
    %152 = arith.addf %151, %150 : vector<1x32xf32>
    %153 = arith.divf %151, %152 : vector<1x32xf32>
    %154 = arith.mulf %145, %133 : vector<1x32xf32>
    %155 = arith.mulf %139, %147 : vector<1x32xf32>
    %156 = arith.addf %154, %155 : vector<1x32xf32>
    %157 = math.tanh %156 : vector<1x32xf32>
    %158 = arith.mulf %153, %157 : vector<1x32xf32>
    %c0_81 = arith.constant 0 : index
    %c0_82 = arith.constant 0 : index
    %159 = vector.load %arg22[%c0_81, %c0_82] : memref<1x32xf32, #tpu.memory_space<vmem>>, vector<1x32xf32>
    tpu.vector_store %arg22[%c0_81, %c0_82], %132 {strides = array<i32>} : memref<1x32xf32, #tpu.memory_space<vmem>>, vector<1x32xf32>,
    %c0_83 = arith.constant 0 : index
    %c0_84 = arith.constant 0 : index
    %160 = vector.load %arg24[%c0_83, %c0_84] : memref<1x32xf32, #tpu.memory_space<vmem>>, vector<1x32xf32>
    tpu.vector_store %arg24[%c0_83, %c0_84], %130 {strides = array<i32>} : memref<1x32xf32, #tpu.memory_space<vmem>>, vector<1x32xf32>,
    %c0_85 = arith.constant 0 : index
    %c0_86 = arith.constant 0 : index
    %161 = vector.load %arg23[%c0_85, %c0_86] : memref<1x32xf32, #tpu.memory_space<vmem>>, vector<1x32xf32>
    tpu.vector_store %arg23[%c0_85, %c0_86], %158 {strides = array<i32>} : memref<1x32xf32, #tpu.memory_space<vmem>>, vector<1x32xf32>,
    %c0_87 = arith.constant 0 : index
    %c0_88 = arith.constant 0 : index
    %162 = vector.load %arg25[%c0_87, %c0_88] : memref<1x32xf32, #tpu.memory_space<vmem>>, vector<1x32xf32>
    tpu.vector_store %arg25[%c0_87, %c0_88], %156 {strides = array<i32>} : memref<1x32xf32, #tpu.memory_space<vmem>>, vector<1x32xf32>,
    %163 = arith.index_cast %c1_i32 : i32 to index
    %c0_89 = arith.constant 0 : index
    %164 = vector.load %arg26[%163, %c0_89] : memref<8x32xf32, #tpu.memory_space<vmem>>, vector<1x32xf32>
    tpu.vector_store %arg26[%163, %c0_89], %132 {strides = array<i32>} : memref<8x32xf32, #tpu.memory_space<vmem>>, vector<1x32xf32>,
    %165 = arith.index_cast %94 : i32 to index
    %c0_90 = arith.constant 0 : index
    %166 = vector.load %arg27[%165, %c0_90] : memref<8x32xf32, #tpu.memory_space<vmem>>, vector<1x32xf32>
    tpu.vector_store %arg27[%165, %c0_90], %158 {strides = array<i32>} : memref<8x32xf32, #tpu.memory_space<vmem>>, vector<1x32xf32>,
    %c2_i32 = arith.constant 2 : i32
    %c7_i32_91 = arith.constant 7 : i32
    %167 = arith.subi %c7_i32_91, %c2_i32 : i32
    %168 = arith.index_cast %c2_i32 : i32 to index
    %c0_92 = arith.constant 0 : index
    %169 = vector.load %arg20[%168, %c0_92] : memref<8x128xf32, #tpu.memory_space<vmem>>, vector<1x128xf32>
    %c0_93 = arith.constant 0 : index
    %c0_94 = arith.constant 0 : index
    %170 = vector.load %arg22[%c0_93, %c0_94] : memref<1x32xf32, #tpu.memory_space<vmem>>, vector<1x32xf32>
    %c0_95 = arith.constant 0 : index
    %c0_96 = arith.constant 0 : index
    %171 = vector.load %arg3[%c0_95, %c0_96] : memref<32x128xf32, #tpu.memory_space<vmem>>, vector<32x128xf32>
    %cst_97 = arith.constant dense<0.000000e+00> : vector<1x128xf32>
    %172 = tpu.matmul %170, %171, %cst_97 {dimension_numbers = #tpu.dot_dimension_numbers<[1], [0], [0], [1], [0, 0, 1, 1], [], []>} : vector<1x32xf32>, vector<32x128xf32>, vector<1x128xf32> -> vector<1x128xf32>
    %173 = arith.addf %169, %172 : vector<1x128xf32>
    %174 = arith.index_cast %167 : i32 to index
    %c0_98 = arith.constant 0 : index
    %175 = vector.load %arg21[%174, %c0_98] : memref<8x128xf32, #tpu.memory_space<vmem>>, vector<1x128xf32>
    %c0_99 = arith.constant 0 : index
    %c0_100 = arith.constant 0 : index
    %176 = vector.load %arg23[%c0_99, %c0_100] : memref<1x32xf32, #tpu.memory_space<vmem>>, vector<1x32xf32>
    %c0_101 = arith.constant 0 : index
    %c0_102 = arith.constant 0 : index
    %177 = vector.load %arg6[%c0_101, %c0_102] : memref<32x128xf32, #tpu.memory_space<vmem>>, vector<32x128xf32>
    %cst_103 = arith.constant dense<0.000000e+00> : vector<1x128xf32>
    %178 = tpu.matmul %176, %177, %cst_103 {dimension_numbers = #tpu.dot_dimension_numbers<[1], [0], [0], [1], [0, 0, 1, 1], [], []>} : vector<1x32xf32>, vector<32x128xf32>, vector<1x128xf32> -> vector<1x128xf32>
    %179 = arith.addf %175, %178 : vector<1x128xf32>
    %c0_104 = arith.constant 0 : index
    %c0_105 = arith.constant 0 : index
    %180 = vector.load %arg24[%c0_104, %c0_105] : memref<1x32xf32, #tpu.memory_space<vmem>>, vector<1x32xf32>
    %181 = vector.extract_strided_slice %173 {offsets = [0, 0], sizes = [1, 32], strides = [1, 1]} : vector<1x128xf32> to vector<1x32xf32>
    %182 = arith.negf %181 : vector<1x32xf32>
    %183 = math.exp %182 : vector<1x32xf32>
    %cst_106 = arith.constant 1.000000e+00 : f32
    %184 = vector.broadcast %cst_106 : f32 to vector<1x32xf32>
    %185 = arith.addf %184, %183 : vector<1x32xf32>
    %186 = arith.divf %184, %185 : vector<1x32xf32>
    %187 = vector.extract_strided_slice %173 {offsets = [0, 32], sizes = [1, 32], strides = [1, 1]} : vector<1x128xf32> to vector<1x32xf32>
    %188 = arith.negf %187 : vector<1x32xf32>
    %189 = math.exp %188 : vector<1x32xf32>
    %cst_107 = arith.constant 1.000000e+00 : f32
    %190 = vector.broadcast %cst_107 : f32 to vector<1x32xf32>
    %191 = arith.addf %190, %189 : vector<1x32xf32>
    %192 = arith.divf %190, %191 : vector<1x32xf32>
    %193 = vector.extract_strided_slice %173 {offsets = [0, 64], sizes = [1, 32], strides = [1, 1]} : vector<1x128xf32> to vector<1x32xf32>
    %194 = math.tanh %193 : vector<1x32xf32>
    %195 = vector.extract_strided_slice %173 {offsets = [0, 96], sizes = [1, 32], strides = [1, 1]} : vector<1x128xf32> to vector<1x32xf32>
    %196 = arith.negf %195 : vector<1x32xf32>
    %197 = math.exp %196 : vector<1x32xf32>
    %cst_108 = arith.constant 1.000000e+00 : f32
    %198 = vector.broadcast %cst_108 : f32 to vector<1x32xf32>
    %199 = arith.addf %198, %197 : vector<1x32xf32>
    %200 = arith.divf %198, %199 : vector<1x32xf32>
    %201 = arith.mulf %192, %180 : vector<1x32xf32>
    %202 = arith.mulf %186, %194 : vector<1x32xf32>
    %203 = arith.addf %201, %202 : vector<1x32xf32>
    %204 = math.tanh %203 : vector<1x32xf32>
    %205 = arith.mulf %200, %204 : vector<1x32xf32>
    %c0_109 = arith.constant 0 : index
    %c0_110 = arith.constant 0 : index
    %206 = vector.load %arg25[%c0_109, %c0_110] : memref<1x32xf32, #tpu.memory_space<vmem>>, vector<1x32xf32>
    %207 = vector.extract_strided_slice %179 {offsets = [0, 0], sizes = [1, 32], strides = [1, 1]} : vector<1x128xf32> to vector<1x32xf32>
    %208 = arith.negf %207 : vector<1x32xf32>
    %209 = math.exp %208 : vector<1x32xf32>
    %cst_111 = arith.constant 1.000000e+00 : f32
    %210 = vector.broadcast %cst_111 : f32 to vector<1x32xf32>
    %211 = arith.addf %210, %209 : vector<1x32xf32>
    %212 = arith.divf %210, %211 : vector<1x32xf32>
    %213 = vector.extract_strided_slice %179 {offsets = [0, 32], sizes = [1, 32], strides = [1, 1]} : vector<1x128xf32> to vector<1x32xf32>
    %214 = arith.negf %213 : vector<1x32xf32>
    %215 = math.exp %214 : vector<1x32xf32>
    %cst_112 = arith.constant 1.000000e+00 : f32
    %216 = vector.broadcast %cst_112 : f32 to vector<1x32xf32>
    %217 = arith.addf %216, %215 : vector<1x32xf32>
    %218 = arith.divf %216, %217 : vector<1x32xf32>
    %219 = vector.extract_strided_slice %179 {offsets = [0, 64], sizes = [1, 32], strides = [1, 1]} : vector<1x128xf32> to vector<1x32xf32>
    %220 = math.tanh %219 : vector<1x32xf32>
    %221 = vector.extract_strided_slice %179 {offsets = [0, 96], sizes = [1, 32], strides = [1, 1]} : vector<1x128xf32> to vector<1x32xf32>
    %222 = arith.negf %221 : vector<1x32xf32>
    %223 = math.exp %222 : vector<1x32xf32>
    %cst_113 = arith.constant 1.000000e+00 : f32
    %224 = vector.broadcast %cst_113 : f32 to vector<1x32xf32>
    %225 = arith.addf %224, %223 : vector<1x32xf32>
    %226 = arith.divf %224, %225 : vector<1x32xf32>
    %227 = arith.mulf %218, %206 : vector<1x32xf32>
    %228 = arith.mulf %212, %220 : vector<1x32xf32>
    %229 = arith.addf %227, %228 : vector<1x32xf32>
    %230 = math.tanh %229 : vector<1x32xf32>
    %231 = arith.mulf %226, %230 : vector<1x32xf32>
    %c0_114 = arith.constant 0 : index
    %c0_115 = arith.constant 0 : index
    %232 = vector.load %arg22[%c0_114, %c0_115] : memref<1x32xf32, #tpu.memory_space<vmem>>, vector<1x32xf32>
    tpu.vector_store %arg22[%c0_114, %c0_115], %205 {strides = array<i32>} : memref<1x32xf32, #tpu.memory_space<vmem>>, vector<1x32xf32>,
    %c0_116 = arith.constant 0 : index
    %c0_117 = arith.constant 0 : index
    %233 = vector.load %arg24[%c0_116, %c0_117] : memref<1x32xf32, #tpu.memory_space<vmem>>, vector<1x32xf32>
    tpu.vector_store %arg24[%c0_116, %c0_117], %203 {strides = array<i32>} : memref<1x32xf32, #tpu.memory_space<vmem>>, vector<1x32xf32>,
    %c0_118 = arith.constant 0 : index
    %c0_119 = arith.constant 0 : index
    %234 = vector.load %arg23[%c0_118, %c0_119] : memref<1x32xf32, #tpu.memory_space<vmem>>, vector<1x32xf32>
    tpu.vector_store %arg23[%c0_118, %c0_119], %231 {strides = array<i32>} : memref<1x32xf32, #tpu.memory_space<vmem>>, vector<1x32xf32>,
    %c0_120 = arith.constant 0 : index
    %c0_121 = arith.constant 0 : index
    %235 = vector.load %arg25[%c0_120, %c0_121] : memref<1x32xf32, #tpu.memory_space<vmem>>, vector<1x32xf32>
    tpu.vector_store %arg25[%c0_120, %c0_121], %229 {strides = array<i32>} : memref<1x32xf32, #tpu.memory_space<vmem>>, vector<1x32xf32>,
    %236 = arith.index_cast %c2_i32 : i32 to index
    %c0_122 = arith.constant 0 : index
    %237 = vector.load %arg26[%236, %c0_122] : memref<8x32xf32, #tpu.memory_space<vmem>>, vector<1x32xf32>
    tpu.vector_store %arg26[%236, %c0_122], %205 {strides = array<i32>} : memref<8x32xf32, #tpu.memory_space<vmem>>, vector<1x32xf32>,
    %238 = arith.index_cast %167 : i32 to index
    %c0_123 = arith.constant 0 : index
    %239 = vector.load %arg27[%238, %c0_123] : memref<8x32xf32, #tpu.memory_space<vmem>>, vector<1x32xf32>
    tpu.vector_store %arg27[%238, %c0_123], %231 {strides = array<i32>} : memref<8x32xf32, #tpu.memory_space<vmem>>, vector<1x32xf32>,
    %c3_i32 = arith.constant 3 : i32
    %c7_i32_124 = arith.constant 7 : i32
    %240 = arith.subi %c7_i32_124, %c3_i32 : i32
    %241 = arith.index_cast %c3_i32 : i32 to index
    %c0_125 = arith.constant 0 : index
    %242 = vector.load %arg20[%241, %c0_125] : memref<8x128xf32, #tpu.memory_space<vmem>>, vector<1x128xf32>
    %c0_126 = arith.constant 0 : index
    %c0_127 = arith.constant 0 : index
    %243 = vector.load %arg22[%c0_126, %c0_127] : memref<1x32xf32, #tpu.memory_space<vmem>>, vector<1x32xf32>
    %c0_128 = arith.constant 0 : index
    %c0_129 = arith.constant 0 : index
    %244 = vector.load %arg3[%c0_128, %c0_129] : memref<32x128xf32, #tpu.memory_space<vmem>>, vector<32x128xf32>
    %cst_130 = arith.constant dense<0.000000e+00> : vector<1x128xf32>
    %245 = tpu.matmul %243, %244, %cst_130 {dimension_numbers = #tpu.dot_dimension_numbers<[1], [0], [0], [1], [0, 0, 1, 1], [], []>} : vector<1x32xf32>, vector<32x128xf32>, vector<1x128xf32> -> vector<1x128xf32>
    %246 = arith.addf %242, %245 : vector<1x128xf32>
    %247 = arith.index_cast %240 : i32 to index
    %c0_131 = arith.constant 0 : index
    %248 = vector.load %arg21[%247, %c0_131] : memref<8x128xf32, #tpu.memory_space<vmem>>, vector<1x128xf32>
    %c0_132 = arith.constant 0 : index
    %c0_133 = arith.constant 0 : index
    %249 = vector.load %arg23[%c0_132, %c0_133] : memref<1x32xf32, #tpu.memory_space<vmem>>, vector<1x32xf32>
    %c0_134 = arith.constant 0 : index
    %c0_135 = arith.constant 0 : index
    %250 = vector.load %arg6[%c0_134, %c0_135] : memref<32x128xf32, #tpu.memory_space<vmem>>, vector<32x128xf32>
    %cst_136 = arith.constant dense<0.000000e+00> : vector<1x128xf32>
    %251 = tpu.matmul %249, %250, %cst_136 {dimension_numbers = #tpu.dot_dimension_numbers<[1], [0], [0], [1], [0, 0, 1, 1], [], []>} : vector<1x32xf32>, vector<32x128xf32>, vector<1x128xf32> -> vector<1x128xf32>
    %252 = arith.addf %248, %251 : vector<1x128xf32>
    %c0_137 = arith.constant 0 : index
    %c0_138 = arith.constant 0 : index
    %253 = vector.load %arg24[%c0_137, %c0_138] : memref<1x32xf32, #tpu.memory_space<vmem>>, vector<1x32xf32>
    %254 = vector.extract_strided_slice %246 {offsets = [0, 0], sizes = [1, 32], strides = [1, 1]} : vector<1x128xf32> to vector<1x32xf32>
    %255 = arith.negf %254 : vector<1x32xf32>
    %256 = math.exp %255 : vector<1x32xf32>
    %cst_139 = arith.constant 1.000000e+00 : f32
    %257 = vector.broadcast %cst_139 : f32 to vector<1x32xf32>
    %258 = arith.addf %257, %256 : vector<1x32xf32>
    %259 = arith.divf %257, %258 : vector<1x32xf32>
    %260 = vector.extract_strided_slice %246 {offsets = [0, 32], sizes = [1, 32], strides = [1, 1]} : vector<1x128xf32> to vector<1x32xf32>
    %261 = arith.negf %260 : vector<1x32xf32>
    %262 = math.exp %261 : vector<1x32xf32>
    %cst_140 = arith.constant 1.000000e+00 : f32
    %263 = vector.broadcast %cst_140 : f32 to vector<1x32xf32>
    %264 = arith.addf %263, %262 : vector<1x32xf32>
    %265 = arith.divf %263, %264 : vector<1x32xf32>
    %266 = vector.extract_strided_slice %246 {offsets = [0, 64], sizes = [1, 32], strides = [1, 1]} : vector<1x128xf32> to vector<1x32xf32>
    %267 = math.tanh %266 : vector<1x32xf32>
    %268 = vector.extract_strided_slice %246 {offsets = [0, 96], sizes = [1, 32], strides = [1, 1]} : vector<1x128xf32> to vector<1x32xf32>
    %269 = arith.negf %268 : vector<1x32xf32>
    %270 = math.exp %269 : vector<1x32xf32>
    %cst_141 = arith.constant 1.000000e+00 : f32
    %271 = vector.broadcast %cst_141 : f32 to vector<1x32xf32>
    %272 = arith.addf %271, %270 : vector<1x32xf32>
    %273 = arith.divf %271, %272 : vector<1x32xf32>
    %274 = arith.mulf %265, %253 : vector<1x32xf32>
    %275 = arith.mulf %259, %267 : vector<1x32xf32>
    %276 = arith.addf %274, %275 : vector<1x32xf32>
    %277 = math.tanh %276 : vector<1x32xf32>
    %278 = arith.mulf %273, %277 : vector<1x32xf32>
    %c0_142 = arith.constant 0 : index
    %c0_143 = arith.constant 0 : index
    %279 = vector.load %arg25[%c0_142, %c0_143] : memref<1x32xf32, #tpu.memory_space<vmem>>, vector<1x32xf32>
    %280 = vector.extract_strided_slice %252 {offsets = [0, 0], sizes = [1, 32], strides = [1, 1]} : vector<1x128xf32> to vector<1x32xf32>
    %281 = arith.negf %280 : vector<1x32xf32>
    %282 = math.exp %281 : vector<1x32xf32>
    %cst_144 = arith.constant 1.000000e+00 : f32
    %283 = vector.broadcast %cst_144 : f32 to vector<1x32xf32>
    %284 = arith.addf %283, %282 : vector<1x32xf32>
    %285 = arith.divf %283, %284 : vector<1x32xf32>
    %286 = vector.extract_strided_slice %252 {offsets = [0, 32], sizes = [1, 32], strides = [1, 1]} : vector<1x128xf32> to vector<1x32xf32>
    %287 = arith.negf %286 : vector<1x32xf32>
    %288 = math.exp %287 : vector<1x32xf32>
    %cst_145 = arith.constant 1.000000e+00 : f32
    %289 = vector.broadcast %cst_145 : f32 to vector<1x32xf32>
    %290 = arith.addf %289, %288 : vector<1x32xf32>
    %291 = arith.divf %289, %290 : vector<1x32xf32>
    %292 = vector.extract_strided_slice %252 {offsets = [0, 64], sizes = [1, 32], strides = [1, 1]} : vector<1x128xf32> to vector<1x32xf32>
    %293 = math.tanh %292 : vector<1x32xf32>
    %294 = vector.extract_strided_slice %252 {offsets = [0, 96], sizes = [1, 32], strides = [1, 1]} : vector<1x128xf32> to vector<1x32xf32>
    %295 = arith.negf %294 : vector<1x32xf32>
    %296 = math.exp %295 : vector<1x32xf32>
    %cst_146 = arith.constant 1.000000e+00 : f32
    %297 = vector.broadcast %cst_146 : f32 to vector<1x32xf32>
    %298 = arith.addf %297, %296 : vector<1x32xf32>
    %299 = arith.divf %297, %298 : vector<1x32xf32>
    %300 = arith.mulf %291, %279 : vector<1x32xf32>
    %301 = arith.mulf %285, %293 : vector<1x32xf32>
    %302 = arith.addf %300, %301 : vector<1x32xf32>
    %303 = math.tanh %302 : vector<1x32xf32>
    %304 = arith.mulf %299, %303 : vector<1x32xf32>
    %c0_147 = arith.constant 0 : index
    %c0_148 = arith.constant 0 : index
    %305 = vector.load %arg22[%c0_147, %c0_148] : memref<1x32xf32, #tpu.memory_space<vmem>>, vector<1x32xf32>
    tpu.vector_store %arg22[%c0_147, %c0_148], %278 {strides = array<i32>} : memref<1x32xf32, #tpu.memory_space<vmem>>, vector<1x32xf32>,
    %c0_149 = arith.constant 0 : index
    %c0_150 = arith.constant 0 : index
    %306 = vector.load %arg24[%c0_149, %c0_150] : memref<1x32xf32, #tpu.memory_space<vmem>>, vector<1x32xf32>
    tpu.vector_store %arg24[%c0_149, %c0_150], %276 {strides = array<i32>} : memref<1x32xf32, #tpu.memory_space<vmem>>, vector<1x32xf32>,
    %c0_151 = arith.constant 0 : index
    %c0_152 = arith.constant 0 : index
    %307 = vector.load %arg23[%c0_151, %c0_152] : memref<1x32xf32, #tpu.memory_space<vmem>>, vector<1x32xf32>
    tpu.vector_store %arg23[%c0_151, %c0_152], %304 {strides = array<i32>} : memref<1x32xf32, #tpu.memory_space<vmem>>, vector<1x32xf32>,
    %c0_153 = arith.constant 0 : index
    %c0_154 = arith.constant 0 : index
    %308 = vector.load %arg25[%c0_153, %c0_154] : memref<1x32xf32, #tpu.memory_space<vmem>>, vector<1x32xf32>
    tpu.vector_store %arg25[%c0_153, %c0_154], %302 {strides = array<i32>} : memref<1x32xf32, #tpu.memory_space<vmem>>, vector<1x32xf32>,
    %309 = arith.index_cast %c3_i32 : i32 to index
    %c0_155 = arith.constant 0 : index
    %310 = vector.load %arg26[%309, %c0_155] : memref<8x32xf32, #tpu.memory_space<vmem>>, vector<1x32xf32>
    tpu.vector_store %arg26[%309, %c0_155], %278 {strides = array<i32>} : memref<8x32xf32, #tpu.memory_space<vmem>>, vector<1x32xf32>,
    %311 = arith.index_cast %240 : i32 to index
    %c0_156 = arith.constant 0 : index
    %312 = vector.load %arg27[%311, %c0_156] : memref<8x32xf32, #tpu.memory_space<vmem>>, vector<1x32xf32>
    tpu.vector_store %arg27[%311, %c0_156], %304 {strides = array<i32>} : memref<8x32xf32, #tpu.memory_space<vmem>>, vector<1x32xf32>,
    %c4_i32 = arith.constant 4 : i32
    %c7_i32_157 = arith.constant 7 : i32
    %313 = arith.subi %c7_i32_157, %c4_i32 : i32
    %314 = arith.index_cast %c4_i32 : i32 to index
    %c0_158 = arith.constant 0 : index
    %315 = vector.load %arg20[%314, %c0_158] : memref<8x128xf32, #tpu.memory_space<vmem>>, vector<1x128xf32>
    %c0_159 = arith.constant 0 : index
    %c0_160 = arith.constant 0 : index
    %316 = vector.load %arg22[%c0_159, %c0_160] : memref<1x32xf32, #tpu.memory_space<vmem>>, vector<1x32xf32>
    %c0_161 = arith.constant 0 : index
    %c0_162 = arith.constant 0 : index
    %317 = vector.load %arg3[%c0_161, %c0_162] : memref<32x128xf32, #tpu.memory_space<vmem>>, vector<32x128xf32>
    %cst_163 = arith.constant dense<0.000000e+00> : vector<1x128xf32>
    %318 = tpu.matmul %316, %317, %cst_163 {dimension_numbers = #tpu.dot_dimension_numbers<[1], [0], [0], [1], [0, 0, 1, 1], [], []>} : vector<1x32xf32>, vector<32x128xf32>, vector<1x128xf32> -> vector<1x128xf32>
    %319 = arith.addf %315, %318 : vector<1x128xf32>
    %320 = arith.index_cast %313 : i32 to index
    %c0_164 = arith.constant 0 : index
    %321 = vector.load %arg21[%320, %c0_164] : memref<8x128xf32, #tpu.memory_space<vmem>>, vector<1x128xf32>
    %c0_165 = arith.constant 0 : index
    %c0_166 = arith.constant 0 : index
    %322 = vector.load %arg23[%c0_165, %c0_166] : memref<1x32xf32, #tpu.memory_space<vmem>>, vector<1x32xf32>
    %c0_167 = arith.constant 0 : index
    %c0_168 = arith.constant 0 : index
    %323 = vector.load %arg6[%c0_167, %c0_168] : memref<32x128xf32, #tpu.memory_space<vmem>>, vector<32x128xf32>
    %cst_169 = arith.constant dense<0.000000e+00> : vector<1x128xf32>
    %324 = tpu.matmul %322, %323, %cst_169 {dimension_numbers = #tpu.dot_dimension_numbers<[1], [0], [0], [1], [0, 0, 1, 1], [], []>} : vector<1x32xf32>, vector<32x128xf32>, vector<1x128xf32> -> vector<1x128xf32>
    %325 = arith.addf %321, %324 : vector<1x128xf32>
    %c0_170 = arith.constant 0 : index
    %c0_171 = arith.constant 0 : index
    %326 = vector.load %arg24[%c0_170, %c0_171] : memref<1x32xf32, #tpu.memory_space<vmem>>, vector<1x32xf32>
    %327 = vector.extract_strided_slice %319 {offsets = [0, 0], sizes = [1, 32], strides = [1, 1]} : vector<1x128xf32> to vector<1x32xf32>
    %328 = arith.negf %327 : vector<1x32xf32>
    %329 = math.exp %328 : vector<1x32xf32>
    %cst_172 = arith.constant 1.000000e+00 : f32
    %330 = vector.broadcast %cst_172 : f32 to vector<1x32xf32>
    %331 = arith.addf %330, %329 : vector<1x32xf32>
    %332 = arith.divf %330, %331 : vector<1x32xf32>
    %333 = vector.extract_strided_slice %319 {offsets = [0, 32], sizes = [1, 32], strides = [1, 1]} : vector<1x128xf32> to vector<1x32xf32>
    %334 = arith.negf %333 : vector<1x32xf32>
    %335 = math.exp %334 : vector<1x32xf32>
    %cst_173 = arith.constant 1.000000e+00 : f32
    %336 = vector.broadcast %cst_173 : f32 to vector<1x32xf32>
    %337 = arith.addf %336, %335 : vector<1x32xf32>
    %338 = arith.divf %336, %337 : vector<1x32xf32>
    %339 = vector.extract_strided_slice %319 {offsets = [0, 64], sizes = [1, 32], strides = [1, 1]} : vector<1x128xf32> to vector<1x32xf32>
    %340 = math.tanh %339 : vector<1x32xf32>
    %341 = vector.extract_strided_slice %319 {offsets = [0, 96], sizes = [1, 32], strides = [1, 1]} : vector<1x128xf32> to vector<1x32xf32>
    %342 = arith.negf %341 : vector<1x32xf32>
    %343 = math.exp %342 : vector<1x32xf32>
    %cst_174 = arith.constant 1.000000e+00 : f32
    %344 = vector.broadcast %cst_174 : f32 to vector<1x32xf32>
    %345 = arith.addf %344, %343 : vector<1x32xf32>
    %346 = arith.divf %344, %345 : vector<1x32xf32>
    %347 = arith.mulf %338, %326 : vector<1x32xf32>
    %348 = arith.mulf %332, %340 : vector<1x32xf32>
    %349 = arith.addf %347, %348 : vector<1x32xf32>
    %350 = math.tanh %349 : vector<1x32xf32>
    %351 = arith.mulf %346, %350 : vector<1x32xf32>
    %c0_175 = arith.constant 0 : index
    %c0_176 = arith.constant 0 : index
    %352 = vector.load %arg25[%c0_175, %c0_176] : memref<1x32xf32, #tpu.memory_space<vmem>>, vector<1x32xf32>
    %353 = vector.extract_strided_slice %325 {offsets = [0, 0], sizes = [1, 32], strides = [1, 1]} : vector<1x128xf32> to vector<1x32xf32>
    %354 = arith.negf %353 : vector<1x32xf32>
    %355 = math.exp %354 : vector<1x32xf32>
    %cst_177 = arith.constant 1.000000e+00 : f32
    %356 = vector.broadcast %cst_177 : f32 to vector<1x32xf32>
    %357 = arith.addf %356, %355 : vector<1x32xf32>
    %358 = arith.divf %356, %357 : vector<1x32xf32>
    %359 = vector.extract_strided_slice %325 {offsets = [0, 32], sizes = [1, 32], strides = [1, 1]} : vector<1x128xf32> to vector<1x32xf32>
    %360 = arith.negf %359 : vector<1x32xf32>
    %361 = math.exp %360 : vector<1x32xf32>
    %cst_178 = arith.constant 1.000000e+00 : f32
    %362 = vector.broadcast %cst_178 : f32 to vector<1x32xf32>
    %363 = arith.addf %362, %361 : vector<1x32xf32>
    %364 = arith.divf %362, %363 : vector<1x32xf32>
    %365 = vector.extract_strided_slice %325 {offsets = [0, 64], sizes = [1, 32], strides = [1, 1]} : vector<1x128xf32> to vector<1x32xf32>
    %366 = math.tanh %365 : vector<1x32xf32>
    %367 = vector.extract_strided_slice %325 {offsets = [0, 96], sizes = [1, 32], strides = [1, 1]} : vector<1x128xf32> to vector<1x32xf32>
    %368 = arith.negf %367 : vector<1x32xf32>
    %369 = math.exp %368 : vector<1x32xf32>
    %cst_179 = arith.constant 1.000000e+00 : f32
    %370 = vector.broadcast %cst_179 : f32 to vector<1x32xf32>
    %371 = arith.addf %370, %369 : vector<1x32xf32>
    %372 = arith.divf %370, %371 : vector<1x32xf32>
    %373 = arith.mulf %364, %352 : vector<1x32xf32>
    %374 = arith.mulf %358, %366 : vector<1x32xf32>
    %375 = arith.addf %373, %374 : vector<1x32xf32>
    %376 = math.tanh %375 : vector<1x32xf32>
    %377 = arith.mulf %372, %376 : vector<1x32xf32>
    %c0_180 = arith.constant 0 : index
    %c0_181 = arith.constant 0 : index
    %378 = vector.load %arg22[%c0_180, %c0_181] : memref<1x32xf32, #tpu.memory_space<vmem>>, vector<1x32xf32>
    tpu.vector_store %arg22[%c0_180, %c0_181], %351 {strides = array<i32>} : memref<1x32xf32, #tpu.memory_space<vmem>>, vector<1x32xf32>,
    %c0_182 = arith.constant 0 : index
    %c0_183 = arith.constant 0 : index
    %379 = vector.load %arg24[%c0_182, %c0_183] : memref<1x32xf32, #tpu.memory_space<vmem>>, vector<1x32xf32>
    tpu.vector_store %arg24[%c0_182, %c0_183], %349 {strides = array<i32>} : memref<1x32xf32, #tpu.memory_space<vmem>>, vector<1x32xf32>,
    %c0_184 = arith.constant 0 : index
    %c0_185 = arith.constant 0 : index
    %380 = vector.load %arg23[%c0_184, %c0_185] : memref<1x32xf32, #tpu.memory_space<vmem>>, vector<1x32xf32>
    tpu.vector_store %arg23[%c0_184, %c0_185], %377 {strides = array<i32>} : memref<1x32xf32, #tpu.memory_space<vmem>>, vector<1x32xf32>,
    %c0_186 = arith.constant 0 : index
    %c0_187 = arith.constant 0 : index
    %381 = vector.load %arg25[%c0_186, %c0_187] : memref<1x32xf32, #tpu.memory_space<vmem>>, vector<1x32xf32>
    tpu.vector_store %arg25[%c0_186, %c0_187], %375 {strides = array<i32>} : memref<1x32xf32, #tpu.memory_space<vmem>>, vector<1x32xf32>,
    %382 = arith.index_cast %c4_i32 : i32 to index
    %c0_188 = arith.constant 0 : index
    %383 = vector.load %arg26[%382, %c0_188] : memref<8x32xf32, #tpu.memory_space<vmem>>, vector<1x32xf32>
    tpu.vector_store %arg26[%382, %c0_188], %351 {strides = array<i32>} : memref<8x32xf32, #tpu.memory_space<vmem>>, vector<1x32xf32>,
    %384 = arith.index_cast %313 : i32 to index
    %c0_189 = arith.constant 0 : index
    %385 = vector.load %arg27[%384, %c0_189] : memref<8x32xf32, #tpu.memory_space<vmem>>, vector<1x32xf32>
    tpu.vector_store %arg27[%384, %c0_189], %377 {strides = array<i32>} : memref<8x32xf32, #tpu.memory_space<vmem>>, vector<1x32xf32>,
    %c5_i32 = arith.constant 5 : i32
    %c7_i32_190 = arith.constant 7 : i32
    %386 = arith.subi %c7_i32_190, %c5_i32 : i32
    %387 = arith.index_cast %c5_i32 : i32 to index
    %c0_191 = arith.constant 0 : index
    %388 = vector.load %arg20[%387, %c0_191] : memref<8x128xf32, #tpu.memory_space<vmem>>, vector<1x128xf32>
    %c0_192 = arith.constant 0 : index
    %c0_193 = arith.constant 0 : index
    %389 = vector.load %arg22[%c0_192, %c0_193] : memref<1x32xf32, #tpu.memory_space<vmem>>, vector<1x32xf32>
    %c0_194 = arith.constant 0 : index
    %c0_195 = arith.constant 0 : index
    %390 = vector.load %arg3[%c0_194, %c0_195] : memref<32x128xf32, #tpu.memory_space<vmem>>, vector<32x128xf32>
    %cst_196 = arith.constant dense<0.000000e+00> : vector<1x128xf32>
    %391 = tpu.matmul %389, %390, %cst_196 {dimension_numbers = #tpu.dot_dimension_numbers<[1], [0], [0], [1], [0, 0, 1, 1], [], []>} : vector<1x32xf32>, vector<32x128xf32>, vector<1x128xf32> -> vector<1x128xf32>
    %392 = arith.addf %388, %391 : vector<1x128xf32>
    %393 = arith.index_cast %386 : i32 to index
    %c0_197 = arith.constant 0 : index
    %394 = vector.load %arg21[%393, %c0_197] : memref<8x128xf32, #tpu.memory_space<vmem>>, vector<1x128xf32>
    %c0_198 = arith.constant 0 : index
    %c0_199 = arith.constant 0 : index
    %395 = vector.load %arg23[%c0_198, %c0_199] : memref<1x32xf32, #tpu.memory_space<vmem>>, vector<1x32xf32>
    %c0_200 = arith.constant 0 : index
    %c0_201 = arith.constant 0 : index
    %396 = vector.load %arg6[%c0_200, %c0_201] : memref<32x128xf32, #tpu.memory_space<vmem>>, vector<32x128xf32>
    %cst_202 = arith.constant dense<0.000000e+00> : vector<1x128xf32>
    %397 = tpu.matmul %395, %396, %cst_202 {dimension_numbers = #tpu.dot_dimension_numbers<[1], [0], [0], [1], [0, 0, 1, 1], [], []>} : vector<1x32xf32>, vector<32x128xf32>, vector<1x128xf32> -> vector<1x128xf32>
    %398 = arith.addf %394, %397 : vector<1x128xf32>
    %c0_203 = arith.constant 0 : index
    %c0_204 = arith.constant 0 : index
    %399 = vector.load %arg24[%c0_203, %c0_204] : memref<1x32xf32, #tpu.memory_space<vmem>>, vector<1x32xf32>
    %400 = vector.extract_strided_slice %392 {offsets = [0, 0], sizes = [1, 32], strides = [1, 1]} : vector<1x128xf32> to vector<1x32xf32>
    %401 = arith.negf %400 : vector<1x32xf32>
    %402 = math.exp %401 : vector<1x32xf32>
    %cst_205 = arith.constant 1.000000e+00 : f32
    %403 = vector.broadcast %cst_205 : f32 to vector<1x32xf32>
    %404 = arith.addf %403, %402 : vector<1x32xf32>
    %405 = arith.divf %403, %404 : vector<1x32xf32>
    %406 = vector.extract_strided_slice %392 {offsets = [0, 32], sizes = [1, 32], strides = [1, 1]} : vector<1x128xf32> to vector<1x32xf32>
    %407 = arith.negf %406 : vector<1x32xf32>
    %408 = math.exp %407 : vector<1x32xf32>
    %cst_206 = arith.constant 1.000000e+00 : f32
    %409 = vector.broadcast %cst_206 : f32 to vector<1x32xf32>
    %410 = arith.addf %409, %408 : vector<1x32xf32>
    %411 = arith.divf %409, %410 : vector<1x32xf32>
    %412 = vector.extract_strided_slice %392 {offsets = [0, 64], sizes = [1, 32], strides = [1, 1]} : vector<1x128xf32> to vector<1x32xf32>
    %413 = math.tanh %412 : vector<1x32xf32>
    %414 = vector.extract_strided_slice %392 {offsets = [0, 96], sizes = [1, 32], strides = [1, 1]} : vector<1x128xf32> to vector<1x32xf32>
    %415 = arith.negf %414 : vector<1x32xf32>
    %416 = math.exp %415 : vector<1x32xf32>
    %cst_207 = arith.constant 1.000000e+00 : f32
    %417 = vector.broadcast %cst_207 : f32 to vector<1x32xf32>
    %418 = arith.addf %417, %416 : vector<1x32xf32>
    %419 = arith.divf %417, %418 : vector<1x32xf32>
    %420 = arith.mulf %411, %399 : vector<1x32xf32>
    %421 = arith.mulf %405, %413 : vector<1x32xf32>
    %422 = arith.addf %420, %421 : vector<1x32xf32>
    %423 = math.tanh %422 : vector<1x32xf32>
    %424 = arith.mulf %419, %423 : vector<1x32xf32>
    %c0_208 = arith.constant 0 : index
    %c0_209 = arith.constant 0 : index
    %425 = vector.load %arg25[%c0_208, %c0_209] : memref<1x32xf32, #tpu.memory_space<vmem>>, vector<1x32xf32>
    %426 = vector.extract_strided_slice %398 {offsets = [0, 0], sizes = [1, 32], strides = [1, 1]} : vector<1x128xf32> to vector<1x32xf32>
    %427 = arith.negf %426 : vector<1x32xf32>
    %428 = math.exp %427 : vector<1x32xf32>
    %cst_210 = arith.constant 1.000000e+00 : f32
    %429 = vector.broadcast %cst_210 : f32 to vector<1x32xf32>
    %430 = arith.addf %429, %428 : vector<1x32xf32>
    %431 = arith.divf %429, %430 : vector<1x32xf32>
    %432 = vector.extract_strided_slice %398 {offsets = [0, 32], sizes = [1, 32], strides = [1, 1]} : vector<1x128xf32> to vector<1x32xf32>
    %433 = arith.negf %432 : vector<1x32xf32>
    %434 = math.exp %433 : vector<1x32xf32>
    %cst_211 = arith.constant 1.000000e+00 : f32
    %435 = vector.broadcast %cst_211 : f32 to vector<1x32xf32>
    %436 = arith.addf %435, %434 : vector<1x32xf32>
    %437 = arith.divf %435, %436 : vector<1x32xf32>
    %438 = vector.extract_strided_slice %398 {offsets = [0, 64], sizes = [1, 32], strides = [1, 1]} : vector<1x128xf32> to vector<1x32xf32>
    %439 = math.tanh %438 : vector<1x32xf32>
    %440 = vector.extract_strided_slice %398 {offsets = [0, 96], sizes = [1, 32], strides = [1, 1]} : vector<1x128xf32> to vector<1x32xf32>
    %441 = arith.negf %440 : vector<1x32xf32>
    %442 = math.exp %441 : vector<1x32xf32>
    %cst_212 = arith.constant 1.000000e+00 : f32
    %443 = vector.broadcast %cst_212 : f32 to vector<1x32xf32>
    %444 = arith.addf %443, %442 : vector<1x32xf32>
    %445 = arith.divf %443, %444 : vector<1x32xf32>
    %446 = arith.mulf %437, %425 : vector<1x32xf32>
    %447 = arith.mulf %431, %439 : vector<1x32xf32>
    %448 = arith.addf %446, %447 : vector<1x32xf32>
    %449 = math.tanh %448 : vector<1x32xf32>
    %450 = arith.mulf %445, %449 : vector<1x32xf32>
    %c0_213 = arith.constant 0 : index
    %c0_214 = arith.constant 0 : index
    %451 = vector.load %arg22[%c0_213, %c0_214] : memref<1x32xf32, #tpu.memory_space<vmem>>, vector<1x32xf32>
    tpu.vector_store %arg22[%c0_213, %c0_214], %424 {strides = array<i32>} : memref<1x32xf32, #tpu.memory_space<vmem>>, vector<1x32xf32>,
    %c0_215 = arith.constant 0 : index
    %c0_216 = arith.constant 0 : index
    %452 = vector.load %arg24[%c0_215, %c0_216] : memref<1x32xf32, #tpu.memory_space<vmem>>, vector<1x32xf32>
    tpu.vector_store %arg24[%c0_215, %c0_216], %422 {strides = array<i32>} : memref<1x32xf32, #tpu.memory_space<vmem>>, vector<1x32xf32>,
    %c0_217 = arith.constant 0 : index
    %c0_218 = arith.constant 0 : index
    %453 = vector.load %arg23[%c0_217, %c0_218] : memref<1x32xf32, #tpu.memory_space<vmem>>, vector<1x32xf32>
    tpu.vector_store %arg23[%c0_217, %c0_218], %450 {strides = array<i32>} : memref<1x32xf32, #tpu.memory_space<vmem>>, vector<1x32xf32>,
    %c0_219 = arith.constant 0 : index
    %c0_220 = arith.constant 0 : index
    %454 = vector.load %arg25[%c0_219, %c0_220] : memref<1x32xf32, #tpu.memory_space<vmem>>, vector<1x32xf32>
    tpu.vector_store %arg25[%c0_219, %c0_220], %448 {strides = array<i32>} : memref<1x32xf32, #tpu.memory_space<vmem>>, vector<1x32xf32>,
    %455 = arith.index_cast %c5_i32 : i32 to index
    %c0_221 = arith.constant 0 : index
    %456 = vector.load %arg26[%455, %c0_221] : memref<8x32xf32, #tpu.memory_space<vmem>>, vector<1x32xf32>
    tpu.vector_store %arg26[%455, %c0_221], %424 {strides = array<i32>} : memref<8x32xf32, #tpu.memory_space<vmem>>, vector<1x32xf32>,
    %457 = arith.index_cast %386 : i32 to index
    %c0_222 = arith.constant 0 : index
    %458 = vector.load %arg27[%457, %c0_222] : memref<8x32xf32, #tpu.memory_space<vmem>>, vector<1x32xf32>
    tpu.vector_store %arg27[%457, %c0_222], %450 {strides = array<i32>} : memref<8x32xf32, #tpu.memory_space<vmem>>, vector<1x32xf32>,
    %c6_i32 = arith.constant 6 : i32
    %c7_i32_223 = arith.constant 7 : i32
    %459 = arith.subi %c7_i32_223, %c6_i32 : i32
    %460 = arith.index_cast %c6_i32 : i32 to index
    %c0_224 = arith.constant 0 : index
    %461 = vector.load %arg20[%460, %c0_224] : memref<8x128xf32, #tpu.memory_space<vmem>>, vector<1x128xf32>
    %c0_225 = arith.constant 0 : index
    %c0_226 = arith.constant 0 : index
    %462 = vector.load %arg22[%c0_225, %c0_226] : memref<1x32xf32, #tpu.memory_space<vmem>>, vector<1x32xf32>
    %c0_227 = arith.constant 0 : index
    %c0_228 = arith.constant 0 : index
    %463 = vector.load %arg3[%c0_227, %c0_228] : memref<32x128xf32, #tpu.memory_space<vmem>>, vector<32x128xf32>
    %cst_229 = arith.constant dense<0.000000e+00> : vector<1x128xf32>
    %464 = tpu.matmul %462, %463, %cst_229 {dimension_numbers = #tpu.dot_dimension_numbers<[1], [0], [0], [1], [0, 0, 1, 1], [], []>} : vector<1x32xf32>, vector<32x128xf32>, vector<1x128xf32> -> vector<1x128xf32>
    %465 = arith.addf %461, %464 : vector<1x128xf32>
    %466 = arith.index_cast %459 : i32 to index
    %c0_230 = arith.constant 0 : index
    %467 = vector.load %arg21[%466, %c0_230] : memref<8x128xf32, #tpu.memory_space<vmem>>, vector<1x128xf32>
    %c0_231 = arith.constant 0 : index
    %c0_232 = arith.constant 0 : index
    %468 = vector.load %arg23[%c0_231, %c0_232] : memref<1x32xf32, #tpu.memory_space<vmem>>, vector<1x32xf32>
    %c0_233 = arith.constant 0 : index
    %c0_234 = arith.constant 0 : index
    %469 = vector.load %arg6[%c0_233, %c0_234] : memref<32x128xf32, #tpu.memory_space<vmem>>, vector<32x128xf32>
    %cst_235 = arith.constant dense<0.000000e+00> : vector<1x128xf32>
    %470 = tpu.matmul %468, %469, %cst_235 {dimension_numbers = #tpu.dot_dimension_numbers<[1], [0], [0], [1], [0, 0, 1, 1], [], []>} : vector<1x32xf32>, vector<32x128xf32>, vector<1x128xf32> -> vector<1x128xf32>
    %471 = arith.addf %467, %470 : vector<1x128xf32>
    %c0_236 = arith.constant 0 : index
    %c0_237 = arith.constant 0 : index
    %472 = vector.load %arg24[%c0_236, %c0_237] : memref<1x32xf32, #tpu.memory_space<vmem>>, vector<1x32xf32>
    %473 = vector.extract_strided_slice %465 {offsets = [0, 0], sizes = [1, 32], strides = [1, 1]} : vector<1x128xf32> to vector<1x32xf32>
    %474 = arith.negf %473 : vector<1x32xf32>
    %475 = math.exp %474 : vector<1x32xf32>
    %cst_238 = arith.constant 1.000000e+00 : f32
    %476 = vector.broadcast %cst_238 : f32 to vector<1x32xf32>
    %477 = arith.addf %476, %475 : vector<1x32xf32>
    %478 = arith.divf %476, %477 : vector<1x32xf32>
    %479 = vector.extract_strided_slice %465 {offsets = [0, 32], sizes = [1, 32], strides = [1, 1]} : vector<1x128xf32> to vector<1x32xf32>
    %480 = arith.negf %479 : vector<1x32xf32>
    %481 = math.exp %480 : vector<1x32xf32>
    %cst_239 = arith.constant 1.000000e+00 : f32
    %482 = vector.broadcast %cst_239 : f32 to vector<1x32xf32>
    %483 = arith.addf %482, %481 : vector<1x32xf32>
    %484 = arith.divf %482, %483 : vector<1x32xf32>
    %485 = vector.extract_strided_slice %465 {offsets = [0, 64], sizes = [1, 32], strides = [1, 1]} : vector<1x128xf32> to vector<1x32xf32>
    %486 = math.tanh %485 : vector<1x32xf32>
    %487 = vector.extract_strided_slice %465 {offsets = [0, 96], sizes = [1, 32], strides = [1, 1]} : vector<1x128xf32> to vector<1x32xf32>
    %488 = arith.negf %487 : vector<1x32xf32>
    %489 = math.exp %488 : vector<1x32xf32>
    %cst_240 = arith.constant 1.000000e+00 : f32
    %490 = vector.broadcast %cst_240 : f32 to vector<1x32xf32>
    %491 = arith.addf %490, %489 : vector<1x32xf32>
    %492 = arith.divf %490, %491 : vector<1x32xf32>
    %493 = arith.mulf %484, %472 : vector<1x32xf32>
    %494 = arith.mulf %478, %486 : vector<1x32xf32>
    %495 = arith.addf %493, %494 : vector<1x32xf32>
    %496 = math.tanh %495 : vector<1x32xf32>
    %497 = arith.mulf %492, %496 : vector<1x32xf32>
    %c0_241 = arith.constant 0 : index
    %c0_242 = arith.constant 0 : index
    %498 = vector.load %arg25[%c0_241, %c0_242] : memref<1x32xf32, #tpu.memory_space<vmem>>, vector<1x32xf32>
    %499 = vector.extract_strided_slice %471 {offsets = [0, 0], sizes = [1, 32], strides = [1, 1]} : vector<1x128xf32> to vector<1x32xf32>
    %500 = arith.negf %499 : vector<1x32xf32>
    %501 = math.exp %500 : vector<1x32xf32>
    %cst_243 = arith.constant 1.000000e+00 : f32
    %502 = vector.broadcast %cst_243 : f32 to vector<1x32xf32>
    %503 = arith.addf %502, %501 : vector<1x32xf32>
    %504 = arith.divf %502, %503 : vector<1x32xf32>
    %505 = vector.extract_strided_slice %471 {offsets = [0, 32], sizes = [1, 32], strides = [1, 1]} : vector<1x128xf32> to vector<1x32xf32>
    %506 = arith.negf %505 : vector<1x32xf32>
    %507 = math.exp %506 : vector<1x32xf32>
    %cst_244 = arith.constant 1.000000e+00 : f32
    %508 = vector.broadcast %cst_244 : f32 to vector<1x32xf32>
    %509 = arith.addf %508, %507 : vector<1x32xf32>
    %510 = arith.divf %508, %509 : vector<1x32xf32>
    %511 = vector.extract_strided_slice %471 {offsets = [0, 64], sizes = [1, 32], strides = [1, 1]} : vector<1x128xf32> to vector<1x32xf32>
    %512 = math.tanh %511 : vector<1x32xf32>
    %513 = vector.extract_strided_slice %471 {offsets = [0, 96], sizes = [1, 32], strides = [1, 1]} : vector<1x128xf32> to vector<1x32xf32>
    %514 = arith.negf %513 : vector<1x32xf32>
    %515 = math.exp %514 : vector<1x32xf32>
    %cst_245 = arith.constant 1.000000e+00 : f32
    %516 = vector.broadcast %cst_245 : f32 to vector<1x32xf32>
    %517 = arith.addf %516, %515 : vector<1x32xf32>
    %518 = arith.divf %516, %517 : vector<1x32xf32>
    %519 = arith.mulf %510, %498 : vector<1x32xf32>
    %520 = arith.mulf %504, %512 : vector<1x32xf32>
    %521 = arith.addf %519, %520 : vector<1x32xf32>
    %522 = math.tanh %521 : vector<1x32xf32>
    %523 = arith.mulf %518, %522 : vector<1x32xf32>
    %c0_246 = arith.constant 0 : index
    %c0_247 = arith.constant 0 : index
    %524 = vector.load %arg22[%c0_246, %c0_247] : memref<1x32xf32, #tpu.memory_space<vmem>>, vector<1x32xf32>
    tpu.vector_store %arg22[%c0_246, %c0_247], %497 {strides = array<i32>} : memref<1x32xf32, #tpu.memory_space<vmem>>, vector<1x32xf32>,
    %c0_248 = arith.constant 0 : index
    %c0_249 = arith.constant 0 : index
    %525 = vector.load %arg24[%c0_248, %c0_249] : memref<1x32xf32, #tpu.memory_space<vmem>>, vector<1x32xf32>
    tpu.vector_store %arg24[%c0_248, %c0_249], %495 {strides = array<i32>} : memref<1x32xf32, #tpu.memory_space<vmem>>, vector<1x32xf32>,
    %c0_250 = arith.constant 0 : index
    %c0_251 = arith.constant 0 : index
    %526 = vector.load %arg23[%c0_250, %c0_251] : memref<1x32xf32, #tpu.memory_space<vmem>>, vector<1x32xf32>
    tpu.vector_store %arg23[%c0_250, %c0_251], %523 {strides = array<i32>} : memref<1x32xf32, #tpu.memory_space<vmem>>, vector<1x32xf32>,
    %c0_252 = arith.constant 0 : index
    %c0_253 = arith.constant 0 : index
    %527 = vector.load %arg25[%c0_252, %c0_253] : memref<1x32xf32, #tpu.memory_space<vmem>>, vector<1x32xf32>
    tpu.vector_store %arg25[%c0_252, %c0_253], %521 {strides = array<i32>} : memref<1x32xf32, #tpu.memory_space<vmem>>, vector<1x32xf32>,
    %528 = arith.index_cast %c6_i32 : i32 to index
    %c0_254 = arith.constant 0 : index
    %529 = vector.load %arg26[%528, %c0_254] : memref<8x32xf32, #tpu.memory_space<vmem>>, vector<1x32xf32>
    tpu.vector_store %arg26[%528, %c0_254], %497 {strides = array<i32>} : memref<8x32xf32, #tpu.memory_space<vmem>>, vector<1x32xf32>,
    %530 = arith.index_cast %459 : i32 to index
    %c0_255 = arith.constant 0 : index
    %531 = vector.load %arg27[%530, %c0_255] : memref<8x32xf32, #tpu.memory_space<vmem>>, vector<1x32xf32>
    tpu.vector_store %arg27[%530, %c0_255], %523 {strides = array<i32>} : memref<8x32xf32, #tpu.memory_space<vmem>>, vector<1x32xf32>,
    %c7_i32_256 = arith.constant 7 : i32
    %c7_i32_257 = arith.constant 7 : i32
    %532 = arith.subi %c7_i32_257, %c7_i32_256 : i32
    %533 = arith.index_cast %c7_i32_256 : i32 to index
    %c0_258 = arith.constant 0 : index
    %534 = vector.load %arg20[%533, %c0_258] : memref<8x128xf32, #tpu.memory_space<vmem>>, vector<1x128xf32>
    %c0_259 = arith.constant 0 : index
    %c0_260 = arith.constant 0 : index
    %535 = vector.load %arg22[%c0_259, %c0_260] : memref<1x32xf32, #tpu.memory_space<vmem>>, vector<1x32xf32>
    %c0_261 = arith.constant 0 : index
    %c0_262 = arith.constant 0 : index
    %536 = vector.load %arg3[%c0_261, %c0_262] : memref<32x128xf32, #tpu.memory_space<vmem>>, vector<32x128xf32>
    %cst_263 = arith.constant dense<0.000000e+00> : vector<1x128xf32>
    %537 = tpu.matmul %535, %536, %cst_263 {dimension_numbers = #tpu.dot_dimension_numbers<[1], [0], [0], [1], [0, 0, 1, 1], [], []>} : vector<1x32xf32>, vector<32x128xf32>, vector<1x128xf32> -> vector<1x128xf32>
    %538 = arith.addf %534, %537 : vector<1x128xf32>
    %539 = arith.index_cast %532 : i32 to index
    %c0_264 = arith.constant 0 : index
    %540 = vector.load %arg21[%539, %c0_264] : memref<8x128xf32, #tpu.memory_space<vmem>>, vector<1x128xf32>
    %c0_265 = arith.constant 0 : index
    %c0_266 = arith.constant 0 : index
    %541 = vector.load %arg23[%c0_265, %c0_266] : memref<1x32xf32, #tpu.memory_space<vmem>>, vector<1x32xf32>
    %c0_267 = arith.constant 0 : index
    %c0_268 = arith.constant 0 : index
    %542 = vector.load %arg6[%c0_267, %c0_268] : memref<32x128xf32, #tpu.memory_space<vmem>>, vector<32x128xf32>
    %cst_269 = arith.constant dense<0.000000e+00> : vector<1x128xf32>
    %543 = tpu.matmul %541, %542, %cst_269 {dimension_numbers = #tpu.dot_dimension_numbers<[1], [0], [0], [1], [0, 0, 1, 1], [], []>} : vector<1x32xf32>, vector<32x128xf32>, vector<1x128xf32> -> vector<1x128xf32>
    %544 = arith.addf %540, %543 : vector<1x128xf32>
    %c0_270 = arith.constant 0 : index
    %c0_271 = arith.constant 0 : index
    %545 = vector.load %arg24[%c0_270, %c0_271] : memref<1x32xf32, #tpu.memory_space<vmem>>, vector<1x32xf32>
    %546 = vector.extract_strided_slice %538 {offsets = [0, 0], sizes = [1, 32], strides = [1, 1]} : vector<1x128xf32> to vector<1x32xf32>
    %547 = arith.negf %546 : vector<1x32xf32>
    %548 = math.exp %547 : vector<1x32xf32>
    %cst_272 = arith.constant 1.000000e+00 : f32
    %549 = vector.broadcast %cst_272 : f32 to vector<1x32xf32>
    %550 = arith.addf %549, %548 : vector<1x32xf32>
    %551 = arith.divf %549, %550 : vector<1x32xf32>
    %552 = vector.extract_strided_slice %538 {offsets = [0, 32], sizes = [1, 32], strides = [1, 1]} : vector<1x128xf32> to vector<1x32xf32>
    %553 = arith.negf %552 : vector<1x32xf32>
    %554 = math.exp %553 : vector<1x32xf32>
    %cst_273 = arith.constant 1.000000e+00 : f32
    %555 = vector.broadcast %cst_273 : f32 to vector<1x32xf32>
    %556 = arith.addf %555, %554 : vector<1x32xf32>
    %557 = arith.divf %555, %556 : vector<1x32xf32>
    %558 = vector.extract_strided_slice %538 {offsets = [0, 64], sizes = [1, 32], strides = [1, 1]} : vector<1x128xf32> to vector<1x32xf32>
    %559 = math.tanh %558 : vector<1x32xf32>
    %560 = vector.extract_strided_slice %538 {offsets = [0, 96], sizes = [1, 32], strides = [1, 1]} : vector<1x128xf32> to vector<1x32xf32>
    %561 = arith.negf %560 : vector<1x32xf32>
    %562 = math.exp %561 : vector<1x32xf32>
    %cst_274 = arith.constant 1.000000e+00 : f32
    %563 = vector.broadcast %cst_274 : f32 to vector<1x32xf32>
    %564 = arith.addf %563, %562 : vector<1x32xf32>
    %565 = arith.divf %563, %564 : vector<1x32xf32>
    %566 = arith.mulf %557, %545 : vector<1x32xf32>
    %567 = arith.mulf %551, %559 : vector<1x32xf32>
    %568 = arith.addf %566, %567 : vector<1x32xf32>
    %569 = math.tanh %568 : vector<1x32xf32>
    %570 = arith.mulf %565, %569 : vector<1x32xf32>
    %c0_275 = arith.constant 0 : index
    %c0_276 = arith.constant 0 : index
    %571 = vector.load %arg25[%c0_275, %c0_276] : memref<1x32xf32, #tpu.memory_space<vmem>>, vector<1x32xf32>
    %572 = vector.extract_strided_slice %544 {offsets = [0, 0], sizes = [1, 32], strides = [1, 1]} : vector<1x128xf32> to vector<1x32xf32>
    %573 = arith.negf %572 : vector<1x32xf32>
    %574 = math.exp %573 : vector<1x32xf32>
    %cst_277 = arith.constant 1.000000e+00 : f32
    %575 = vector.broadcast %cst_277 : f32 to vector<1x32xf32>
    %576 = arith.addf %575, %574 : vector<1x32xf32>
    %577 = arith.divf %575, %576 : vector<1x32xf32>
    %578 = vector.extract_strided_slice %544 {offsets = [0, 32], sizes = [1, 32], strides = [1, 1]} : vector<1x128xf32> to vector<1x32xf32>
    %579 = arith.negf %578 : vector<1x32xf32>
    %580 = math.exp %579 : vector<1x32xf32>
    %cst_278 = arith.constant 1.000000e+00 : f32
    %581 = vector.broadcast %cst_278 : f32 to vector<1x32xf32>
    %582 = arith.addf %581, %580 : vector<1x32xf32>
    %583 = arith.divf %581, %582 : vector<1x32xf32>
    %584 = vector.extract_strided_slice %544 {offsets = [0, 64], sizes = [1, 32], strides = [1, 1]} : vector<1x128xf32> to vector<1x32xf32>
    %585 = math.tanh %584 : vector<1x32xf32>
    %586 = vector.extract_strided_slice %544 {offsets = [0, 96], sizes = [1, 32], strides = [1, 1]} : vector<1x128xf32> to vector<1x32xf32>
    %587 = arith.negf %586 : vector<1x32xf32>
    %588 = math.exp %587 : vector<1x32xf32>
    %cst_279 = arith.constant 1.000000e+00 : f32
    %589 = vector.broadcast %cst_279 : f32 to vector<1x32xf32>
    %590 = arith.addf %589, %588 : vector<1x32xf32>
    %591 = arith.divf %589, %590 : vector<1x32xf32>
    %592 = arith.mulf %583, %571 : vector<1x32xf32>
    %593 = arith.mulf %577, %585 : vector<1x32xf32>
    %594 = arith.addf %592, %593 : vector<1x32xf32>
    %595 = math.tanh %594 : vector<1x32xf32>
    %596 = arith.mulf %591, %595 : vector<1x32xf32>
    %c0_280 = arith.constant 0 : index
    %c0_281 = arith.constant 0 : index
    %597 = vector.load %arg22[%c0_280, %c0_281] : memref<1x32xf32, #tpu.memory_space<vmem>>, vector<1x32xf32>
    tpu.vector_store %arg22[%c0_280, %c0_281], %570 {strides = array<i32>} : memref<1x32xf32, #tpu.memory_space<vmem>>, vector<1x32xf32>,
    %c0_282 = arith.constant 0 : index
    %c0_283 = arith.constant 0 : index
    %598 = vector.load %arg24[%c0_282, %c0_283] : memref<1x32xf32, #tpu.memory_space<vmem>>, vector<1x32xf32>
    tpu.vector_store %arg24[%c0_282, %c0_283], %568 {strides = array<i32>} : memref<1x32xf32, #tpu.memory_space<vmem>>, vector<1x32xf32>,
    %c0_284 = arith.constant 0 : index
    %c0_285 = arith.constant 0 : index
    %599 = vector.load %arg23[%c0_284, %c0_285] : memref<1x32xf32, #tpu.memory_space<vmem>>, vector<1x32xf32>
    tpu.vector_store %arg23[%c0_284, %c0_285], %596 {strides = array<i32>} : memref<1x32xf32, #tpu.memory_space<vmem>>, vector<1x32xf32>,
    %c0_286 = arith.constant 0 : index
    %c0_287 = arith.constant 0 : index
    %600 = vector.load %arg25[%c0_286, %c0_287] : memref<1x32xf32, #tpu.memory_space<vmem>>, vector<1x32xf32>
    tpu.vector_store %arg25[%c0_286, %c0_287], %594 {strides = array<i32>} : memref<1x32xf32, #tpu.memory_space<vmem>>, vector<1x32xf32>,
    %601 = arith.index_cast %c7_i32_256 : i32 to index
    %c0_288 = arith.constant 0 : index
    %602 = vector.load %arg26[%601, %c0_288] : memref<8x32xf32, #tpu.memory_space<vmem>>, vector<1x32xf32>
    tpu.vector_store %arg26[%601, %c0_288], %570 {strides = array<i32>} : memref<8x32xf32, #tpu.memory_space<vmem>>, vector<1x32xf32>,
    %603 = arith.index_cast %532 : i32 to index
    %c0_289 = arith.constant 0 : index
    %604 = vector.load %arg27[%603, %c0_289] : memref<8x32xf32, #tpu.memory_space<vmem>>, vector<1x32xf32>
    tpu.vector_store %arg27[%603, %c0_289], %596 {strides = array<i32>} : memref<8x32xf32, #tpu.memory_space<vmem>>, vector<1x32xf32>,
    %c8_i32 = arith.constant 8 : i32
    %c0_290 = arith.constant 0 : index
    %c0_291 = arith.constant 0 : index
    %605 = vector.load %arg26[%c0_290, %c0_291] : memref<8x32xf32, #tpu.memory_space<vmem>>, vector<8x32xf32>
    %c0_292 = arith.constant 0 : index
    %c0_293 = arith.constant 0 : index
    %606 = vector.load %arg27[%c0_292, %c0_293] : memref<8x32xf32, #tpu.memory_space<vmem>>, vector<8x32xf32>
    %607 = tpu.concatenate %605, %606 in 1 : vector<8x32xf32>, vector<8x32xf32> -> vector<8x64xf32>
    %c0_294 = arith.constant 0 : index
    %c0_295 = arith.constant 0 : index
    %608 = vector.load %arg8[%c0_294, %c0_295] : memref<64x128xf32, #tpu.memory_space<vmem>>, vector<64x128xf32>
    %cst_296 = arith.constant dense<0.000000e+00> : vector<8x128xf32>
    %609 = tpu.matmul %607, %608, %cst_296 {dimension_numbers = #tpu.dot_dimension_numbers<[1], [0], [0], [1], [0, 0, 1, 1], [], []>} : vector<8x64xf32>, vector<64x128xf32>, vector<8x128xf32> -> vector<8x128xf32>
    %c0_297 = arith.constant 0 : index
    %c0_298 = arith.constant 0 : index
    %610 = vector.load %arg10[%c0_297, %c0_298] : memref<1x128xf32, #tpu.memory_space<vmem>>, vector<1x128xf32>
    %611 = vector.broadcast %610 : vector<1x128xf32> to vector<8x128xf32>
    %612 = arith.addf %609, %611 : vector<8x128xf32>
    %c0_299 = arith.constant 0 : index
    %c0_300 = arith.constant 0 : index
    %613 = vector.load %arg20[%c0_299, %c0_300] : memref<8x128xf32, #tpu.memory_space<vmem>>, vector<8x128xf32>
    tpu.vector_store %arg20[%c0_299, %c0_300], %612 {strides = array<i32>} : memref<8x128xf32, #tpu.memory_space<vmem>>, vector<8x128xf32>,
    %c0_301 = arith.constant 0 : index
    %c0_302 = arith.constant 0 : index
    %614 = vector.load %arg11[%c0_301, %c0_302] : memref<64x128xf32, #tpu.memory_space<vmem>>, vector<64x128xf32>
    %cst_303 = arith.constant dense<0.000000e+00> : vector<8x128xf32>
    %615 = tpu.matmul %607, %614, %cst_303 {dimension_numbers = #tpu.dot_dimension_numbers<[1], [0], [0], [1], [0, 0, 1, 1], [], []>} : vector<8x64xf32>, vector<64x128xf32>, vector<8x128xf32> -> vector<8x128xf32>
    %c0_304 = arith.constant 0 : index
    %c0_305 = arith.constant 0 : index
    %616 = vector.load %arg13[%c0_304, %c0_305] : memref<1x128xf32, #tpu.memory_space<vmem>>, vector<1x128xf32>
    %617 = vector.broadcast %616 : vector<1x128xf32> to vector<8x128xf32>
    %618 = arith.addf %615, %617 : vector<8x128xf32>
    %c0_306 = arith.constant 0 : index
    %c0_307 = arith.constant 0 : index
    %619 = vector.load %arg21[%c0_306, %c0_307] : memref<8x128xf32, #tpu.memory_space<vmem>>, vector<8x128xf32>
    tpu.vector_store %arg21[%c0_306, %c0_307], %618 {strides = array<i32>} : memref<8x128xf32, #tpu.memory_space<vmem>>, vector<8x128xf32>,
    %cst_308 = arith.constant 0.000000e+00 : f32
    %620 = vector.broadcast %cst_308 : f32 to vector<1x32xf32>
    %c0_309 = arith.constant 0 : index
    %c0_310 = arith.constant 0 : index
    %621 = vector.load %arg22[%c0_309, %c0_310] : memref<1x32xf32, #tpu.memory_space<vmem>>, vector<1x32xf32>
    tpu.vector_store %arg22[%c0_309, %c0_310], %620 {strides = array<i32>} : memref<1x32xf32, #tpu.memory_space<vmem>>, vector<1x32xf32>,
    %cst_311 = arith.constant 0.000000e+00 : f32
    %622 = vector.broadcast %cst_311 : f32 to vector<1x32xf32>
    %c0_312 = arith.constant 0 : index
    %c0_313 = arith.constant 0 : index
    %623 = vector.load %arg23[%c0_312, %c0_313] : memref<1x32xf32, #tpu.memory_space<vmem>>, vector<1x32xf32>
    tpu.vector_store %arg23[%c0_312, %c0_313], %622 {strides = array<i32>} : memref<1x32xf32, #tpu.memory_space<vmem>>, vector<1x32xf32>,
    %cst_314 = arith.constant 0.000000e+00 : f32
    %624 = vector.broadcast %cst_314 : f32 to vector<1x32xf32>
    %c0_315 = arith.constant 0 : index
    %c0_316 = arith.constant 0 : index
    %625 = vector.load %arg24[%c0_315, %c0_316] : memref<1x32xf32, #tpu.memory_space<vmem>>, vector<1x32xf32>
    tpu.vector_store %arg24[%c0_315, %c0_316], %624 {strides = array<i32>} : memref<1x32xf32, #tpu.memory_space<vmem>>, vector<1x32xf32>,
    %cst_317 = arith.constant 0.000000e+00 : f32
    %626 = vector.broadcast %cst_317 : f32 to vector<1x32xf32>
    %c0_318 = arith.constant 0 : index
    %c0_319 = arith.constant 0 : index
    %627 = vector.load %arg25[%c0_318, %c0_319] : memref<1x32xf32, #tpu.memory_space<vmem>>, vector<1x32xf32>
    tpu.vector_store %arg25[%c0_318, %c0_319], %626 {strides = array<i32>} : memref<1x32xf32, #tpu.memory_space<vmem>>, vector<1x32xf32>,
    %c0_i32_320 = arith.constant 0 : i32
    %c7_i32_321 = arith.constant 7 : i32
    %628 = arith.subi %c7_i32_321, %c0_i32_320 : i32
    %629 = arith.index_cast %c0_i32_320 : i32 to index
    %c0_322 = arith.constant 0 : index
    %630 = vector.load %arg20[%629, %c0_322] : memref<8x128xf32, #tpu.memory_space<vmem>>, vector<1x128xf32>
    %c0_323 = arith.constant 0 : index
    %c0_324 = arith.constant 0 : index
    %631 = vector.load %arg22[%c0_323, %c0_324] : memref<1x32xf32, #tpu.memory_space<vmem>>, vector<1x32xf32>
    %c0_325 = arith.constant 0 : index
    %c0_326 = arith.constant 0 : index
    %632 = vector.load %arg9[%c0_325, %c0_326] : memref<32x128xf32, #tpu.memory_space<vmem>>, vector<32x128xf32>
    %cst_327 = arith.constant dense<0.000000e+00> : vector<1x128xf32>
    %633 = tpu.matmul %631, %632, %cst_327 {dimension_numbers = #tpu.dot_dimension_numbers<[1], [0], [0], [1], [0, 0, 1, 1], [], []>} : vector<1x32xf32>, vector<32x128xf32>, vector<1x128xf32> -> vector<1x128xf32>
    %634 = arith.addf %630, %633 : vector<1x128xf32>
    %635 = arith.index_cast %628 : i32 to index
    %c0_328 = arith.constant 0 : index
    %636 = vector.load %arg21[%635, %c0_328] : memref<8x128xf32, #tpu.memory_space<vmem>>, vector<1x128xf32>
    %c0_329 = arith.constant 0 : index
    %c0_330 = arith.constant 0 : index
    %637 = vector.load %arg23[%c0_329, %c0_330] : memref<1x32xf32, #tpu.memory_space<vmem>>, vector<1x32xf32>
    %c0_331 = arith.constant 0 : index
    %c0_332 = arith.constant 0 : index
    %638 = vector.load %arg12[%c0_331, %c0_332] : memref<32x128xf32, #tpu.memory_space<vmem>>, vector<32x128xf32>
    %cst_333 = arith.constant dense<0.000000e+00> : vector<1x128xf32>
    %639 = tpu.matmul %637, %638, %cst_333 {dimension_numbers = #tpu.dot_dimension_numbers<[1], [0], [0], [1], [0, 0, 1, 1], [], []>} : vector<1x32xf32>, vector<32x128xf32>, vector<1x128xf32> -> vector<1x128xf32>
    %640 = arith.addf %636, %639 : vector<1x128xf32>
    %c0_334 = arith.constant 0 : index
    %c0_335 = arith.constant 0 : index
    %641 = vector.load %arg24[%c0_334, %c0_335] : memref<1x32xf32, #tpu.memory_space<vmem>>, vector<1x32xf32>
    %642 = vector.extract_strided_slice %634 {offsets = [0, 0], sizes = [1, 32], strides = [1, 1]} : vector<1x128xf32> to vector<1x32xf32>
    %643 = arith.negf %642 : vector<1x32xf32>
    %644 = math.exp %643 : vector<1x32xf32>
    %cst_336 = arith.constant 1.000000e+00 : f32
    %645 = vector.broadcast %cst_336 : f32 to vector<1x32xf32>
    %646 = arith.addf %645, %644 : vector<1x32xf32>
    %647 = arith.divf %645, %646 : vector<1x32xf32>
    %648 = vector.extract_strided_slice %634 {offsets = [0, 32], sizes = [1, 32], strides = [1, 1]} : vector<1x128xf32> to vector<1x32xf32>
    %649 = arith.negf %648 : vector<1x32xf32>
    %650 = math.exp %649 : vector<1x32xf32>
    %cst_337 = arith.constant 1.000000e+00 : f32
    %651 = vector.broadcast %cst_337 : f32 to vector<1x32xf32>
    %652 = arith.addf %651, %650 : vector<1x32xf32>
    %653 = arith.divf %651, %652 : vector<1x32xf32>
    %654 = vector.extract_strided_slice %634 {offsets = [0, 64], sizes = [1, 32], strides = [1, 1]} : vector<1x128xf32> to vector<1x32xf32>
    %655 = math.tanh %654 : vector<1x32xf32>
    %656 = vector.extract_strided_slice %634 {offsets = [0, 96], sizes = [1, 32], strides = [1, 1]} : vector<1x128xf32> to vector<1x32xf32>
    %657 = arith.negf %656 : vector<1x32xf32>
    %658 = math.exp %657 : vector<1x32xf32>
    %cst_338 = arith.constant 1.000000e+00 : f32
    %659 = vector.broadcast %cst_338 : f32 to vector<1x32xf32>
    %660 = arith.addf %659, %658 : vector<1x32xf32>
    %661 = arith.divf %659, %660 : vector<1x32xf32>
    %662 = arith.mulf %653, %641 : vector<1x32xf32>
    %663 = arith.mulf %647, %655 : vector<1x32xf32>
    %664 = arith.addf %662, %663 : vector<1x32xf32>
    %665 = math.tanh %664 : vector<1x32xf32>
    %666 = arith.mulf %661, %665 : vector<1x32xf32>
    %c0_339 = arith.constant 0 : index
    %c0_340 = arith.constant 0 : index
    %667 = vector.load %arg25[%c0_339, %c0_340] : memref<1x32xf32, #tpu.memory_space<vmem>>, vector<1x32xf32>
    %668 = vector.extract_strided_slice %640 {offsets = [0, 0], sizes = [1, 32], strides = [1, 1]} : vector<1x128xf32> to vector<1x32xf32>
    %669 = arith.negf %668 : vector<1x32xf32>
    %670 = math.exp %669 : vector<1x32xf32>
    %cst_341 = arith.constant 1.000000e+00 : f32
    %671 = vector.broadcast %cst_341 : f32 to vector<1x32xf32>
    %672 = arith.addf %671, %670 : vector<1x32xf32>
    %673 = arith.divf %671, %672 : vector<1x32xf32>
    %674 = vector.extract_strided_slice %640 {offsets = [0, 32], sizes = [1, 32], strides = [1, 1]} : vector<1x128xf32> to vector<1x32xf32>
    %675 = arith.negf %674 : vector<1x32xf32>
    %676 = math.exp %675 : vector<1x32xf32>
    %cst_342 = arith.constant 1.000000e+00 : f32
    %677 = vector.broadcast %cst_342 : f32 to vector<1x32xf32>
    %678 = arith.addf %677, %676 : vector<1x32xf32>
    %679 = arith.divf %677, %678 : vector<1x32xf32>
    %680 = vector.extract_strided_slice %640 {offsets = [0, 64], sizes = [1, 32], strides = [1, 1]} : vector<1x128xf32> to vector<1x32xf32>
    %681 = math.tanh %680 : vector<1x32xf32>
    %682 = vector.extract_strided_slice %640 {offsets = [0, 96], sizes = [1, 32], strides = [1, 1]} : vector<1x128xf32> to vector<1x32xf32>
    %683 = arith.negf %682 : vector<1x32xf32>
    %684 = math.exp %683 : vector<1x32xf32>
    %cst_343 = arith.constant 1.000000e+00 : f32
    %685 = vector.broadcast %cst_343 : f32 to vector<1x32xf32>
    %686 = arith.addf %685, %684 : vector<1x32xf32>
    %687 = arith.divf %685, %686 : vector<1x32xf32>
    %688 = arith.mulf %679, %667 : vector<1x32xf32>
    %689 = arith.mulf %673, %681 : vector<1x32xf32>
    %690 = arith.addf %688, %689 : vector<1x32xf32>
    %691 = math.tanh %690 : vector<1x32xf32>
    %692 = arith.mulf %687, %691 : vector<1x32xf32>
    %c0_344 = arith.constant 0 : index
    %c0_345 = arith.constant 0 : index
    %693 = vector.load %arg22[%c0_344, %c0_345] : memref<1x32xf32, #tpu.memory_space<vmem>>, vector<1x32xf32>
    tpu.vector_store %arg22[%c0_344, %c0_345], %666 {strides = array<i32>} : memref<1x32xf32, #tpu.memory_space<vmem>>, vector<1x32xf32>,
    %c0_346 = arith.constant 0 : index
    %c0_347 = arith.constant 0 : index
    %694 = vector.load %arg24[%c0_346, %c0_347] : memref<1x32xf32, #tpu.memory_space<vmem>>, vector<1x32xf32>
    tpu.vector_store %arg24[%c0_346, %c0_347], %664 {strides = array<i32>} : memref<1x32xf32, #tpu.memory_space<vmem>>, vector<1x32xf32>,
    %c0_348 = arith.constant 0 : index
    %c0_349 = arith.constant 0 : index
    %695 = vector.load %arg23[%c0_348, %c0_349] : memref<1x32xf32, #tpu.memory_space<vmem>>, vector<1x32xf32>
    tpu.vector_store %arg23[%c0_348, %c0_349], %692 {strides = array<i32>} : memref<1x32xf32, #tpu.memory_space<vmem>>, vector<1x32xf32>,
    %c0_350 = arith.constant 0 : index
    %c0_351 = arith.constant 0 : index
    %696 = vector.load %arg25[%c0_350, %c0_351] : memref<1x32xf32, #tpu.memory_space<vmem>>, vector<1x32xf32>
    tpu.vector_store %arg25[%c0_350, %c0_351], %690 {strides = array<i32>} : memref<1x32xf32, #tpu.memory_space<vmem>>, vector<1x32xf32>,
    %697 = arith.index_cast %c0_i32_320 : i32 to index
    %c0_352 = arith.constant 0 : index
    %698 = vector.load %arg28[%697, %c0_352] : memref<8x32xf32, #tpu.memory_space<vmem>>, vector<1x32xf32>
    tpu.vector_store %arg28[%697, %c0_352], %666 {strides = array<i32>} : memref<8x32xf32, #tpu.memory_space<vmem>>, vector<1x32xf32>,
    %699 = arith.index_cast %628 : i32 to index
    %c0_353 = arith.constant 0 : index
    %700 = vector.load %arg29[%699, %c0_353] : memref<8x32xf32, #tpu.memory_space<vmem>>, vector<1x32xf32>
    tpu.vector_store %arg29[%699, %c0_353], %692 {strides = array<i32>} : memref<8x32xf32, #tpu.memory_space<vmem>>, vector<1x32xf32>,
    %c1_i32_354 = arith.constant 1 : i32
    %c7_i32_355 = arith.constant 7 : i32
    %701 = arith.subi %c7_i32_355, %c1_i32_354 : i32
    %702 = arith.index_cast %c1_i32_354 : i32 to index
    %c0_356 = arith.constant 0 : index
    %703 = vector.load %arg20[%702, %c0_356] : memref<8x128xf32, #tpu.memory_space<vmem>>, vector<1x128xf32>
    %c0_357 = arith.constant 0 : index
    %c0_358 = arith.constant 0 : index
    %704 = vector.load %arg22[%c0_357, %c0_358] : memref<1x32xf32, #tpu.memory_space<vmem>>, vector<1x32xf32>
    %c0_359 = arith.constant 0 : index
    %c0_360 = arith.constant 0 : index
    %705 = vector.load %arg9[%c0_359, %c0_360] : memref<32x128xf32, #tpu.memory_space<vmem>>, vector<32x128xf32>
    %cst_361 = arith.constant dense<0.000000e+00> : vector<1x128xf32>
    %706 = tpu.matmul %704, %705, %cst_361 {dimension_numbers = #tpu.dot_dimension_numbers<[1], [0], [0], [1], [0, 0, 1, 1], [], []>} : vector<1x32xf32>, vector<32x128xf32>, vector<1x128xf32> -> vector<1x128xf32>
    %707 = arith.addf %703, %706 : vector<1x128xf32>
    %708 = arith.index_cast %701 : i32 to index
    %c0_362 = arith.constant 0 : index
    %709 = vector.load %arg21[%708, %c0_362] : memref<8x128xf32, #tpu.memory_space<vmem>>, vector<1x128xf32>
    %c0_363 = arith.constant 0 : index
    %c0_364 = arith.constant 0 : index
    %710 = vector.load %arg23[%c0_363, %c0_364] : memref<1x32xf32, #tpu.memory_space<vmem>>, vector<1x32xf32>
    %c0_365 = arith.constant 0 : index
    %c0_366 = arith.constant 0 : index
    %711 = vector.load %arg12[%c0_365, %c0_366] : memref<32x128xf32, #tpu.memory_space<vmem>>, vector<32x128xf32>
    %cst_367 = arith.constant dense<0.000000e+00> : vector<1x128xf32>
    %712 = tpu.matmul %710, %711, %cst_367 {dimension_numbers = #tpu.dot_dimension_numbers<[1], [0], [0], [1], [0, 0, 1, 1], [], []>} : vector<1x32xf32>, vector<32x128xf32>, vector<1x128xf32> -> vector<1x128xf32>
    %713 = arith.addf %709, %712 : vector<1x128xf32>
    %c0_368 = arith.constant 0 : index
    %c0_369 = arith.constant 0 : index
    %714 = vector.load %arg24[%c0_368, %c0_369] : memref<1x32xf32, #tpu.memory_space<vmem>>, vector<1x32xf32>
    %715 = vector.extract_strided_slice %707 {offsets = [0, 0], sizes = [1, 32], strides = [1, 1]} : vector<1x128xf32> to vector<1x32xf32>
    %716 = arith.negf %715 : vector<1x32xf32>
    %717 = math.exp %716 : vector<1x32xf32>
    %cst_370 = arith.constant 1.000000e+00 : f32
    %718 = vector.broadcast %cst_370 : f32 to vector<1x32xf32>
    %719 = arith.addf %718, %717 : vector<1x32xf32>
    %720 = arith.divf %718, %719 : vector<1x32xf32>
    %721 = vector.extract_strided_slice %707 {offsets = [0, 32], sizes = [1, 32], strides = [1, 1]} : vector<1x128xf32> to vector<1x32xf32>
    %722 = arith.negf %721 : vector<1x32xf32>
    %723 = math.exp %722 : vector<1x32xf32>
    %cst_371 = arith.constant 1.000000e+00 : f32
    %724 = vector.broadcast %cst_371 : f32 to vector<1x32xf32>
    %725 = arith.addf %724, %723 : vector<1x32xf32>
    %726 = arith.divf %724, %725 : vector<1x32xf32>
    %727 = vector.extract_strided_slice %707 {offsets = [0, 64], sizes = [1, 32], strides = [1, 1]} : vector<1x128xf32> to vector<1x32xf32>
    %728 = math.tanh %727 : vector<1x32xf32>
    %729 = vector.extract_strided_slice %707 {offsets = [0, 96], sizes = [1, 32], strides = [1, 1]} : vector<1x128xf32> to vector<1x32xf32>
    %730 = arith.negf %729 : vector<1x32xf32>
    %731 = math.exp %730 : vector<1x32xf32>
    %cst_372 = arith.constant 1.000000e+00 : f32
    %732 = vector.broadcast %cst_372 : f32 to vector<1x32xf32>
    %733 = arith.addf %732, %731 : vector<1x32xf32>
    %734 = arith.divf %732, %733 : vector<1x32xf32>
    %735 = arith.mulf %726, %714 : vector<1x32xf32>
    %736 = arith.mulf %720, %728 : vector<1x32xf32>
    %737 = arith.addf %735, %736 : vector<1x32xf32>
    %738 = math.tanh %737 : vector<1x32xf32>
    %739 = arith.mulf %734, %738 : vector<1x32xf32>
    %c0_373 = arith.constant 0 : index
    %c0_374 = arith.constant 0 : index
    %740 = vector.load %arg25[%c0_373, %c0_374] : memref<1x32xf32, #tpu.memory_space<vmem>>, vector<1x32xf32>
    %741 = vector.extract_strided_slice %713 {offsets = [0, 0], sizes = [1, 32], strides = [1, 1]} : vector<1x128xf32> to vector<1x32xf32>
    %742 = arith.negf %741 : vector<1x32xf32>
    %743 = math.exp %742 : vector<1x32xf32>
    %cst_375 = arith.constant 1.000000e+00 : f32
    %744 = vector.broadcast %cst_375 : f32 to vector<1x32xf32>
    %745 = arith.addf %744, %743 : vector<1x32xf32>
    %746 = arith.divf %744, %745 : vector<1x32xf32>
    %747 = vector.extract_strided_slice %713 {offsets = [0, 32], sizes = [1, 32], strides = [1, 1]} : vector<1x128xf32> to vector<1x32xf32>
    %748 = arith.negf %747 : vector<1x32xf32>
    %749 = math.exp %748 : vector<1x32xf32>
    %cst_376 = arith.constant 1.000000e+00 : f32
    %750 = vector.broadcast %cst_376 : f32 to vector<1x32xf32>
    %751 = arith.addf %750, %749 : vector<1x32xf32>
    %752 = arith.divf %750, %751 : vector<1x32xf32>
    %753 = vector.extract_strided_slice %713 {offsets = [0, 64], sizes = [1, 32], strides = [1, 1]} : vector<1x128xf32> to vector<1x32xf32>
    %754 = math.tanh %753 : vector<1x32xf32>
    %755 = vector.extract_strided_slice %713 {offsets = [0, 96], sizes = [1, 32], strides = [1, 1]} : vector<1x128xf32> to vector<1x32xf32>
    %756 = arith.negf %755 : vector<1x32xf32>
    %757 = math.exp %756 : vector<1x32xf32>
    %cst_377 = arith.constant 1.000000e+00 : f32
    %758 = vector.broadcast %cst_377 : f32 to vector<1x32xf32>
    %759 = arith.addf %758, %757 : vector<1x32xf32>
    %760 = arith.divf %758, %759 : vector<1x32xf32>
    %761 = arith.mulf %752, %740 : vector<1x32xf32>
    %762 = arith.mulf %746, %754 : vector<1x32xf32>
    %763 = arith.addf %761, %762 : vector<1x32xf32>
    %764 = math.tanh %763 : vector<1x32xf32>
    %765 = arith.mulf %760, %764 : vector<1x32xf32>
    %c0_378 = arith.constant 0 : index
    %c0_379 = arith.constant 0 : index
    %766 = vector.load %arg22[%c0_378, %c0_379] : memref<1x32xf32, #tpu.memory_space<vmem>>, vector<1x32xf32>
    tpu.vector_store %arg22[%c0_378, %c0_379], %739 {strides = array<i32>} : memref<1x32xf32, #tpu.memory_space<vmem>>, vector<1x32xf32>,
    %c0_380 = arith.constant 0 : index
    %c0_381 = arith.constant 0 : index
    %767 = vector.load %arg24[%c0_380, %c0_381] : memref<1x32xf32, #tpu.memory_space<vmem>>, vector<1x32xf32>
    tpu.vector_store %arg24[%c0_380, %c0_381], %737 {strides = array<i32>} : memref<1x32xf32, #tpu.memory_space<vmem>>, vector<1x32xf32>,
    %c0_382 = arith.constant 0 : index
    %c0_383 = arith.constant 0 : index
    %768 = vector.load %arg23[%c0_382, %c0_383] : memref<1x32xf32, #tpu.memory_space<vmem>>, vector<1x32xf32>
    tpu.vector_store %arg23[%c0_382, %c0_383], %765 {strides = array<i32>} : memref<1x32xf32, #tpu.memory_space<vmem>>, vector<1x32xf32>,
    %c0_384 = arith.constant 0 : index
    %c0_385 = arith.constant 0 : index
    %769 = vector.load %arg25[%c0_384, %c0_385] : memref<1x32xf32, #tpu.memory_space<vmem>>, vector<1x32xf32>
    tpu.vector_store %arg25[%c0_384, %c0_385], %763 {strides = array<i32>} : memref<1x32xf32, #tpu.memory_space<vmem>>, vector<1x32xf32>,
    %770 = arith.index_cast %c1_i32_354 : i32 to index
    %c0_386 = arith.constant 0 : index
    %771 = vector.load %arg28[%770, %c0_386] : memref<8x32xf32, #tpu.memory_space<vmem>>, vector<1x32xf32>
    tpu.vector_store %arg28[%770, %c0_386], %739 {strides = array<i32>} : memref<8x32xf32, #tpu.memory_space<vmem>>, vector<1x32xf32>,
    %772 = arith.index_cast %701 : i32 to index
    %c0_387 = arith.constant 0 : index
    %773 = vector.load %arg29[%772, %c0_387] : memref<8x32xf32, #tpu.memory_space<vmem>>, vector<1x32xf32>
    tpu.vector_store %arg29[%772, %c0_387], %765 {strides = array<i32>} : memref<8x32xf32, #tpu.memory_space<vmem>>, vector<1x32xf32>,
    %c2_i32_388 = arith.constant 2 : i32
    %c7_i32_389 = arith.constant 7 : i32
    %774 = arith.subi %c7_i32_389, %c2_i32_388 : i32
    %775 = arith.index_cast %c2_i32_388 : i32 to index
    %c0_390 = arith.constant 0 : index
    %776 = vector.load %arg20[%775, %c0_390] : memref<8x128xf32, #tpu.memory_space<vmem>>, vector<1x128xf32>
    %c0_391 = arith.constant 0 : index
    %c0_392 = arith.constant 0 : index
    %777 = vector.load %arg22[%c0_391, %c0_392] : memref<1x32xf32, #tpu.memory_space<vmem>>, vector<1x32xf32>
    %c0_393 = arith.constant 0 : index
    %c0_394 = arith.constant 0 : index
    %778 = vector.load %arg9[%c0_393, %c0_394] : memref<32x128xf32, #tpu.memory_space<vmem>>, vector<32x128xf32>
    %cst_395 = arith.constant dense<0.000000e+00> : vector<1x128xf32>
    %779 = tpu.matmul %777, %778, %cst_395 {dimension_numbers = #tpu.dot_dimension_numbers<[1], [0], [0], [1], [0, 0, 1, 1], [], []>} : vector<1x32xf32>, vector<32x128xf32>, vector<1x128xf32> -> vector<1x128xf32>
    %780 = arith.addf %776, %779 : vector<1x128xf32>
    %781 = arith.index_cast %774 : i32 to index
    %c0_396 = arith.constant 0 : index
    %782 = vector.load %arg21[%781, %c0_396] : memref<8x128xf32, #tpu.memory_space<vmem>>, vector<1x128xf32>
    %c0_397 = arith.constant 0 : index
    %c0_398 = arith.constant 0 : index
    %783 = vector.load %arg23[%c0_397, %c0_398] : memref<1x32xf32, #tpu.memory_space<vmem>>, vector<1x32xf32>
    %c0_399 = arith.constant 0 : index
    %c0_400 = arith.constant 0 : index
    %784 = vector.load %arg12[%c0_399, %c0_400] : memref<32x128xf32, #tpu.memory_space<vmem>>, vector<32x128xf32>
    %cst_401 = arith.constant dense<0.000000e+00> : vector<1x128xf32>
    %785 = tpu.matmul %783, %784, %cst_401 {dimension_numbers = #tpu.dot_dimension_numbers<[1], [0], [0], [1], [0, 0, 1, 1], [], []>} : vector<1x32xf32>, vector<32x128xf32>, vector<1x128xf32> -> vector<1x128xf32>
    %786 = arith.addf %782, %785 : vector<1x128xf32>
    %c0_402 = arith.constant 0 : index
    %c0_403 = arith.constant 0 : index
    %787 = vector.load %arg24[%c0_402, %c0_403] : memref<1x32xf32, #tpu.memory_space<vmem>>, vector<1x32xf32>
    %788 = vector.extract_strided_slice %780 {offsets = [0, 0], sizes = [1, 32], strides = [1, 1]} : vector<1x128xf32> to vector<1x32xf32>
    %789 = arith.negf %788 : vector<1x32xf32>
    %790 = math.exp %789 : vector<1x32xf32>
    %cst_404 = arith.constant 1.000000e+00 : f32
    %791 = vector.broadcast %cst_404 : f32 to vector<1x32xf32>
    %792 = arith.addf %791, %790 : vector<1x32xf32>
    %793 = arith.divf %791, %792 : vector<1x32xf32>
    %794 = vector.extract_strided_slice %780 {offsets = [0, 32], sizes = [1, 32], strides = [1, 1]} : vector<1x128xf32> to vector<1x32xf32>
    %795 = arith.negf %794 : vector<1x32xf32>
    %796 = math.exp %795 : vector<1x32xf32>
    %cst_405 = arith.constant 1.000000e+00 : f32
    %797 = vector.broadcast %cst_405 : f32 to vector<1x32xf32>
    %798 = arith.addf %797, %796 : vector<1x32xf32>
    %799 = arith.divf %797, %798 : vector<1x32xf32>
    %800 = vector.extract_strided_slice %780 {offsets = [0, 64], sizes = [1, 32], strides = [1, 1]} : vector<1x128xf32> to vector<1x32xf32>
    %801 = math.tanh %800 : vector<1x32xf32>
    %802 = vector.extract_strided_slice %780 {offsets = [0, 96], sizes = [1, 32], strides = [1, 1]} : vector<1x128xf32> to vector<1x32xf32>
    %803 = arith.negf %802 : vector<1x32xf32>
    %804 = math.exp %803 : vector<1x32xf32>
    %cst_406 = arith.constant 1.000000e+00 : f32
    %805 = vector.broadcast %cst_406 : f32 to vector<1x32xf32>
    %806 = arith.addf %805, %804 : vector<1x32xf32>
    %807 = arith.divf %805, %806 : vector<1x32xf32>
    %808 = arith.mulf %799, %787 : vector<1x32xf32>
    %809 = arith.mulf %793, %801 : vector<1x32xf32>
    %810 = arith.addf %808, %809 : vector<1x32xf32>
    %811 = math.tanh %810 : vector<1x32xf32>
    %812 = arith.mulf %807, %811 : vector<1x32xf32>
    %c0_407 = arith.constant 0 : index
    %c0_408 = arith.constant 0 : index
    %813 = vector.load %arg25[%c0_407, %c0_408] : memref<1x32xf32, #tpu.memory_space<vmem>>, vector<1x32xf32>
    %814 = vector.extract_strided_slice %786 {offsets = [0, 0], sizes = [1, 32], strides = [1, 1]} : vector<1x128xf32> to vector<1x32xf32>
    %815 = arith.negf %814 : vector<1x32xf32>
    %816 = math.exp %815 : vector<1x32xf32>
    %cst_409 = arith.constant 1.000000e+00 : f32
    %817 = vector.broadcast %cst_409 : f32 to vector<1x32xf32>
    %818 = arith.addf %817, %816 : vector<1x32xf32>
    %819 = arith.divf %817, %818 : vector<1x32xf32>
    %820 = vector.extract_strided_slice %786 {offsets = [0, 32], sizes = [1, 32], strides = [1, 1]} : vector<1x128xf32> to vector<1x32xf32>
    %821 = arith.negf %820 : vector<1x32xf32>
    %822 = math.exp %821 : vector<1x32xf32>
    %cst_410 = arith.constant 1.000000e+00 : f32
    %823 = vector.broadcast %cst_410 : f32 to vector<1x32xf32>
    %824 = arith.addf %823, %822 : vector<1x32xf32>
    %825 = arith.divf %823, %824 : vector<1x32xf32>
    %826 = vector.extract_strided_slice %786 {offsets = [0, 64], sizes = [1, 32], strides = [1, 1]} : vector<1x128xf32> to vector<1x32xf32>
    %827 = math.tanh %826 : vector<1x32xf32>
    %828 = vector.extract_strided_slice %786 {offsets = [0, 96], sizes = [1, 32], strides = [1, 1]} : vector<1x128xf32> to vector<1x32xf32>
    %829 = arith.negf %828 : vector<1x32xf32>
    %830 = math.exp %829 : vector<1x32xf32>
    %cst_411 = arith.constant 1.000000e+00 : f32
    %831 = vector.broadcast %cst_411 : f32 to vector<1x32xf32>
    %832 = arith.addf %831, %830 : vector<1x32xf32>
    %833 = arith.divf %831, %832 : vector<1x32xf32>
    %834 = arith.mulf %825, %813 : vector<1x32xf32>
    %835 = arith.mulf %819, %827 : vector<1x32xf32>
    %836 = arith.addf %834, %835 : vector<1x32xf32>
    %837 = math.tanh %836 : vector<1x32xf32>
    %838 = arith.mulf %833, %837 : vector<1x32xf32>
    %c0_412 = arith.constant 0 : index
    %c0_413 = arith.constant 0 : index
    %839 = vector.load %arg22[%c0_412, %c0_413] : memref<1x32xf32, #tpu.memory_space<vmem>>, vector<1x32xf32>
    tpu.vector_store %arg22[%c0_412, %c0_413], %812 {strides = array<i32>} : memref<1x32xf32, #tpu.memory_space<vmem>>, vector<1x32xf32>,
    %c0_414 = arith.constant 0 : index
    %c0_415 = arith.constant 0 : index
    %840 = vector.load %arg24[%c0_414, %c0_415] : memref<1x32xf32, #tpu.memory_space<vmem>>, vector<1x32xf32>
    tpu.vector_store %arg24[%c0_414, %c0_415], %810 {strides = array<i32>} : memref<1x32xf32, #tpu.memory_space<vmem>>, vector<1x32xf32>,
    %c0_416 = arith.constant 0 : index
    %c0_417 = arith.constant 0 : index
    %841 = vector.load %arg23[%c0_416, %c0_417] : memref<1x32xf32, #tpu.memory_space<vmem>>, vector<1x32xf32>
    tpu.vector_store %arg23[%c0_416, %c0_417], %838 {strides = array<i32>} : memref<1x32xf32, #tpu.memory_space<vmem>>, vector<1x32xf32>,
    %c0_418 = arith.constant 0 : index
    %c0_419 = arith.constant 0 : index
    %842 = vector.load %arg25[%c0_418, %c0_419] : memref<1x32xf32, #tpu.memory_space<vmem>>, vector<1x32xf32>
    tpu.vector_store %arg25[%c0_418, %c0_419], %836 {strides = array<i32>} : memref<1x32xf32, #tpu.memory_space<vmem>>, vector<1x32xf32>,
    %843 = arith.index_cast %c2_i32_388 : i32 to index
    %c0_420 = arith.constant 0 : index
    %844 = vector.load %arg28[%843, %c0_420] : memref<8x32xf32, #tpu.memory_space<vmem>>, vector<1x32xf32>
    tpu.vector_store %arg28[%843, %c0_420], %812 {strides = array<i32>} : memref<8x32xf32, #tpu.memory_space<vmem>>, vector<1x32xf32>,
    %845 = arith.index_cast %774 : i32 to index
    %c0_421 = arith.constant 0 : index
    %846 = vector.load %arg29[%845, %c0_421] : memref<8x32xf32, #tpu.memory_space<vmem>>, vector<1x32xf32>
    tpu.vector_store %arg29[%845, %c0_421], %838 {strides = array<i32>} : memref<8x32xf32, #tpu.memory_space<vmem>>, vector<1x32xf32>,
    %c3_i32_422 = arith.constant 3 : i32
    %c7_i32_423 = arith.constant 7 : i32
    %847 = arith.subi %c7_i32_423, %c3_i32_422 : i32
    %848 = arith.index_cast %c3_i32_422 : i32 to index
    %c0_424 = arith.constant 0 : index
    %849 = vector.load %arg20[%848, %c0_424] : memref<8x128xf32, #tpu.memory_space<vmem>>, vector<1x128xf32>
    %c0_425 = arith.constant 0 : index
    %c0_426 = arith.constant 0 : index
    %850 = vector.load %arg22[%c0_425, %c0_426] : memref<1x32xf32, #tpu.memory_space<vmem>>, vector<1x32xf32>
    %c0_427 = arith.constant 0 : index
    %c0_428 = arith.constant 0 : index
    %851 = vector.load %arg9[%c0_427, %c0_428] : memref<32x128xf32, #tpu.memory_space<vmem>>, vector<32x128xf32>
    %cst_429 = arith.constant dense<0.000000e+00> : vector<1x128xf32>
    %852 = tpu.matmul %850, %851, %cst_429 {dimension_numbers = #tpu.dot_dimension_numbers<[1], [0], [0], [1], [0, 0, 1, 1], [], []>} : vector<1x32xf32>, vector<32x128xf32>, vector<1x128xf32> -> vector<1x128xf32>
    %853 = arith.addf %849, %852 : vector<1x128xf32>
    %854 = arith.index_cast %847 : i32 to index
    %c0_430 = arith.constant 0 : index
    %855 = vector.load %arg21[%854, %c0_430] : memref<8x128xf32, #tpu.memory_space<vmem>>, vector<1x128xf32>
    %c0_431 = arith.constant 0 : index
    %c0_432 = arith.constant 0 : index
    %856 = vector.load %arg23[%c0_431, %c0_432] : memref<1x32xf32, #tpu.memory_space<vmem>>, vector<1x32xf32>
    %c0_433 = arith.constant 0 : index
    %c0_434 = arith.constant 0 : index
    %857 = vector.load %arg12[%c0_433, %c0_434] : memref<32x128xf32, #tpu.memory_space<vmem>>, vector<32x128xf32>
    %cst_435 = arith.constant dense<0.000000e+00> : vector<1x128xf32>
    %858 = tpu.matmul %856, %857, %cst_435 {dimension_numbers = #tpu.dot_dimension_numbers<[1], [0], [0], [1], [0, 0, 1, 1], [], []>} : vector<1x32xf32>, vector<32x128xf32>, vector<1x128xf32> -> vector<1x128xf32>
    %859 = arith.addf %855, %858 : vector<1x128xf32>
    %c0_436 = arith.constant 0 : index
    %c0_437 = arith.constant 0 : index
    %860 = vector.load %arg24[%c0_436, %c0_437] : memref<1x32xf32, #tpu.memory_space<vmem>>, vector<1x32xf32>
    %861 = vector.extract_strided_slice %853 {offsets = [0, 0], sizes = [1, 32], strides = [1, 1]} : vector<1x128xf32> to vector<1x32xf32>
    %862 = arith.negf %861 : vector<1x32xf32>
    %863 = math.exp %862 : vector<1x32xf32>
    %cst_438 = arith.constant 1.000000e+00 : f32
    %864 = vector.broadcast %cst_438 : f32 to vector<1x32xf32>
    %865 = arith.addf %864, %863 : vector<1x32xf32>
    %866 = arith.divf %864, %865 : vector<1x32xf32>
    %867 = vector.extract_strided_slice %853 {offsets = [0, 32], sizes = [1, 32], strides = [1, 1]} : vector<1x128xf32> to vector<1x32xf32>
    %868 = arith.negf %867 : vector<1x32xf32>
    %869 = math.exp %868 : vector<1x32xf32>
    %cst_439 = arith.constant 1.000000e+00 : f32
    %870 = vector.broadcast %cst_439 : f32 to vector<1x32xf32>
    %871 = arith.addf %870, %869 : vector<1x32xf32>
    %872 = arith.divf %870, %871 : vector<1x32xf32>
    %873 = vector.extract_strided_slice %853 {offsets = [0, 64], sizes = [1, 32], strides = [1, 1]} : vector<1x128xf32> to vector<1x32xf32>
    %874 = math.tanh %873 : vector<1x32xf32>
    %875 = vector.extract_strided_slice %853 {offsets = [0, 96], sizes = [1, 32], strides = [1, 1]} : vector<1x128xf32> to vector<1x32xf32>
    %876 = arith.negf %875 : vector<1x32xf32>
    %877 = math.exp %876 : vector<1x32xf32>
    %cst_440 = arith.constant 1.000000e+00 : f32
    %878 = vector.broadcast %cst_440 : f32 to vector<1x32xf32>
    %879 = arith.addf %878, %877 : vector<1x32xf32>
    %880 = arith.divf %878, %879 : vector<1x32xf32>
    %881 = arith.mulf %872, %860 : vector<1x32xf32>
    %882 = arith.mulf %866, %874 : vector<1x32xf32>
    %883 = arith.addf %881, %882 : vector<1x32xf32>
    %884 = math.tanh %883 : vector<1x32xf32>
    %885 = arith.mulf %880, %884 : vector<1x32xf32>
    %c0_441 = arith.constant 0 : index
    %c0_442 = arith.constant 0 : index
    %886 = vector.load %arg25[%c0_441, %c0_442] : memref<1x32xf32, #tpu.memory_space<vmem>>, vector<1x32xf32>
    %887 = vector.extract_strided_slice %859 {offsets = [0, 0], sizes = [1, 32], strides = [1, 1]} : vector<1x128xf32> to vector<1x32xf32>
    %888 = arith.negf %887 : vector<1x32xf32>
    %889 = math.exp %888 : vector<1x32xf32>
    %cst_443 = arith.constant 1.000000e+00 : f32
    %890 = vector.broadcast %cst_443 : f32 to vector<1x32xf32>
    %891 = arith.addf %890, %889 : vector<1x32xf32>
    %892 = arith.divf %890, %891 : vector<1x32xf32>
    %893 = vector.extract_strided_slice %859 {offsets = [0, 32], sizes = [1, 32], strides = [1, 1]} : vector<1x128xf32> to vector<1x32xf32>
    %894 = arith.negf %893 : vector<1x32xf32>
    %895 = math.exp %894 : vector<1x32xf32>
    %cst_444 = arith.constant 1.000000e+00 : f32
    %896 = vector.broadcast %cst_444 : f32 to vector<1x32xf32>
    %897 = arith.addf %896, %895 : vector<1x32xf32>
    %898 = arith.divf %896, %897 : vector<1x32xf32>
    %899 = vector.extract_strided_slice %859 {offsets = [0, 64], sizes = [1, 32], strides = [1, 1]} : vector<1x128xf32> to vector<1x32xf32>
    %900 = math.tanh %899 : vector<1x32xf32>
    %901 = vector.extract_strided_slice %859 {offsets = [0, 96], sizes = [1, 32], strides = [1, 1]} : vector<1x128xf32> to vector<1x32xf32>
    %902 = arith.negf %901 : vector<1x32xf32>
    %903 = math.exp %902 : vector<1x32xf32>
    %cst_445 = arith.constant 1.000000e+00 : f32
    %904 = vector.broadcast %cst_445 : f32 to vector<1x32xf32>
    %905 = arith.addf %904, %903 : vector<1x32xf32>
    %906 = arith.divf %904, %905 : vector<1x32xf32>
    %907 = arith.mulf %898, %886 : vector<1x32xf32>
    %908 = arith.mulf %892, %900 : vector<1x32xf32>
    %909 = arith.addf %907, %908 : vector<1x32xf32>
    %910 = math.tanh %909 : vector<1x32xf32>
    %911 = arith.mulf %906, %910 : vector<1x32xf32>
    %c0_446 = arith.constant 0 : index
    %c0_447 = arith.constant 0 : index
    %912 = vector.load %arg22[%c0_446, %c0_447] : memref<1x32xf32, #tpu.memory_space<vmem>>, vector<1x32xf32>
    tpu.vector_store %arg22[%c0_446, %c0_447], %885 {strides = array<i32>} : memref<1x32xf32, #tpu.memory_space<vmem>>, vector<1x32xf32>,
    %c0_448 = arith.constant 0 : index
    %c0_449 = arith.constant 0 : index
    %913 = vector.load %arg24[%c0_448, %c0_449] : memref<1x32xf32, #tpu.memory_space<vmem>>, vector<1x32xf32>
    tpu.vector_store %arg24[%c0_448, %c0_449], %883 {strides = array<i32>} : memref<1x32xf32, #tpu.memory_space<vmem>>, vector<1x32xf32>,
    %c0_450 = arith.constant 0 : index
    %c0_451 = arith.constant 0 : index
    %914 = vector.load %arg23[%c0_450, %c0_451] : memref<1x32xf32, #tpu.memory_space<vmem>>, vector<1x32xf32>
    tpu.vector_store %arg23[%c0_450, %c0_451], %911 {strides = array<i32>} : memref<1x32xf32, #tpu.memory_space<vmem>>, vector<1x32xf32>,
    %c0_452 = arith.constant 0 : index
    %c0_453 = arith.constant 0 : index
    %915 = vector.load %arg25[%c0_452, %c0_453] : memref<1x32xf32, #tpu.memory_space<vmem>>, vector<1x32xf32>
    tpu.vector_store %arg25[%c0_452, %c0_453], %909 {strides = array<i32>} : memref<1x32xf32, #tpu.memory_space<vmem>>, vector<1x32xf32>,
    %916 = arith.index_cast %c3_i32_422 : i32 to index
    %c0_454 = arith.constant 0 : index
    %917 = vector.load %arg28[%916, %c0_454] : memref<8x32xf32, #tpu.memory_space<vmem>>, vector<1x32xf32>
    tpu.vector_store %arg28[%916, %c0_454], %885 {strides = array<i32>} : memref<8x32xf32, #tpu.memory_space<vmem>>, vector<1x32xf32>,
    %918 = arith.index_cast %847 : i32 to index
    %c0_455 = arith.constant 0 : index
    %919 = vector.load %arg29[%918, %c0_455] : memref<8x32xf32, #tpu.memory_space<vmem>>, vector<1x32xf32>
    tpu.vector_store %arg29[%918, %c0_455], %911 {strides = array<i32>} : memref<8x32xf32, #tpu.memory_space<vmem>>, vector<1x32xf32>,
    %c4_i32_456 = arith.constant 4 : i32
    %c7_i32_457 = arith.constant 7 : i32
    %920 = arith.subi %c7_i32_457, %c4_i32_456 : i32
    %921 = arith.index_cast %c4_i32_456 : i32 to index
    %c0_458 = arith.constant 0 : index
    %922 = vector.load %arg20[%921, %c0_458] : memref<8x128xf32, #tpu.memory_space<vmem>>, vector<1x128xf32>
    %c0_459 = arith.constant 0 : index
    %c0_460 = arith.constant 0 : index
    %923 = vector.load %arg22[%c0_459, %c0_460] : memref<1x32xf32, #tpu.memory_space<vmem>>, vector<1x32xf32>
    %c0_461 = arith.constant 0 : index
    %c0_462 = arith.constant 0 : index
    %924 = vector.load %arg9[%c0_461, %c0_462] : memref<32x128xf32, #tpu.memory_space<vmem>>, vector<32x128xf32>
    %cst_463 = arith.constant dense<0.000000e+00> : vector<1x128xf32>
    %925 = tpu.matmul %923, %924, %cst_463 {dimension_numbers = #tpu.dot_dimension_numbers<[1], [0], [0], [1], [0, 0, 1, 1], [], []>} : vector<1x32xf32>, vector<32x128xf32>, vector<1x128xf32> -> vector<1x128xf32>
    %926 = arith.addf %922, %925 : vector<1x128xf32>
    %927 = arith.index_cast %920 : i32 to index
    %c0_464 = arith.constant 0 : index
    %928 = vector.load %arg21[%927, %c0_464] : memref<8x128xf32, #tpu.memory_space<vmem>>, vector<1x128xf32>
    %c0_465 = arith.constant 0 : index
    %c0_466 = arith.constant 0 : index
    %929 = vector.load %arg23[%c0_465, %c0_466] : memref<1x32xf32, #tpu.memory_space<vmem>>, vector<1x32xf32>
    %c0_467 = arith.constant 0 : index
    %c0_468 = arith.constant 0 : index
    %930 = vector.load %arg12[%c0_467, %c0_468] : memref<32x128xf32, #tpu.memory_space<vmem>>, vector<32x128xf32>
    %cst_469 = arith.constant dense<0.000000e+00> : vector<1x128xf32>
    %931 = tpu.matmul %929, %930, %cst_469 {dimension_numbers = #tpu.dot_dimension_numbers<[1], [0], [0], [1], [0, 0, 1, 1], [], []>} : vector<1x32xf32>, vector<32x128xf32>, vector<1x128xf32> -> vector<1x128xf32>
    %932 = arith.addf %928, %931 : vector<1x128xf32>
    %c0_470 = arith.constant 0 : index
    %c0_471 = arith.constant 0 : index
    %933 = vector.load %arg24[%c0_470, %c0_471] : memref<1x32xf32, #tpu.memory_space<vmem>>, vector<1x32xf32>
    %934 = vector.extract_strided_slice %926 {offsets = [0, 0], sizes = [1, 32], strides = [1, 1]} : vector<1x128xf32> to vector<1x32xf32>
    %935 = arith.negf %934 : vector<1x32xf32>
    %936 = math.exp %935 : vector<1x32xf32>
    %cst_472 = arith.constant 1.000000e+00 : f32
    %937 = vector.broadcast %cst_472 : f32 to vector<1x32xf32>
    %938 = arith.addf %937, %936 : vector<1x32xf32>
    %939 = arith.divf %937, %938 : vector<1x32xf32>
    %940 = vector.extract_strided_slice %926 {offsets = [0, 32], sizes = [1, 32], strides = [1, 1]} : vector<1x128xf32> to vector<1x32xf32>
    %941 = arith.negf %940 : vector<1x32xf32>
    %942 = math.exp %941 : vector<1x32xf32>
    %cst_473 = arith.constant 1.000000e+00 : f32
    %943 = vector.broadcast %cst_473 : f32 to vector<1x32xf32>
    %944 = arith.addf %943, %942 : vector<1x32xf32>
    %945 = arith.divf %943, %944 : vector<1x32xf32>
    %946 = vector.extract_strided_slice %926 {offsets = [0, 64], sizes = [1, 32], strides = [1, 1]} : vector<1x128xf32> to vector<1x32xf32>
    %947 = math.tanh %946 : vector<1x32xf32>
    %948 = vector.extract_strided_slice %926 {offsets = [0, 96], sizes = [1, 32], strides = [1, 1]} : vector<1x128xf32> to vector<1x32xf32>
    %949 = arith.negf %948 : vector<1x32xf32>
    %950 = math.exp %949 : vector<1x32xf32>
    %cst_474 = arith.constant 1.000000e+00 : f32
    %951 = vector.broadcast %cst_474 : f32 to vector<1x32xf32>
    %952 = arith.addf %951, %950 : vector<1x32xf32>
    %953 = arith.divf %951, %952 : vector<1x32xf32>
    %954 = arith.mulf %945, %933 : vector<1x32xf32>
    %955 = arith.mulf %939, %947 : vector<1x32xf32>
    %956 = arith.addf %954, %955 : vector<1x32xf32>
    %957 = math.tanh %956 : vector<1x32xf32>
    %958 = arith.mulf %953, %957 : vector<1x32xf32>
    %c0_475 = arith.constant 0 : index
    %c0_476 = arith.constant 0 : index
    %959 = vector.load %arg25[%c0_475, %c0_476] : memref<1x32xf32, #tpu.memory_space<vmem>>, vector<1x32xf32>
    %960 = vector.extract_strided_slice %932 {offsets = [0, 0], sizes = [1, 32], strides = [1, 1]} : vector<1x128xf32> to vector<1x32xf32>
    %961 = arith.negf %960 : vector<1x32xf32>
    %962 = math.exp %961 : vector<1x32xf32>
    %cst_477 = arith.constant 1.000000e+00 : f32
    %963 = vector.broadcast %cst_477 : f32 to vector<1x32xf32>
    %964 = arith.addf %963, %962 : vector<1x32xf32>
    %965 = arith.divf %963, %964 : vector<1x32xf32>
    %966 = vector.extract_strided_slice %932 {offsets = [0, 32], sizes = [1, 32], strides = [1, 1]} : vector<1x128xf32> to vector<1x32xf32>
    %967 = arith.negf %966 : vector<1x32xf32>
    %968 = math.exp %967 : vector<1x32xf32>
    %cst_478 = arith.constant 1.000000e+00 : f32
    %969 = vector.broadcast %cst_478 : f32 to vector<1x32xf32>
    %970 = arith.addf %969, %968 : vector<1x32xf32>
    %971 = arith.divf %969, %970 : vector<1x32xf32>
    %972 = vector.extract_strided_slice %932 {offsets = [0, 64], sizes = [1, 32], strides = [1, 1]} : vector<1x128xf32> to vector<1x32xf32>
    %973 = math.tanh %972 : vector<1x32xf32>
    %974 = vector.extract_strided_slice %932 {offsets = [0, 96], sizes = [1, 32], strides = [1, 1]} : vector<1x128xf32> to vector<1x32xf32>
    %975 = arith.negf %974 : vector<1x32xf32>
    %976 = math.exp %975 : vector<1x32xf32>
    %cst_479 = arith.constant 1.000000e+00 : f32
    %977 = vector.broadcast %cst_479 : f32 to vector<1x32xf32>
    %978 = arith.addf %977, %976 : vector<1x32xf32>
    %979 = arith.divf %977, %978 : vector<1x32xf32>
    %980 = arith.mulf %971, %959 : vector<1x32xf32>
    %981 = arith.mulf %965, %973 : vector<1x32xf32>
    %982 = arith.addf %980, %981 : vector<1x32xf32>
    %983 = math.tanh %982 : vector<1x32xf32>
    %984 = arith.mulf %979, %983 : vector<1x32xf32>
    %c0_480 = arith.constant 0 : index
    %c0_481 = arith.constant 0 : index
    %985 = vector.load %arg22[%c0_480, %c0_481] : memref<1x32xf32, #tpu.memory_space<vmem>>, vector<1x32xf32>
    tpu.vector_store %arg22[%c0_480, %c0_481], %958 {strides = array<i32>} : memref<1x32xf32, #tpu.memory_space<vmem>>, vector<1x32xf32>,
    %c0_482 = arith.constant 0 : index
    %c0_483 = arith.constant 0 : index
    %986 = vector.load %arg24[%c0_482, %c0_483] : memref<1x32xf32, #tpu.memory_space<vmem>>, vector<1x32xf32>
    tpu.vector_store %arg24[%c0_482, %c0_483], %956 {strides = array<i32>} : memref<1x32xf32, #tpu.memory_space<vmem>>, vector<1x32xf32>,
    %c0_484 = arith.constant 0 : index
    %c0_485 = arith.constant 0 : index
    %987 = vector.load %arg23[%c0_484, %c0_485] : memref<1x32xf32, #tpu.memory_space<vmem>>, vector<1x32xf32>
    tpu.vector_store %arg23[%c0_484, %c0_485], %984 {strides = array<i32>} : memref<1x32xf32, #tpu.memory_space<vmem>>, vector<1x32xf32>,
    %c0_486 = arith.constant 0 : index
    %c0_487 = arith.constant 0 : index
    %988 = vector.load %arg25[%c0_486, %c0_487] : memref<1x32xf32, #tpu.memory_space<vmem>>, vector<1x32xf32>
    tpu.vector_store %arg25[%c0_486, %c0_487], %982 {strides = array<i32>} : memref<1x32xf32, #tpu.memory_space<vmem>>, vector<1x32xf32>,
    %989 = arith.index_cast %c4_i32_456 : i32 to index
    %c0_488 = arith.constant 0 : index
    %990 = vector.load %arg28[%989, %c0_488] : memref<8x32xf32, #tpu.memory_space<vmem>>, vector<1x32xf32>
    tpu.vector_store %arg28[%989, %c0_488], %958 {strides = array<i32>} : memref<8x32xf32, #tpu.memory_space<vmem>>, vector<1x32xf32>,
    %991 = arith.index_cast %920 : i32 to index
    %c0_489 = arith.constant 0 : index
    %992 = vector.load %arg29[%991, %c0_489] : memref<8x32xf32, #tpu.memory_space<vmem>>, vector<1x32xf32>
    tpu.vector_store %arg29[%991, %c0_489], %984 {strides = array<i32>} : memref<8x32xf32, #tpu.memory_space<vmem>>, vector<1x32xf32>,
    %c5_i32_490 = arith.constant 5 : i32
    %c7_i32_491 = arith.constant 7 : i32
    %993 = arith.subi %c7_i32_491, %c5_i32_490 : i32
    %994 = arith.index_cast %c5_i32_490 : i32 to index
    %c0_492 = arith.constant 0 : index
    %995 = vector.load %arg20[%994, %c0_492] : memref<8x128xf32, #tpu.memory_space<vmem>>, vector<1x128xf32>
    %c0_493 = arith.constant 0 : index
    %c0_494 = arith.constant 0 : index
    %996 = vector.load %arg22[%c0_493, %c0_494] : memref<1x32xf32, #tpu.memory_space<vmem>>, vector<1x32xf32>
    %c0_495 = arith.constant 0 : index
    %c0_496 = arith.constant 0 : index
    %997 = vector.load %arg9[%c0_495, %c0_496] : memref<32x128xf32, #tpu.memory_space<vmem>>, vector<32x128xf32>
    %cst_497 = arith.constant dense<0.000000e+00> : vector<1x128xf32>
    %998 = tpu.matmul %996, %997, %cst_497 {dimension_numbers = #tpu.dot_dimension_numbers<[1], [0], [0], [1], [0, 0, 1, 1], [], []>} : vector<1x32xf32>, vector<32x128xf32>, vector<1x128xf32> -> vector<1x128xf32>
    %999 = arith.addf %995, %998 : vector<1x128xf32>
    %1000 = arith.index_cast %993 : i32 to index
    %c0_498 = arith.constant 0 : index
    %1001 = vector.load %arg21[%1000, %c0_498] : memref<8x128xf32, #tpu.memory_space<vmem>>, vector<1x128xf32>
    %c0_499 = arith.constant 0 : index
    %c0_500 = arith.constant 0 : index
    %1002 = vector.load %arg23[%c0_499, %c0_500] : memref<1x32xf32, #tpu.memory_space<vmem>>, vector<1x32xf32>
    %c0_501 = arith.constant 0 : index
    %c0_502 = arith.constant 0 : index
    %1003 = vector.load %arg12[%c0_501, %c0_502] : memref<32x128xf32, #tpu.memory_space<vmem>>, vector<32x128xf32>
    %cst_503 = arith.constant dense<0.000000e+00> : vector<1x128xf32>
    %1004 = tpu.matmul %1002, %1003, %cst_503 {dimension_numbers = #tpu.dot_dimension_numbers<[1], [0], [0], [1], [0, 0, 1, 1], [], []>} : vector<1x32xf32>, vector<32x128xf32>, vector<1x128xf32> -> vector<1x128xf32>
    %1005 = arith.addf %1001, %1004 : vector<1x128xf32>
    %c0_504 = arith.constant 0 : index
    %c0_505 = arith.constant 0 : index
    %1006 = vector.load %arg24[%c0_504, %c0_505] : memref<1x32xf32, #tpu.memory_space<vmem>>, vector<1x32xf32>
    %1007 = vector.extract_strided_slice %999 {offsets = [0, 0], sizes = [1, 32], strides = [1, 1]} : vector<1x128xf32> to vector<1x32xf32>
    %1008 = arith.negf %1007 : vector<1x32xf32>
    %1009 = math.exp %1008 : vector<1x32xf32>
    %cst_506 = arith.constant 1.000000e+00 : f32
    %1010 = vector.broadcast %cst_506 : f32 to vector<1x32xf32>
    %1011 = arith.addf %1010, %1009 : vector<1x32xf32>
    %1012 = arith.divf %1010, %1011 : vector<1x32xf32>
    %1013 = vector.extract_strided_slice %999 {offsets = [0, 32], sizes = [1, 32], strides = [1, 1]} : vector<1x128xf32> to vector<1x32xf32>
    %1014 = arith.negf %1013 : vector<1x32xf32>
    %1015 = math.exp %1014 : vector<1x32xf32>
    %cst_507 = arith.constant 1.000000e+00 : f32
    %1016 = vector.broadcast %cst_507 : f32 to vector<1x32xf32>
    %1017 = arith.addf %1016, %1015 : vector<1x32xf32>
    %1018 = arith.divf %1016, %1017 : vector<1x32xf32>
    %1019 = vector.extract_strided_slice %999 {offsets = [0, 64], sizes = [1, 32], strides = [1, 1]} : vector<1x128xf32> to vector<1x32xf32>
    %1020 = math.tanh %1019 : vector<1x32xf32>
    %1021 = vector.extract_strided_slice %999 {offsets = [0, 96], sizes = [1, 32], strides = [1, 1]} : vector<1x128xf32> to vector<1x32xf32>
    %1022 = arith.negf %1021 : vector<1x32xf32>
    %1023 = math.exp %1022 : vector<1x32xf32>
    %cst_508 = arith.constant 1.000000e+00 : f32
    %1024 = vector.broadcast %cst_508 : f32 to vector<1x32xf32>
    %1025 = arith.addf %1024, %1023 : vector<1x32xf32>
    %1026 = arith.divf %1024, %1025 : vector<1x32xf32>
    %1027 = arith.mulf %1018, %1006 : vector<1x32xf32>
    %1028 = arith.mulf %1012, %1020 : vector<1x32xf32>
    %1029 = arith.addf %1027, %1028 : vector<1x32xf32>
    %1030 = math.tanh %1029 : vector<1x32xf32>
    %1031 = arith.mulf %1026, %1030 : vector<1x32xf32>
    %c0_509 = arith.constant 0 : index
    %c0_510 = arith.constant 0 : index
    %1032 = vector.load %arg25[%c0_509, %c0_510] : memref<1x32xf32, #tpu.memory_space<vmem>>, vector<1x32xf32>
    %1033 = vector.extract_strided_slice %1005 {offsets = [0, 0], sizes = [1, 32], strides = [1, 1]} : vector<1x128xf32> to vector<1x32xf32>
    %1034 = arith.negf %1033 : vector<1x32xf32>
    %1035 = math.exp %1034 : vector<1x32xf32>
    %cst_511 = arith.constant 1.000000e+00 : f32
    %1036 = vector.broadcast %cst_511 : f32 to vector<1x32xf32>
    %1037 = arith.addf %1036, %1035 : vector<1x32xf32>
    %1038 = arith.divf %1036, %1037 : vector<1x32xf32>
    %1039 = vector.extract_strided_slice %1005 {offsets = [0, 32], sizes = [1, 32], strides = [1, 1]} : vector<1x128xf32> to vector<1x32xf32>
    %1040 = arith.negf %1039 : vector<1x32xf32>
    %1041 = math.exp %1040 : vector<1x32xf32>
    %cst_512 = arith.constant 1.000000e+00 : f32
    %1042 = vector.broadcast %cst_512 : f32 to vector<1x32xf32>
    %1043 = arith.addf %1042, %1041 : vector<1x32xf32>
    %1044 = arith.divf %1042, %1043 : vector<1x32xf32>
    %1045 = vector.extract_strided_slice %1005 {offsets = [0, 64], sizes = [1, 32], strides = [1, 1]} : vector<1x128xf32> to vector<1x32xf32>
    %1046 = math.tanh %1045 : vector<1x32xf32>
    %1047 = vector.extract_strided_slice %1005 {offsets = [0, 96], sizes = [1, 32], strides = [1, 1]} : vector<1x128xf32> to vector<1x32xf32>
    %1048 = arith.negf %1047 : vector<1x32xf32>
    %1049 = math.exp %1048 : vector<1x32xf32>
    %cst_513 = arith.constant 1.000000e+00 : f32
    %1050 = vector.broadcast %cst_513 : f32 to vector<1x32xf32>
    %1051 = arith.addf %1050, %1049 : vector<1x32xf32>
    %1052 = arith.divf %1050, %1051 : vector<1x32xf32>
    %1053 = arith.mulf %1044, %1032 : vector<1x32xf32>
    %1054 = arith.mulf %1038, %1046 : vector<1x32xf32>
    %1055 = arith.addf %1053, %1054 : vector<1x32xf32>
    %1056 = math.tanh %1055 : vector<1x32xf32>
    %1057 = arith.mulf %1052, %1056 : vector<1x32xf32>
    %c0_514 = arith.constant 0 : index
    %c0_515 = arith.constant 0 : index
    %1058 = vector.load %arg22[%c0_514, %c0_515] : memref<1x32xf32, #tpu.memory_space<vmem>>, vector<1x32xf32>
    tpu.vector_store %arg22[%c0_514, %c0_515], %1031 {strides = array<i32>} : memref<1x32xf32, #tpu.memory_space<vmem>>, vector<1x32xf32>,
    %c0_516 = arith.constant 0 : index
    %c0_517 = arith.constant 0 : index
    %1059 = vector.load %arg24[%c0_516, %c0_517] : memref<1x32xf32, #tpu.memory_space<vmem>>, vector<1x32xf32>
    tpu.vector_store %arg24[%c0_516, %c0_517], %1029 {strides = array<i32>} : memref<1x32xf32, #tpu.memory_space<vmem>>, vector<1x32xf32>,
    %c0_518 = arith.constant 0 : index
    %c0_519 = arith.constant 0 : index
    %1060 = vector.load %arg23[%c0_518, %c0_519] : memref<1x32xf32, #tpu.memory_space<vmem>>, vector<1x32xf32>
    tpu.vector_store %arg23[%c0_518, %c0_519], %1057 {strides = array<i32>} : memref<1x32xf32, #tpu.memory_space<vmem>>, vector<1x32xf32>,
    %c0_520 = arith.constant 0 : index
    %c0_521 = arith.constant 0 : index
    %1061 = vector.load %arg25[%c0_520, %c0_521] : memref<1x32xf32, #tpu.memory_space<vmem>>, vector<1x32xf32>
    tpu.vector_store %arg25[%c0_520, %c0_521], %1055 {strides = array<i32>} : memref<1x32xf32, #tpu.memory_space<vmem>>, vector<1x32xf32>,
    %1062 = arith.index_cast %c5_i32_490 : i32 to index
    %c0_522 = arith.constant 0 : index
    %1063 = vector.load %arg28[%1062, %c0_522] : memref<8x32xf32, #tpu.memory_space<vmem>>, vector<1x32xf32>
    tpu.vector_store %arg28[%1062, %c0_522], %1031 {strides = array<i32>} : memref<8x32xf32, #tpu.memory_space<vmem>>, vector<1x32xf32>,
    %1064 = arith.index_cast %993 : i32 to index
    %c0_523 = arith.constant 0 : index
    %1065 = vector.load %arg29[%1064, %c0_523] : memref<8x32xf32, #tpu.memory_space<vmem>>, vector<1x32xf32>
    tpu.vector_store %arg29[%1064, %c0_523], %1057 {strides = array<i32>} : memref<8x32xf32, #tpu.memory_space<vmem>>, vector<1x32xf32>,
    %c6_i32_524 = arith.constant 6 : i32
    %c7_i32_525 = arith.constant 7 : i32
    %1066 = arith.subi %c7_i32_525, %c6_i32_524 : i32
    %1067 = arith.index_cast %c6_i32_524 : i32 to index
    %c0_526 = arith.constant 0 : index
    %1068 = vector.load %arg20[%1067, %c0_526] : memref<8x128xf32, #tpu.memory_space<vmem>>, vector<1x128xf32>
    %c0_527 = arith.constant 0 : index
    %c0_528 = arith.constant 0 : index
    %1069 = vector.load %arg22[%c0_527, %c0_528] : memref<1x32xf32, #tpu.memory_space<vmem>>, vector<1x32xf32>
    %c0_529 = arith.constant 0 : index
    %c0_530 = arith.constant 0 : index
    %1070 = vector.load %arg9[%c0_529, %c0_530] : memref<32x128xf32, #tpu.memory_space<vmem>>, vector<32x128xf32>
    %cst_531 = arith.constant dense<0.000000e+00> : vector<1x128xf32>
    %1071 = tpu.matmul %1069, %1070, %cst_531 {dimension_numbers = #tpu.dot_dimension_numbers<[1], [0], [0], [1], [0, 0, 1, 1], [], []>} : vector<1x32xf32>, vector<32x128xf32>, vector<1x128xf32> -> vector<1x128xf32>
    %1072 = arith.addf %1068, %1071 : vector<1x128xf32>
    %1073 = arith.index_cast %1066 : i32 to index
    %c0_532 = arith.constant 0 : index
    %1074 = vector.load %arg21[%1073, %c0_532] : memref<8x128xf32, #tpu.memory_space<vmem>>, vector<1x128xf32>
    %c0_533 = arith.constant 0 : index
    %c0_534 = arith.constant 0 : index
    %1075 = vector.load %arg23[%c0_533, %c0_534] : memref<1x32xf32, #tpu.memory_space<vmem>>, vector<1x32xf32>
    %c0_535 = arith.constant 0 : index
    %c0_536 = arith.constant 0 : index
    %1076 = vector.load %arg12[%c0_535, %c0_536] : memref<32x128xf32, #tpu.memory_space<vmem>>, vector<32x128xf32>
    %cst_537 = arith.constant dense<0.000000e+00> : vector<1x128xf32>
    %1077 = tpu.matmul %1075, %1076, %cst_537 {dimension_numbers = #tpu.dot_dimension_numbers<[1], [0], [0], [1], [0, 0, 1, 1], [], []>} : vector<1x32xf32>, vector<32x128xf32>, vector<1x128xf32> -> vector<1x128xf32>
    %1078 = arith.addf %1074, %1077 : vector<1x128xf32>
    %c0_538 = arith.constant 0 : index
    %c0_539 = arith.constant 0 : index
    %1079 = vector.load %arg24[%c0_538, %c0_539] : memref<1x32xf32, #tpu.memory_space<vmem>>, vector<1x32xf32>
    %1080 = vector.extract_strided_slice %1072 {offsets = [0, 0], sizes = [1, 32], strides = [1, 1]} : vector<1x128xf32> to vector<1x32xf32>
    %1081 = arith.negf %1080 : vector<1x32xf32>
    %1082 = math.exp %1081 : vector<1x32xf32>
    %cst_540 = arith.constant 1.000000e+00 : f32
    %1083 = vector.broadcast %cst_540 : f32 to vector<1x32xf32>
    %1084 = arith.addf %1083, %1082 : vector<1x32xf32>
    %1085 = arith.divf %1083, %1084 : vector<1x32xf32>
    %1086 = vector.extract_strided_slice %1072 {offsets = [0, 32], sizes = [1, 32], strides = [1, 1]} : vector<1x128xf32> to vector<1x32xf32>
    %1087 = arith.negf %1086 : vector<1x32xf32>
    %1088 = math.exp %1087 : vector<1x32xf32>
    %cst_541 = arith.constant 1.000000e+00 : f32
    %1089 = vector.broadcast %cst_541 : f32 to vector<1x32xf32>
    %1090 = arith.addf %1089, %1088 : vector<1x32xf32>
    %1091 = arith.divf %1089, %1090 : vector<1x32xf32>
    %1092 = vector.extract_strided_slice %1072 {offsets = [0, 64], sizes = [1, 32], strides = [1, 1]} : vector<1x128xf32> to vector<1x32xf32>
    %1093 = math.tanh %1092 : vector<1x32xf32>
    %1094 = vector.extract_strided_slice %1072 {offsets = [0, 96], sizes = [1, 32], strides = [1, 1]} : vector<1x128xf32> to vector<1x32xf32>
    %1095 = arith.negf %1094 : vector<1x32xf32>
    %1096 = math.exp %1095 : vector<1x32xf32>
    %cst_542 = arith.constant 1.000000e+00 : f32
    %1097 = vector.broadcast %cst_542 : f32 to vector<1x32xf32>
    %1098 = arith.addf %1097, %1096 : vector<1x32xf32>
    %1099 = arith.divf %1097, %1098 : vector<1x32xf32>
    %1100 = arith.mulf %1091, %1079 : vector<1x32xf32>
    %1101 = arith.mulf %1085, %1093 : vector<1x32xf32>
    %1102 = arith.addf %1100, %1101 : vector<1x32xf32>
    %1103 = math.tanh %1102 : vector<1x32xf32>
    %1104 = arith.mulf %1099, %1103 : vector<1x32xf32>
    %c0_543 = arith.constant 0 : index
    %c0_544 = arith.constant 0 : index
    %1105 = vector.load %arg25[%c0_543, %c0_544] : memref<1x32xf32, #tpu.memory_space<vmem>>, vector<1x32xf32>
    %1106 = vector.extract_strided_slice %1078 {offsets = [0, 0], sizes = [1, 32], strides = [1, 1]} : vector<1x128xf32> to vector<1x32xf32>
    %1107 = arith.negf %1106 : vector<1x32xf32>
    %1108 = math.exp %1107 : vector<1x32xf32>
    %cst_545 = arith.constant 1.000000e+00 : f32
    %1109 = vector.broadcast %cst_545 : f32 to vector<1x32xf32>
    %1110 = arith.addf %1109, %1108 : vector<1x32xf32>
    %1111 = arith.divf %1109, %1110 : vector<1x32xf32>
    %1112 = vector.extract_strided_slice %1078 {offsets = [0, 32], sizes = [1, 32], strides = [1, 1]} : vector<1x128xf32> to vector<1x32xf32>
    %1113 = arith.negf %1112 : vector<1x32xf32>
    %1114 = math.exp %1113 : vector<1x32xf32>
    %cst_546 = arith.constant 1.000000e+00 : f32
    %1115 = vector.broadcast %cst_546 : f32 to vector<1x32xf32>
    %1116 = arith.addf %1115, %1114 : vector<1x32xf32>
    %1117 = arith.divf %1115, %1116 : vector<1x32xf32>
    %1118 = vector.extract_strided_slice %1078 {offsets = [0, 64], sizes = [1, 32], strides = [1, 1]} : vector<1x128xf32> to vector<1x32xf32>
    %1119 = math.tanh %1118 : vector<1x32xf32>
    %1120 = vector.extract_strided_slice %1078 {offsets = [0, 96], sizes = [1, 32], strides = [1, 1]} : vector<1x128xf32> to vector<1x32xf32>
    %1121 = arith.negf %1120 : vector<1x32xf32>
    %1122 = math.exp %1121 : vector<1x32xf32>
    %cst_547 = arith.constant 1.000000e+00 : f32
    %1123 = vector.broadcast %cst_547 : f32 to vector<1x32xf32>
    %1124 = arith.addf %1123, %1122 : vector<1x32xf32>
    %1125 = arith.divf %1123, %1124 : vector<1x32xf32>
    %1126 = arith.mulf %1117, %1105 : vector<1x32xf32>
    %1127 = arith.mulf %1111, %1119 : vector<1x32xf32>
    %1128 = arith.addf %1126, %1127 : vector<1x32xf32>
    %1129 = math.tanh %1128 : vector<1x32xf32>
    %1130 = arith.mulf %1125, %1129 : vector<1x32xf32>
    %c0_548 = arith.constant 0 : index
    %c0_549 = arith.constant 0 : index
    %1131 = vector.load %arg22[%c0_548, %c0_549] : memref<1x32xf32, #tpu.memory_space<vmem>>, vector<1x32xf32>
    tpu.vector_store %arg22[%c0_548, %c0_549], %1104 {strides = array<i32>} : memref<1x32xf32, #tpu.memory_space<vmem>>, vector<1x32xf32>,
    %c0_550 = arith.constant 0 : index
    %c0_551 = arith.constant 0 : index
    %1132 = vector.load %arg24[%c0_550, %c0_551] : memref<1x32xf32, #tpu.memory_space<vmem>>, vector<1x32xf32>
    tpu.vector_store %arg24[%c0_550, %c0_551], %1102 {strides = array<i32>} : memref<1x32xf32, #tpu.memory_space<vmem>>, vector<1x32xf32>,
    %c0_552 = arith.constant 0 : index
    %c0_553 = arith.constant 0 : index
    %1133 = vector.load %arg23[%c0_552, %c0_553] : memref<1x32xf32, #tpu.memory_space<vmem>>, vector<1x32xf32>
    tpu.vector_store %arg23[%c0_552, %c0_553], %1130 {strides = array<i32>} : memref<1x32xf32, #tpu.memory_space<vmem>>, vector<1x32xf32>,
    %c0_554 = arith.constant 0 : index
    %c0_555 = arith.constant 0 : index
    %1134 = vector.load %arg25[%c0_554, %c0_555] : memref<1x32xf32, #tpu.memory_space<vmem>>, vector<1x32xf32>
    tpu.vector_store %arg25[%c0_554, %c0_555], %1128 {strides = array<i32>} : memref<1x32xf32, #tpu.memory_space<vmem>>, vector<1x32xf32>,
    %1135 = arith.index_cast %c6_i32_524 : i32 to index
    %c0_556 = arith.constant 0 : index
    %1136 = vector.load %arg28[%1135, %c0_556] : memref<8x32xf32, #tpu.memory_space<vmem>>, vector<1x32xf32>
    tpu.vector_store %arg28[%1135, %c0_556], %1104 {strides = array<i32>} : memref<8x32xf32, #tpu.memory_space<vmem>>, vector<1x32xf32>,
    %1137 = arith.index_cast %1066 : i32 to index
    %c0_557 = arith.constant 0 : index
    %1138 = vector.load %arg29[%1137, %c0_557] : memref<8x32xf32, #tpu.memory_space<vmem>>, vector<1x32xf32>
    tpu.vector_store %arg29[%1137, %c0_557], %1130 {strides = array<i32>} : memref<8x32xf32, #tpu.memory_space<vmem>>, vector<1x32xf32>,
    %c7_i32_558 = arith.constant 7 : i32
    %c7_i32_559 = arith.constant 7 : i32
    %1139 = arith.subi %c7_i32_559, %c7_i32_558 : i32
    %1140 = arith.index_cast %c7_i32_558 : i32 to index
    %c0_560 = arith.constant 0 : index
    %1141 = vector.load %arg20[%1140, %c0_560] : memref<8x128xf32, #tpu.memory_space<vmem>>, vector<1x128xf32>
    %c0_561 = arith.constant 0 : index
    %c0_562 = arith.constant 0 : index
    %1142 = vector.load %arg22[%c0_561, %c0_562] : memref<1x32xf32, #tpu.memory_space<vmem>>, vector<1x32xf32>
    %c0_563 = arith.constant 0 : index
    %c0_564 = arith.constant 0 : index
    %1143 = vector.load %arg9[%c0_563, %c0_564] : memref<32x128xf32, #tpu.memory_space<vmem>>, vector<32x128xf32>
    %cst_565 = arith.constant dense<0.000000e+00> : vector<1x128xf32>
    %1144 = tpu.matmul %1142, %1143, %cst_565 {dimension_numbers = #tpu.dot_dimension_numbers<[1], [0], [0], [1], [0, 0, 1, 1], [], []>} : vector<1x32xf32>, vector<32x128xf32>, vector<1x128xf32> -> vector<1x128xf32>
    %1145 = arith.addf %1141, %1144 : vector<1x128xf32>
    %1146 = arith.index_cast %1139 : i32 to index
    %c0_566 = arith.constant 0 : index
    %1147 = vector.load %arg21[%1146, %c0_566] : memref<8x128xf32, #tpu.memory_space<vmem>>, vector<1x128xf32>
    %c0_567 = arith.constant 0 : index
    %c0_568 = arith.constant 0 : index
    %1148 = vector.load %arg23[%c0_567, %c0_568] : memref<1x32xf32, #tpu.memory_space<vmem>>, vector<1x32xf32>
    %c0_569 = arith.constant 0 : index
    %c0_570 = arith.constant 0 : index
    %1149 = vector.load %arg12[%c0_569, %c0_570] : memref<32x128xf32, #tpu.memory_space<vmem>>, vector<32x128xf32>
    %cst_571 = arith.constant dense<0.000000e+00> : vector<1x128xf32>
    %1150 = tpu.matmul %1148, %1149, %cst_571 {dimension_numbers = #tpu.dot_dimension_numbers<[1], [0], [0], [1], [0, 0, 1, 1], [], []>} : vector<1x32xf32>, vector<32x128xf32>, vector<1x128xf32> -> vector<1x128xf32>
    %1151 = arith.addf %1147, %1150 : vector<1x128xf32>
    %c0_572 = arith.constant 0 : index
    %c0_573 = arith.constant 0 : index
    %1152 = vector.load %arg24[%c0_572, %c0_573] : memref<1x32xf32, #tpu.memory_space<vmem>>, vector<1x32xf32>
    %1153 = vector.extract_strided_slice %1145 {offsets = [0, 0], sizes = [1, 32], strides = [1, 1]} : vector<1x128xf32> to vector<1x32xf32>
    %1154 = arith.negf %1153 : vector<1x32xf32>
    %1155 = math.exp %1154 : vector<1x32xf32>
    %cst_574 = arith.constant 1.000000e+00 : f32
    %1156 = vector.broadcast %cst_574 : f32 to vector<1x32xf32>
    %1157 = arith.addf %1156, %1155 : vector<1x32xf32>
    %1158 = arith.divf %1156, %1157 : vector<1x32xf32>
    %1159 = vector.extract_strided_slice %1145 {offsets = [0, 32], sizes = [1, 32], strides = [1, 1]} : vector<1x128xf32> to vector<1x32xf32>
    %1160 = arith.negf %1159 : vector<1x32xf32>
    %1161 = math.exp %1160 : vector<1x32xf32>
    %cst_575 = arith.constant 1.000000e+00 : f32
    %1162 = vector.broadcast %cst_575 : f32 to vector<1x32xf32>
    %1163 = arith.addf %1162, %1161 : vector<1x32xf32>
    %1164 = arith.divf %1162, %1163 : vector<1x32xf32>
    %1165 = vector.extract_strided_slice %1145 {offsets = [0, 64], sizes = [1, 32], strides = [1, 1]} : vector<1x128xf32> to vector<1x32xf32>
    %1166 = math.tanh %1165 : vector<1x32xf32>
    %1167 = vector.extract_strided_slice %1145 {offsets = [0, 96], sizes = [1, 32], strides = [1, 1]} : vector<1x128xf32> to vector<1x32xf32>
    %1168 = arith.negf %1167 : vector<1x32xf32>
    %1169 = math.exp %1168 : vector<1x32xf32>
    %cst_576 = arith.constant 1.000000e+00 : f32
    %1170 = vector.broadcast %cst_576 : f32 to vector<1x32xf32>
    %1171 = arith.addf %1170, %1169 : vector<1x32xf32>
    %1172 = arith.divf %1170, %1171 : vector<1x32xf32>
    %1173 = arith.mulf %1164, %1152 : vector<1x32xf32>
    %1174 = arith.mulf %1158, %1166 : vector<1x32xf32>
    %1175 = arith.addf %1173, %1174 : vector<1x32xf32>
    %1176 = math.tanh %1175 : vector<1x32xf32>
    %1177 = arith.mulf %1172, %1176 : vector<1x32xf32>
    %c0_577 = arith.constant 0 : index
    %c0_578 = arith.constant 0 : index
    %1178 = vector.load %arg25[%c0_577, %c0_578] : memref<1x32xf32, #tpu.memory_space<vmem>>, vector<1x32xf32>
    %1179 = vector.extract_strided_slice %1151 {offsets = [0, 0], sizes = [1, 32], strides = [1, 1]} : vector<1x128xf32> to vector<1x32xf32>
    %1180 = arith.negf %1179 : vector<1x32xf32>
    %1181 = math.exp %1180 : vector<1x32xf32>
    %cst_579 = arith.constant 1.000000e+00 : f32
    %1182 = vector.broadcast %cst_579 : f32 to vector<1x32xf32>
    %1183 = arith.addf %1182, %1181 : vector<1x32xf32>
    %1184 = arith.divf %1182, %1183 : vector<1x32xf32>
    %1185 = vector.extract_strided_slice %1151 {offsets = [0, 32], sizes = [1, 32], strides = [1, 1]} : vector<1x128xf32> to vector<1x32xf32>
    %1186 = arith.negf %1185 : vector<1x32xf32>
    %1187 = math.exp %1186 : vector<1x32xf32>
    %cst_580 = arith.constant 1.000000e+00 : f32
    %1188 = vector.broadcast %cst_580 : f32 to vector<1x32xf32>
    %1189 = arith.addf %1188, %1187 : vector<1x32xf32>
    %1190 = arith.divf %1188, %1189 : vector<1x32xf32>
    %1191 = vector.extract_strided_slice %1151 {offsets = [0, 64], sizes = [1, 32], strides = [1, 1]} : vector<1x128xf32> to vector<1x32xf32>
    %1192 = math.tanh %1191 : vector<1x32xf32>
    %1193 = vector.extract_strided_slice %1151 {offsets = [0, 96], sizes = [1, 32], strides = [1, 1]} : vector<1x128xf32> to vector<1x32xf32>
    %1194 = arith.negf %1193 : vector<1x32xf32>
    %1195 = math.exp %1194 : vector<1x32xf32>
    %cst_581 = arith.constant 1.000000e+00 : f32
    %1196 = vector.broadcast %cst_581 : f32 to vector<1x32xf32>
    %1197 = arith.addf %1196, %1195 : vector<1x32xf32>
    %1198 = arith.divf %1196, %1197 : vector<1x32xf32>
    %1199 = arith.mulf %1190, %1178 : vector<1x32xf32>
    %1200 = arith.mulf %1184, %1192 : vector<1x32xf32>
    %1201 = arith.addf %1199, %1200 : vector<1x32xf32>
    %1202 = math.tanh %1201 : vector<1x32xf32>
    %1203 = arith.mulf %1198, %1202 : vector<1x32xf32>
    %c0_582 = arith.constant 0 : index
    %c0_583 = arith.constant 0 : index
    %1204 = vector.load %arg22[%c0_582, %c0_583] : memref<1x32xf32, #tpu.memory_space<vmem>>, vector<1x32xf32>
    tpu.vector_store %arg22[%c0_582, %c0_583], %1177 {strides = array<i32>} : memref<1x32xf32, #tpu.memory_space<vmem>>, vector<1x32xf32>,
    %c0_584 = arith.constant 0 : index
    %c0_585 = arith.constant 0 : index
    %1205 = vector.load %arg24[%c0_584, %c0_585] : memref<1x32xf32, #tpu.memory_space<vmem>>, vector<1x32xf32>
    tpu.vector_store %arg24[%c0_584, %c0_585], %1175 {strides = array<i32>} : memref<1x32xf32, #tpu.memory_space<vmem>>, vector<1x32xf32>,
    %c0_586 = arith.constant 0 : index
    %c0_587 = arith.constant 0 : index
    %1206 = vector.load %arg23[%c0_586, %c0_587] : memref<1x32xf32, #tpu.memory_space<vmem>>, vector<1x32xf32>
    tpu.vector_store %arg23[%c0_586, %c0_587], %1203 {strides = array<i32>} : memref<1x32xf32, #tpu.memory_space<vmem>>, vector<1x32xf32>,
    %c0_588 = arith.constant 0 : index
    %c0_589 = arith.constant 0 : index
    %1207 = vector.load %arg25[%c0_588, %c0_589] : memref<1x32xf32, #tpu.memory_space<vmem>>, vector<1x32xf32>
    tpu.vector_store %arg25[%c0_588, %c0_589], %1201 {strides = array<i32>} : memref<1x32xf32, #tpu.memory_space<vmem>>, vector<1x32xf32>,
    %1208 = arith.index_cast %c7_i32_558 : i32 to index
    %c0_590 = arith.constant 0 : index
    %1209 = vector.load %arg28[%1208, %c0_590] : memref<8x32xf32, #tpu.memory_space<vmem>>, vector<1x32xf32>
    tpu.vector_store %arg28[%1208, %c0_590], %1177 {strides = array<i32>} : memref<8x32xf32, #tpu.memory_space<vmem>>, vector<1x32xf32>,
    %1210 = arith.index_cast %1139 : i32 to index
    %c0_591 = arith.constant 0 : index
    %1211 = vector.load %arg29[%1210, %c0_591] : memref<8x32xf32, #tpu.memory_space<vmem>>, vector<1x32xf32>
    tpu.vector_store %arg29[%1210, %c0_591], %1203 {strides = array<i32>} : memref<8x32xf32, #tpu.memory_space<vmem>>, vector<1x32xf32>,
    %c8_i32_592 = arith.constant 8 : i32
    %c0_593 = arith.constant 0 : index
    %c0_594 = arith.constant 0 : index
    %1212 = vector.load %arg28[%c0_593, %c0_594] : memref<8x32xf32, #tpu.memory_space<vmem>>, vector<8x32xf32>
    %c0_595 = arith.constant 0 : index
    %c0_596 = arith.constant 0 : index
    %1213 = vector.load %arg29[%c0_595, %c0_596] : memref<8x32xf32, #tpu.memory_space<vmem>>, vector<8x32xf32>
    %1214 = tpu.concatenate %1212, %1213 in 1 : vector<8x32xf32>, vector<8x32xf32> -> vector<8x64xf32>
    %c0_597 = arith.constant 0 : index
    %c0_598 = arith.constant 0 : index
    %1215 = vector.load %arg14[%c0_597, %c0_598] : memref<64x32xf32, #tpu.memory_space<vmem>>, vector<64x32xf32>
    %cst_599 = arith.constant dense<0.000000e+00> : vector<8x32xf32>
    %1216 = tpu.matmul %1214, %1215, %cst_599 {dimension_numbers = #tpu.dot_dimension_numbers<[1], [0], [0], [1], [0, 0, 1, 1], [], []>} : vector<8x64xf32>, vector<64x32xf32>, vector<8x32xf32> -> vector<8x32xf32>
    %c0_600 = arith.constant 0 : index
    %c0_601 = arith.constant 0 : index
    %1217 = vector.load %arg15[%c0_600, %c0_601] : memref<64x32xf32, #tpu.memory_space<vmem>>, vector<64x32xf32>
    %cst_602 = arith.constant dense<0.000000e+00> : vector<8x32xf32>
    %1218 = tpu.matmul %1214, %1217, %cst_602 {dimension_numbers = #tpu.dot_dimension_numbers<[1], [0], [0], [1], [0, 0, 1, 1], [], []>} : vector<8x64xf32>, vector<64x32xf32>, vector<8x32xf32> -> vector<8x32xf32>
    %c0_603 = arith.constant 0 : index
    %c0_604 = arith.constant 0 : index
    %1219 = vector.load %arg16[%c0_603, %c0_604] : memref<1x32xf32, #tpu.memory_space<vmem>>, vector<1x32xf32>
    %1220 = vector.broadcast %1219 : vector<1x32xf32> to vector<8x32xf32>
    %1221 = arith.addf %1218, %1220 : vector<8x32xf32>
    %c0_605 = arith.constant 0 : index
    %c0_606 = arith.constant 0 : index
    %1222 = vector.load %arg17[%c0_605, %c0_606] : memref<32x1xf32, #tpu.memory_space<vmem>>, vector<32x1xf32>
    %c0_607 = arith.constant 0 : index
    %c0_608 = arith.constant 0 : index
    %1223 = vector.load %arg18[%c0_607, %c0_608] : memref<1x1xf32, #tpu.memory_space<vmem>>, vector<1x1xf32>
    %1224 = vector.extract_strided_slice %1216 {offsets = [0, 0], sizes = [1, 32], strides = [1, 1]} : vector<8x32xf32> to vector<1x32xf32>
    %1225 = vector.broadcast %1224 : vector<1x32xf32> to vector<8x32xf32>
    %1226 = arith.addf %1221, %1225 : vector<8x32xf32>
    %1227 = math.tanh %1226 : vector<8x32xf32>
    %cst_609 = arith.constant dense<0.000000e+00> : vector<8x1xf32>
    %1228 = tpu.matmul %1227, %1222, %cst_609 {dimension_numbers = #tpu.dot_dimension_numbers<[1], [0], [0], [1], [0, 0, 1, 1], [], []>} : vector<8x32xf32>, vector<32x1xf32>, vector<8x1xf32> -> vector<8x1xf32>
    %1229 = vector.broadcast %1223 : vector<1x1xf32> to vector<8x1xf32>
    %1230 = arith.addf %1228, %1229 : vector<8x1xf32>
    %c0_610 = arith.constant 0 : index
    %c0_611 = arith.constant 0 : index
    %1231 = vector.load %arg19[%c0_610, %c0_611] : memref<8x8xf32, #tpu.memory_space<vmem>>, vector<8x1xf32>
    tpu.vector_store %arg19[%c0_610, %c0_611], %1230 {strides = array<i32>} : memref<8x8xf32, #tpu.memory_space<vmem>>, vector<8x1xf32>,
    %1232 = vector.extract_strided_slice %1216 {offsets = [1, 0], sizes = [1, 32], strides = [1, 1]} : vector<8x32xf32> to vector<1x32xf32>
    %1233 = vector.broadcast %1232 : vector<1x32xf32> to vector<8x32xf32>
    %1234 = arith.addf %1221, %1233 : vector<8x32xf32>
    %1235 = math.tanh %1234 : vector<8x32xf32>
    %cst_612 = arith.constant dense<0.000000e+00> : vector<8x1xf32>
    %1236 = tpu.matmul %1235, %1222, %cst_612 {dimension_numbers = #tpu.dot_dimension_numbers<[1], [0], [0], [1], [0, 0, 1, 1], [], []>} : vector<8x32xf32>, vector<32x1xf32>, vector<8x1xf32> -> vector<8x1xf32>
    %1237 = vector.broadcast %1223 : vector<1x1xf32> to vector<8x1xf32>
    %1238 = arith.addf %1236, %1237 : vector<8x1xf32>
    %c0_613 = arith.constant 0 : index
    %c1 = arith.constant 1 : index
    %1239 = vector.load %arg19[%c0_613, %c1] : memref<8x8xf32, #tpu.memory_space<vmem>>, vector<8x1xf32>
    tpu.vector_store %arg19[%c0_613, %c1], %1238 {strides = array<i32>} : memref<8x8xf32, #tpu.memory_space<vmem>>, vector<8x1xf32>,
    %1240 = vector.extract_strided_slice %1216 {offsets = [2, 0], sizes = [1, 32], strides = [1, 1]} : vector<8x32xf32> to vector<1x32xf32>
    %1241 = vector.broadcast %1240 : vector<1x32xf32> to vector<8x32xf32>
    %1242 = arith.addf %1221, %1241 : vector<8x32xf32>
    %1243 = math.tanh %1242 : vector<8x32xf32>
    %cst_614 = arith.constant dense<0.000000e+00> : vector<8x1xf32>
    %1244 = tpu.matmul %1243, %1222, %cst_614 {dimension_numbers = #tpu.dot_dimension_numbers<[1], [0], [0], [1], [0, 0, 1, 1], [], []>} : vector<8x32xf32>, vector<32x1xf32>, vector<8x1xf32> -> vector<8x1xf32>
    %1245 = vector.broadcast %1223 : vector<1x1xf32> to vector<8x1xf32>
    %1246 = arith.addf %1244, %1245 : vector<8x1xf32>
    %c0_615 = arith.constant 0 : index
    %c2 = arith.constant 2 : index
    %1247 = vector.load %arg19[%c0_615, %c2] : memref<8x8xf32, #tpu.memory_space<vmem>>, vector<8x1xf32>
    tpu.vector_store %arg19[%c0_615, %c2], %1246 {strides = array<i32>} : memref<8x8xf32, #tpu.memory_space<vmem>>, vector<8x1xf32>,
    %1248 = vector.extract_strided_slice %1216 {offsets = [3, 0], sizes = [1, 32], strides = [1, 1]} : vector<8x32xf32> to vector<1x32xf32>
    %1249 = vector.broadcast %1248 : vector<1x32xf32> to vector<8x32xf32>
    %1250 = arith.addf %1221, %1249 : vector<8x32xf32>
    %1251 = math.tanh %1250 : vector<8x32xf32>
    %cst_616 = arith.constant dense<0.000000e+00> : vector<8x1xf32>
    %1252 = tpu.matmul %1251, %1222, %cst_616 {dimension_numbers = #tpu.dot_dimension_numbers<[1], [0], [0], [1], [0, 0, 1, 1], [], []>} : vector<8x32xf32>, vector<32x1xf32>, vector<8x1xf32> -> vector<8x1xf32>
    %1253 = vector.broadcast %1223 : vector<1x1xf32> to vector<8x1xf32>
    %1254 = arith.addf %1252, %1253 : vector<8x1xf32>
    %c0_617 = arith.constant 0 : index
    %c3 = arith.constant 3 : index
    %1255 = vector.load %arg19[%c0_617, %c3] : memref<8x8xf32, #tpu.memory_space<vmem>>, vector<8x1xf32>
    tpu.vector_store %arg19[%c0_617, %c3], %1254 {strides = array<i32>} : memref<8x8xf32, #tpu.memory_space<vmem>>, vector<8x1xf32>,
    %1256 = vector.extract_strided_slice %1216 {offsets = [4, 0], sizes = [1, 32], strides = [1, 1]} : vector<8x32xf32> to vector<1x32xf32>
    %1257 = vector.broadcast %1256 : vector<1x32xf32> to vector<8x32xf32>
    %1258 = arith.addf %1221, %1257 : vector<8x32xf32>
    %1259 = math.tanh %1258 : vector<8x32xf32>
    %cst_618 = arith.constant dense<0.000000e+00> : vector<8x1xf32>
    %1260 = tpu.matmul %1259, %1222, %cst_618 {dimension_numbers = #tpu.dot_dimension_numbers<[1], [0], [0], [1], [0, 0, 1, 1], [], []>} : vector<8x32xf32>, vector<32x1xf32>, vector<8x1xf32> -> vector<8x1xf32>
    %1261 = vector.broadcast %1223 : vector<1x1xf32> to vector<8x1xf32>
    %1262 = arith.addf %1260, %1261 : vector<8x1xf32>
    %c0_619 = arith.constant 0 : index
    %c4 = arith.constant 4 : index
    %1263 = vector.load %arg19[%c0_619, %c4] : memref<8x8xf32, #tpu.memory_space<vmem>>, vector<8x1xf32>
    tpu.vector_store %arg19[%c0_619, %c4], %1262 {strides = array<i32>} : memref<8x8xf32, #tpu.memory_space<vmem>>, vector<8x1xf32>,
    %1264 = vector.extract_strided_slice %1216 {offsets = [5, 0], sizes = [1, 32], strides = [1, 1]} : vector<8x32xf32> to vector<1x32xf32>
    %1265 = vector.broadcast %1264 : vector<1x32xf32> to vector<8x32xf32>
    %1266 = arith.addf %1221, %1265 : vector<8x32xf32>
    %1267 = math.tanh %1266 : vector<8x32xf32>
    %cst_620 = arith.constant dense<0.000000e+00> : vector<8x1xf32>
    %1268 = tpu.matmul %1267, %1222, %cst_620 {dimension_numbers = #tpu.dot_dimension_numbers<[1], [0], [0], [1], [0, 0, 1, 1], [], []>} : vector<8x32xf32>, vector<32x1xf32>, vector<8x1xf32> -> vector<8x1xf32>
    %1269 = vector.broadcast %1223 : vector<1x1xf32> to vector<8x1xf32>
    %1270 = arith.addf %1268, %1269 : vector<8x1xf32>
    %c0_621 = arith.constant 0 : index
    %c5 = arith.constant 5 : index
    %1271 = vector.load %arg19[%c0_621, %c5] : memref<8x8xf32, #tpu.memory_space<vmem>>, vector<8x1xf32>
    tpu.vector_store %arg19[%c0_621, %c5], %1270 {strides = array<i32>} : memref<8x8xf32, #tpu.memory_space<vmem>>, vector<8x1xf32>,
    %1272 = vector.extract_strided_slice %1216 {offsets = [6, 0], sizes = [1, 32], strides = [1, 1]} : vector<8x32xf32> to vector<1x32xf32>
    %1273 = vector.broadcast %1272 : vector<1x32xf32> to vector<8x32xf32>
    %1274 = arith.addf %1221, %1273 : vector<8x32xf32>
    %1275 = math.tanh %1274 : vector<8x32xf32>
    %cst_622 = arith.constant dense<0.000000e+00> : vector<8x1xf32>
    %1276 = tpu.matmul %1275, %1222, %cst_622 {dimension_numbers = #tpu.dot_dimension_numbers<[1], [0], [0], [1], [0, 0, 1, 1], [], []>} : vector<8x32xf32>, vector<32x1xf32>, vector<8x1xf32> -> vector<8x1xf32>
    %1277 = vector.broadcast %1223 : vector<1x1xf32> to vector<8x1xf32>
    %1278 = arith.addf %1276, %1277 : vector<8x1xf32>
    %c0_623 = arith.constant 0 : index
    %c6 = arith.constant 6 : index
    %1279 = vector.load %arg19[%c0_623, %c6] : memref<8x8xf32, #tpu.memory_space<vmem>>, vector<8x1xf32>
    tpu.vector_store %arg19[%c0_623, %c6], %1278 {strides = array<i32>} : memref<8x8xf32, #tpu.memory_space<vmem>>, vector<8x1xf32>,
    %1280 = vector.extract_strided_slice %1216 {offsets = [7, 0], sizes = [1, 32], strides = [1, 1]} : vector<8x32xf32> to vector<1x32xf32>
    %1281 = vector.broadcast %1280 : vector<1x32xf32> to vector<8x32xf32>
    %1282 = arith.addf %1221, %1281 : vector<8x32xf32>
    %1283 = math.tanh %1282 : vector<8x32xf32>
    %cst_624 = arith.constant dense<0.000000e+00> : vector<8x1xf32>
    %1284 = tpu.matmul %1283, %1222, %cst_624 {dimension_numbers = #tpu.dot_dimension_numbers<[1], [0], [0], [1], [0, 0, 1, 1], [], []>} : vector<8x32xf32>, vector<32x1xf32>, vector<8x1xf32> -> vector<8x1xf32>
    %1285 = vector.broadcast %1223 : vector<1x1xf32> to vector<8x1xf32>
    %1286 = arith.addf %1284, %1285 : vector<8x1xf32>
    %c0_625 = arith.constant 0 : index
    %c7 = arith.constant 7 : index
    %1287 = vector.load %arg19[%c0_625, %c7] : memref<8x8xf32, #tpu.memory_space<vmem>>, vector<8x1xf32>
    tpu.vector_store %arg19[%c0_625, %c7], %1286 {strides = array<i32>} : memref<8x8xf32, #tpu.memory_space<vmem>>, vector<8x1xf32>,
    return
  }
  func.func @transform_0(%arg0: i32) -> (i32, i32) {
    %c0_i32 = arith.constant 0 : i32
    %c0_i32_0 = arith.constant 0 : i32
    %c0_i32_1 = arith.constant 0 : i32
    return %c0_i32, %c0_i32_0 : i32, i32
  }
  func.func @transform_1(%arg0: i32) -> (i32, i32) {
    %c0_i32 = arith.constant 0 : i32
    %c0_i32_0 = arith.constant 0 : i32
    %c0_i32_1 = arith.constant 0 : i32
    return %c0_i32, %c0_i32_0 : i32, i32
  }
  func.func @transform_2(%arg0: i32) -> (i32, i32) {
    %c0_i32 = arith.constant 0 : i32
    %c0_i32_0 = arith.constant 0 : i32
    %c0_i32_1 = arith.constant 0 : i32
    return %c0_i32, %c0_i32_0 : i32, i32
  }
  func.func @transform_3(%arg0: i32) -> (i32, i32) {
    %c0_i32 = arith.constant 0 : i32
    %c0_i32_0 = arith.constant 0 : i32
    %c0_i32_1 = arith.constant 0 : i32
    return %c0_i32, %c0_i32_0 : i32, i32
  }
  func.func @transform_4(%arg0: i32) -> (i32, i32) {
    %c0_i32 = arith.constant 0 : i32
    %c0_i32_0 = arith.constant 0 : i32
    %c0_i32_1 = arith.constant 0 : i32
    return %c0_i32, %c0_i32_0 : i32, i32
  }
  func.func @transform_5(%arg0: i32) -> (i32, i32) {
    %c0_i32 = arith.constant 0 : i32
    %c0_i32_0 = arith.constant 0 : i32
    %c0_i32_1 = arith.constant 0 : i32
    return %c0_i32, %c0_i32_0 : i32, i32
  }
  func.func @transform_6(%arg0: i32) -> (i32, i32) {
    %c0_i32 = arith.constant 0 : i32
    %c0_i32_0 = arith.constant 0 : i32
    %c0_i32_1 = arith.constant 0 : i32
    return %c0_i32, %c0_i32_0 : i32, i32
  }
  func.func @transform_7(%arg0: i32) -> (i32, i32) {
    %c0_i32 = arith.constant 0 : i32
    %c0_i32_0 = arith.constant 0 : i32
    %c0_i32_1 = arith.constant 0 : i32
    return %c0_i32, %c0_i32_0 : i32, i32
  }
  func.func @transform_8(%arg0: i32) -> (i32, i32) {
    %c0_i32 = arith.constant 0 : i32
    %c0_i32_0 = arith.constant 0 : i32
    %c0_i32_1 = arith.constant 0 : i32
    return %c0_i32, %c0_i32_0 : i32, i32
  }
  func.func @transform_9(%arg0: i32) -> (i32, i32) {
    %c0_i32 = arith.constant 0 : i32
    %c0_i32_0 = arith.constant 0 : i32
    %c0_i32_1 = arith.constant 0 : i32
    return %c0_i32, %c0_i32_0 : i32, i32
  }
  func.func @transform_10(%arg0: i32) -> (i32, i32) {
    %c0_i32 = arith.constant 0 : i32
    %c0_i32_0 = arith.constant 0 : i32
    %c0_i32_1 = arith.constant 0 : i32
    return %c0_i32, %c0_i32_0 : i32, i32
  }
  func.func @transform_11(%arg0: i32) -> (i32, i32) {
    %c0_i32 = arith.constant 0 : i32
    %c0_i32_0 = arith.constant 0 : i32
    %c0_i32_1 = arith.constant 0 : i32
    return %c0_i32, %c0_i32_0 : i32, i32
  }
  func.func @transform_12(%arg0: i32) -> (i32, i32) {
    %c0_i32 = arith.constant 0 : i32
    %c0_i32_0 = arith.constant 0 : i32
    %c0_i32_1 = arith.constant 0 : i32
    return %c0_i32, %c0_i32_0 : i32, i32
  }
  func.func @transform_13(%arg0: i32) -> (i32, i32) {
    %c0_i32 = arith.constant 0 : i32
    %c0_i32_0 = arith.constant 0 : i32
    %c0_i32_1 = arith.constant 0 : i32
    return %c0_i32, %c0_i32_0 : i32, i32
  }
  func.func @transform_14(%arg0: i32) -> (i32, i32) {
    %c0_i32 = arith.constant 0 : i32
    %c0_i32_0 = arith.constant 0 : i32
    %c0_i32_1 = arith.constant 0 : i32
    return %c0_i32, %c0_i32_0 : i32, i32
  }
  func.func @transform_15(%arg0: i32) -> (i32, i32) {
    %c0_i32 = arith.constant 0 : i32
    %c0_i32_0 = arith.constant 0 : i32
    %c0_i32_1 = arith.constant 0 : i32
    return %c0_i32, %c0_i32_0 : i32, i32
  }
  func.func @transform_16(%arg0: i32) -> (i32, i32) {
    %c0_i32 = arith.constant 0 : i32
    %c0_i32_0 = arith.constant 0 : i32
    %c0_i32_1 = arith.constant 0 : i32
    return %c0_i32, %c0_i32_0 : i32, i32
  }
  func.func @transform_17(%arg0: i32) -> (i32, i32) {
    %c0_i32 = arith.constant 0 : i32
    %c0_i32_0 = arith.constant 0 : i32
    %c0_i32_1 = arith.constant 0 : i32
    return %c0_i32, %c0_i32_0 : i32, i32
  }
  func.func @transform_18(%arg0: i32) -> (i32, i32) {
    %c0_i32 = arith.constant 0 : i32
    %c0_i32_0 = arith.constant 0 : i32
    %c0_i32_1 = arith.constant 0 : i32
    return %c0_i32, %c0_i32_0 : i32, i32
  }
}

</mosaic_0001>

<llo_original>
// kernel: tpu_custom_call.1
$region0: #{tpu_custom_call.1}
  #allocation0 [shape = 'u32[]', space=smem, size = 0x4, offset = 0x4, fixed_abs, tag = 'smem constant byte address 0x4 - core index']
  #allocation1 [shape = 'u32[144,128]{1,0:T(1,128)}', space=vmem, size = 0x12000, scoped, tag = 'internal scratch']
  #allocation2 [shape = 'f32[8,128]{1,0:T(8,128)}', space=vmem, size = 0x1000, scoped, tag = 'scratch operand']
  #allocation3 [shape = 'f32[8,128]{1,0:T(8,128)}', space=vmem, size = 0x1000, scoped, tag = 'scratch operand']
  #allocation4 [shape = 'f32[1,32]{1,0:T(1,128)}', space=vmem, size = 0x200, scoped, tag = 'scratch operand']
  #allocation5 [shape = 'f32[1,32]{1,0:T(1,128)}', space=vmem, size = 0x200, scoped, tag = 'scratch operand']
  #allocation6 [shape = 'f32[1,32]{1,0:T(1,128)}', space=vmem, size = 0x200, scoped, tag = 'scratch operand']
  #allocation7 [shape = 'f32[1,32]{1,0:T(1,128)}', space=vmem, size = 0x200, scoped, tag = 'scratch operand']
  #allocation8 [shape = 'f32[8,32]{1,0:T(8,128)}', space=vmem, size = 0x1000, scoped, tag = 'scratch operand']
  #allocation9 [shape = 'f32[8,32]{1,0:T(8,128)}', space=vmem, size = 0x1000, scoped, tag = 'scratch operand']
  #allocation10 [shape = 'f32[8,32]{1,0:T(8,128)}', space=vmem, size = 0x1000, scoped, tag = 'scratch operand']
  #allocation11 [shape = 'f32[8,32]{1,0:T(8,128)}', space=vmem, size = 0x1000, scoped, tag = 'scratch operand']
  #allocation12 [shape = 'f32[1,1]{1,0:T(1,128)S(1)}', space=vmem, size = 0x200, scoped, tag = 'scoped memory for tpu_custom_call.1']
  %s0 = inlined_call_operand.hbm [shape: f32[8,32], index: 0, kind: input, shape index: {}]
  %s1 = inlined_call_operand.vmem [shape: f32[32,128], index: 1, kind: input, shape index: {}]
  %s2 = inlined_call_operand.hbm [shape: f32[32,128], index: 2, kind: input, shape index: {}]
  %s3 = inlined_call_operand.vmem [shape: f32[1,128], index: 3, kind: input, shape index: {}]
  %s4 = inlined_call_operand.hbm [shape: f32[32,128], index: 4, kind: input, shape index: {}]
  %s5 = inlined_call_operand.hbm [shape: f32[32,128], index: 5, kind: input, shape index: {}]
  %s6 = inlined_call_operand.vmem [shape: f32[1,128], index: 6, kind: input, shape index: {}]
  %s7 = inlined_call_operand.vmem [shape: f32[64,128], index: 7, kind: input, shape index: {}]
  %s8 = inlined_call_operand.vmem [shape: f32[32,128], index: 8, kind: input, shape index: {}]
  %s9 = inlined_call_operand.vmem [shape: f32[1,128], index: 9, kind: input, shape index: {}]
  %s10 = inlined_call_operand.vmem [shape: f32[64,128], index: 10, kind: input, shape index: {}]
  %s11 = inlined_call_operand.hbm [shape: f32[32,128], index: 11, kind: input, shape index: {}]
  %s12 = inlined_call_operand.vmem [shape: f32[1,128], index: 12, kind: input, shape index: {}]
  %s13 = inlined_call_operand.vmem [shape: f32[64,32], index: 13, kind: input, shape index: {}]
  %s14 = inlined_call_operand.vmem [shape: f32[64,32], index: 14, kind: input, shape index: {}]
  %s15 = inlined_call_operand.vmem [shape: f32[1,32], index: 15, kind: input, shape index: {}]
  %s16 = inlined_call_operand.vmem [shape: f32[32,1], index: 16, kind: input, shape index: {}]
  %s17 = inlined_call_operand.<no memory space> [shape: f32[1,1], index: 17, kind: input, shape index: {}]
  %s18 = inlined_call_operand.hbm [shape: f32[8,8], index: 18, kind: output, shape index: {}]
  %s19 = sld [smem:[#allocation0]]
  $region102: #{tpu_custom_call.1} parent=0
    _
  %s21 = ssub.s32 1, %s19
  %s22 = scalar_select 0, %s21, %s19
  %v23 = vstv %s17
  %24 = vst [vmem:[#allocation12] sm:$0x1] %v23
  $region1: #{tpu_custom_call.1} parent=0
    #allocation13 [shape = 'u8[4096]{0}', space=vmem, size = 0x1000, scoped, tag = 'input window, operand 0, single buffered']
    #allocation14 [shape = 's32[1]{0}', space=sflag, size = 0x4, scoped, tag = 'scoped memory for tpu_custom_call.1']
    #allocation15 [shape = 's32[1]{0}', space=sflag, size = 0x4, scoped, tag = 'scoped memory for tpu_custom_call.1']
    #allocation16 [shape = 'u8[16384]{0}', space=vmem, size = 0x4000, scoped, tag = 'input window, operand 2, single buffered']
    #allocation17 [shape = 's32[1]{0}', space=sflag, size = 0x4, scoped, tag = 'scoped memory for tpu_custom_call.1']
    #allocation18 [shape = 'u8[16384]{0}', space=vmem, size = 0x4000, scoped, tag = 'input window, operand 4, single buffered']
    #allocation19 [shape = 'u8[16384]{0}', space=vmem, size = 0x4000, scoped, tag = 'input window, operand 5, single buffered']
    #allocation20 [shape = 's32[1]{0}', space=sflag, size = 0x4, scoped, tag = 'scoped memory for tpu_custom_call.1']
    #allocation21 [shape = 'u8[16384]{0}', space=vmem, size = 0x4000, scoped, tag = 'input window, operand 11, single buffered']
    #allocation22 [shape = 'u8[4096]{0}', space=vmem, size = 0x1000, scoped, tag = 'output window, operand 0, single buffered']
    %25 = vsyncpa [#allocation14], 0
    %26 = vsyncpa [#allocation17], 0
    %27 = vsyncpa [#allocation20], 0
    %28 = vsyncpa [#allocation15], 0
    // Predicated region
    $region2: #{tpu_custom_call.1} parent=1 // pred_check
      _
    $region3: #{tpu_custom_call.1} parent=1 // pred_check_branch
      %30 = sbr.rel (0) target = $region5
    $region4: #{tpu_custom_call.1} parent=1 // pred_region
      %s32 = ssub.s32 128, 128
      %33 = vsyncadd [#allocation14], %s32
      %s35 = sshll.u32 [#allocation13], 4
      %s36 = int_to_ptr.vmem [resolvable:$true] %s35
      %38 = dma.hbm_to_vmem [thread:$0]  %s0, 128, %s36, [#allocation14]
    $region5: #{tpu_custom_call.1} parent=1 // pred_fallthru
      _
    // Predicated region
    $region6: #{tpu_custom_call.1} parent=1 // pred_check
      _
    $region7: #{tpu_custom_call.1} parent=1 // pred_check_branch
      %40 = sbr.rel (0) target = $region9
    $region8: #{tpu_custom_call.1} parent=1 // pred_region
      _
    $region9: #{tpu_custom_call.1} parent=1 // pred_fallthru
      _
    // Predicated region
    $region10: #{tpu_custom_call.1} parent=1 // pred_check
      _
    $region11: #{tpu_custom_call.1} parent=1 // pred_check_branch
      %42 = sbr.rel (0) target = $region13
    $region12: #{tpu_custom_call.1} parent=1 // pred_region
      %s44 = ssub.s32 512, 512
      %45 = vsyncadd [#allocation17], %s44
      %s46 = sshll.u32 [#allocation16], 4
      %s47 = int_to_ptr.vmem [resolvable:$true] %s46
      %52 = dma.hbm_to_vmem [thread:$0]  %s2, 512, %s47, [#allocation17], 128, 128, 8
    $region13: #{tpu_custom_call.1} parent=1 // pred_fallthru
      _
    // Predicated region
    $region14: #{tpu_custom_call.1} parent=1 // pred_check
      _
    $region15: #{tpu_custom_call.1} parent=1 // pred_check_branch
      %54 = sbr.rel (0) target = $region17
    $region16: #{tpu_custom_call.1} parent=1 // pred_region
      _
    $region17: #{tpu_custom_call.1} parent=1 // pred_fallthru
      _
    // Predicated region
    $region18: #{tpu_custom_call.1} parent=1 // pred_check
      _
    $region19: #{tpu_custom_call.1} parent=1 // pred_check_branch
      %56 = sbr.rel (0) target = $region21
    $region20: #{tpu_custom_call.1} parent=1 // pred_region
      %s58 = ssub.s32 512, 512
      %59 = vsyncadd [#allocation17], %s58
      %s60 = sshll.u32 [#allocation18], 4
      %s61 = int_to_ptr.vmem [resolvable:$true] %s60
      %66 = dma.hbm_to_vmem [thread:$0]  %s4, 512, %s61, [#allocation17], 128, 128, 8
    $region21: #{tpu_custom_call.1} parent=1 // pred_fallthru
      _
    // Predicated region
    $region22: #{tpu_custom_call.1} parent=1 // pred_check
      _
    $region23: #{tpu_custom_call.1} parent=1 // pred_check_branch
      %68 = sbr.rel (0) target = $region25
    $region24: #{tpu_custom_call.1} parent=1 // pred_region
      %s70 = ssub.s32 512, 512
      %71 = vsyncadd [#allocation20], %s70
      %s72 = sshll.u32 [#allocation19], 4
      %s73 = int_to_ptr.vmem [resolvable:$true] %s72
      %78 = dma.hbm_to_vmem [thread:$0]  %s5, 512, %s73, [#allocation20], 128, 128, 8
    $region25: #{tpu_custom_call.1} parent=1 // pred_fallthru
      _
    // Predicated region
    $region26: #{tpu_custom_call.1} parent=1 // pred_check
      _
    $region27: #{tpu_custom_call.1} parent=1 // pred_check_branch
      %80 = sbr.rel (0) target = $region29
    $region28: #{tpu_custom_call.1} parent=1 // pred_region
      _
    $region29: #{tpu_custom_call.1} parent=1 // pred_fallthru
      _
    // Predicated region
    $region30: #{tpu_custom_call.1} parent=1 // pred_check
      _
    $region31: #{tpu_custom_call.1} parent=1 // pred_check_branch
      %82 = sbr.rel (0) target = $region33
    $region32: #{tpu_custom_call.1} parent=1 // pred_region
      _
    $region33: #{tpu_custom_call.1} parent=1 // pred_fallthru
      _
    // Predicated region
    $region34: #{tpu_custom_call.1} parent=1 // pred_check
      _
    $region35: #{tpu_custom_call.1} parent=1 // pred_check_branch
      %84 = sbr.rel (0) target = $region37
    $region36: #{tpu_custom_call.1} parent=1 // pred_region
      _
    $region37: #{tpu_custom_call.1} parent=1 // pred_fallthru
      _
    // Predicated region
    $region38: #{tpu_custom_call.1} parent=1 // pred_check
      _
    $region39: #{tpu_custom_call.1} parent=1 // pred_check_branch
      %86 = sbr.rel (0) target = $region41
    $region40: #{tpu_custom_call.1} parent=1 // pred_region
      _
    $region41: #{tpu_custom_call.1} parent=1 // pred_fallthru
      _
    // Predicated region
    $region42: #{tpu_custom_call.1} parent=1 // pred_check
      _
    $region43: #{tpu_custom_call.1} parent=1 // pred_check_branch
      %88 = sbr.rel (0) target = $region45
    $region44: #{tpu_custom_call.1} parent=1 // pred_region
      _
    $region45: #{tpu_custom_call.1} parent=1 // pred_fallthru
      _
    // Predicated region
    $region46: #{tpu_custom_call.1} parent=1 // pred_check
      _
    $region47: #{tpu_custom_call.1} parent=1 // pred_check_branch
      %90 = sbr.rel (0) target = $region49
    $region48: #{tpu_custom_call.1} parent=1 // pred_region
      %s92 = ssub.s32 512, 512
      %93 = vsyncadd [#allocation20], %s92
      %s94 = sshll.u32 [#allocation21], 4
      %s95 = int_to_ptr.vmem [resolvable:$true] %s94
      %100 = dma.hbm_to_vmem [thread:$0]  %s11, 512, %s95, [#allocation20], 128, 128, 8
    $region49: #{tpu_custom_call.1} parent=1 // pred_fallthru
      _
    // Predicated region
    $region50: #{tpu_custom_call.1} parent=1 // pred_check
      _
    $region51: #{tpu_custom_call.1} parent=1 // pred_check_branch
      %102 = sbr.rel (0) target = $region53
    $region52: #{tpu_custom_call.1} parent=1 // pred_region
      _
    $region53: #{tpu_custom_call.1} parent=1 // pred_fallthru
      _
    // Predicated region
    $region54: #{tpu_custom_call.1} parent=1 // pred_check
      _
    $region55: #{tpu_custom_call.1} parent=1 // pred_check_branch
      %104 = sbr.rel (0) target = $region57
    $region56: #{tpu_custom_call.1} parent=1 // pred_region
      _
    $region57: #{tpu_custom_call.1} parent=1 // pred_fallthru
      _
    // Predicated region
    $region58: #{tpu_custom_call.1} parent=1 // pred_check
      _
    $region59: #{tpu_custom_call.1} parent=1 // pred_check_branch
      %106 = sbr.rel (0) target = $region61
    $region60: #{tpu_custom_call.1} parent=1 // pred_region
      _
    $region61: #{tpu_custom_call.1} parent=1 // pred_fallthru
      _
    // Predicated region
    $region62: #{tpu_custom_call.1} parent=1 // pred_check
      _
    $region63: #{tpu_custom_call.1} parent=1 // pred_check_branch
      %108 = sbr.rel (0) target = $region65
    $region64: #{tpu_custom_call.1} parent=1 // pred_region
      _
    $region65: #{tpu_custom_call.1} parent=1 // pred_fallthru
      _
    // Predicated region
    $region66: #{tpu_custom_call.1} parent=1 // pred_check
      _
    $region67: #{tpu_custom_call.1} parent=1 // pred_check_branch
      %110 = sbr.rel (0) target = $region69
    $region68: #{tpu_custom_call.1} parent=1 // pred_region
      _
    $region69: #{tpu_custom_call.1} parent=1 // pred_fallthru
      _
    // Predicated region
    $region70: #{tpu_custom_call.1} parent=1 // pred_check
      _
    $region71: #{tpu_custom_call.1} parent=1 // pred_check_branch
      %112 = sbr.rel (0) target = $region73
    $region72: #{tpu_custom_call.1} parent=1 // pred_region
      _
    $region73: #{tpu_custom_call.1} parent=1 // pred_fallthru
      _
    // Predicated region
    $region74: #{tpu_custom_call.1} parent=1 // pred_check
      _
    $region75: #{tpu_custom_call.1} parent=1 // pred_check_branch
      %114 = sbr.rel (0) target = $region77
    $region76: #{tpu_custom_call.1} parent=1 // pred_region
      %115 = dma.done [#allocation14], 128
    $region77: #{tpu_custom_call.1} parent=1 // pred_fallthru
      _
    // Predicated region
    $region78: #{tpu_custom_call.1} parent=1 // pred_check
      _
    $region79: #{tpu_custom_call.1} parent=1 // pred_check_branch
      %117 = sbr.rel (0) target = $region81
    $region80: #{tpu_custom_call.1} parent=1 // pred_region
      %118 = dma.done [#allocation17], 512
    $region81: #{tpu_custom_call.1} parent=1 // pred_fallthru
      _
    // Predicated region
    $region82: #{tpu_custom_call.1} parent=1 // pred_check
      _
    $region83: #{tpu_custom_call.1} parent=1 // pred_check_branch
      %120 = sbr.rel (0) target = $region85
    $region84: #{tpu_custom_call.1} parent=1 // pred_region
      %121 = dma.done [#allocation17], 512
    $region85: #{tpu_custom_call.1} parent=1 // pred_fallthru
      _
    // Predicated region
    $region86: #{tpu_custom_call.1} parent=1 // pred_check
      _
    $region87: #{tpu_custom_call.1} parent=1 // pred_check_branch
      %123 = sbr.rel (0) target = $region89
    $region88: #{tpu_custom_call.1} parent=1 // pred_region
      %124 = dma.done [#allocation20], 512
    $region89: #{tpu_custom_call.1} parent=1 // pred_fallthru
      _
    // Predicated region
    $region90: #{tpu_custom_call.1} parent=1 // pred_check
      _
    $region91: #{tpu_custom_call.1} parent=1 // pred_check_branch
      %126 = sbr.rel (0) target = $region93
    $region92: #{tpu_custom_call.1} parent=1 // pred_region
      %127 = dma.done [#allocation20], 512
    $region93: #{tpu_custom_call.1} parent=1 // pred_fallthru
      _
    %v128 = vld [vmem:[#allocation13] sm:$0xff]
    %v129 = vld [vmem:[%s1] sm:$0xff]
    %v130 = vld [vmem:[%s1 + $0x8] sm:$0xff]
    %v131 = vld [vmem:[%s1 + $0x10] sm:$0xff]
    %v132 = vld [vmem:[%s1 + $0x18] sm:$0xff]
    %v133 = vld [vmem:[%s3] sm:$0x1]
    %v135 = vlaneseq
    %v136 = vshrl.u32 %v135, 7
    %v137 = vsub.s32 0, %v136
    %v138 = vrot.slane %v133, %v137
    %vm140 = vcmask 261120
    %v142 = vsel %vm140, %v128, 0
    %144 = vmatprep.subr.mxu0 0.0
    %145 = vmatpush1.msra.mxu0 %v129
    %146 = vmatprep.subr.mxu0 0.0
    %147 = vmatpush1.msra.mxu0 %v130
    %148 = vmatprep.subr.mxu0 0.0
    %149 = vmatpush1.msra.mxu0 %v131
    %150 = vmatprep.subr.mxu0 0.0
    %151 = vmatpush1.msra.mxu0 %v132
    %152 = vmatprep.subr.mxu0 0.0
    %153 = vmatpush1.msra.mxu0 0.0
    %154 = vmatprep.subr.mxu0 0.0
    %155 = vmatpush1.msra.mxu0 0.0
    %156 = vmatprep.subr.mxu0 0.0
    %157 = vmatpush1.msra.mxu0 0.0
    %158 = vmatprep.subr.mxu0 0.0
    %159 = vmatpush1.msra.mxu0 0.0
    %160 = vmatprep.subr.mxu0 0.0
    %161 = vmatpush1.msra.mxu0 0.0
    %162 = vmatprep.subr.mxu0 0.0
    %163 = vmatpush1.msra.mxu0 0.0
    %164 = vmatprep.subr.mxu0 0.0
    %165 = vmatpush1.msra.mxu0 0.0
    %166 = vmatprep.subr.mxu0 0.0
    %167 = vmatpush1.msra.mxu0 0.0
    %168 = vmatprep.subr.mxu0 0.0
    %169 = vmatpush1.msra.mxu0 0.0
    %170 = vmatprep.subr.mxu0 0.0
    %171 = vmatpush1.msra.mxu0 0.0
    %172 = vmatprep.subr.mxu0 0.0
    %173 = vmatpush1.msra.mxu0 0.0
    %174 = vmatprep.subr.mxu0 0.0
    %175 = vmatpush1.msra.mxu0 0.0
    %176 = vmatprep.subr.mxu0 0.0
    %177 = vmatpush1.msra.mxu0 0.0
    %178 = vmatprep.subr.mxu0 0.0
    %179 = vmatpush1.msra.mxu0 0.0
    %180 = vmatprep.subr.mxu0 0.0
    %181 = vmatpush1.msra.mxu0 0.0
    %182 = vmatprep.subr.mxu0 0.0
    %183 = vmatpush1.msra.mxu0 0.0
    %184 = vmatprep.subr.mxu0 0.0
    %185 = vmatpush1.msra.mxu0 0.0
    %186 = vmatprep.subr.mxu0 0.0
    %187 = vmatpush1.msra.mxu0 0.0
    %188 = vmatprep.subr.mxu0 0.0
    %189 = vmatpush1.msra.mxu0 0.0
    %190 = vmatprep.subr.mxu0 0.0
    %191 = vmatpush1.msra.mxu0 0.0
    %192 = vmatprep.subr.mxu0 0.0
    %193 = vmatpush1.msra.mxu0 0.0
    %194 = vmatprep.subr.mxu0 0.0
    %195 = vmatpush1.msra.mxu0 0.0
    %196 = vmatprep.subr.mxu0 0.0
    %197 = vmatpush1.msra.mxu0 0.0
    %198 = vmatprep.subr.mxu0 0.0
    %199 = vmatpush1.msra.mxu0 0.0
    %200 = vmatprep.subr.mxu0 0.0
    %201 = vmatpush1.msra.mxu0 0.0
    %202 = vmatprep.subr.mxu0 0.0
    %203 = vmatpush1.msra.mxu0 0.0
    %204 = vmatprep.subr.mxu0 0.0
    %205 = vmatpush1.msra.mxu0 0.0
    %206 = vmatprep.subr.mxu0 0.0
    %207 = vmatpush1.msra.mxu0 0.0
    %208 = vmatprep.mubr.f32.mxu0 0.0
    %209 = vmatmul.mubr.f32.gmra.mrb[0].mxu0 %v142
    %v210 = vpop.f32.mrb[0].mxu0
    %v211 = vadd.f32 %v138, %v210
    %v212 = vpop.f32.mrb[0].mxu0
    %213 = vdwg.mxu0
    %214 = vst [vmem:[#allocation2] sm:$0xff] %v211
    %v215 = vld [vmem:[#allocation18] sm:$0xff]
    %v216 = vld [vmem:[#allocation18 + $0x8] sm:$0xff]
    %v217 = vld [vmem:[#allocation18 + $0x10] sm:$0xff]
    %v218 = vld [vmem:[#allocation18 + $0x18] sm:$0xff]
    %v219 = vld [vmem:[%s6] sm:$0x1]
    %v221 = vlaneseq
    %v222 = vshrl.u32 %v221, 7
    %v223 = vsub.s32 0, %v222
    %v224 = vrot.slane %v219, %v223
    %226 = vmatprep.subr.mxu0 0.0
    %227 = vmatpush1.msra.mxu0 %v215
    %228 = vmatprep.subr.mxu0 0.0
    %229 = vmatpush1.msra.mxu0 %v216
    %230 = vmatprep.subr.mxu0 0.0
    %231 = vmatpush1.msra.mxu0 %v217
    %232 = vmatprep.subr.mxu0 0.0
    %233 = vmatpush1.msra.mxu0 %v218
    %234 = vmatprep.subr.mxu0 0.0
    %235 = vmatpush1.msra.mxu0 0.0
    %236 = vmatprep.subr.mxu0 0.0
    %237 = vmatpush1.msra.mxu0 0.0
    %238 = vmatprep.subr.mxu0 0.0
    %239 = vmatpush1.msra.mxu0 0.0
    %240 = vmatprep.subr.mxu0 0.0
    %241 = vmatpush1.msra.mxu0 0.0
    %242 = vmatprep.subr.mxu0 0.0
    %243 = vmatpush1.msra.mxu0 0.0
    %244 = vmatprep.subr.mxu0 0.0
    %245 = vmatpush1.msra.mxu0 0.0
    %246 = vmatprep.subr.mxu0 0.0
    %247 = vmatpush1.msra.mxu0 0.0
    %248 = vmatprep.subr.mxu0 0.0
    %249 = vmatpush1.msra.mxu0 0.0
    %250 = vmatprep.subr.mxu0 0.0
    %251 = vmatpush1.msra.mxu0 0.0
    %252 = vmatprep.subr.mxu0 0.0
    %253 = vmatpush1.msra.mxu0 0.0
    %254 = vmatprep.subr.mxu0 0.0
    %255 = vmatpush1.msra.mxu0 0.0
    %256 = vmatprep.subr.mxu0 0.0
    %257 = vmatpush1.msra.mxu0 0.0
    %258 = vmatprep.subr.mxu0 0.0
    %259 = vmatpush1.msra.mxu0 0.0
    %260 = vmatprep.subr.mxu0 0.0
    %261 = vmatpush1.msra.mxu0 0.0
    %262 = vmatprep.subr.mxu0 0.0
    %263 = vmatpush1.msra.mxu0 0.0
    %264 = vmatprep.subr.mxu0 0.0
    %265 = vmatpush1.msra.mxu0 0.0
    %266 = vmatprep.subr.mxu0 0.0
    %267 = vmatpush1.msra.mxu0 0.0
    %268 = vmatprep.subr.mxu0 0.0
    %269 = vmatpush1.msra.mxu0 0.0
    %270 = vmatprep.subr.mxu0 0.0
    %271 = vmatpush1.msra.mxu0 0.0
    %272 = vmatprep.subr.mxu0 0.0
    %273 = vmatpush1.msra.mxu0 0.0
    %274 = vmatprep.subr.mxu0 0.0
    %275 = vmatpush1.msra.mxu0 0.0
    %276 = vmatprep.subr.mxu0 0.0
    %277 = vmatpush1.msra.mxu0 0.0
    %278 = vmatprep.subr.mxu0 0.0
    %279 = vmatpush1.msra.mxu0 0.0
    %280 = vmatprep.subr.mxu0 0.0
    %281 = vmatpush1.msra.mxu0 0.0
    %282 = vmatprep.subr.mxu0 0.0
    %283 = vmatpush1.msra.mxu0 0.0
    %284 = vmatprep.subr.mxu0 0.0
    %285 = vmatpush1.msra.mxu0 0.0
    %286 = vmatprep.subr.mxu0 0.0
    %287 = vmatpush1.msra.mxu0 0.0
    %288 = vmatprep.subr.mxu0 0.0
    %289 = vmatpush1.msra.mxu0 0.0
    %290 = vmatprep.mubr.f32.mxu0 0.0
    %291 = vmatmul.mubr.f32.gmra.mrb[0].mxu0 %v142
    %v292 = vpop.f32.mrb[0].mxu0
    %v293 = vadd.f32 %v224, %v292
    %v294 = vpop.f32.mrb[0].mxu0
    %295 = vdwg.mxu0
    %296 = vst [vmem:[#allocation3] sm:$0xff] %v293
    %vm297 = vcmask 253952
    %298 = vst.msk [vmem:[#allocation4] sm:$0x1] %vm297, 0.0
    %299 = vst.msk [vmem:[#allocation5] sm:$0x1] %vm297, 0.0
    %300 = vst.msk [vmem:[#allocation6] sm:$0x1] %vm297, 0.0
    %301 = vst.msk [vmem:[#allocation7] sm:$0x1] %vm297, 0.0
    %v302 = vld [vmem:[#allocation2] sm:$0x1]
    %v303 = vld [vmem:[#allocation4] sm:$0x1]
    %v304 = vld [vmem:[#allocation16] sm:$0xff]
    %v305 = vld [vmem:[#allocation16 + $0x8] sm:$0xff]
    %v306 = vld [vmem:[#allocation16 + $0x10] sm:$0xff]
    %v307 = vld [vmem:[#allocation16 + $0x18] sm:$0xff]
    %v309 = vsel %vm140, %v303, 0
    %311 = vmatprep.subr.mxu0 0.0
    %312 = vmatpush1.msra.mxu0 %v304
    %313 = vmatprep.subr.mxu0 0.0
    %314 = vmatpush1.msra.mxu0 %v305
    %315 = vmatprep.subr.mxu0 0.0
    %316 = vmatpush1.msra.mxu0 %v306
    %317 = vmatprep.subr.mxu0 0.0
    %318 = vmatpush1.msra.mxu0 %v307
    %319 = vmatprep.subr.mxu0 0.0
    %320 = vmatpush1.msra.mxu0 0.0
    %321 = vmatprep.subr.mxu0 0.0
    %322 = vmatpush1.msra.mxu0 0.0
    %323 = vmatprep.subr.mxu0 0.0
    %324 = vmatpush1.msra.mxu0 0.0
    %325 = vmatprep.subr.mxu0 0.0
    %326 = vmatpush1.msra.mxu0 0.0
    %327 = vmatprep.subr.mxu0 0.0
    %328 = vmatpush1.msra.mxu0 0.0
    %329 = vmatprep.subr.mxu0 0.0
    %330 = vmatpush1.msra.mxu0 0.0
    %331 = vmatprep.subr.mxu0 0.0
    %332 = vmatpush1.msra.mxu0 0.0
    %333 = vmatprep.subr.mxu0 0.0
    %334 = vmatpush1.msra.mxu0 0.0
    %335 = vmatprep.subr.mxu0 0.0
    %336 = vmatpush1.msra.mxu0 0.0
    %337 = vmatprep.subr.mxu0 0.0
    %338 = vmatpush1.msra.mxu0 0.0
    %339 = vmatprep.subr.mxu0 0.0
    %340 = vmatpush1.msra.mxu0 0.0
    %341 = vmatprep.subr.mxu0 0.0
    %342 = vmatpush1.msra.mxu0 0.0
    %343 = vmatprep.subr.mxu0 0.0
    %344 = vmatpush1.msra.mxu0 0.0
    %345 = vmatprep.subr.mxu0 0.0
    %346 = vmatpush1.msra.mxu0 0.0
    %347 = vmatprep.subr.mxu0 0.0
    %348 = vmatpush1.msra.mxu0 0.0
    %349 = vmatprep.subr.mxu0 0.0
    %350 = vmatpush1.msra.mxu0 0.0
    %351 = vmatprep.subr.mxu0 0.0
    %352 = vmatpush1.msra.mxu0 0.0
    %353 = vmatprep.subr.mxu0 0.0
    %354 = vmatpush1.msra.mxu0 0.0
    %355 = vmatprep.subr.mxu0 0.0
    %356 = vmatpush1.msra.mxu0 0.0
    %357 = vmatprep.subr.mxu0 0.0
    %358 = vmatpush1.msra.mxu0 0.0
    %359 = vmatprep.subr.mxu0 0.0
    %360 = vmatpush1.msra.mxu0 0.0
    %361 = vmatprep.subr.mxu0 0.0
    %362 = vmatpush1.msra.mxu0 0.0
    %363 = vmatprep.subr.mxu0 0.0
    %364 = vmatpush1.msra.mxu0 0.0
    %365 = vmatprep.subr.mxu0 0.0
    %366 = vmatpush1.msra.mxu0 0.0
    %367 = vmatprep.subr.mxu0 0.0
    %368 = vmatpush1.msra.mxu0 0.0
    %369 = vmatprep.subr.mxu0 0.0
    %370 = vmatpush1.msra.mxu0 0.0
    %371 = vmatprep.subr.mxu0 0.0
    %372 = vmatpush1.msra.mxu0 0.0
    %373 = vmatprep.subr.mxu0 0.0
    %374 = vmatpush1.msra.mxu0 0.0
    %375 = vmatprep.mubr.f32.mxu0 0.0
    %376 = vmatmul.mubr.f32.gmra.mrb[0].mxu0 %v309
    %v377 = vpop.f32.mrb[0].mxu0
    %v378 = vadd.f32 0.0, %v377
    %v379 = vpop.f32.mrb[0].mxu0
    %380 = vdwg.mxu0
    %v381 = vadd.f32 %v302, %v378
    %v382 = vld [vmem:[#allocation3 + $0x7] sm:$0x1]
    %v383 = vld [vmem:[#allocation5] sm:$0x1]
    %v384 = vld [vmem:[#allocation19] sm:$0xff]
    %v385 = vld [vmem:[#allocation19 + $0x8] sm:$0xff]
    %v386 = vld [vmem:[#allocation19 + $0x10] sm:$0xff]
    %v387 = vld [vmem:[#allocation19 + $0x18] sm:$0xff]
    %v389 = vsel %vm140, %v383, 0
    %391 = vmatprep.subr.mxu0 0.0
    %392 = vmatpush1.msra.mxu0 %v384
    %393 = vmatprep.subr.mxu0 0.0
    %394 = vmatpush1.msra.mxu0 %v385
    %395 = vmatprep.subr.mxu0 0.0
    %396 = vmatpush1.msra.mxu0 %v386
    %397 = vmatprep.subr.mxu0 0.0
    %398 = vmatpush1.msra.mxu0 %v387
    %399 = vmatprep.subr.mxu0 0.0
    %400 = vmatpush1.msra.mxu0 0.0
    %401 = vmatprep.subr.mxu0 0.0
    %402 = vmatpush1.msra.mxu0 0.0
    %403 = vmatprep.subr.mxu0 0.0
    %404 = vmatpush1.msra.mxu0 0.0
    %405 = vmatprep.subr.mxu0 0.0
    %406 = vmatpush1.msra.mxu0 0.0
    %407 = vmatprep.subr.mxu0 0.0
    %408 = vmatpush1.msra.mxu0 0.0
    %409 = vmatprep.subr.mxu0 0.0
    %410 = vmatpush1.msra.mxu0 0.0
    %411 = vmatprep.subr.mxu0 0.0
    %412 = vmatpush1.msra.mxu0 0.0
    %413 = vmatprep.subr.mxu0 0.0
    %414 = vmatpush1.msra.mxu0 0.0
    %415 = vmatprep.subr.mxu0 0.0
    %416 = vmatpush1.msra.mxu0 0.0
    %417 = vmatprep.subr.mxu0 0.0
    %418 = vmatpush1.msra.mxu0 0.0
    %419 = vmatprep.subr.mxu0 0.0
    %420 = vmatpush1.msra.mxu0 0.0
    %421 = vmatprep.subr.mxu0 0.0
    %422 = vmatpush1.msra.mxu0 0.0
    %423 = vmatprep.subr.mxu0 0.0
    %424 = vmatpush1.msra.mxu0 0.0
    %425 = vmatprep.subr.mxu0 0.0
    %426 = vmatpush1.msra.mxu0 0.0
    %427 = vmatprep.subr.mxu0 0.0
    %428 = vmatpush1.msra.mxu0 0.0
    %429 = vmatprep.subr.mxu0 0.0
    %430 = vmatpush1.msra.mxu0 0.0
    %431 = vmatprep.subr.mxu0 0.0
    %432 = vmatpush1.msra.mxu0 0.0
    %433 = vmatprep.subr.mxu0 0.0
    %434 = vmatpush1.msra.mxu0 0.0
    %435 = vmatprep.subr.mxu0 0.0
    %436 = vmatpush1.msra.mxu0 0.0
    %437 = vmatprep.subr.mxu0 0.0
    %438 = vmatpush1.msra.mxu0 0.0
    %439 = vmatprep.subr.mxu0 0.0
    %440 = vmatpush1.msra.mxu0 0.0
    %441 = vmatprep.subr.mxu0 0.0
    %442 = vmatpush1.msra.mxu0 0.0
    %443 = vmatprep.subr.mxu0 0.0
    %444 = vmatpush1.msra.mxu0 0.0
    %445 = vmatprep.subr.mxu0 0.0
    %446 = vmatpush1.msra.mxu0 0.0
    %447 = vmatprep.subr.mxu0 0.0
    %448 = vmatpush1.msra.mxu0 0.0
    %449 = vmatprep.subr.mxu0 0.0
    %450 = vmatpush1.msra.mxu0 0.0
    %451 = vmatprep.subr.mxu0 0.0
    %452 = vmatpush1.msra.mxu0 0.0
    %453 = vmatprep.subr.mxu0 0.0
    %454 = vmatpush1.msra.mxu0 0.0
    %455 = vmatprep.mubr.f32.mxu0 0.0
    %456 = vmatmul.mubr.f32.gmra.mrb[0].mxu0 %v389
    %v457 = vpop.f32.mrb[0].mxu0
    %v458 = vadd.f32 0.0, %v457
    %v459 = vpop.f32.mrb[0].mxu0
    %460 = vdwg.mxu0
    %v461 = vadd.f32 %v382, %v458
    %v462 = vld [vmem:[#allocation6] sm:$0x1]
    %v463 = vxor.u32 %v381, 2147483648
    %v464 = vmul.f32 %v463, 1.442695
    %v465 = vpow.pop %v464
    %v466 = vadd.f32 %v465, 1.0
    %v467 = vrcp.pop %v466
    %v468 = vmul.f32 1.0, %v467
    %v469 = vtanh.pop %v381
    %v471 = vlaneseq
    %v472 = vshrl.u32 %v471, 7
    %v473 = vsub.s32 0, %v472
    %v474 = vrot.slane %v462, %v473
    %475 = vrot.lane.b32.xlu0 %v474, 32
    %v476 = vpop.permute.xlu0 %475
    %v478 = vmul.f32 %v468, %v476
    %480 = vrot.lane.b32.xlu0 %v469, 64
    %v481 = vpop.permute.xlu0 %480
    %v483 = vmul.f32 %v468, %v481
    %485 = vrot.lane.b32.xlu0 %v483, 32
    %v486 = vpop.permute.xlu0 %485
    %v488 = vadd.f32 %v478, %v486
    %v489 = vtanh.pop %v488
    %491 = vrot.lane.b32.xlu0 %v489, 64
    %v492 = vpop.permute.xlu0 %491
    %v494 = vmul.f32 %v468, %v492
    %v495 = vld [vmem:[#allocation7] sm:$0x1]
    %v496 = vxor.u32 %v461, 2147483648
    %v497 = vmul.f32 %v496, 1.442695
    %v498 = vpow.pop %v497
    %v499 = vadd.f32 %v498, 1.0
    %v500 = vrcp.pop %v499
    %v501 = vmul.f32 1.0, %v500
    %v502 = vtanh.pop %v461
    %v504 = vlaneseq
    %v505 = vshrl.u32 %v504, 7
    %v506 = vsub.s32 0, %v505
    %v507 = vrot.slane %v495, %v506
    %508 = vrot.lane.b32.xlu0 %v507, 32
    %v509 = vpop.permute.xlu0 %508
    %v511 = vmul.f32 %v501, %v509
    %513 = vrot.lane.b32.xlu0 %v502, 64
    %v514 = vpop.permute.xlu0 %513
    %v516 = vmul.f32 %v501, %v514
    %518 = vrot.lane.b32.xlu0 %v516, 32
    %v519 = vpop.permute.xlu0 %518
    %v521 = vadd.f32 %v511, %v519
    %v522 = vtanh.pop %v521
    %524 = vrot.lane.b32.xlu0 %v522, 64
    %v525 = vpop.permute.xlu0 %524
    %v527 = vmul.f32 %v501, %v525
    %529 = vrot.lane.b32.xlu0 %v494, 32
    %v530 = vpop.permute.xlu0 %529
    %532 = vst.msk [vmem:[#allocation4] sm:$0x1] %vm297, %v530
    %534 = vrot.lane.b32.xlu0 %v488, 96
    %v535 = vpop.permute.xlu0 %534
    %537 = vst.msk [vmem:[#allocation6] sm:$0x1] %vm297, %v535
    %539 = vrot.lane.b32.xlu0 %v527, 32
    %v540 = vpop.permute.xlu0 %539
    %542 = vst.msk [vmem:[#allocation5] sm:$0x1] %vm297, %v540
    %544 = vrot.lane.b32.xlu0 %v521, 96
    %v545 = vpop.permute.xlu0 %544
    %547 = vst.msk [vmem:[#allocation7] sm:$0x1] %vm297, %v545
    %548 = vst.msk [vmem:[#allocation8] sm:$0x1] %vm297, %v530
    %549 = vst.msk [vmem:[#allocation9 + $0x7] sm:$0x1] %vm297, %v540
    %v550 = vld [vmem:[#allocation2 + $0x1] sm:$0x1]
    %v551 = vld [vmem:[#allocation4] sm:$0x1]
    %v552 = vld [vmem:[#allocation16] sm:$0xff]
    %v553 = vld [vmem:[#allocation16 + $0x8] sm:$0xff]
    %v554 = vld [vmem:[#allocation16 + $0x10] sm:$0xff]
    %v555 = vld [vmem:[#allocation16 + $0x18] sm:$0xff]
    %v557 = vsel %vm140, %v551, 0
    %559 = vmatprep.subr.mxu0 0.0
    %560 = vmatpush1.msra.mxu0 %v552
    %561 = vmatprep.subr.mxu0 0.0
    %562 = vmatpush1.msra.mxu0 %v553
    %563 = vmatprep.subr.mxu0 0.0
    %564 = vmatpush1.msra.mxu0 %v554
    %565 = vmatprep.subr.mxu0 0.0
    %566 = vmatpush1.msra.mxu0 %v555
    %567 = vmatprep.subr.mxu0 0.0
    %568 = vmatpush1.msra.mxu0 0.0
    %569 = vmatprep.subr.mxu0 0.0
    %570 = vmatpush1.msra.mxu0 0.0
    %571 = vmatprep.subr.mxu0 0.0
    %572 = vmatpush1.msra.mxu0 0.0
    %573 = vmatprep.subr.mxu0 0.0
    %574 = vmatpush1.msra.mxu0 0.0
    %575 = vmatprep.subr.mxu0 0.0
    %576 = vmatpush1.msra.mxu0 0.0
    %577 = vmatprep.subr.mxu0 0.0
    %578 = vmatpush1.msra.mxu0 0.0
    %579 = vmatprep.subr.mxu0 0.0
    %580 = vmatpush1.msra.mxu0 0.0
    %581 = vmatprep.subr.mxu0 0.0
    %582 = vmatpush1.msra.mxu0 0.0
    %583 = vmatprep.subr.mxu0 0.0
    %584 = vmatpush1.msra.mxu0 0.0
    %585 = vmatprep.subr.mxu0 0.0
    %586 = vmatpush1.msra.mxu0 0.0
    %587 = vmatprep.subr.mxu0 0.0
    %588 = vmatpush1.msra.mxu0 0.0
    %589 = vmatprep.subr.mxu0 0.0
    %590 = vmatpush1.msra.mxu0 0.0
    %591 = vmatprep.subr.mxu0 0.0
    %592 = vmatpush1.msra.mxu0 0.0
    %593 = vmatprep.subr.mxu0 0.0
    %594 = vmatpush1.msra.mxu0 0.0
    %595 = vmatprep.subr.mxu0 0.0
    %596 = vmatpush1.msra.mxu0 0.0
    %597 = vmatprep.subr.mxu0 0.0
    %598 = vmatpush1.msra.mxu0 0.0
    %599 = vmatprep.subr.mxu0 0.0
    %600 = vmatpush1.msra.mxu0 0.0
    %601 = vmatprep.subr.mxu0 0.0
    %602 = vmatpush1.msra.mxu0 0.0
    %603 = vmatprep.subr.mxu0 0.0
    %604 = vmatpush1.msra.mxu0 0.0
    %605 = vmatprep.subr.mxu0 0.0
    %606 = vmatpush1.msra.mxu0 0.0
    %607 = vmatprep.subr.mxu0 0.0
    %608 = vmatpush1.msra.mxu0 0.0
    %609 = vmatprep.subr.mxu0 0.0
    %610 = vmatpush1.msra.mxu0 0.0
    %611 = vmatprep.subr.mxu0 0.0
    %612 = vmatpush1.msra.mxu0 0.0
    %613 = vmatprep.subr.mxu0 0.0
    %614 = vmatpush1.msra.mxu0 0.0
    %615 = vmatprep.subr.mxu0 0.0
    %616 = vmatpush1.msra.mxu0 0.0
    %617 = vmatprep.subr.mxu0 0.0
    %618 = vmatpush1.msra.mxu0 0.0
    %619 = vmatprep.subr.mxu0 0.0
    %620 = vmatpush1.msra.mxu0 0.0
    %621 = vmatprep.subr.mxu0 0.0
    %622 = vmatpush1.msra.mxu0 0.0
    %623 = vmatprep.mubr.f32.mxu0 0.0
    %624 = vmatmul.mubr.f32.gmra.mrb[0].mxu0 %v557
    %v625 = vpop.f32.mrb[0].mxu0
    %v626 = vadd.f32 0.0, %v625
    %v627 = vpop.f32.mrb[0].mxu0
    %628 = vdwg.mxu0
    %v629 = vadd.f32 %v550, %v626
    %v630 = vld [vmem:[#allocation3 + $0x6] sm:$0x1]
    %v631 = vld [vmem:[#allocation5] sm:$0x1]
    %v632 = vld [vmem:[#allocation19] sm:$0xff]
    %v633 = vld [vmem:[#allocation19 + $0x8] sm:$0xff]
    %v634 = vld [vmem:[#allocation19 + $0x10] sm:$0xff]
    %v635 = vld [vmem:[#allocation19 + $0x18] sm:$0xff]
    %v637 = vsel %vm140, %v631, 0
    %639 = vmatprep.subr.mxu0 0.0
    %640 = vmatpush1.msra.mxu0 %v632
    %641 = vmatprep.subr.mxu0 0.0
    %642 = vmatpush1.msra.mxu0 %v633
    %643 = vmatprep.subr.mxu0 0.0
    %644 = vmatpush1.msra.mxu0 %v634
    %645 = vmatprep.subr.mxu0 0.0
    %646 = vmatpush1.msra.mxu0 %v635
    %647 = vmatprep.subr.mxu0 0.0
    %648 = vmatpush1.msra.mxu0 0.0
    %649 = vmatprep.subr.mxu0 0.0
    %650 = vmatpush1.msra.mxu0 0.0
    %651 = vmatprep.subr.mxu0 0.0
    %652 = vmatpush1.msra.mxu0 0.0
    %653 = vmatprep.subr.mxu0 0.0
    %654 = vmatpush1.msra.mxu0 0.0
    %655 = vmatprep.subr.mxu0 0.0
    %656 = vmatpush1.msra.mxu0 0.0
    %657 = vmatprep.subr.mxu0 0.0
    %658 = vmatpush1.msra.mxu0 0.0
    %659 = vmatprep.subr.mxu0 0.0
    %660 = vmatpush1.msra.mxu0 0.0
    %661 = vmatprep.subr.mxu0 0.0
    %662 = vmatpush1.msra.mxu0 0.0
    %663 = vmatprep.subr.mxu0 0.0
    %664 = vmatpush1.msra.mxu0 0.0
    %665 = vmatprep.subr.mxu0 0.0
    %666 = vmatpush1.msra.mxu0 0.0
    %667 = vmatprep.subr.mxu0 0.0
    %668 = vmatpush1.msra.mxu0 0.0
    %669 = vmatprep.subr.mxu0 0.0
    %670 = vmatpush1.msra.mxu0 0.0
    %671 = vmatprep.subr.mxu0 0.0
    %672 = vmatpush1.msra.mxu0 0.0
    %673 = vmatprep.subr.mxu0 0.0
    %674 = vmatpush1.msra.mxu0 0.0
    %675 = vmatprep.subr.mxu0 0.0
    %676 = vmatpush1.msra.mxu0 0.0
    %677 = vmatprep.subr.mxu0 0.0
    %678 = vmatpush1.msra.mxu0 0.0
    %679 = vmatprep.subr.mxu0 0.0
    %680 = vmatpush1.msra.mxu0 0.0
    %681 = vmatprep.subr.mxu0 0.0
    %682 = vmatpush1.msra.mxu0 0.0
    %683 = vmatprep.subr.mxu0 0.0
    %684 = vmatpush1.msra.mxu0 0.0
    %685 = vmatprep.subr.mxu0 0.0
    %686 = vmatpush1.msra.mxu0 0.0
    %687 = vmatprep.subr.mxu0 0.0
    %688 = vmatpush1.msra.mxu0 0.0
    %689 = vmatprep.subr.mxu0 0.0
    %690 = vmatpush1.msra.mxu0 0.0
    %691 = vmatprep.subr.mxu0 0.0
    %692 = vmatpush1.msra.mxu0 0.0
    %693 = vmatprep.subr.mxu0 0.0
    %694 = vmatpush1.msra.mxu0 0.0
    %695 = vmatprep.subr.mxu0 0.0
    %696 = vmatpush1.msra.mxu0 0.0
    %697 = vmatprep.subr.mxu0 0.0
    %698 = vmatpush1.msra.mxu0 0.0
    %699 = vmatprep.subr.mxu0 0.0
    %700 = vmatpush1.msra.mxu0 0.0
    %701 = vmatprep.subr.mxu0 0.0
    %702 = vmatpush1.msra.mxu0 0.0
    %703 = vmatprep.mubr.f32.mxu0 0.0
    %704 = vmatmul.mubr.f32.gmra.mrb[0].mxu0 %v637
    %v705 = vpop.f32.mrb[0].mxu0
    %v706 = vadd.f32 0.0, %v705
    %v707 = vpop.f32.mrb[0].mxu0
    %708 = vdwg.mxu0
    %v709 = vadd.f32 %v630, %v706
    %v710 = vld [vmem:[#allocation6] sm:$0x1]
    %v711 = vxor.u32 %v629, 2147483648
    %v712 = vmul.f32 %v711, 1.442695
    %v713 = vpow.pop %v712
    %v714 = vadd.f32 %v713, 1.0
    %v715 = vrcp.pop %v714
    %v716 = vmul.f32 1.0, %v715
    %v717 = vtanh.pop %v629
    %v719 = vlaneseq
    %v720 = vshrl.u32 %v719, 7
    %v721 = vsub.s32 0, %v720
    %v722 = vrot.slane %v710, %v721
    %723 = vrot.lane.b32.xlu0 %v722, 32
    %v724 = vpop.permute.xlu0 %723
    %v726 = vmul.f32 %v716, %v724
    %728 = vrot.lane.b32.xlu0 %v717, 64
    %v729 = vpop.permute.xlu0 %728
    %v731 = vmul.f32 %v716, %v729
    %733 = vrot.lane.b32.xlu0 %v731, 32
    %v734 = vpop.permute.xlu0 %733
    %v736 = vadd.f32 %v726, %v734
    %v737 = vtanh.pop %v736
    %739 = vrot.lane.b32.xlu0 %v737, 64
    %v740 = vpop.permute.xlu0 %739
    %v742 = vmul.f32 %v716, %v740
    %v743 = vld [vmem:[#allocation7] sm:$0x1]
    %v744 = vxor.u32 %v709, 2147483648
    %v745 = vmul.f32 %v744, 1.442695
    %v746 = vpow.pop %v745
    %v747 = vadd.f32 %v746, 1.0
    %v748 = vrcp.pop %v747
    %v749 = vmul.f32 1.0, %v748
    %v750 = vtanh.pop %v709
    %v752 = vlaneseq
    %v753 = vshrl.u32 %v752, 7
    %v754 = vsub.s32 0, %v753
    %v755 = vrot.slane %v743, %v754
    %756 = vrot.lane.b32.xlu0 %v755, 32
    %v757 = vpop.permute.xlu0 %756
    %v759 = vmul.f32 %v749, %v757
    %761 = vrot.lane.b32.xlu0 %v750, 64
    %v762 = vpop.permute.xlu0 %761
    %v764 = vmul.f32 %v749, %v762
    %766 = vrot.lane.b32.xlu0 %v764, 32
    %v767 = vpop.permute.xlu0 %766
    %v769 = vadd.f32 %v759, %v767
    %v770 = vtanh.pop %v769
    %772 = vrot.lane.b32.xlu0 %v770, 64
    %v773 = vpop.permute.xlu0 %772
    %v775 = vmul.f32 %v749, %v773
    %777 = vrot.lane.b32.xlu0 %v742, 32
    %v778 = vpop.permute.xlu0 %777
    %780 = vst.msk [vmem:[#allocation4] sm:$0x1] %vm297, %v778
    %782 = vrot.lane.b32.xlu0 %v736, 96
    %v783 = vpop.permute.xlu0 %782
    %785 = vst.msk [vmem:[#allocation6] sm:$0x1] %vm297, %v783
    %787 = vrot.lane.b32.xlu0 %v775, 32
    %v788 = vpop.permute.xlu0 %787
    %790 = vst.msk [vmem:[#allocation5] sm:$0x1] %vm297, %v788
    %792 = vrot.lane.b32.xlu0 %v769, 96
    %v793 = vpop.permute.xlu0 %792
    %795 = vst.msk [vmem:[#allocation7] sm:$0x1] %vm297, %v793
    %796 = vst.msk [vmem:[#allocation8 + $0x1] sm:$0x1] %vm297, %v778
    %797 = vst.msk [vmem:[#allocation9 + $0x6] sm:$0x1] %vm297, %v788
    %v798 = vld [vmem:[#allocation2 + $0x2] sm:$0x1]
    %v799 = vld [vmem:[#allocation4] sm:$0x1]
    %v800 = vld [vmem:[#allocation16] sm:$0xff]
    %v801 = vld [vmem:[#allocation16 + $0x8] sm:$0xff]
    %v802 = vld [vmem:[#allocation16 + $0x10] sm:$0xff]
    %v803 = vld [vmem:[#allocation16 + $0x18] sm:$0xff]
    %v805 = vsel %vm140, %v799, 0
    %807 = vmatprep.subr.mxu0 0.0
    %808 = vmatpush1.msra.mxu0 %v800
    %809 = vmatprep.subr.mxu0 0.0
    %810 = vmatpush1.msra.mxu0 %v801
    %811 = vmatprep.subr.mxu0 0.0
    %812 = vmatpush1.msra.mxu0 %v802
    %813 = vmatprep.subr.mxu0 0.0
    %814 = vmatpush1.msra.mxu0 %v803
    %815 = vmatprep.subr.mxu0 0.0
    %816 = vmatpush1.msra.mxu0 0.0
    %817 = vmatprep.subr.mxu0 0.0
    %818 = vmatpush1.msra.mxu0 0.0
    %819 = vmatprep.subr.mxu0 0.0
    %820 = vmatpush1.msra.mxu0 0.0
    %821 = vmatprep.subr.mxu0 0.0
    %822 = vmatpush1.msra.mxu0 0.0
    %823 = vmatprep.subr.mxu0 0.0
    %824 = vmatpush1.msra.mxu0 0.0
    %825 = vmatprep.subr.mxu0 0.0
    %826 = vmatpush1.msra.mxu0 0.0
    %827 = vmatprep.subr.mxu0 0.0
    %828 = vmatpush1.msra.mxu0 0.0
    %829 = vmatprep.subr.mxu0 0.0
    %830 = vmatpush1.msra.mxu0 0.0
    %831 = vmatprep.subr.mxu0 0.0
    %832 = vmatpush1.msra.mxu0 0.0
    %833 = vmatprep.subr.mxu0 0.0
    %834 = vmatpush1.msra.mxu0 0.0
    %835 = vmatprep.subr.mxu0 0.0
    %836 = vmatpush1.msra.mxu0 0.0
    %837 = vmatprep.subr.mxu0 0.0
    %838 = vmatpush1.msra.mxu0 0.0
    %839 = vmatprep.subr.mxu0 0.0
    %840 = vmatpush1.msra.mxu0 0.0
    %841 = vmatprep.subr.mxu0 0.0
    %842 = vmatpush1.msra.mxu0 0.0
    %843 = vmatprep.subr.mxu0 0.0
    %844 = vmatpush1.msra.mxu0 0.0
    %845 = vmatprep.subr.mxu0 0.0
    %846 = vmatpush1.msra.mxu0 0.0
    %847 = vmatprep.subr.mxu0 0.0
    %848 = vmatpush1.msra.mxu0 0.0
    %849 = vmatprep.subr.mxu0 0.0
    %850 = vmatpush1.msra.mxu0 0.0
    %851 = vmatprep.subr.mxu0 0.0
    %852 = vmatpush1.msra.mxu0 0.0
    %853 = vmatprep.subr.mxu0 0.0
    %854 = vmatpush1.msra.mxu0 0.0
    %855 = vmatprep.subr.mxu0 0.0
    %856 = vmatpush1.msra.mxu0 0.0
    %857 = vmatprep.subr.mxu0 0.0
    %858 = vmatpush1.msra.mxu0 0.0
    %859 = vmatprep.subr.mxu0 0.0
    %860 = vmatpush1.msra.mxu0 0.0
    %861 = vmatprep.subr.mxu0 0.0
    %862 = vmatpush1.msra.mxu0 0.0
    %863 = vmatprep.subr.mxu0 0.0
    %864 = vmatpush1.msra.mxu0 0.0
    %865 = vmatprep.subr.mxu0 0.0
    %866 = vmatpush1.msra.mxu0 0.0
    %867 = vmatprep.subr.mxu0 0.0
    %868 = vmatpush1.msra.mxu0 0.0
    %869 = vmatprep.subr.mxu0 0.0
    %870 = vmatpush1.msra.mxu0 0.0
    %871 = vmatprep.mubr.f32.mxu0 0.0
    %872 = vmatmul.mubr.f32.gmra.mrb[0].mxu0 %v805
    %v873 = vpop.f32.mrb[0].mxu0
    %v874 = vadd.f32 0.0, %v873
    %v875 = vpop.f32.mrb[0].mxu0
    %876 = vdwg.mxu0
    %v877 = vadd.f32 %v798, %v874
    %v878 = vld [vmem:[#allocation3 + $0x5] sm:$0x1]
    %v879 = vld [vmem:[#allocation5] sm:$0x1]
    %v880 = vld [vmem:[#allocation19] sm:$0xff]
    %v881 = vld [vmem:[#allocation19 + $0x8] sm:$0xff]
    %v882 = vld [vmem:[#allocation19 + $0x10] sm:$0xff]
    %v883 = vld [vmem:[#allocation19 + $0x18] sm:$0xff]
    %v885 = vsel %vm140, %v879, 0
    %887 = vmatprep.subr.mxu0 0.0
    %888 = vmatpush1.msra.mxu0 %v880
    %889 = vmatprep.subr.mxu0 0.0
    %890 = vmatpush1.msra.mxu0 %v881
    %891 = vmatprep.subr.mxu0 0.0
    %892 = vmatpush1.msra.mxu0 %v882
    %893 = vmatprep.subr.mxu0 0.0
    %894 = vmatpush1.msra.mxu0 %v883
    %895 = vmatprep.subr.mxu0 0.0
    %896 = vmatpush1.msra.mxu0 0.0
    %897 = vmatprep.subr.mxu0 0.0
    %898 = vmatpush1.msra.mxu0 0.0
    %899 = vmatprep.subr.mxu0 0.0
    %900 = vmatpush1.msra.mxu0 0.0
    %901 = vmatprep.subr.mxu0 0.0
    %902 = vmatpush1.msra.mxu0 0.0
    %903 = vmatprep.subr.mxu0 0.0
    %904 = vmatpush1.msra.mxu0 0.0
    %905 = vmatprep.subr.mxu0 0.0
    %906 = vmatpush1.msra.mxu0 0.0
    %907 = vmatprep.subr.mxu0 0.0
    %908 = vmatpush1.msra.mxu0 0.0
    %909 = vmatprep.subr.mxu0 0.0
    %910 = vmatpush1.msra.mxu0 0.0
    %911 = vmatprep.subr.mxu0 0.0
    %912 = vmatpush1.msra.mxu0 0.0
    %913 = vmatprep.subr.mxu0 0.0
    %914 = vmatpush1.msra.mxu0 0.0
    %915 = vmatprep.subr.mxu0 0.0
    %916 = vmatpush1.msra.mxu0 0.0
    %917 = vmatprep.subr.mxu0 0.0
    %918 = vmatpush1.msra.mxu0 0.0
    %919 = vmatprep.subr.mxu0 0.0
    %920 = vmatpush1.msra.mxu0 0.0
    %921 = vmatprep.subr.mxu0 0.0
    %922 = vmatpush1.msra.mxu0 0.0
    %923 = vmatprep.subr.mxu0 0.0
    %924 = vmatpush1.msra.mxu0 0.0
    %925 = vmatprep.subr.mxu0 0.0
    %926 = vmatpush1.msra.mxu0 0.0
    %927 = vmatprep.subr.mxu0 0.0
    %928 = vmatpush1.msra.mxu0 0.0
    %929 = vmatprep.subr.mxu0 0.0
    %930 = vmatpush1.msra.mxu0 0.0
    %931 = vmatprep.subr.mxu0 0.0
    %932 = vmatpush1.msra.mxu0 0.0
    %933 = vmatprep.subr.mxu0 0.0
    %934 = vmatpush1.msra.mxu0 0.0
    %935 = vmatprep.subr.mxu0 0.0
    %936 = vmatpush1.msra.mxu0 0.0
    %937 = vmatprep.subr.mxu0 0.0
    %938 = vmatpush1.msra.mxu0 0.0
    %939 = vmatprep.subr.mxu0 0.0
    %940 = vmatpush1.msra.mxu0 0.0
    %941 = vmatprep.subr.mxu0 0.0
    %942 = vmatpush1.msra.mxu0 0.0
    %943 = vmatprep.subr.mxu0 0.0
    %944 = vmatpush1.msra.mxu0 0.0
    %945 = vmatprep.subr.mxu0 0.0
    %946 = vmatpush1.msra.mxu0 0.0
    %947 = vmatprep.subr.mxu0 0.0
    %948 = vmatpush1.msra.mxu0 0.0
    %949 = vmatprep.subr.mxu0 0.0
    %950 = vmatpush1.msra.mxu0 0.0
    %951 = vmatprep.mubr.f32.mxu0 0.0
    %952 = vmatmul.mubr.f32.gmra.mrb[0].mxu0 %v885
    %v953 = vpop.f32.mrb[0].mxu0
    %v954 = vadd.f32 0.0, %v953
    %v955 = vpop.f32.mrb[0].mxu0
    %956 = vdwg.mxu0
    %v957 = vadd.f32 %v878, %v954
    %v958 = vld [vmem:[#allocation6] sm:$0x1]
    %v959 = vxor.u32 %v877, 2147483648
    %v960 = vmul.f32 %v959, 1.442695
    %v961 = vpow.pop %v960
    %v962 = vadd.f32 %v961, 1.0
    %v963 = vrcp.pop %v962
    %v964 = vmul.f32 1.0, %v963
    %v965 = vtanh.pop %v877
    %v967 = vlaneseq
    %v968 = vshrl.u32 %v967, 7
    %v969 = vsub.s32 0, %v968
    %v970 = vrot.slane %v958, %v969
    %971 = vrot.lane.b32.xlu0 %v970, 32
    %v972 = vpop.permute.xlu0 %971
    %v974 = vmul.f32 %v964, %v972
    %976 = vrot.lane.b32.xlu0 %v965, 64
    %v977 = vpop.permute.xlu0 %976
    %v979 = vmul.f32 %v964, %v977
    %981 = vrot.lane.b32.xlu0 %v979, 32
    %v982 = vpop.permute.xlu0 %981
    %v984 = vadd.f32 %v974, %v982
    %v985 = vtanh.pop %v984
    %987 = vrot.lane.b32.xlu0 %v985, 64
    %v988 = vpop.permute.xlu0 %987
    %v990 = vmul.f32 %v964, %v988
    %v991 = vld [vmem:[#allocation7] sm:$0x1]
    %v992 = vxor.u32 %v957, 2147483648
    %v993 = vmul.f32 %v992, 1.442695
    %v994 = vpow.pop %v993
    %v995 = vadd.f32 %v994, 1.0
    %v996 = vrcp.pop %v995
    %v997 = vmul.f32 1.0, %v996
    %v998 = vtanh.pop %v957
    %v1000 = vlaneseq
    %v1001 = vshrl.u32 %v1000, 7
    %v1002 = vsub.s32 0, %v1001
    %v1003 = vrot.slane %v991, %v1002
    %1004 = vrot.lane.b32.xlu0 %v1003, 32
    %v1005 = vpop.permute.xlu0 %1004
    %v1007 = vmul.f32 %v997, %v1005
    %1009 = vrot.lane.b32.xlu0 %v998, 64
    %v1010 = vpop.permute.xlu0 %1009
    %v1012 = vmul.f32 %v997, %v1010
    %1014 = vrot.lane.b32.xlu0 %v1012, 32
    %v1015 = vpop.permute.xlu0 %1014
    %v1017 = vadd.f32 %v1007, %v1015
    %v1018 = vtanh.pop %v1017
    %1020 = vrot.lane.b32.xlu0 %v1018, 64
    %v1021 = vpop.permute.xlu0 %1020
    %v1023 = vmul.f32 %v997, %v1021
    %1025 = vrot.lane.b32.xlu0 %v990, 32
    %v1026 = vpop.permute.xlu0 %1025
    %1028 = vst.msk [vmem:[#allocation4] sm:$0x1] %vm297, %v1026
    %1030 = vrot.lane.b32.xlu0 %v984, 96
    %v1031 = vpop.permute.xlu0 %1030
    %1033 = vst.msk [vmem:[#allocation6] sm:$0x1] %vm297, %v1031
    %1035 = vrot.lane.b32.xlu0 %v1023, 32
    %v1036 = vpop.permute.xlu0 %1035
    %1038 = vst.msk [vmem:[#allocation5] sm:$0x1] %vm297, %v1036
    %1040 = vrot.lane.b32.xlu0 %v1017, 96
    %v1041 = vpop.permute.xlu0 %1040
    %1043 = vst.msk [vmem:[#allocation7] sm:$0x1] %vm297, %v1041
    %1044 = vst.msk [vmem:[#allocation8 + $0x2] sm:$0x1] %vm297, %v1026
    %1045 = vst.msk [vmem:[#allocation9 + $0x5] sm:$0x1] %vm297, %v1036
    %v1046 = vld [vmem:[#allocation2 + $0x3] sm:$0x1]
    %v1047 = vld [vmem:[#allocation4] sm:$0x1]
    %v1048 = vld [vmem:[#allocation16] sm:$0xff]
    %v1049 = vld [vmem:[#allocation16 + $0x8] sm:$0xff]
    %v1050 = vld [vmem:[#allocation16 + $0x10] sm:$0xff]
    %v1051 = vld [vmem:[#allocation16 + $0x18] sm:$0xff]
    %v1053 = vsel %vm140, %v1047, 0
    %1055 = vmatprep.subr.mxu0 0.0
    %1056 = vmatpush1.msra.mxu0 %v1048
    %1057 = vmatprep.subr.mxu0 0.0
    %1058 = vmatpush1.msra.mxu0 %v1049
    %1059 = vmatprep.subr.mxu0 0.0
    %1060 = vmatpush1.msra.mxu0 %v1050
    %1061 = vmatprep.subr.mxu0 0.0
    %1062 = vmatpush1.msra.mxu0 %v1051
    %1063 = vmatprep.subr.mxu0 0.0
    %1064 = vmatpush1.msra.mxu0 0.0
    %1065 = vmatprep.subr.mxu0 0.0
    %1066 = vmatpush1.msra.mxu0 0.0
    %1067 = vmatprep.subr.mxu0 0.0
    %1068 = vmatpush1.msra.mxu0 0.0
    %1069 = vmatprep.subr.mxu0 0.0
    %1070 = vmatpush1.msra.mxu0 0.0
    %1071 = vmatprep.subr.mxu0 0.0
    %1072 = vmatpush1.msra.mxu0 0.0
    %1073 = vmatprep.subr.mxu0 0.0
    %1074 = vmatpush1.msra.mxu0 0.0
    %1075 = vmatprep.subr.mxu0 0.0
    %1076 = vmatpush1.msra.mxu0 0.0
    %1077 = vmatprep.subr.mxu0 0.0
    %1078 = vmatpush1.msra.mxu0 0.0
    %1079 = vmatprep.subr.mxu0 0.0
    %1080 = vmatpush1.msra.mxu0 0.0
    %1081 = vmatprep.subr.mxu0 0.0
    %1082 = vmatpush1.msra.mxu0 0.0
    %1083 = vmatprep.subr.mxu0 0.0
    %1084 = vmatpush1.msra.mxu0 0.0
    %1085 = vmatprep.subr.mxu0 0.0
    %1086 = vmatpush1.msra.mxu0 0.0
    %1087 = vmatprep.subr.mxu0 0.0
    %1088 = vmatpush1.msra.mxu0 0.0
    %1089 = vmatprep.subr.mxu0 0.0
    %1090 = vmatpush1.msra.mxu0 0.0
    %1091 = vmatprep.subr.mxu0 0.0
    %1092 = vmatpush1.msra.mxu0 0.0
    %1093 = vmatprep.subr.mxu0 0.0
    %1094 = vmatpush1.msra.mxu0 0.0
    %1095 = vmatprep.subr.mxu0 0.0
    %1096 = vmatpush1.msra.mxu0 0.0
    %1097 = vmatprep.subr.mxu0 0.0
    %1098 = vmatpush1.msra.mxu0 0.0
    %1099 = vmatprep.subr.mxu0 0.0
    %1100 = vmatpush1.msra.mxu0 0.0
    %1101 = vmatprep.subr.mxu0 0.0
    %1102 = vmatpush1.msra.mxu0 0.0
    %1103 = vmatprep.subr.mxu0 0.0
    %1104 = vmatpush1.msra.mxu0 0.0
    %1105 = vmatprep.subr.mxu0 0.0
    %1106 = vmatpush1.msra.mxu0 0.0
    %1107 = vmatprep.subr.mxu0 0.0
    %1108 = vmatpush1.msra.mxu0 0.0
    %1109 = vmatprep.subr.mxu0 0.0
    %1110 = vmatpush1.msra.mxu0 0.0
    %1111 = vmatprep.subr.mxu0 0.0
    %1112 = vmatpush1.msra.mxu0 0.0
    %1113 = vmatprep.subr.mxu0 0.0
    %1114 = vmatpush1.msra.mxu0 0.0
    %1115 = vmatprep.subr.mxu0 0.0
    %1116 = vmatpush1.msra.mxu0 0.0
    %1117 = vmatprep.subr.mxu0 0.0
    %1118 = vmatpush1.msra.mxu0 0.0
    %1119 = vmatprep.mubr.f32.mxu0 0.0
    %1120 = vmatmul.mubr.f32.gmra.mrb[0].mxu0 %v1053
    %v1121 = vpop.f32.mrb[0].mxu0
    %v1122 = vadd.f32 0.0, %v1121
    %v1123 = vpop.f32.mrb[0].mxu0
    %1124 = vdwg.mxu0
    %v1125 = vadd.f32 %v1046, %v1122
    %v1126 = vld [vmem:[#allocation3 + $0x4] sm:$0x1]
    %v1127 = vld [vmem:[#allocation5] sm:$0x1]
    %v1128 = vld [vmem:[#allocation19] sm:$0xff]
    %v1129 = vld [vmem:[#allocation19 + $0x8] sm:$0xff]
    %v1130 = vld [vmem:[#allocation19 + $0x10] sm:$0xff]
    %v1131 = vld [vmem:[#allocation19 + $0x18] sm:$0xff]
    %v1133 = vsel %vm140, %v1127, 0
    %1135 = vmatprep.subr.mxu0 0.0
    %1136 = vmatpush1.msra.mxu0 %v1128
    %1137 = vmatprep.subr.mxu0 0.0
    %1138 = vmatpush1.msra.mxu0 %v1129
    %1139 = vmatprep.subr.mxu0 0.0
    %1140 = vmatpush1.msra.mxu0 %v1130
    %1141 = vmatprep.subr.mxu0 0.0
    %1142 = vmatpush1.msra.mxu0 %v1131
    %1143 = vmatprep.subr.mxu0 0.0
    %1144 = vmatpush1.msra.mxu0 0.0
    %1145 = vmatprep.subr.mxu0 0.0
    %1146 = vmatpush1.msra.mxu0 0.0
    %1147 = vmatprep.subr.mxu0 0.0
    %1148 = vmatpush1.msra.mxu0 0.0
    %1149 = vmatprep.subr.mxu0 0.0
    %1150 = vmatpush1.msra.mxu0 0.0
    %1151 = vmatprep.subr.mxu0 0.0
    %1152 = vmatpush1.msra.mxu0 0.0
    %1153 = vmatprep.subr.mxu0 0.0
    %1154 = vmatpush1.msra.mxu0 0.0
    %1155 = vmatprep.subr.mxu0 0.0
    %1156 = vmatpush1.msra.mxu0 0.0
    %1157 = vmatprep.subr.mxu0 0.0
    %1158 = vmatpush1.msra.mxu0 0.0
    %1159 = vmatprep.subr.mxu0 0.0
    %1160 = vmatpush1.msra.mxu0 0.0
    %1161 = vmatprep.subr.mxu0 0.0
    %1162 = vmatpush1.msra.mxu0 0.0
    %1163 = vmatprep.subr.mxu0 0.0
    %1164 = vmatpush1.msra.mxu0 0.0
    %1165 = vmatprep.subr.mxu0 0.0
    %1166 = vmatpush1.msra.mxu0 0.0
    %1167 = vmatprep.subr.mxu0 0.0
    %1168 = vmatpush1.msra.mxu0 0.0
    %1169 = vmatprep.subr.mxu0 0.0
    %1170 = vmatpush1.msra.mxu0 0.0
    %1171 = vmatprep.subr.mxu0 0.0
    %1172 = vmatpush1.msra.mxu0 0.0
    %1173 = vmatprep.subr.mxu0 0.0
    %1174 = vmatpush1.msra.mxu0 0.0
    %1175 = vmatprep.subr.mxu0 0.0
    %1176 = vmatpush1.msra.mxu0 0.0
    %1177 = vmatprep.subr.mxu0 0.0
    %1178 = vmatpush1.msra.mxu0 0.0
    %1179 = vmatprep.subr.mxu0 0.0
    %1180 = vmatpush1.msra.mxu0 0.0
    %1181 = vmatprep.subr.mxu0 0.0
    %1182 = vmatpush1.msra.mxu0 0.0
    %1183 = vmatprep.subr.mxu0 0.0
    %1184 = vmatpush1.msra.mxu0 0.0
    %1185 = vmatprep.subr.mxu0 0.0
    %1186 = vmatpush1.msra.mxu0 0.0
    %1187 = vmatprep.subr.mxu0 0.0
    %1188 = vmatpush1.msra.mxu0 0.0
    %1189 = vmatprep.subr.mxu0 0.0
    %1190 = vmatpush1.msra.mxu0 0.0
    %1191 = vmatprep.subr.mxu0 0.0
    %1192 = vmatpush1.msra.mxu0 0.0
    %1193 = vmatprep.subr.mxu0 0.0
    %1194 = vmatpush1.msra.mxu0 0.0
    %1195 = vmatprep.subr.mxu0 0.0
    %1196 = vmatpush1.msra.mxu0 0.0
    %1197 = vmatprep.subr.mxu0 0.0
    %1198 = vmatpush1.msra.mxu0 0.0
    %1199 = vmatprep.mubr.f32.mxu0 0.0
    %1200 = vmatmul.mubr.f32.gmra.mrb[0].mxu0 %v1133
    %v1201 = vpop.f32.mrb[0].mxu0
    %v1202 = vadd.f32 0.0, %v1201
    %v1203 = vpop.f32.mrb[0].mxu0
    %1204 = vdwg.mxu0
    %v1205 = vadd.f32 %v1126, %v1202
    %v1206 = vld [vmem:[#allocation6] sm:$0x1]
    %v1207 = vxor.u32 %v1125, 2147483648
    %v1208 = vmul.f32 %v1207, 1.442695
    %v1209 = vpow.pop %v1208
    %v1210 = vadd.f32 %v1209, 1.0
    %v1211 = vrcp.pop %v1210
    %v1212 = vmul.f32 1.0, %v1211
    %v1213 = vtanh.pop %v1125
    %v1215 = vlaneseq
    %v1216 = vshrl.u32 %v1215, 7
    %v1217 = vsub.s32 0, %v1216
    %v1218 = vrot.slane %v1206, %v1217
    %1219 = vrot.lane.b32.xlu0 %v1218, 32
    %v1220 = vpop.permute.xlu0 %1219
    %v1222 = vmul.f32 %v1212, %v1220
    %1224 = vrot.lane.b32.xlu0 %v1213, 64
    %v1225 = vpop.permute.xlu0 %1224
    %v1227 = vmul.f32 %v1212, %v1225
    %1229 = vrot.lane.b32.xlu0 %v1227, 32
    %v1230 = vpop.permute.xlu0 %1229
    %v1232 = vadd.f32 %v1222, %v1230
    %v1233 = vtanh.pop %v1232
    %1235 = vrot.lane.b32.xlu0 %v1233, 64
    %v1236 = vpop.permute.xlu0 %1235
    %v1238 = vmul.f32 %v1212, %v1236
    %v1239 = vld [vmem:[#allocation7] sm:$0x1]
    %v1240 = vxor.u32 %v1205, 2147483648
    %v1241 = vmul.f32 %v1240, 1.442695
    %v1242 = vpow.pop %v1241
    %v1243 = vadd.f32 %v1242, 1.0
    %v1244 = vrcp.pop %v1243
    %v1245 = vmul.f32 1.0, %v1244
    %v1246 = vtanh.pop %v1205
    %v1248 = vlaneseq
    %v1249 = vshrl.u32 %v1248, 7
    %v1250 = vsub.s32 0, %v1249
    %v1251 = vrot.slane %v1239, %v1250
    %1252 = vrot.lane.b32.xlu0 %v1251, 32
    %v1253 = vpop.permute.xlu0 %1252
    %v1255 = vmul.f32 %v1245, %v1253
    %1257 = vrot.lane.b32.xlu0 %v1246, 64
    %v1258 = vpop.permute.xlu0 %1257
    %v1260 = vmul.f32 %v1245, %v1258
    %1262 = vrot.lane.b32.xlu0 %v1260, 32
    %v1263 = vpop.permute.xlu0 %1262
    %v1265 = vadd.f32 %v1255, %v1263
    %v1266 = vtanh.pop %v1265
    %1268 = vrot.lane.b32.xlu0 %v1266, 64
    %v1269 = vpop.permute.xlu0 %1268
    %v1271 = vmul.f32 %v1245, %v1269
    %1273 = vrot.lane.b32.xlu0 %v1238, 32
    %v1274 = vpop.permute.xlu0 %1273
    %1276 = vst.msk [vmem:[#allocation4] sm:$0x1] %vm297, %v1274
    %1278 = vrot.lane.b32.xlu0 %v1232, 96
    %v1279 = vpop.permute.xlu0 %1278
    %1281 = vst.msk [vmem:[#allocation6] sm:$0x1] %vm297, %v1279
    %1283 = vrot.lane.b32.xlu0 %v1271, 32
    %v1284 = vpop.permute.xlu0 %1283
    %1286 = vst.msk [vmem:[#allocation5] sm:$0x1] %vm297, %v1284
    %1288 = vrot.lane.b32.xlu0 %v1265, 96
    %v1289 = vpop.permute.xlu0 %1288
    %1291 = vst.msk [vmem:[#allocation7] sm:$0x1] %vm297, %v1289
    %1292 = vst.msk [vmem:[#allocation8 + $0x3] sm:$0x1] %vm297, %v1274
    %1293 = vst.msk [vmem:[#allocation9 + $0x4] sm:$0x1] %vm297, %v1284
    %v1294 = vld [vmem:[#allocation2 + $0x4] sm:$0x1]
    %v1295 = vld [vmem:[#allocation4] sm:$0x1]
    %v1296 = vld [vmem:[#allocation16] sm:$0xff]
    %v1297 = vld [vmem:[#allocation16 + $0x8] sm:$0xff]
    %v1298 = vld [vmem:[#allocation16 + $0x10] sm:$0xff]
    %v1299 = vld [vmem:[#allocation16 + $0x18] sm:$0xff]
    %v1301 = vsel %vm140, %v1295, 0
    %1303 = vmatprep.subr.mxu0 0.0
    %1304 = vmatpush1.msra.mxu0 %v1296
    %1305 = vmatprep.subr.mxu0 0.0
    %1306 = vmatpush1.msra.mxu0 %v1297
    %1307 = vmatprep.subr.mxu0 0.0
    %1308 = vmatpush1.msra.mxu0 %v1298
    %1309 = vmatprep.subr.mxu0 0.0
    %1310 = vmatpush1.msra.mxu0 %v1299
    %1311 = vmatprep.subr.mxu0 0.0
    %1312 = vmatpush1.msra.mxu0 0.0
    %1313 = vmatprep.subr.mxu0 0.0
    %1314 = vmatpush1.msra.mxu0 0.0
    %1315 = vmatprep.subr.mxu0 0.0
    %1316 = vmatpush1.msra.mxu0 0.0
    %1317 = vmatprep.subr.mxu0 0.0
    %1318 = vmatpush1.msra.mxu0 0.0
    %1319 = vmatprep.subr.mxu0 0.0
    %1320 = vmatpush1.msra.mxu0 0.0
    %1321 = vmatprep.subr.mxu0 0.0
    %1322 = vmatpush1.msra.mxu0 0.0
    %1323 = vmatprep.subr.mxu0 0.0
    %1324 = vmatpush1.msra.mxu0 0.0
    %1325 = vmatprep.subr.mxu0 0.0
    %1326 = vmatpush1.msra.mxu0 0.0
    %1327 = vmatprep.subr.mxu0 0.0
    %1328 = vmatpush1.msra.mxu0 0.0
    %1329 = vmatprep.subr.mxu0 0.0
    %1330 = vmatpush1.msra.mxu0 0.0
    %1331 = vmatprep.subr.mxu0 0.0
    %1332 = vmatpush1.msra.mxu0 0.0
    %1333 = vmatprep.subr.mxu0 0.0
    %1334 = vmatpush1.msra.mxu0 0.0
    %1335 = vmatprep.subr.mxu0 0.0
    %1336 = vmatpush1.msra.mxu0 0.0
    %1337 = vmatprep.subr.mxu0 0.0
    %1338 = vmatpush1.msra.mxu0 0.0
    %1339 = vmatprep.subr.mxu0 0.0
    %1340 = vmatpush1.msra.mxu0 0.0
    %1341 = vmatprep.subr.mxu0 0.0
    %1342 = vmatpush1.msra.mxu0 0.0
    %1343 = vmatprep.subr.mxu0 0.0
    %1344 = vmatpush1.msra.mxu0 0.0
    %1345 = vmatprep.subr.mxu0 0.0
    %1346 = vmatpush1.msra.mxu0 0.0
    %1347 = vmatprep.subr.mxu0 0.0
    %1348 = vmatpush1.msra.mxu0 0.0
    %1349 = vmatprep.subr.mxu0 0.0
    %1350 = vmatpush1.msra.mxu0 0.0
    %1351 = vmatprep.subr.mxu0 0.0
    %1352 = vmatpush1.msra.mxu0 0.0
    %1353 = vmatprep.subr.mxu0 0.0
    %1354 = vmatpush1.msra.mxu0 0.0
    %1355 = vmatprep.subr.mxu0 0.0
    %1356 = vmatpush1.msra.mxu0 0.0
    %1357 = vmatprep.subr.mxu0 0.0
    %1358 = vmatpush1.msra.mxu0 0.0
    %1359 = vmatprep.subr.mxu0 0.0
    %1360 = vmatpush1.msra.mxu0 0.0
    %1361 = vmatprep.subr.mxu0 0.0
    %1362 = vmatpush1.msra.mxu0 0.0
    %1363 = vmatprep.subr.mxu0 0.0
    %1364 = vmatpush1.msra.mxu0 0.0
    %1365 = vmatprep.subr.mxu0 0.0
    %1366 = vmatpush1.msra.mxu0 0.0
    %1367 = vmatprep.mubr.f32.mxu0 0.0
    %1368 = vmatmul.mubr.f32.gmra.mrb[0].mxu0 %v1301
    %v1369 = vpop.f32.mrb[0].mxu0
    %v1370 = vadd.f32 0.0, %v1369
    %v1371 = vpop.f32.mrb[0].mxu0
    %1372 = vdwg.mxu0
    %v1373 = vadd.f32 %v1294, %v1370
    %v1374 = vld [vmem:[#allocation3 + $0x3] sm:$0x1]
    %v1375 = vld [vmem:[#allocation5] sm:$0x1]
    %v1376 = vld [vmem:[#allocation19] sm:$0xff]
    %v1377 = vld [vmem:[#allocation19 + $0x8] sm:$0xff]
    %v1378 = vld [vmem:[#allocation19 + $0x10] sm:$0xff]
    %v1379 = vld [vmem:[#allocation19 + $0x18] sm:$0xff]
    %v1381 = vsel %vm140, %v1375, 0
    %1383 = vmatprep.subr.mxu0 0.0
    %1384 = vmatpush1.msra.mxu0 %v1376
    %1385 = vmatprep.subr.mxu0 0.0
    %1386 = vmatpush1.msra.mxu0 %v1377
    %1387 = vmatprep.subr.mxu0 0.0
    %1388 = vmatpush1.msra.mxu0 %v1378
    %1389 = vmatprep.subr.mxu0 0.0
    %1390 = vmatpush1.msra.mxu0 %v1379
    %1391 = vmatprep.subr.mxu0 0.0
    %1392 = vmatpush1.msra.mxu0 0.0
    %1393 = vmatprep.subr.mxu0 0.0
    %1394 = vmatpush1.msra.mxu0 0.0
    %1395 = vmatprep.subr.mxu0 0.0
    %1396 = vmatpush1.msra.mxu0 0.0
    %1397 = vmatprep.subr.mxu0 0.0
    %1398 = vmatpush1.msra.mxu0 0.0
    %1399 = vmatprep.subr.mxu0 0.0
    %1400 = vmatpush1.msra.mxu0 0.0
    %1401 = vmatprep.subr.mxu0 0.0
    %1402 = vmatpush1.msra.mxu0 0.0
    %1403 = vmatprep.subr.mxu0 0.0
    %1404 = vmatpush1.msra.mxu0 0.0
    %1405 = vmatprep.subr.mxu0 0.0
    %1406 = vmatpush1.msra.mxu0 0.0
    %1407 = vmatprep.subr.mxu0 0.0
    %1408 = vmatpush1.msra.mxu0 0.0
    %1409 = vmatprep.subr.mxu0 0.0
    %1410 = vmatpush1.msra.mxu0 0.0
    %1411 = vmatprep.subr.mxu0 0.0
    %1412 = vmatpush1.msra.mxu0 0.0
    %1413 = vmatprep.subr.mxu0 0.0
    %1414 = vmatpush1.msra.mxu0 0.0
    %1415 = vmatprep.subr.mxu0 0.0
    %1416 = vmatpush1.msra.mxu0 0.0
    %1417 = vmatprep.subr.mxu0 0.0
    %1418 = vmatpush1.msra.mxu0 0.0
    %1419 = vmatprep.subr.mxu0 0.0
    %1420 = vmatpush1.msra.mxu0 0.0
    %1421 = vmatprep.subr.mxu0 0.0
    %1422 = vmatpush1.msra.mxu0 0.0
    %1423 = vmatprep.subr.mxu0 0.0
    %1424 = vmatpush1.msra.mxu0 0.0
    %1425 = vmatprep.subr.mxu0 0.0
    %1426 = vmatpush1.msra.mxu0 0.0
    %1427 = vmatprep.subr.mxu0 0.0
    %1428 = vmatpush1.msra.mxu0 0.0
    %1429 = vmatprep.subr.mxu0 0.0
    %1430 = vmatpush1.msra.mxu0 0.0
    %1431 = vmatprep.subr.mxu0 0.0
    %1432 = vmatpush1.msra.mxu0 0.0
    %1433 = vmatprep.subr.mxu0 0.0
    %1434 = vmatpush1.msra.mxu0 0.0
    %1435 = vmatprep.subr.mxu0 0.0
    %1436 = vmatpush1.msra.mxu0 0.0
    %1437 = vmatprep.subr.mxu0 0.0
    %1438 = vmatpush1.msra.mxu0 0.0
    %1439 = vmatprep.subr.mxu0 0.0
    %1440 = vmatpush1.msra.mxu0 0.0
    %1441 = vmatprep.subr.mxu0 0.0
    %1442 = vmatpush1.msra.mxu0 0.0
    %1443 = vmatprep.subr.mxu0 0.0
    %1444 = vmatpush1.msra.mxu0 0.0
    %1445 = vmatprep.subr.mxu0 0.0
    %1446 = vmatpush1.msra.mxu0 0.0
    %1447 = vmatprep.mubr.f32.mxu0 0.0
    %1448 = vmatmul.mubr.f32.gmra.mrb[0].mxu0 %v1381
    %v1449 = vpop.f32.mrb[0].mxu0
    %v1450 = vadd.f32 0.0, %v1449
    %v1451 = vpop.f32.mrb[0].mxu0
    %1452 = vdwg.mxu0
    %v1453 = vadd.f32 %v1374, %v1450
    %v1454 = vld [vmem:[#allocation6] sm:$0x1]
    %v1455 = vxor.u32 %v1373, 2147483648
    %v1456 = vmul.f32 %v1455, 1.442695
    %v1457 = vpow.pop %v1456
    %v1458 = vadd.f32 %v1457, 1.0
    %v1459 = vrcp.pop %v1458
    %v1460 = vmul.f32 1.0, %v1459
    %v1461 = vtanh.pop %v1373
    %v1463 = vlaneseq
    %v1464 = vshrl.u32 %v1463, 7
    %v1465 = vsub.s32 0, %v1464
    %v1466 = vrot.slane %v1454, %v1465
    %1467 = vrot.lane.b32.xlu0 %v1466, 32
    %v1468 = vpop.permute.xlu0 %1467
    %v1470 = vmul.f32 %v1460, %v1468
    %1472 = vrot.lane.b32.xlu0 %v1461, 64
    %v1473 = vpop.permute.xlu0 %1472
    %v1475 = vmul.f32 %v1460, %v1473
    %1477 = vrot.lane.b32.xlu0 %v1475, 32
    %v1478 = vpop.permute.xlu0 %1477
    %v1480 = vadd.f32 %v1470, %v1478
    %v1481 = vtanh.pop %v1480
    %1483 = vrot.lane.b32.xlu0 %v1481, 64
    %v1484 = vpop.permute.xlu0 %1483
    %v1486 = vmul.f32 %v1460, %v1484
    %v1487 = vld [vmem:[#allocation7] sm:$0x1]
    %v1488 = vxor.u32 %v1453, 2147483648
    %v1489 = vmul.f32 %v1488, 1.442695
    %v1490 = vpow.pop %v1489
    %v1491 = vadd.f32 %v1490, 1.0
    %v1492 = vrcp.pop %v1491
    %v1493 = vmul.f32 1.0, %v1492
    %v1494 = vtanh.pop %v1453
    %v1496 = vlaneseq
    %v1497 = vshrl.u32 %v1496, 7
    %v1498 = vsub.s32 0, %v1497
    %v1499 = vrot.slane %v1487, %v1498
    %1500 = vrot.lane.b32.xlu0 %v1499, 32
    %v1501 = vpop.permute.xlu0 %1500
    %v1503 = vmul.f32 %v1493, %v1501
    %1505 = vrot.lane.b32.xlu0 %v1494, 64
    %v1506 = vpop.permute.xlu0 %1505
    %v1508 = vmul.f32 %v1493, %v1506
    %1510 = vrot.lane.b32.xlu0 %v1508, 32
    %v1511 = vpop.permute.xlu0 %1510
    %v1513 = vadd.f32 %v1503, %v1511
    %v1514 = vtanh.pop %v1513
    %1516 = vrot.lane.b32.xlu0 %v1514, 64
    %v1517 = vpop.permute.xlu0 %1516
    %v1519 = vmul.f32 %v1493, %v1517
    %1521 = vrot.lane.b32.xlu0 %v1486, 32
    %v1522 = vpop.permute.xlu0 %1521
    %1524 = vst.msk [vmem:[#allocation4] sm:$0x1] %vm297, %v1522
    %1526 = vrot.lane.b32.xlu0 %v1480, 96
    %v1527 = vpop.permute.xlu0 %1526
    %1529 = vst.msk [vmem:[#allocation6] sm:$0x1] %vm297, %v1527
    %1531 = vrot.lane.b32.xlu0 %v1519, 32
    %v1532 = vpop.permute.xlu0 %1531
    %1534 = vst.msk [vmem:[#allocation5] sm:$0x1] %vm297, %v1532
    %1536 = vrot.lane.b32.xlu0 %v1513, 96
    %v1537 = vpop.permute.xlu0 %1536
    %1539 = vst.msk [vmem:[#allocation7] sm:$0x1] %vm297, %v1537
    %1540 = vst.msk [vmem:[#allocation8 + $0x4] sm:$0x1] %vm297, %v1522
    %1541 = vst.msk [vmem:[#allocation9 + $0x3] sm:$0x1] %vm297, %v1532
    %v1542 = vld [vmem:[#allocation2 + $0x5] sm:$0x1]
    %v1543 = vld [vmem:[#allocation4] sm:$0x1]
    %v1544 = vld [vmem:[#allocation16] sm:$0xff]
    %v1545 = vld [vmem:[#allocation16 + $0x8] sm:$0xff]
    %v1546 = vld [vmem:[#allocation16 + $0x10] sm:$0xff]
    %v1547 = vld [vmem:[#allocation16 + $0x18] sm:$0xff]
    %v1549 = vsel %vm140, %v1543, 0
    %1551 = vmatprep.subr.mxu0 0.0
    %1552 = vmatpush1.msra.mxu0 %v1544
    %1553 = vmatprep.subr.mxu0 0.0
    %1554 = vmatpush1.msra.mxu0 %v1545
    %1555 = vmatprep.subr.mxu0 0.0
    %1556 = vmatpush1.msra.mxu0 %v1546
    %1557 = vmatprep.subr.mxu0 0.0
    %1558 = vmatpush1.msra.mxu0 %v1547
    %1559 = vmatprep.subr.mxu0 0.0
    %1560 = vmatpush1.msra.mxu0 0.0
    %1561 = vmatprep.subr.mxu0 0.0
    %1562 = vmatpush1.msra.mxu0 0.0
    %1563 = vmatprep.subr.mxu0 0.0
    %1564 = vmatpush1.msra.mxu0 0.0
    %1565 = vmatprep.subr.mxu0 0.0
    %1566 = vmatpush1.msra.mxu0 0.0
    %1567 = vmatprep.subr.mxu0 0.0
    %1568 = vmatpush1.msra.mxu0 0.0
    %1569 = vmatprep.subr.mxu0 0.0
    %1570 = vmatpush1.msra.mxu0 0.0
    %1571 = vmatprep.subr.mxu0 0.0
    %1572 = vmatpush1.msra.mxu0 0.0
    %1573 = vmatprep.subr.mxu0 0.0
    %1574 = vmatpush1.msra.mxu0 0.0
    %1575 = vmatprep.subr.mxu0 0.0
    %1576 = vmatpush1.msra.mxu0 0.0
    %1577 = vmatprep.subr.mxu0 0.0
    %1578 = vmatpush1.msra.mxu0 0.0
    %1579 = vmatprep.subr.mxu0 0.0
    %1580 = vmatpush1.msra.mxu0 0.0
    %1581 = vmatprep.subr.mxu0 0.0
    %1582 = vmatpush1.msra.mxu0 0.0
    %1583 = vmatprep.subr.mxu0 0.0
    %1584 = vmatpush1.msra.mxu0 0.0
    %1585 = vmatprep.subr.mxu0 0.0
    %1586 = vmatpush1.msra.mxu0 0.0
    %1587 = vmatprep.subr.mxu0 0.0
    %1588 = vmatpush1.msra.mxu0 0.0
    %1589 = vmatprep.subr.mxu0 0.0
    %1590 = vmatpush1.msra.mxu0 0.0
    %1591 = vmatprep.subr.mxu0 0.0
    %1592 = vmatpush1.msra.mxu0 0.0
    %1593 = vmatprep.subr.mxu0 0.0
    %1594 = vmatpush1.msra.mxu0 0.0
    %1595 = vmatprep.subr.mxu0 0.0
    %1596 = vmatpush1.msra.mxu0 0.0
    %1597 = vmatprep.subr.mxu0 0.0
    %1598 = vmatpush1.msra.mxu0 0.0
    %1599 = vmatprep.subr.mxu0 0.0
    %1600 = vmatpush1.msra.mxu0 0.0
    %1601 = vmatprep.subr.mxu0 0.0
    %1602 = vmatpush1.msra.mxu0 0.0
    %1603 = vmatprep.subr.mxu0 0.0
    %1604 = vmatpush1.msra.mxu0 0.0
    %1605 = vmatprep.subr.mxu0 0.0
    %1606 = vmatpush1.msra.mxu0 0.0
    %1607 = vmatprep.subr.mxu0 0.0
    %1608 = vmatpush1.msra.mxu0 0.0
    %1609 = vmatprep.subr.mxu0 0.0
    %1610 = vmatpush1.msra.mxu0 0.0
    %1611 = vmatprep.subr.mxu0 0.0
    %1612 = vmatpush1.msra.mxu0 0.0
    %1613 = vmatprep.subr.mxu0 0.0
    %1614 = vmatpush1.msra.mxu0 0.0
    %1615 = vmatprep.mubr.f32.mxu0 0.0
    %1616 = vmatmul.mubr.f32.gmra.mrb[0].mxu0 %v1549
    %v1617 = vpop.f32.mrb[0].mxu0
    %v1618 = vadd.f32 0.0, %v1617
    %v1619 = vpop.f32.mrb[0].mxu0
    %1620 = vdwg.mxu0
    %v1621 = vadd.f32 %v1542, %v1618
    %v1622 = vld [vmem:[#allocation3 + $0x2] sm:$0x1]
    %v1623 = vld [vmem:[#allocation5] sm:$0x1]
    %v1624 = vld [vmem:[#allocation19] sm:$0xff]
    %v1625 = vld [vmem:[#allocation19 + $0x8] sm:$0xff]
    %v1626 = vld [vmem:[#allocation19 + $0x10] sm:$0xff]
    %v1627 = vld [vmem:[#allocation19 + $0x18] sm:$0xff]
    %v1629 = vsel %vm140, %v1623, 0
    %1631 = vmatprep.subr.mxu0 0.0
    %1632 = vmatpush1.msra.mxu0 %v1624
    %1633 = vmatprep.subr.mxu0 0.0
    %1634 = vmatpush1.msra.mxu0 %v1625
    %1635 = vmatprep.subr.mxu0 0.0
    %1636 = vmatpush1.msra.mxu0 %v1626
    %1637 = vmatprep.subr.mxu0 0.0
    %1638 = vmatpush1.msra.mxu0 %v1627
    %1639 = vmatprep.subr.mxu0 0.0
    %1640 = vmatpush1.msra.mxu0 0.0
    %1641 = vmatprep.subr.mxu0 0.0
    %1642 = vmatpush1.msra.mxu0 0.0
    %1643 = vmatprep.subr.mxu0 0.0
    %1644 = vmatpush1.msra.mxu0 0.0
    %1645 = vmatprep.subr.mxu0 0.0
    %1646 = vmatpush1.msra.mxu0 0.0
    %1647 = vmatprep.subr.mxu0 0.0
    %1648 = vmatpush1.msra.mxu0 0.0
    %1649 = vmatprep.subr.mxu0 0.0
    %1650 = vmatpush1.msra.mxu0 0.0
    %1651 = vmatprep.subr.mxu0 0.0
    %1652 = vmatpush1.msra.mxu0 0.0
    %1653 = vmatprep.subr.mxu0 0.0
    %1654 = vmatpush1.msra.mxu0 0.0
    %1655 = vmatprep.subr.mxu0 0.0
    %1656 = vmatpush1.msra.mxu0 0.0
    %1657 = vmatprep.subr.mxu0 0.0
    %1658 = vmatpush1.msra.mxu0 0.0
    %1659 = vmatprep.subr.mxu0 0.0
    %1660 = vmatpush1.msra.mxu0 0.0
    %1661 = vmatprep.subr.mxu0 0.0
    %1662 = vmatpush1.msra.mxu0 0.0
    %1663 = vmatprep.subr.mxu0 0.0
    %1664 = vmatpush1.msra.mxu0 0.0
    %1665 = vmatprep.subr.mxu0 0.0
    %1666 = vmatpush1.msra.mxu0 0.0
    %1667 = vmatprep.subr.mxu0 0.0
    %1668 = vmatpush1.msra.mxu0 0.0
    %1669 = vmatprep.subr.mxu0 0.0
    %1670 = vmatpush1.msra.mxu0 0.0
    %1671 = vmatprep.subr.mxu0 0.0
    %1672 = vmatpush1.msra.mxu0 0.0
    %1673 = vmatprep.subr.mxu0 0.0
    %1674 = vmatpush1.msra.mxu0 0.0
    %1675 = vmatprep.subr.mxu0 0.0
    %1676 = vmatpush1.msra.mxu0 0.0
    %1677 = vmatprep.subr.mxu0 0.0
    %1678 = vmatpush1.msra.mxu0 0.0
    %1679 = vmatprep.subr.mxu0 0.0
    %1680 = vmatpush1.msra.mxu0 0.0
    %1681 = vmatprep.subr.mxu0 0.0
    %1682 = vmatpush1.msra.mxu0 0.0
    %1683 = vmatprep.subr.mxu0 0.0
    %1684 = vmatpush1.msra.mxu0 0.0
    %1685 = vmatprep.subr.mxu0 0.0
    %1686 = vmatpush1.msra.mxu0 0.0
    %1687 = vmatprep.subr.mxu0 0.0
    %1688 = vmatpush1.msra.mxu0 0.0
    %1689 = vmatprep.subr.mxu0 0.0
    %1690 = vmatpush1.msra.mxu0 0.0
    %1691 = vmatprep.subr.mxu0 0.0
    %1692 = vmatpush1.msra.mxu0 0.0
    %1693 = vmatprep.subr.mxu0 0.0
    %1694 = vmatpush1.msra.mxu0 0.0
    %1695 = vmatprep.mubr.f32.mxu0 0.0
    %1696 = vmatmul.mubr.f32.gmra.mrb[0].mxu0 %v1629
    %v1697 = vpop.f32.mrb[0].mxu0
    %v1698 = vadd.f32 0.0, %v1697
    %v1699 = vpop.f32.mrb[0].mxu0
    %1700 = vdwg.mxu0
    %v1701 = vadd.f32 %v1622, %v1698
    %v1702 = vld [vmem:[#allocation6] sm:$0x1]
    %v1703 = vxor.u32 %v1621, 2147483648
    %v1704 = vmul.f32 %v1703, 1.442695
    %v1705 = vpow.pop %v1704
    %v1706 = vadd.f32 %v1705, 1.0
    %v1707 = vrcp.pop %v1706
    %v1708 = vmul.f32 1.0, %v1707
    %v1709 = vtanh.pop %v1621
    %v1711 = vlaneseq
    %v1712 = vshrl.u32 %v1711, 7
    %v1713 = vsub.s32 0, %v1712
    %v1714 = vrot.slane %v1702, %v1713
    %1715 = vrot.lane.b32.xlu0 %v1714, 32
    %v1716 = vpop.permute.xlu0 %1715
    %v1718 = vmul.f32 %v1708, %v1716
    %1720 = vrot.lane.b32.xlu0 %v1709, 64
    %v1721 = vpop.permute.xlu0 %1720
    %v1723 = vmul.f32 %v1708, %v1721
    %1725 = vrot.lane.b32.xlu0 %v1723, 32
    %v1726 = vpop.permute.xlu0 %1725
    %v1728 = vadd.f32 %v1718, %v1726
    %v1729 = vtanh.pop %v1728
    %1731 = vrot.lane.b32.xlu0 %v1729, 64
    %v1732 = vpop.permute.xlu0 %1731
    %v1734 = vmul.f32 %v1708, %v1732
    %v1735 = vld [vmem:[#allocation7] sm:$0x1]
    %v1736 = vxor.u32 %v1701, 2147483648
    %v1737 = vmul.f32 %v1736, 1.442695
    %v1738 = vpow.pop %v1737
    %v1739 = vadd.f32 %v1738, 1.0
    %v1740 = vrcp.pop %v1739
    %v1741 = vmul.f32 1.0, %v1740
    %v1742 = vtanh.pop %v1701
    %v1744 = vlaneseq
    %v1745 = vshrl.u32 %v1744, 7
    %v1746 = vsub.s32 0, %v1745
    %v1747 = vrot.slane %v1735, %v1746
    %1748 = vrot.lane.b32.xlu0 %v1747, 32
    %v1749 = vpop.permute.xlu0 %1748
    %v1751 = vmul.f32 %v1741, %v1749
    %1753 = vrot.lane.b32.xlu0 %v1742, 64
    %v1754 = vpop.permute.xlu0 %1753
    %v1756 = vmul.f32 %v1741, %v1754
    %1758 = vrot.lane.b32.xlu0 %v1756, 32
    %v1759 = vpop.permute.xlu0 %1758
    %v1761 = vadd.f32 %v1751, %v1759
    %v1762 = vtanh.pop %v1761
    %1764 = vrot.lane.b32.xlu0 %v1762, 64
    %v1765 = vpop.permute.xlu0 %1764
    %v1767 = vmul.f32 %v1741, %v1765
    %1769 = vrot.lane.b32.xlu0 %v1734, 32
    %v1770 = vpop.permute.xlu0 %1769
    %1772 = vst.msk [vmem:[#allocation4] sm:$0x1] %vm297, %v1770
    %1774 = vrot.lane.b32.xlu0 %v1728, 96
    %v1775 = vpop.permute.xlu0 %1774
    %1777 = vst.msk [vmem:[#allocation6] sm:$0x1] %vm297, %v1775
    %1779 = vrot.lane.b32.xlu0 %v1767, 32
    %v1780 = vpop.permute.xlu0 %1779
    %1782 = vst.msk [vmem:[#allocation5] sm:$0x1] %vm297, %v1780
    %1784 = vrot.lane.b32.xlu0 %v1761, 96
    %v1785 = vpop.permute.xlu0 %1784
    %1787 = vst.msk [vmem:[#allocation7] sm:$0x1] %vm297, %v1785
    %1788 = vst.msk [vmem:[#allocation8 + $0x5] sm:$0x1] %vm297, %v1770
    %1789 = vst.msk [vmem:[#allocation9 + $0x2] sm:$0x1] %vm297, %v1780
    %v1790 = vld [vmem:[#allocation2 + $0x6] sm:$0x1]
    %v1791 = vld [vmem:[#allocation4] sm:$0x1]
    %v1792 = vld [vmem:[#allocation16] sm:$0xff]
    %v1793 = vld [vmem:[#allocation16 + $0x8] sm:$0xff]
    %v1794 = vld [vmem:[#allocation16 + $0x10] sm:$0xff]
    %v1795 = vld [vmem:[#allocation16 + $0x18] sm:$0xff]
    %v1797 = vsel %vm140, %v1791, 0
    %1799 = vmatprep.subr.mxu0 0.0
    %1800 = vmatpush1.msra.mxu0 %v1792
    %1801 = vmatprep.subr.mxu0 0.0
    %1802 = vmatpush1.msra.mxu0 %v1793
    %1803 = vmatprep.subr.mxu0 0.0
    %1804 = vmatpush1.msra.mxu0 %v1794
    %1805 = vmatprep.subr.mxu0 0.0
    %1806 = vmatpush1.msra.mxu0 %v1795
    %1807 = vmatprep.subr.mxu0 0.0
    %1808 = vmatpush1.msra.mxu0 0.0
    %1809 = vmatprep.subr.mxu0 0.0
    %1810 = vmatpush1.msra.mxu0 0.0
    %1811 = vmatprep.subr.mxu0 0.0
    %1812 = vmatpush1.msra.mxu0 0.0
    %1813 = vmatprep.subr.mxu0 0.0
    %1814 = vmatpush1.msra.mxu0 0.0
    %1815 = vmatprep.subr.mxu0 0.0
    %1816 = vmatpush1.msra.mxu0 0.0
    %1817 = vmatprep.subr.mxu0 0.0
    %1818 = vmatpush1.msra.mxu0 0.0
    %1819 = vmatprep.subr.mxu0 0.0
    %1820 = vmatpush1.msra.mxu0 0.0
    %1821 = vmatprep.subr.mxu0 0.0
    %1822 = vmatpush1.msra.mxu0 0.0
    %1823 = vmatprep.subr.mxu0 0.0
    %1824 = vmatpush1.msra.mxu0 0.0
    %1825 = vmatprep.subr.mxu0 0.0
    %1826 = vmatpush1.msra.mxu0 0.0
    %1827 = vmatprep.subr.mxu0 0.0
    %1828 = vmatpush1.msra.mxu0 0.0
    %1829 = vmatprep.subr.mxu0 0.0
    %1830 = vmatpush1.msra.mxu0 0.0
    %1831 = vmatprep.subr.mxu0 0.0
    %1832 = vmatpush1.msra.mxu0 0.0
    %1833 = vmatprep.subr.mxu0 0.0
    %1834 = vmatpush1.msra.mxu0 0.0
    %1835 = vmatprep.subr.mxu0 0.0
    %1836 = vmatpush1.msra.mxu0 0.0
    %1837 = vmatprep.subr.mxu0 0.0
    %1838 = vmatpush1.msra.mxu0 0.0
    %1839 = vmatprep.subr.mxu0 0.0
    %1840 = vmatpush1.msra.mxu0 0.0
    %1841 = vmatprep.subr.mxu0 0.0
    %1842 = vmatpush1.msra.mxu0 0.0
    %1843 = vmatprep.subr.mxu0 0.0
    %1844 = vmatpush1.msra.mxu0 0.0
    %1845 = vmatprep.subr.mxu0 0.0
    %1846 = vmatpush1.msra.mxu0 0.0
    %1847 = vmatprep.subr.mxu0 0.0
    %1848 = vmatpush1.msra.mxu0 0.0
    %1849 = vmatprep.subr.mxu0 0.0
    %1850 = vmatpush1.msra.mxu0 0.0
    %1851 = vmatprep.subr.mxu0 0.0
    %1852 = vmatpush1.msra.mxu0 0.0
    %1853 = vmatprep.subr.mxu0 0.0
    %1854 = vmatpush1.msra.mxu0 0.0
    %1855 = vmatprep.subr.mxu0 0.0
    %1856 = vmatpush1.msra.mxu0 0.0
    %1857 = vmatprep.subr.mxu0 0.0
    %1858 = vmatpush1.msra.mxu0 0.0
    %1859 = vmatprep.subr.mxu0 0.0
    %1860 = vmatpush1.msra.mxu0 0.0
    %1861 = vmatprep.subr.mxu0 0.0
    %1862 = vmatpush1.msra.mxu0 0.0
    %1863 = vmatprep.mubr.f32.mxu0 0.0
    %1864 = vmatmul.mubr.f32.gmra.mrb[0].mxu0 %v1797
    %v1865 = vpop.f32.mrb[0].mxu0
    %v1866 = vadd.f32 0.0, %v1865
    %v1867 = vpop.f32.mrb[0].mxu0
    %1868 = vdwg.mxu0
    %v1869 = vadd.f32 %v1790, %v1866
    %v1870 = vld [vmem:[#allocation3 + $0x1] sm:$0x1]
    %v1871 = vld [vmem:[#allocation5] sm:$0x1]
    %v1872 = vld [vmem:[#allocation19] sm:$0xff]
    %v1873 = vld [vmem:[#allocation19 + $0x8] sm:$0xff]
    %v1874 = vld [vmem:[#allocation19 + $0x10] sm:$0xff]
    %v1875 = vld [vmem:[#allocation19 + $0x18] sm:$0xff]
    %v1877 = vsel %vm140, %v1871, 0
    %1879 = vmatprep.subr.mxu0 0.0
    %1880 = vmatpush1.msra.mxu0 %v1872
    %1881 = vmatprep.subr.mxu0 0.0
    %1882 = vmatpush1.msra.mxu0 %v1873
    %1883 = vmatprep.subr.mxu0 0.0
    %1884 = vmatpush1.msra.mxu0 %v1874
    %1885 = vmatprep.subr.mxu0 0.0
    %1886 = vmatpush1.msra.mxu0 %v1875
    %1887 = vmatprep.subr.mxu0 0.0
    %1888 = vmatpush1.msra.mxu0 0.0
    %1889 = vmatprep.subr.mxu0 0.0
    %1890 = vmatpush1.msra.mxu0 0.0
    %1891 = vmatprep.subr.mxu0 0.0
    %1892 = vmatpush1.msra.mxu0 0.0
    %1893 = vmatprep.subr.mxu0 0.0
    %1894 = vmatpush1.msra.mxu0 0.0
    %1895 = vmatprep.subr.mxu0 0.0
    %1896 = vmatpush1.msra.mxu0 0.0
    %1897 = vmatprep.subr.mxu0 0.0
    %1898 = vmatpush1.msra.mxu0 0.0
    %1899 = vmatprep.subr.mxu0 0.0
    %1900 = vmatpush1.msra.mxu0 0.0
    %1901 = vmatprep.subr.mxu0 0.0
    %1902 = vmatpush1.msra.mxu0 0.0
    %1903 = vmatprep.subr.mxu0 0.0
    %1904 = vmatpush1.msra.mxu0 0.0
    %1905 = vmatprep.subr.mxu0 0.0
    %1906 = vmatpush1.msra.mxu0 0.0
    %1907 = vmatprep.subr.mxu0 0.0
    %1908 = vmatpush1.msra.mxu0 0.0
    %1909 = vmatprep.subr.mxu0 0.0
    %1910 = vmatpush1.msra.mxu0 0.0
    %1911 = vmatprep.subr.mxu0 0.0
    %1912 = vmatpush1.msra.mxu0 0.0
    %1913 = vmatprep.subr.mxu0 0.0
    %1914 = vmatpush1.msra.mxu0 0.0
    %1915 = vmatprep.subr.mxu0 0.0
    %1916 = vmatpush1.msra.mxu0 0.0
    %1917 = vmatprep.subr.mxu0 0.0
    %1918 = vmatpush1.msra.mxu0 0.0
    %1919 = vmatprep.subr.mxu0 0.0
    %1920 = vmatpush1.msra.mxu0 0.0
    %1921 = vmatprep.subr.mxu0 0.0
    %1922 = vmatpush1.msra.mxu0 0.0
    %1923 = vmatprep.subr.mxu0 0.0
    %1924 = vmatpush1.msra.mxu0 0.0
    %1925 = vmatprep.subr.mxu0 0.0
    %1926 = vmatpush1.msra.mxu0 0.0
    %1927 = vmatprep.subr.mxu0 0.0
    %1928 = vmatpush1.msra.mxu0 0.0
    %1929 = vmatprep.subr.mxu0 0.0
    %1930 = vmatpush1.msra.mxu0 0.0
    %1931 = vmatprep.subr.mxu0 0.0
    %1932 = vmatpush1.msra.mxu0 0.0
    %1933 = vmatprep.subr.mxu0 0.0
    %1934 = vmatpush1.msra.mxu0 0.0
    %1935 = vmatprep.subr.mxu0 0.0
    %1936 = vmatpush1.msra.mxu0 0.0
    %1937 = vmatprep.subr.mxu0 0.0
    %1938 = vmatpush1.msra.mxu0 0.0
    %1939 = vmatprep.subr.mxu0 0.0
    %1940 = vmatpush1.msra.mxu0 0.0
    %1941 = vmatprep.subr.mxu0 0.0
    %1942 = vmatpush1.msra.mxu0 0.0
    %1943 = vmatprep.mubr.f32.mxu0 0.0
    %1944 = vmatmul.mubr.f32.gmra.mrb[0].mxu0 %v1877
    %v1945 = vpop.f32.mrb[0].mxu0
    %v1946 = vadd.f32 0.0, %v1945
    %v1947 = vpop.f32.mrb[0].mxu0
    %1948 = vdwg.mxu0
    %v1949 = vadd.f32 %v1870, %v1946
    %v1950 = vld [vmem:[#allocation6] sm:$0x1]
    %v1951 = vxor.u32 %v1869, 2147483648
    %v1952 = vmul.f32 %v1951, 1.442695
    %v1953 = vpow.pop %v1952
    %v1954 = vadd.f32 %v1953, 1.0
    %v1955 = vrcp.pop %v1954
    %v1956 = vmul.f32 1.0, %v1955
    %v1957 = vtanh.pop %v1869
    %v1959 = vlaneseq
    %v1960 = vshrl.u32 %v1959, 7
    %v1961 = vsub.s32 0, %v1960
    %v1962 = vrot.slane %v1950, %v1961
    %1963 = vrot.lane.b32.xlu0 %v1962, 32
    %v1964 = vpop.permute.xlu0 %1963
    %v1966 = vmul.f32 %v1956, %v1964
    %1968 = vrot.lane.b32.xlu0 %v1957, 64
    %v1969 = vpop.permute.xlu0 %1968
    %v1971 = vmul.f32 %v1956, %v1969
    %1973 = vrot.lane.b32.xlu0 %v1971, 32
    %v1974 = vpop.permute.xlu0 %1973
    %v1976 = vadd.f32 %v1966, %v1974
    %v1977 = vtanh.pop %v1976
    %1979 = vrot.lane.b32.xlu0 %v1977, 64
    %v1980 = vpop.permute.xlu0 %1979
    %v1982 = vmul.f32 %v1956, %v1980
    %v1983 = vld [vmem:[#allocation7] sm:$0x1]
    %v1984 = vxor.u32 %v1949, 2147483648
    %v1985 = vmul.f32 %v1984, 1.442695
    %v1986 = vpow.pop %v1985
    %v1987 = vadd.f32 %v1986, 1.0
    %v1988 = vrcp.pop %v1987
    %v1989 = vmul.f32 1.0, %v1988
    %v1990 = vtanh.pop %v1949
    %v1992 = vlaneseq
    %v1993 = vshrl.u32 %v1992, 7
    %v1994 = vsub.s32 0, %v1993
    %v1995 = vrot.slane %v1983, %v1994
    %1996 = vrot.lane.b32.xlu0 %v1995, 32
    %v1997 = vpop.permute.xlu0 %1996
    %v1999 = vmul.f32 %v1989, %v1997
    %2001 = vrot.lane.b32.xlu0 %v1990, 64
    %v2002 = vpop.permute.xlu0 %2001
    %v2004 = vmul.f32 %v1989, %v2002
    %2006 = vrot.lane.b32.xlu0 %v2004, 32
    %v2007 = vpop.permute.xlu0 %2006
    %v2009 = vadd.f32 %v1999, %v2007
    %v2010 = vtanh.pop %v2009
    %2012 = vrot.lane.b32.xlu0 %v2010, 64
    %v2013 = vpop.permute.xlu0 %2012
    %v2015 = vmul.f32 %v1989, %v2013
    %2017 = vrot.lane.b32.xlu0 %v1982, 32
    %v2018 = vpop.permute.xlu0 %2017
    %2020 = vst.msk [vmem:[#allocation4] sm:$0x1] %vm297, %v2018
    %2022 = vrot.lane.b32.xlu0 %v1976, 96
    %v2023 = vpop.permute.xlu0 %2022
    %2025 = vst.msk [vmem:[#allocation6] sm:$0x1] %vm297, %v2023
    %2027 = vrot.lane.b32.xlu0 %v2015, 32
    %v2028 = vpop.permute.xlu0 %2027
    %2030 = vst.msk [vmem:[#allocation5] sm:$0x1] %vm297, %v2028
    %2032 = vrot.lane.b32.xlu0 %v2009, 96
    %v2033 = vpop.permute.xlu0 %2032
    %2035 = vst.msk [vmem:[#allocation7] sm:$0x1] %vm297, %v2033
    %2036 = vst.msk [vmem:[#allocation8 + $0x6] sm:$0x1] %vm297, %v2018
    %2037 = vst.msk [vmem:[#allocation9 + $0x1] sm:$0x1] %vm297, %v2028
    %v2038 = vld [vmem:[#allocation2 + $0x7] sm:$0x1]
    %v2039 = vld [vmem:[#allocation4] sm:$0x1]
    %v2040 = vld [vmem:[#allocation16] sm:$0xff]
    %v2041 = vld [vmem:[#allocation16 + $0x8] sm:$0xff]
    %v2042 = vld [vmem:[#allocation16 + $0x10] sm:$0xff]
    %v2043 = vld [vmem:[#allocation16 + $0x18] sm:$0xff]
    %v2045 = vsel %vm140, %v2039, 0
    %2047 = vmatprep.subr.mxu0 0.0
    %2048 = vmatpush1.msra.mxu0 %v2040
    %2049 = vmatprep.subr.mxu0 0.0
    %2050 = vmatpush1.msra.mxu0 %v2041
    %2051 = vmatprep.subr.mxu0 0.0
    %2052 = vmatpush1.msra.mxu0 %v2042
    %2053 = vmatprep.subr.mxu0 0.0
    %2054 = vmatpush1.msra.mxu0 %v2043
    %2055 = vmatprep.subr.mxu0 0.0
    %2056 = vmatpush1.msra.mxu0 0.0
    %2057 = vmatprep.subr.mxu0 0.0
    %2058 = vmatpush1.msra.mxu0 0.0
    %2059 = vmatprep.subr.mxu0 0.0
    %2060 = vmatpush1.msra.mxu0 0.0
    %2061 = vmatprep.subr.mxu0 0.0
    %2062 = vmatpush1.msra.mxu0 0.0
    %2063 = vmatprep.subr.mxu0 0.0
    %2064 = vmatpush1.msra.mxu0 0.0
    %2065 = vmatprep.subr.mxu0 0.0
    %2066 = vmatpush1.msra.mxu0 0.0
    %2067 = vmatprep.subr.mxu0 0.0
    %2068 = vmatpush1.msra.mxu0 0.0
    %2069 = vmatprep.subr.mxu0 0.0
    %2070 = vmatpush1.msra.mxu0 0.0
    %2071 = vmatprep.subr.mxu0 0.0
    %2072 = vmatpush1.msra.mxu0 0.0
    %2073 = vmatprep.subr.mxu0 0.0
    %2074 = vmatpush1.msra.mxu0 0.0
    %2075 = vmatprep.subr.mxu0 0.0
    %2076 = vmatpush1.msra.mxu0 0.0
    %2077 = vmatprep.subr.mxu0 0.0
    %2078 = vmatpush1.msra.mxu0 0.0
    %2079 = vmatprep.subr.mxu0 0.0
    %2080 = vmatpush1.msra.mxu0 0.0
    %2081 = vmatprep.subr.mxu0 0.0
    %2082 = vmatpush1.msra.mxu0 0.0
    %2083 = vmatprep.subr.mxu0 0.0
    %2084 = vmatpush1.msra.mxu0 0.0
    %2085 = vmatprep.subr.mxu0 0.0
    %2086 = vmatpush1.msra.mxu0 0.0
    %2087 = vmatprep.subr.mxu0 0.0
    %2088 = vmatpush1.msra.mxu0 0.0
    %2089 = vmatprep.subr.mxu0 0.0
    %2090 = vmatpush1.msra.mxu0 0.0
    %2091 = vmatprep.subr.mxu0 0.0
    %2092 = vmatpush1.msra.mxu0 0.0
    %2093 = vmatprep.subr.mxu0 0.0
    %2094 = vmatpush1.msra.mxu0 0.0
    %2095 = vmatprep.subr.mxu0 0.0
    %2096 = vmatpush1.msra.mxu0 0.0
    %2097 = vmatprep.subr.mxu0 0.0
    %2098 = vmatpush1.msra.mxu0 0.0
    %2099 = vmatprep.subr.mxu0 0.0
    %2100 = vmatpush1.msra.mxu0 0.0
    %2101 = vmatprep.subr.mxu0 0.0
    %2102 = vmatpush1.msra.mxu0 0.0
    %2103 = vmatprep.subr.mxu0 0.0
    %2104 = vmatpush1.msra.mxu0 0.0
    %2105 = vmatprep.subr.mxu0 0.0
    %2106 = vmatpush1.msra.mxu0 0.0
    %2107 = vmatprep.subr.mxu0 0.0
    %2108 = vmatpush1.msra.mxu0 0.0
    %2109 = vmatprep.subr.mxu0 0.0
    %2110 = vmatpush1.msra.mxu0 0.0
    %2111 = vmatprep.mubr.f32.mxu0 0.0
    %2112 = vmatmul.mubr.f32.gmra.mrb[0].mxu0 %v2045
    %v2113 = vpop.f32.mrb[0].mxu0
    %v2114 = vadd.f32 0.0, %v2113
    %v2115 = vpop.f32.mrb[0].mxu0
    %2116 = vdwg.mxu0
    %v2117 = vadd.f32 %v2038, %v2114
    %v2118 = vld [vmem:[#allocation3] sm:$0x1]
    %v2119 = vld [vmem:[#allocation5] sm:$0x1]
    %v2120 = vld [vmem:[#allocation19] sm:$0xff]
    %v2121 = vld [vmem:[#allocation19 + $0x8] sm:$0xff]
    %v2122 = vld [vmem:[#allocation19 + $0x10] sm:$0xff]
    %v2123 = vld [vmem:[#allocation19 + $0x18] sm:$0xff]
    %v2125 = vsel %vm140, %v2119, 0
    %2127 = vmatprep.subr.mxu0 0.0
    %2128 = vmatpush1.msra.mxu0 %v2120
    %2129 = vmatprep.subr.mxu0 0.0
    %2130 = vmatpush1.msra.mxu0 %v2121
    %2131 = vmatprep.subr.mxu0 0.0
    %2132 = vmatpush1.msra.mxu0 %v2122
    %2133 = vmatprep.subr.mxu0 0.0
    %2134 = vmatpush1.msra.mxu0 %v2123
    %2135 = vmatprep.subr.mxu0 0.0
    %2136 = vmatpush1.msra.mxu0 0.0
    %2137 = vmatprep.subr.mxu0 0.0
    %2138 = vmatpush1.msra.mxu0 0.0
    %2139 = vmatprep.subr.mxu0 0.0
    %2140 = vmatpush1.msra.mxu0 0.0
    %2141 = vmatprep.subr.mxu0 0.0
    %2142 = vmatpush1.msra.mxu0 0.0
    %2143 = vmatprep.subr.mxu0 0.0
    %2144 = vmatpush1.msra.mxu0 0.0
    %2145 = vmatprep.subr.mxu0 0.0
    %2146 = vmatpush1.msra.mxu0 0.0
    %2147 = vmatprep.subr.mxu0 0.0
    %2148 = vmatpush1.msra.mxu0 0.0
    %2149 = vmatprep.subr.mxu0 0.0
    %2150 = vmatpush1.msra.mxu0 0.0
    %2151 = vmatprep.subr.mxu0 0.0
    %2152 = vmatpush1.msra.mxu0 0.0
    %2153 = vmatprep.subr.mxu0 0.0
    %2154 = vmatpush1.msra.mxu0 0.0
    %2155 = vmatprep.subr.mxu0 0.0
    %2156 = vmatpush1.msra.mxu0 0.0
    %2157 = vmatprep.subr.mxu0 0.0
    %2158 = vmatpush1.msra.mxu0 0.0
    %2159 = vmatprep.subr.mxu0 0.0
    %2160 = vmatpush1.msra.mxu0 0.0
    %2161 = vmatprep.subr.mxu0 0.0
    %2162 = vmatpush1.msra.mxu0 0.0
    %2163 = vmatprep.subr.mxu0 0.0
    %2164 = vmatpush1.msra.mxu0 0.0
    %2165 = vmatprep.subr.mxu0 0.0
    %2166 = vmatpush1.msra.mxu0 0.0
    %2167 = vmatprep.subr.mxu0 0.0
    %2168 = vmatpush1.msra.mxu0 0.0
    %2169 = vmatprep.subr.mxu0 0.0
    %2170 = vmatpush1.msra.mxu0 0.0
    %2171 = vmatprep.subr.mxu0 0.0
    %2172 = vmatpush1.msra.mxu0 0.0
    %2173 = vmatprep.subr.mxu0 0.0
    %2174 = vmatpush1.msra.mxu0 0.0
    %2175 = vmatprep.subr.mxu0 0.0
    %2176 = vmatpush1.msra.mxu0 0.0
    %2177 = vmatprep.subr.mxu0 0.0
    %2178 = vmatpush1.msra.mxu0 0.0
    %2179 = vmatprep.subr.mxu0 0.0
    %2180 = vmatpush1.msra.mxu0 0.0
    %2181 = vmatprep.subr.mxu0 0.0
    %2182 = vmatpush1.msra.mxu0 0.0
    %2183 = vmatprep.subr.mxu0 0.0
    %2184 = vmatpush1.msra.mxu0 0.0
    %2185 = vmatprep.subr.mxu0 0.0
    %2186 = vmatpush1.msra.mxu0 0.0
    %2187 = vmatprep.subr.mxu0 0.0
    %2188 = vmatpush1.msra.mxu0 0.0
    %2189 = vmatprep.subr.mxu0 0.0
    %2190 = vmatpush1.msra.mxu0 0.0
    %2191 = vmatprep.mubr.f32.mxu0 0.0
    %2192 = vmatmul.mubr.f32.gmra.mrb[0].mxu0 %v2125
    %v2193 = vpop.f32.mrb[0].mxu0
    %v2194 = vadd.f32 0.0, %v2193
    %v2195 = vpop.f32.mrb[0].mxu0
    %2196 = vdwg.mxu0
    %v2197 = vadd.f32 %v2118, %v2194
    %v2198 = vld [vmem:[#allocation6] sm:$0x1]
    %v2199 = vxor.u32 %v2117, 2147483648
    %v2200 = vmul.f32 %v2199, 1.442695
    %v2201 = vpow.pop %v2200
    %v2202 = vadd.f32 %v2201, 1.0
    %v2203 = vrcp.pop %v2202
    %v2204 = vmul.f32 1.0, %v2203
    %v2205 = vtanh.pop %v2117
    %v2207 = vlaneseq
    %v2208 = vshrl.u32 %v2207, 7
    %v2209 = vsub.s32 0, %v2208
    %v2210 = vrot.slane %v2198, %v2209
    %2211 = vrot.lane.b32.xlu0 %v2210, 32
    %v2212 = vpop.permute.xlu0 %2211
    %v2214 = vmul.f32 %v2204, %v2212
    %2216 = vrot.lane.b32.xlu0 %v2205, 64
    %v2217 = vpop.permute.xlu0 %2216
    %v2219 = vmul.f32 %v2204, %v2217
    %2221 = vrot.lane.b32.xlu0 %v2219, 32
    %v2222 = vpop.permute.xlu0 %2221
    %v2224 = vadd.f32 %v2214, %v2222
    %v2225 = vtanh.pop %v2224
    %2227 = vrot.lane.b32.xlu0 %v2225, 64
    %v2228 = vpop.permute.xlu0 %2227
    %v2230 = vmul.f32 %v2204, %v2228
    %v2231 = vld [vmem:[#allocation7] sm:$0x1]
    %v2232 = vxor.u32 %v2197, 2147483648
    %v2233 = vmul.f32 %v2232, 1.442695
    %v2234 = vpow.pop %v2233
    %v2235 = vadd.f32 %v2234, 1.0
    %v2236 = vrcp.pop %v2235
    %v2237 = vmul.f32 1.0, %v2236
    %v2238 = vtanh.pop %v2197
    %v2240 = vlaneseq
    %v2241 = vshrl.u32 %v2240, 7
    %v2242 = vsub.s32 0, %v2241
    %v2243 = vrot.slane %v2231, %v2242
    %2244 = vrot.lane.b32.xlu0 %v2243, 32
    %v2245 = vpop.permute.xlu0 %2244
    %v2247 = vmul.f32 %v2237, %v2245
    %2249 = vrot.lane.b32.xlu0 %v2238, 64
    %v2250 = vpop.permute.xlu0 %2249
    %v2252 = vmul.f32 %v2237, %v2250
    %2254 = vrot.lane.b32.xlu0 %v2252, 32
    %v2255 = vpop.permute.xlu0 %2254
    %v2257 = vadd.f32 %v2247, %v2255
    %v2258 = vtanh.pop %v2257
    %2260 = vrot.lane.b32.xlu0 %v2258, 64
    %v2261 = vpop.permute.xlu0 %2260
    %v2263 = vmul.f32 %v2237, %v2261
    %2265 = vrot.lane.b32.xlu0 %v2230, 32
    %v2266 = vpop.permute.xlu0 %2265
    %2268 = vst.msk [vmem:[#allocation4] sm:$0x1] %vm297, %v2266
    %2270 = vrot.lane.b32.xlu0 %v2224, 96
    %v2271 = vpop.permute.xlu0 %2270
    %2273 = vst.msk [vmem:[#allocation6] sm:$0x1] %vm297, %v2271
    %2275 = vrot.lane.b32.xlu0 %v2263, 32
    %v2276 = vpop.permute.xlu0 %2275
    %2278 = vst.msk [vmem:[#allocation5] sm:$0x1] %vm297, %v2276
    %2280 = vrot.lane.b32.xlu0 %v2257, 96
    %v2281 = vpop.permute.xlu0 %2280
    %2283 = vst.msk [vmem:[#allocation7] sm:$0x1] %vm297, %v2281
    %2284 = vst.msk [vmem:[#allocation8 + $0x7] sm:$0x1] %vm297, %v2266
    %2285 = vst.msk [vmem:[#allocation9] sm:$0x1] %vm297, %v2276
    %v2286 = vld [vmem:[#allocation8] sm:$0xff]
    %v2287 = vld [vmem:[#allocation9] sm:$0xff]
    %2289 = vrot.lane.b32.xlu0 %v2287, 32
    %v2290 = vpop.permute.xlu0 %2289
    %v2292 = vsel %vm140, %v2286, %v2290
    %v2293 = vld [vmem:[%s7] sm:$0xff]
    %v2294 = vld [vmem:[%s7 + $0x8] sm:$0xff]
    %v2295 = vld [vmem:[%s7 + $0x10] sm:$0xff]
    %v2296 = vld [vmem:[%s7 + $0x18] sm:$0xff]
    %v2297 = vld [vmem:[%s7 + $0x20] sm:$0xff]
    %v2298 = vld [vmem:[%s7 + $0x28] sm:$0xff]
    %v2299 = vld [vmem:[%s7 + $0x30] sm:$0xff]
    %v2300 = vld [vmem:[%s7 + $0x38] sm:$0xff]
    %v2301 = vld [vmem:[%s9] sm:$0x1]
    %v2303 = vlaneseq
    %v2304 = vshrl.u32 %v2303, 7
    %v2305 = vsub.s32 0, %v2304
    %v2306 = vrot.slane %v2301, %v2305
    %vm2308 = vcmask 523264
    %v2310 = vsel %vm2308, %v2292, 0
    %2312 = vmatprep.subr.mxu0 0.0
    %2313 = vmatpush1.msra.mxu0 %v2293
    %2314 = vmatprep.subr.mxu0 0.0
    %2315 = vmatpush1.msra.mxu0 %v2294
    %2316 = vmatprep.subr.mxu0 0.0
    %2317 = vmatpush1.msra.mxu0 %v2295
    %2318 = vmatprep.subr.mxu0 0.0
    %2319 = vmatpush1.msra.mxu0 %v2296
    %2320 = vmatprep.subr.mxu0 0.0
    %2321 = vmatpush1.msra.mxu0 %v2297
    %2322 = vmatprep.subr.mxu0 0.0
    %2323 = vmatpush1.msra.mxu0 %v2298
    %2324 = vmatprep.subr.mxu0 0.0
    %2325 = vmatpush1.msra.mxu0 %v2299
    %2326 = vmatprep.subr.mxu0 0.0
    %2327 = vmatpush1.msra.mxu0 %v2300
    %2328 = vmatprep.subr.mxu0 0.0
    %2329 = vmatpush1.msra.mxu0 0.0
    %2330 = vmatprep.subr.mxu0 0.0
    %2331 = vmatpush1.msra.mxu0 0.0
    %2332 = vmatprep.subr.mxu0 0.0
    %2333 = vmatpush1.msra.mxu0 0.0
    %2334 = vmatprep.subr.mxu0 0.0
    %2335 = vmatpush1.msra.mxu0 0.0
    %2336 = vmatprep.subr.mxu0 0.0
    %2337 = vmatpush1.msra.mxu0 0.0
    %2338 = vmatprep.subr.mxu0 0.0
    %2339 = vmatpush1.msra.mxu0 0.0
    %2340 = vmatprep.subr.mxu0 0.0
    %2341 = vmatpush1.msra.mxu0 0.0
    %2342 = vmatprep.subr.mxu0 0.0
    %2343 = vmatpush1.msra.mxu0 0.0
    %2344 = vmatprep.subr.mxu0 0.0
    %2345 = vmatpush1.msra.mxu0 0.0
    %2346 = vmatprep.subr.mxu0 0.0
    %2347 = vmatpush1.msra.mxu0 0.0
    %2348 = vmatprep.subr.mxu0 0.0
    %2349 = vmatpush1.msra.mxu0 0.0
    %2350 = vmatprep.subr.mxu0 0.0
    %2351 = vmatpush1.msra.mxu0 0.0
    %2352 = vmatprep.subr.mxu0 0.0
    %2353 = vmatpush1.msra.mxu0 0.0
    %2354 = vmatprep.subr.mxu0 0.0
    %2355 = vmatpush1.msra.mxu0 0.0
    %2356 = vmatprep.subr.mxu0 0.0
    %2357 = vmatpush1.msra.mxu0 0.0
    %2358 = vmatprep.subr.mxu0 0.0
    %2359 = vmatpush1.msra.mxu0 0.0
    %2360 = vmatprep.subr.mxu0 0.0
    %2361 = vmatpush1.msra.mxu0 0.0
    %2362 = vmatprep.subr.mxu0 0.0
    %2363 = vmatpush1.msra.mxu0 0.0
    %2364 = vmatprep.subr.mxu0 0.0
    %2365 = vmatpush1.msra.mxu0 0.0
    %2366 = vmatprep.subr.mxu0 0.0
    %2367 = vmatpush1.msra.mxu0 0.0
    %2368 = vmatprep.subr.mxu0 0.0
    %2369 = vmatpush1.msra.mxu0 0.0
    %2370 = vmatprep.subr.mxu0 0.0
    %2371 = vmatpush1.msra.mxu0 0.0
    %2372 = vmatprep.subr.mxu0 0.0
    %2373 = vmatpush1.msra.mxu0 0.0
    %2374 = vmatprep.subr.mxu0 0.0
    %2375 = vmatpush1.msra.mxu0 0.0
    %2376 = vmatprep.mubr.f32.mxu0 0.0
    %2377 = vmatmul.mubr.f32.gmra.mrb[0].mxu0 %v2310
    %v2378 = vpop.f32.mrb[0].mxu0
    %v2379 = vadd.f32 %v2306, %v2378
    %v2380 = vpop.f32.mrb[0].mxu0
    %2381 = vdwg.mxu0
    %2382 = vst [vmem:[#allocation2] sm:$0xff] %v2379
    %v2383 = vld [vmem:[%s10] sm:$0xff]
    %v2384 = vld [vmem:[%s10 + $0x8] sm:$0xff]
    %v2385 = vld [vmem:[%s10 + $0x10] sm:$0xff]
    %v2386 = vld [vmem:[%s10 + $0x18] sm:$0xff]
    %v2387 = vld [vmem:[%s10 + $0x20] sm:$0xff]
    %v2388 = vld [vmem:[%s10 + $0x28] sm:$0xff]
    %v2389 = vld [vmem:[%s10 + $0x30] sm:$0xff]
    %v2390 = vld [vmem:[%s10 + $0x38] sm:$0xff]
    %v2391 = vld [vmem:[%s12] sm:$0x1]
    %v2393 = vlaneseq
    %v2394 = vshrl.u32 %v2393, 7
    %v2395 = vsub.s32 0, %v2394
    %v2396 = vrot.slane %v2391, %v2395
    %2398 = vmatprep.subr.mxu0 0.0
    %2399 = vmatpush1.msra.mxu0 %v2383
    %2400 = vmatprep.subr.mxu0 0.0
    %2401 = vmatpush1.msra.mxu0 %v2384
    %2402 = vmatprep.subr.mxu0 0.0
    %2403 = vmatpush1.msra.mxu0 %v2385
    %2404 = vmatprep.subr.mxu0 0.0
    %2405 = vmatpush1.msra.mxu0 %v2386
    %2406 = vmatprep.subr.mxu0 0.0
    %2407 = vmatpush1.msra.mxu0 %v2387
    %2408 = vmatprep.subr.mxu0 0.0
    %2409 = vmatpush1.msra.mxu0 %v2388
    %2410 = vmatprep.subr.mxu0 0.0
    %2411 = vmatpush1.msra.mxu0 %v2389
    %2412 = vmatprep.subr.mxu0 0.0
    %2413 = vmatpush1.msra.mxu0 %v2390
    %2414 = vmatprep.subr.mxu0 0.0
    %2415 = vmatpush1.msra.mxu0 0.0
    %2416 = vmatprep.subr.mxu0 0.0
    %2417 = vmatpush1.msra.mxu0 0.0
    %2418 = vmatprep.subr.mxu0 0.0
    %2419 = vmatpush1.msra.mxu0 0.0
    %2420 = vmatprep.subr.mxu0 0.0
    %2421 = vmatpush1.msra.mxu0 0.0
    %2422 = vmatprep.subr.mxu0 0.0
    %2423 = vmatpush1.msra.mxu0 0.0
    %2424 = vmatprep.subr.mxu0 0.0
    %2425 = vmatpush1.msra.mxu0 0.0
    %2426 = vmatprep.subr.mxu0 0.0
    %2427 = vmatpush1.msra.mxu0 0.0
    %2428 = vmatprep.subr.mxu0 0.0
    %2429 = vmatpush1.msra.mxu0 0.0
    %2430 = vmatprep.subr.mxu0 0.0
    %2431 = vmatpush1.msra.mxu0 0.0
    %2432 = vmatprep.subr.mxu0 0.0
    %2433 = vmatpush1.msra.mxu0 0.0
    %2434 = vmatprep.subr.mxu0 0.0
    %2435 = vmatpush1.msra.mxu0 0.0
    %2436 = vmatprep.subr.mxu0 0.0
    %2437 = vmatpush1.msra.mxu0 0.0
    %2438 = vmatprep.subr.mxu0 0.0
    %2439 = vmatpush1.msra.mxu0 0.0
    %2440 = vmatprep.subr.mxu0 0.0
    %2441 = vmatpush1.msra.mxu0 0.0
    %2442 = vmatprep.subr.mxu0 0.0
    %2443 = vmatpush1.msra.mxu0 0.0
    %2444 = vmatprep.subr.mxu0 0.0
    %2445 = vmatpush1.msra.mxu0 0.0
    %2446 = vmatprep.subr.mxu0 0.0
    %2447 = vmatpush1.msra.mxu0 0.0
    %2448 = vmatprep.subr.mxu0 0.0
    %2449 = vmatpush1.msra.mxu0 0.0
    %2450 = vmatprep.subr.mxu0 0.0
    %2451 = vmatpush1.msra.mxu0 0.0
    %2452 = vmatprep.subr.mxu0 0.0
    %2453 = vmatpush1.msra.mxu0 0.0
    %2454 = vmatprep.subr.mxu0 0.0
    %2455 = vmatpush1.msra.mxu0 0.0
    %2456 = vmatprep.subr.mxu0 0.0
    %2457 = vmatpush1.msra.mxu0 0.0
    %2458 = vmatprep.subr.mxu0 0.0
    %2459 = vmatpush1.msra.mxu0 0.0
    %2460 = vmatprep.subr.mxu0 0.0
    %2461 = vmatpush1.msra.mxu0 0.0
    %2462 = vmatprep.mubr.f32.mxu0 0.0
    %2463 = vmatmul.mubr.f32.gmra.mrb[0].mxu0 %v2310
    %v2464 = vpop.f32.mrb[0].mxu0
    %v2465 = vadd.f32 %v2396, %v2464
    %v2466 = vpop.f32.mrb[0].mxu0
    %2467 = vdwg.mxu0
    %2468 = vst [vmem:[#allocation3] sm:$0xff] %v2465
    %2469 = vst.msk [vmem:[#allocation4] sm:$0x1] %vm297, 0.0
    %2470 = vst.msk [vmem:[#allocation5] sm:$0x1] %vm297, 0.0
    %2471 = vst.msk [vmem:[#allocation6] sm:$0x1] %vm297, 0.0
    %2472 = vst.msk [vmem:[#allocation7] sm:$0x1] %vm297, 0.0
    %v2473 = vld [vmem:[#allocation2] sm:$0x1]
    %v2474 = vld [vmem:[#allocation4] sm:$0x1]
    %v2475 = vld [vmem:[%s8] sm:$0xff]
    %v2476 = vld [vmem:[%s8 + $0x8] sm:$0xff]
    %v2477 = vld [vmem:[%s8 + $0x10] sm:$0xff]
    %v2478 = vld [vmem:[%s8 + $0x18] sm:$0xff]
    %v2480 = vsel %vm140, %v2474, 0
    %2482 = vmatprep.subr.mxu0 0.0
    %2483 = vmatpush1.msra.mxu0 %v2475
    %2484 = vmatprep.subr.mxu0 0.0
    %2485 = vmatpush1.msra.mxu0 %v2476
    %2486 = vmatprep.subr.mxu0 0.0
    %2487 = vmatpush1.msra.mxu0 %v2477
    %2488 = vmatprep.subr.mxu0 0.0
    %2489 = vmatpush1.msra.mxu0 %v2478
    %2490 = vmatprep.subr.mxu0 0.0
    %2491 = vmatpush1.msra.mxu0 0.0
    %2492 = vmatprep.subr.mxu0 0.0
    %2493 = vmatpush1.msra.mxu0 0.0
    %2494 = vmatprep.subr.mxu0 0.0
    %2495 = vmatpush1.msra.mxu0 0.0
    %2496 = vmatprep.subr.mxu0 0.0
    %2497 = vmatpush1.msra.mxu0 0.0
    %2498 = vmatprep.subr.mxu0 0.0
    %2499 = vmatpush1.msra.mxu0 0.0
    %2500 = vmatprep.subr.mxu0 0.0
    %2501 = vmatpush1.msra.mxu0 0.0
    %2502 = vmatprep.subr.mxu0 0.0
    %2503 = vmatpush1.msra.mxu0 0.0
    %2504 = vmatprep.subr.mxu0 0.0
    %2505 = vmatpush1.msra.mxu0 0.0
    %2506 = vmatprep.subr.mxu0 0.0
    %2507 = vmatpush1.msra.mxu0 0.0
    %2508 = vmatprep.subr.mxu0 0.0
    %2509 = vmatpush1.msra.mxu0 0.0
    %2510 = vmatprep.subr.mxu0 0.0
    %2511 = vmatpush1.msra.mxu0 0.0
    %2512 = vmatprep.subr.mxu0 0.0
    %2513 = vmatpush1.msra.mxu0 0.0
    %2514 = vmatprep.subr.mxu0 0.0
    %2515 = vmatpush1.msra.mxu0 0.0
    %2516 = vmatprep.subr.mxu0 0.0
    %2517 = vmatpush1.msra.mxu0 0.0
    %2518 = vmatprep.subr.mxu0 0.0
    %2519 = vmatpush1.msra.mxu0 0.0
    %2520 = vmatprep.subr.mxu0 0.0
    %2521 = vmatpush1.msra.mxu0 0.0
    %2522 = vmatprep.subr.mxu0 0.0
    %2523 = vmatpush1.msra.mxu0 0.0
    %2524 = vmatprep.subr.mxu0 0.0
    %2525 = vmatpush1.msra.mxu0 0.0
    %2526 = vmatprep.subr.mxu0 0.0
    %2527 = vmatpush1.msra.mxu0 0.0
    %2528 = vmatprep.subr.mxu0 0.0
    %2529 = vmatpush1.msra.mxu0 0.0
    %2530 = vmatprep.subr.mxu0 0.0
    %2531 = vmatpush1.msra.mxu0 0.0
    %2532 = vmatprep.subr.mxu0 0.0
    %2533 = vmatpush1.msra.mxu0 0.0
    %2534 = vmatprep.subr.mxu0 0.0
    %2535 = vmatpush1.msra.mxu0 0.0
    %2536 = vmatprep.subr.mxu0 0.0
    %2537 = vmatpush1.msra.mxu0 0.0
    %2538 = vmatprep.subr.mxu0 0.0
    %2539 = vmatpush1.msra.mxu0 0.0
    %2540 = vmatprep.subr.mxu0 0.0
    %2541 = vmatpush1.msra.mxu0 0.0
    %2542 = vmatprep.subr.mxu0 0.0
    %2543 = vmatpush1.msra.mxu0 0.0
    %2544 = vmatprep.subr.mxu0 0.0
    %2545 = vmatpush1.msra.mxu0 0.0
    %2546 = vmatprep.mubr.f32.mxu0 0.0
    %2547 = vmatmul.mubr.f32.gmra.mrb[0].mxu0 %v2480
    %v2548 = vpop.f32.mrb[0].mxu0
    %v2549 = vadd.f32 0.0, %v2548
    %v2550 = vpop.f32.mrb[0].mxu0
    %2551 = vdwg.mxu0
    %v2552 = vadd.f32 %v2473, %v2549
    %v2553 = vld [vmem:[#allocation3 + $0x7] sm:$0x1]
    %v2554 = vld [vmem:[#allocation5] sm:$0x1]
    %v2555 = vld [vmem:[#allocation21] sm:$0xff]
    %v2556 = vld [vmem:[#allocation21 + $0x8] sm:$0xff]
    %v2557 = vld [vmem:[#allocation21 + $0x10] sm:$0xff]
    %v2558 = vld [vmem:[#allocation21 + $0x18] sm:$0xff]
    %v2560 = vsel %vm140, %v2554, 0
    %2562 = vmatprep.subr.mxu0 0.0
    %2563 = vmatpush1.msra.mxu0 %v2555
    %2564 = vmatprep.subr.mxu0 0.0
    %2565 = vmatpush1.msra.mxu0 %v2556
    %2566 = vmatprep.subr.mxu0 0.0
    %2567 = vmatpush1.msra.mxu0 %v2557
    %2568 = vmatprep.subr.mxu0 0.0
    %2569 = vmatpush1.msra.mxu0 %v2558
    %2570 = vmatprep.subr.mxu0 0.0
    %2571 = vmatpush1.msra.mxu0 0.0
    %2572 = vmatprep.subr.mxu0 0.0
    %2573 = vmatpush1.msra.mxu0 0.0
    %2574 = vmatprep.subr.mxu0 0.0
    %2575 = vmatpush1.msra.mxu0 0.0
    %2576 = vmatprep.subr.mxu0 0.0
    %2577 = vmatpush1.msra.mxu0 0.0
    %2578 = vmatprep.subr.mxu0 0.0
    %2579 = vmatpush1.msra.mxu0 0.0
    %2580 = vmatprep.subr.mxu0 0.0
    %2581 = vmatpush1.msra.mxu0 0.0
    %2582 = vmatprep.subr.mxu0 0.0
    %2583 = vmatpush1.msra.mxu0 0.0
    %2584 = vmatprep.subr.mxu0 0.0
    %2585 = vmatpush1.msra.mxu0 0.0
    %2586 = vmatprep.subr.mxu0 0.0
    %2587 = vmatpush1.msra.mxu0 0.0
    %2588 = vmatprep.subr.mxu0 0.0
    %2589 = vmatpush1.msra.mxu0 0.0
    %2590 = vmatprep.subr.mxu0 0.0
    %2591 = vmatpush1.msra.mxu0 0.0
    %2592 = vmatprep.subr.mxu0 0.0
    %2593 = vmatpush1.msra.mxu0 0.0
    %2594 = vmatprep.subr.mxu0 0.0
    %2595 = vmatpush1.msra.mxu0 0.0
    %2596 = vmatprep.subr.mxu0 0.0
    %2597 = vmatpush1.msra.mxu0 0.0
    %2598 = vmatprep.subr.mxu0 0.0
    %2599 = vmatpush1.msra.mxu0 0.0
    %2600 = vmatprep.subr.mxu0 0.0
    %2601 = vmatpush1.msra.mxu0 0.0
    %2602 = vmatprep.subr.mxu0 0.0
    %2603 = vmatpush1.msra.mxu0 0.0
    %2604 = vmatprep.subr.mxu0 0.0
    %2605 = vmatpush1.msra.mxu0 0.0
    %2606 = vmatprep.subr.mxu0 0.0
    %2607 = vmatpush1.msra.mxu0 0.0
    %2608 = vmatprep.subr.mxu0 0.0
    %2609 = vmatpush1.msra.mxu0 0.0
    %2610 = vmatprep.subr.mxu0 0.0
    %2611 = vmatpush1.msra.mxu0 0.0
    %2612 = vmatprep.subr.mxu0 0.0
    %2613 = vmatpush1.msra.mxu0 0.0
    %2614 = vmatprep.subr.mxu0 0.0
    %2615 = vmatpush1.msra.mxu0 0.0
    %2616 = vmatprep.subr.mxu0 0.0
    %2617 = vmatpush1.msra.mxu0 0.0
    %2618 = vmatprep.subr.mxu0 0.0
    %2619 = vmatpush1.msra.mxu0 0.0
    %2620 = vmatprep.subr.mxu0 0.0
    %2621 = vmatpush1.msra.mxu0 0.0
    %2622 = vmatprep.subr.mxu0 0.0
    %2623 = vmatpush1.msra.mxu0 0.0
    %2624 = vmatprep.subr.mxu0 0.0
    %2625 = vmatpush1.msra.mxu0 0.0
    %2626 = vmatprep.mubr.f32.mxu0 0.0
    %2627 = vmatmul.mubr.f32.gmra.mrb[0].mxu0 %v2560
    %v2628 = vpop.f32.mrb[0].mxu0
    %v2629 = vadd.f32 0.0, %v2628
    %v2630 = vpop.f32.mrb[0].mxu0
    %2631 = vdwg.mxu0
    %v2632 = vadd.f32 %v2553, %v2629
    %v2633 = vld [vmem:[#allocation6] sm:$0x1]
    %v2634 = vxor.u32 %v2552, 2147483648
    %v2635 = vmul.f32 %v2634, 1.442695
    %v2636 = vpow.pop %v2635
    %v2637 = vadd.f32 %v2636, 1.0
    %v2638 = vrcp.pop %v2637
    %v2639 = vmul.f32 1.0, %v2638
    %v2640 = vtanh.pop %v2552
    %v2642 = vlaneseq
    %v2643 = vshrl.u32 %v2642, 7
    %v2644 = vsub.s32 0, %v2643
    %v2645 = vrot.slane %v2633, %v2644
    %2646 = vrot.lane.b32.xlu0 %v2645, 32
    %v2647 = vpop.permute.xlu0 %2646
    %v2649 = vmul.f32 %v2639, %v2647
    %2651 = vrot.lane.b32.xlu0 %v2640, 64
    %v2652 = vpop.permute.xlu0 %2651
    %v2654 = vmul.f32 %v2639, %v2652
    %2656 = vrot.lane.b32.xlu0 %v2654, 32
    %v2657 = vpop.permute.xlu0 %2656
    %v2659 = vadd.f32 %v2649, %v2657
    %v2660 = vtanh.pop %v2659
    %2662 = vrot.lane.b32.xlu0 %v2660, 64
    %v2663 = vpop.permute.xlu0 %2662
    %v2665 = vmul.f32 %v2639, %v2663
    %v2666 = vld [vmem:[#allocation7] sm:$0x1]
    %v2667 = vxor.u32 %v2632, 2147483648
    %v2668 = vmul.f32 %v2667, 1.442695
    %v2669 = vpow.pop %v2668
    %v2670 = vadd.f32 %v2669, 1.0
    %v2671 = vrcp.pop %v2670
    %v2672 = vmul.f32 1.0, %v2671
    %v2673 = vtanh.pop %v2632
    %v2675 = vlaneseq
    %v2676 = vshrl.u32 %v2675, 7
    %v2677 = vsub.s32 0, %v2676
    %v2678 = vrot.slane %v2666, %v2677
    %2679 = vrot.lane.b32.xlu0 %v2678, 32
    %v2680 = vpop.permute.xlu0 %2679
    %v2682 = vmul.f32 %v2672, %v2680
    %2684 = vrot.lane.b32.xlu0 %v2673, 64
    %v2685 = vpop.permute.xlu0 %2684
    %v2687 = vmul.f32 %v2672, %v2685
    %2689 = vrot.lane.b32.xlu0 %v2687, 32
    %v2690 = vpop.permute.xlu0 %2689
    %v2692 = vadd.f32 %v2682, %v2690
    %v2693 = vtanh.pop %v2692
    %2695 = vrot.lane.b32.xlu0 %v2693, 64
    %v2696 = vpop.permute.xlu0 %2695
    %v2698 = vmul.f32 %v2672, %v2696
    %2700 = vrot.lane.b32.xlu0 %v2665, 32
    %v2701 = vpop.permute.xlu0 %2700
    %2703 = vst.msk [vmem:[#allocation4] sm:$0x1] %vm297, %v2701
    %2705 = vrot.lane.b32.xlu0 %v2659, 96
    %v2706 = vpop.permute.xlu0 %2705
    %2708 = vst.msk [vmem:[#allocation6] sm:$0x1] %vm297, %v2706
    %2710 = vrot.lane.b32.xlu0 %v2698, 32
    %v2711 = vpop.permute.xlu0 %2710
    %2713 = vst.msk [vmem:[#allocation5] sm:$0x1] %vm297, %v2711
    %2715 = vrot.lane.b32.xlu0 %v2692, 96
    %v2716 = vpop.permute.xlu0 %2715
    %2718 = vst.msk [vmem:[#allocation7] sm:$0x1] %vm297, %v2716
    %2719 = vst.msk [vmem:[#allocation10] sm:$0x1] %vm297, %v2701
    %2720 = vst.msk [vmem:[#allocation11 + $0x7] sm:$0x1] %vm297, %v2711
    %v2721 = vld [vmem:[#allocation2 + $0x1] sm:$0x1]
    %v2722 = vld [vmem:[#allocation4] sm:$0x1]
    %v2723 = vld [vmem:[%s8] sm:$0xff]
    %v2724 = vld [vmem:[%s8 + $0x8] sm:$0xff]
    %v2725 = vld [vmem:[%s8 + $0x10] sm:$0xff]
    %v2726 = vld [vmem:[%s8 + $0x18] sm:$0xff]
    %v2728 = vsel %vm140, %v2722, 0
    %2730 = vmatprep.subr.mxu0 0.0
    %2731 = vmatpush1.msra.mxu0 %v2723
    %2732 = vmatprep.subr.mxu0 0.0
    %2733 = vmatpush1.msra.mxu0 %v2724
    %2734 = vmatprep.subr.mxu0 0.0
    %2735 = vmatpush1.msra.mxu0 %v2725
    %2736 = vmatprep.subr.mxu0 0.0
    %2737 = vmatpush1.msra.mxu0 %v2726
    %2738 = vmatprep.subr.mxu0 0.0
    %2739 = vmatpush1.msra.mxu0 0.0
    %2740 = vmatprep.subr.mxu0 0.0
    %2741 = vmatpush1.msra.mxu0 0.0
    %2742 = vmatprep.subr.mxu0 0.0
    %2743 = vmatpush1.msra.mxu0 0.0
    %2744 = vmatprep.subr.mxu0 0.0
    %2745 = vmatpush1.msra.mxu0 0.0
    %2746 = vmatprep.subr.mxu0 0.0
    %2747 = vmatpush1.msra.mxu0 0.0
    %2748 = vmatprep.subr.mxu0 0.0
    %2749 = vmatpush1.msra.mxu0 0.0
    %2750 = vmatprep.subr.mxu0 0.0
    %2751 = vmatpush1.msra.mxu0 0.0
    %2752 = vmatprep.subr.mxu0 0.0
    %2753 = vmatpush1.msra.mxu0 0.0
    %2754 = vmatprep.subr.mxu0 0.0
    %2755 = vmatpush1.msra.mxu0 0.0
    %2756 = vmatprep.subr.mxu0 0.0
    %2757 = vmatpush1.msra.mxu0 0.0
    %2758 = vmatprep.subr.mxu0 0.0
    %2759 = vmatpush1.msra.mxu0 0.0
    %2760 = vmatprep.subr.mxu0 0.0
    %2761 = vmatpush1.msra.mxu0 0.0
    %2762 = vmatprep.subr.mxu0 0.0
    %2763 = vmatpush1.msra.mxu0 0.0
    %2764 = vmatprep.subr.mxu0 0.0
    %2765 = vmatpush1.msra.mxu0 0.0
    %2766 = vmatprep.subr.mxu0 0.0
    %2767 = vmatpush1.msra.mxu0 0.0
    %2768 = vmatprep.subr.mxu0 0.0
    %2769 = vmatpush1.msra.mxu0 0.0
    %2770 = vmatprep.subr.mxu0 0.0
    %2771 = vmatpush1.msra.mxu0 0.0
    %2772 = vmatprep.subr.mxu0 0.0
    %2773 = vmatpush1.msra.mxu0 0.0
    %2774 = vmatprep.subr.mxu0 0.0
    %2775 = vmatpush1.msra.mxu0 0.0
    %2776 = vmatprep.subr.mxu0 0.0
    %2777 = vmatpush1.msra.mxu0 0.0
    %2778 = vmatprep.subr.mxu0 0.0
    %2779 = vmatpush1.msra.mxu0 0.0
    %2780 = vmatprep.subr.mxu0 0.0
    %2781 = vmatpush1.msra.mxu0 0.0
    %2782 = vmatprep.subr.mxu0 0.0
    %2783 = vmatpush1.msra.mxu0 0.0
    %2784 = vmatprep.subr.mxu0 0.0
    %2785 = vmatpush1.msra.mxu0 0.0
    %2786 = vmatprep.subr.mxu0 0.0
    %2787 = vmatpush1.msra.mxu0 0.0
    %2788 = vmatprep.subr.mxu0 0.0
    %2789 = vmatpush1.msra.mxu0 0.0
    %2790 = vmatprep.subr.mxu0 0.0
    %2791 = vmatpush1.msra.mxu0 0.0
    %2792 = vmatprep.subr.mxu0 0.0
    %2793 = vmatpush1.msra.mxu0 0.0
    %2794 = vmatprep.mubr.f32.mxu0 0.0
    %2795 = vmatmul.mubr.f32.gmra.mrb[0].mxu0 %v2728
    %v2796 = vpop.f32.mrb[0].mxu0
    %v2797 = vadd.f32 0.0, %v2796
    %v2798 = vpop.f32.mrb[0].mxu0
    %2799 = vdwg.mxu0
    %v2800 = vadd.f32 %v2721, %v2797
    %v2801 = vld [vmem:[#allocation3 + $0x6] sm:$0x1]
    %v2802 = vld [vmem:[#allocation5] sm:$0x1]
    %v2803 = vld [vmem:[#allocation21] sm:$0xff]
    %v2804 = vld [vmem:[#allocation21 + $0x8] sm:$0xff]
    %v2805 = vld [vmem:[#allocation21 + $0x10] sm:$0xff]
    %v2806 = vld [vmem:[#allocation21 + $0x18] sm:$0xff]
    %v2808 = vsel %vm140, %v2802, 0
    %2810 = vmatprep.subr.mxu0 0.0
    %2811 = vmatpush1.msra.mxu0 %v2803
    %2812 = vmatprep.subr.mxu0 0.0
    %2813 = vmatpush1.msra.mxu0 %v2804
    %2814 = vmatprep.subr.mxu0 0.0
    %2815 = vmatpush1.msra.mxu0 %v2805
    %2816 = vmatprep.subr.mxu0 0.0
    %2817 = vmatpush1.msra.mxu0 %v2806
    %2818 = vmatprep.subr.mxu0 0.0
    %2819 = vmatpush1.msra.mxu0 0.0
    %2820 = vmatprep.subr.mxu0 0.0
    %2821 = vmatpush1.msra.mxu0 0.0
    %2822 = vmatprep.subr.mxu0 0.0
    %2823 = vmatpush1.msra.mxu0 0.0
    %2824 = vmatprep.subr.mxu0 0.0
    %2825 = vmatpush1.msra.mxu0 0.0
    %2826 = vmatprep.subr.mxu0 0.0
    %2827 = vmatpush1.msra.mxu0 0.0
    %2828 = vmatprep.subr.mxu0 0.0
    %2829 = vmatpush1.msra.mxu0 0.0
    %2830 = vmatprep.subr.mxu0 0.0
    %2831 = vmatpush1.msra.mxu0 0.0
    %2832 = vmatprep.subr.mxu0 0.0
    %2833 = vmatpush1.msra.mxu0 0.0
    %2834 = vmatprep.subr.mxu0 0.0
    %2835 = vmatpush1.msra.mxu0 0.0
    %2836 = vmatprep.subr.mxu0 0.0
    %2837 = vmatpush1.msra.mxu0 0.0
    %2838 = vmatprep.subr.mxu0 0.0
    %2839 = vmatpush1.msra.mxu0 0.0
    %2840 = vmatprep.subr.mxu0 0.0
    %2841 = vmatpush1.msra.mxu0 0.0
    %2842 = vmatprep.subr.mxu0 0.0
    %2843 = vmatpush1.msra.mxu0 0.0
    %2844 = vmatprep.subr.mxu0 0.0
    %2845 = vmatpush1.msra.mxu0 0.0
    %2846 = vmatprep.subr.mxu0 0.0
    %2847 = vmatpush1.msra.mxu0 0.0
    %2848 = vmatprep.subr.mxu0 0.0
    %2849 = vmatpush1.msra.mxu0 0.0
    %2850 = vmatprep.subr.mxu0 0.0
    %2851 = vmatpush1.msra.mxu0 0.0
    %2852 = vmatprep.subr.mxu0 0.0
    %2853 = vmatpush1.msra.mxu0 0.0
    %2854 = vmatprep.subr.mxu0 0.0
    %2855 = vmatpush1.msra.mxu0 0.0
    %2856 = vmatprep.subr.mxu0 0.0
    %2857 = vmatpush1.msra.mxu0 0.0
    %2858 = vmatprep.subr.mxu0 0.0
    %2859 = vmatpush1.msra.mxu0 0.0
    %2860 = vmatprep.subr.mxu0 0.0
    %2861 = vmatpush1.msra.mxu0 0.0
    %2862 = vmatprep.subr.mxu0 0.0
    %2863 = vmatpush1.msra.mxu0 0.0
    %2864 = vmatprep.subr.mxu0 0.0
    %2865 = vmatpush1.msra.mxu0 0.0
    %2866 = vmatprep.subr.mxu0 0.0
    %2867 = vmatpush1.msra.mxu0 0.0
    %2868 = vmatprep.subr.mxu0 0.0
    %2869 = vmatpush1.msra.mxu0 0.0
    %2870 = vmatprep.subr.mxu0 0.0
    %2871 = vmatpush1.msra.mxu0 0.0
    %2872 = vmatprep.subr.mxu0 0.0
    %2873 = vmatpush1.msra.mxu0 0.0
    %2874 = vmatprep.mubr.f32.mxu0 0.0
    %2875 = vmatmul.mubr.f32.gmra.mrb[0].mxu0 %v2808
    %v2876 = vpop.f32.mrb[0].mxu0
    %v2877 = vadd.f32 0.0, %v2876
    %v2878 = vpop.f32.mrb[0].mxu0
    %2879 = vdwg.mxu0
    %v2880 = vadd.f32 %v2801, %v2877
    %v2881 = vld [vmem:[#allocation6] sm:$0x1]
    %v2882 = vxor.u32 %v2800, 2147483648
    %v2883 = vmul.f32 %v2882, 1.442695
    %v2884 = vpow.pop %v2883
    %v2885 = vadd.f32 %v2884, 1.0
    %v2886 = vrcp.pop %v2885
    %v2887 = vmul.f32 1.0, %v2886
    %v2888 = vtanh.pop %v2800
    %v2890 = vlaneseq
    %v2891 = vshrl.u32 %v2890, 7
    %v2892 = vsub.s32 0, %v2891
    %v2893 = vrot.slane %v2881, %v2892
    %2894 = vrot.lane.b32.xlu0 %v2893, 32
    %v2895 = vpop.permute.xlu0 %2894
    %v2897 = vmul.f32 %v2887, %v2895
    %2899 = vrot.lane.b32.xlu0 %v2888, 64
    %v2900 = vpop.permute.xlu0 %2899
    %v2902 = vmul.f32 %v2887, %v2900
    %2904 = vrot.lane.b32.xlu0 %v2902, 32
    %v2905 = vpop.permute.xlu0 %2904
    %v2907 = vadd.f32 %v2897, %v2905
    %v2908 = vtanh.pop %v2907
    %2910 = vrot.lane.b32.xlu0 %v2908, 64
    %v2911 = vpop.permute.xlu0 %2910
    %v2913 = vmul.f32 %v2887, %v2911
    %v2914 = vld [vmem:[#allocation7] sm:$0x1]
    %v2915 = vxor.u32 %v2880, 2147483648
    %v2916 = vmul.f32 %v2915, 1.442695
    %v2917 = vpow.pop %v2916
    %v2918 = vadd.f32 %v2917, 1.0
    %v2919 = vrcp.pop %v2918
    %v2920 = vmul.f32 1.0, %v2919
    %v2921 = vtanh.pop %v2880
    %v2923 = vlaneseq
    %v2924 = vshrl.u32 %v2923, 7
    %v2925 = vsub.s32 0, %v2924
    %v2926 = vrot.slane %v2914, %v2925
    %2927 = vrot.lane.b32.xlu0 %v2926, 32
    %v2928 = vpop.permute.xlu0 %2927
    %v2930 = vmul.f32 %v2920, %v2928
    %2932 = vrot.lane.b32.xlu0 %v2921, 64
    %v2933 = vpop.permute.xlu0 %2932
    %v2935 = vmul.f32 %v2920, %v2933
    %2937 = vrot.lane.b32.xlu0 %v2935, 32
    %v2938 = vpop.permute.xlu0 %2937
    %v2940 = vadd.f32 %v2930, %v2938
    %v2941 = vtanh.pop %v2940
    %2943 = vrot.lane.b32.xlu0 %v2941, 64
    %v2944 = vpop.permute.xlu0 %2943
    %v2946 = vmul.f32 %v2920, %v2944
    %2948 = vrot.lane.b32.xlu0 %v2913, 32
    %v2949 = vpop.permute.xlu0 %2948
    %2951 = vst.msk [vmem:[#allocation4] sm:$0x1] %vm297, %v2949
    %2953 = vrot.lane.b32.xlu0 %v2907, 96
    %v2954 = vpop.permute.xlu0 %2953
    %2956 = vst.msk [vmem:[#allocation6] sm:$0x1] %vm297, %v2954
    %2958 = vrot.lane.b32.xlu0 %v2946, 32
    %v2959 = vpop.permute.xlu0 %2958
    %2961 = vst.msk [vmem:[#allocation5] sm:$0x1] %vm297, %v2959
    %2963 = vrot.lane.b32.xlu0 %v2940, 96
    %v2964 = vpop.permute.xlu0 %2963
    %2966 = vst.msk [vmem:[#allocation7] sm:$0x1] %vm297, %v2964
    %2967 = vst.msk [vmem:[#allocation10 + $0x1] sm:$0x1] %vm297, %v2949
    %2968 = vst.msk [vmem:[#allocation11 + $0x6] sm:$0x1] %vm297, %v2959
    %v2969 = vld [vmem:[#allocation2 + $0x2] sm:$0x1]
    %v2970 = vld [vmem:[#allocation4] sm:$0x1]
    %v2971 = vld [vmem:[%s8] sm:$0xff]
    %v2972 = vld [vmem:[%s8 + $0x8] sm:$0xff]
    %v2973 = vld [vmem:[%s8 + $0x10] sm:$0xff]
    %v2974 = vld [vmem:[%s8 + $0x18] sm:$0xff]
    %v2976 = vsel %vm140, %v2970, 0
    %2978 = vmatprep.subr.mxu0 0.0
    %2979 = vmatpush1.msra.mxu0 %v2971
    %2980 = vmatprep.subr.mxu0 0.0
    %2981 = vmatpush1.msra.mxu0 %v2972
    %2982 = vmatprep.subr.mxu0 0.0
    %2983 = vmatpush1.msra.mxu0 %v2973
    %2984 = vmatprep.subr.mxu0 0.0
    %2985 = vmatpush1.msra.mxu0 %v2974
    %2986 = vmatprep.subr.mxu0 0.0
    %2987 = vmatpush1.msra.mxu0 0.0
    %2988 = vmatprep.subr.mxu0 0.0
    %2989 = vmatpush1.msra.mxu0 0.0
    %2990 = vmatprep.subr.mxu0 0.0
    %2991 = vmatpush1.msra.mxu0 0.0
    %2992 = vmatprep.subr.mxu0 0.0
    %2993 = vmatpush1.msra.mxu0 0.0
    %2994 = vmatprep.subr.mxu0 0.0
    %2995 = vmatpush1.msra.mxu0 0.0
    %2996 = vmatprep.subr.mxu0 0.0
    %2997 = vmatpush1.msra.mxu0 0.0
    %2998 = vmatprep.subr.mxu0 0.0
    %2999 = vmatpush1.msra.mxu0 0.0
    %3000 = vmatprep.subr.mxu0 0.0
    %3001 = vmatpush1.msra.mxu0 0.0
    %3002 = vmatprep.subr.mxu0 0.0
    %3003 = vmatpush1.msra.mxu0 0.0
    %3004 = vmatprep.subr.mxu0 0.0
    %3005 = vmatpush1.msra.mxu0 0.0
    %3006 = vmatprep.subr.mxu0 0.0
    %3007 = vmatpush1.msra.mxu0 0.0
    %3008 = vmatprep.subr.mxu0 0.0
    %3009 = vmatpush1.msra.mxu0 0.0
    %3010 = vmatprep.subr.mxu0 0.0
    %3011 = vmatpush1.msra.mxu0 0.0
    %3012 = vmatprep.subr.mxu0 0.0
    %3013 = vmatpush1.msra.mxu0 0.0
    %3014 = vmatprep.subr.mxu0 0.0
    %3015 = vmatpush1.msra.mxu0 0.0
    %3016 = vmatprep.subr.mxu0 0.0
    %3017 = vmatpush1.msra.mxu0 0.0
    %3018 = vmatprep.subr.mxu0 0.0
    %3019 = vmatpush1.msra.mxu0 0.0
    %3020 = vmatprep.subr.mxu0 0.0
    %3021 = vmatpush1.msra.mxu0 0.0
    %3022 = vmatprep.subr.mxu0 0.0
    %3023 = vmatpush1.msra.mxu0 0.0
    %3024 = vmatprep.subr.mxu0 0.0
    %3025 = vmatpush1.msra.mxu0 0.0
    %3026 = vmatprep.subr.mxu0 0.0
    %3027 = vmatpush1.msra.mxu0 0.0
    %3028 = vmatprep.subr.mxu0 0.0
    %3029 = vmatpush1.msra.mxu0 0.0
    %3030 = vmatprep.subr.mxu0 0.0
    %3031 = vmatpush1.msra.mxu0 0.0
    %3032 = vmatprep.subr.mxu0 0.0
    %3033 = vmatpush1.msra.mxu0 0.0
    %3034 = vmatprep.subr.mxu0 0.0
    %3035 = vmatpush1.msra.mxu0 0.0
    %3036 = vmatprep.subr.mxu0 0.0
    %3037 = vmatpush1.msra.mxu0 0.0
    %3038 = vmatprep.subr.mxu0 0.0
    %3039 = vmatpush1.msra.mxu0 0.0
    %3040 = vmatprep.subr.mxu0 0.0
    %3041 = vmatpush1.msra.mxu0 0.0
    %3042 = vmatprep.mubr.f32.mxu0 0.0
    %3043 = vmatmul.mubr.f32.gmra.mrb[0].mxu0 %v2976
    %v3044 = vpop.f32.mrb[0].mxu0
    %v3045 = vadd.f32 0.0, %v3044
    %v3046 = vpop.f32.mrb[0].mxu0
    %3047 = vdwg.mxu0
    %v3048 = vadd.f32 %v2969, %v3045
    %v3049 = vld [vmem:[#allocation3 + $0x5] sm:$0x1]
    %v3050 = vld [vmem:[#allocation5] sm:$0x1]
    %v3051 = vld [vmem:[#allocation21] sm:$0xff]
    %v3052 = vld [vmem:[#allocation21 + $0x8] sm:$0xff]
    %v3053 = vld [vmem:[#allocation21 + $0x10] sm:$0xff]
    %v3054 = vld [vmem:[#allocation21 + $0x18] sm:$0xff]
    %v3056 = vsel %vm140, %v3050, 0
    %3058 = vmatprep.subr.mxu0 0.0
    %3059 = vmatpush1.msra.mxu0 %v3051
    %3060 = vmatprep.subr.mxu0 0.0
    %3061 = vmatpush1.msra.mxu0 %v3052
    %3062 = vmatprep.subr.mxu0 0.0
    %3063 = vmatpush1.msra.mxu0 %v3053
    %3064 = vmatprep.subr.mxu0 0.0
    %3065 = vmatpush1.msra.mxu0 %v3054
    %3066 = vmatprep.subr.mxu0 0.0
    %3067 = vmatpush1.msra.mxu0 0.0
    %3068 = vmatprep.subr.mxu0 0.0
    %3069 = vmatpush1.msra.mxu0 0.0
    %3070 = vmatprep.subr.mxu0 0.0
    %3071 = vmatpush1.msra.mxu0 0.0
    %3072 = vmatprep.subr.mxu0 0.0
    %3073 = vmatpush1.msra.mxu0 0.0
    %3074 = vmatprep.subr.mxu0 0.0
    %3075 = vmatpush1.msra.mxu0 0.0
    %3076 = vmatprep.subr.mxu0 0.0
    %3077 = vmatpush1.msra.mxu0 0.0
    %3078 = vmatprep.subr.mxu0 0.0
    %3079 = vmatpush1.msra.mxu0 0.0
    %3080 = vmatprep.subr.mxu0 0.0
    %3081 = vmatpush1.msra.mxu0 0.0
    %3082 = vmatprep.subr.mxu0 0.0
    %3083 = vmatpush1.msra.mxu0 0.0
    %3084 = vmatprep.subr.mxu0 0.0
    %3085 = vmatpush1.msra.mxu0 0.0
    %3086 = vmatprep.subr.mxu0 0.0
    %3087 = vmatpush1.msra.mxu0 0.0
    %3088 = vmatprep.subr.mxu0 0.0
    %3089 = vmatpush1.msra.mxu0 0.0
    %3090 = vmatprep.subr.mxu0 0.0
    %3091 = vmatpush1.msra.mxu0 0.0
    %3092 = vmatprep.subr.mxu0 0.0
    %3093 = vmatpush1.msra.mxu0 0.0
    %3094 = vmatprep.subr.mxu0 0.0
    %3095 = vmatpush1.msra.mxu0 0.0
    %3096 = vmatprep.subr.mxu0 0.0
    %3097 = vmatpush1.msra.mxu0 0.0
    %3098 = vmatprep.subr.mxu0 0.0
    %3099 = vmatpush1.msra.mxu0 0.0
    %3100 = vmatprep.subr.mxu0 0.0
    %3101 = vmatpush1.msra.mxu0 0.0
    %3102 = vmatprep.subr.mxu0 0.0
    %3103 = vmatpush1.msra.mxu0 0.0
    %3104 = vmatprep.subr.mxu0 0.0
    %3105 = vmatpush1.msra.mxu0 0.0
    %3106 = vmatprep.subr.mxu0 0.0
    %3107 = vmatpush1.msra.mxu0 0.0
    %3108 = vmatprep.subr.mxu0 0.0
    %3109 = vmatpush1.msra.mxu0 0.0
    %3110 = vmatprep.subr.mxu0 0.0
    %3111 = vmatpush1.msra.mxu0 0.0
    %3112 = vmatprep.subr.mxu0 0.0
    %3113 = vmatpush1.msra.mxu0 0.0
    %3114 = vmatprep.subr.mxu0 0.0
    %3115 = vmatpush1.msra.mxu0 0.0
    %3116 = vmatprep.subr.mxu0 0.0
    %3117 = vmatpush1.msra.mxu0 0.0
    %3118 = vmatprep.subr.mxu0 0.0
    %3119 = vmatpush1.msra.mxu0 0.0
    %3120 = vmatprep.subr.mxu0 0.0
    %3121 = vmatpush1.msra.mxu0 0.0
    %3122 = vmatprep.mubr.f32.mxu0 0.0
    %3123 = vmatmul.mubr.f32.gmra.mrb[0].mxu0 %v3056
    %v3124 = vpop.f32.mrb[0].mxu0
    %v3125 = vadd.f32 0.0, %v3124
    %v3126 = vpop.f32.mrb[0].mxu0
    %3127 = vdwg.mxu0
    %v3128 = vadd.f32 %v3049, %v3125
    %v3129 = vld [vmem:[#allocation6] sm:$0x1]
    %v3130 = vxor.u32 %v3048, 2147483648
    %v3131 = vmul.f32 %v3130, 1.442695
    %v3132 = vpow.pop %v3131
    %v3133 = vadd.f32 %v3132, 1.0
    %v3134 = vrcp.pop %v3133
    %v3135 = vmul.f32 1.0, %v3134
    %v3136 = vtanh.pop %v3048
    %v3138 = vlaneseq
    %v3139 = vshrl.u32 %v3138, 7
    %v3140 = vsub.s32 0, %v3139
    %v3141 = vrot.slane %v3129, %v3140
    %3142 = vrot.lane.b32.xlu0 %v3141, 32
    %v3143 = vpop.permute.xlu0 %3142
    %v3145 = vmul.f32 %v3135, %v3143
    %3147 = vrot.lane.b32.xlu0 %v3136, 64
    %v3148 = vpop.permute.xlu0 %3147
    %v3150 = vmul.f32 %v3135, %v3148
    %3152 = vrot.lane.b32.xlu0 %v3150, 32
    %v3153 = vpop.permute.xlu0 %3152
    %v3155 = vadd.f32 %v3145, %v3153
    %v3156 = vtanh.pop %v3155
    %3158 = vrot.lane.b32.xlu0 %v3156, 64
    %v3159 = vpop.permute.xlu0 %3158
    %v3161 = vmul.f32 %v3135, %v3159
    %v3162 = vld [vmem:[#allocation7] sm:$0x1]
    %v3163 = vxor.u32 %v3128, 2147483648
    %v3164 = vmul.f32 %v3163, 1.442695
    %v3165 = vpow.pop %v3164
    %v3166 = vadd.f32 %v3165, 1.0
    %v3167 = vrcp.pop %v3166
    %v3168 = vmul.f32 1.0, %v3167
    %v3169 = vtanh.pop %v3128
    %v3171 = vlaneseq
    %v3172 = vshrl.u32 %v3171, 7
    %v3173 = vsub.s32 0, %v3172
    %v3174 = vrot.slane %v3162, %v3173
    %3175 = vrot.lane.b32.xlu0 %v3174, 32
    %v3176 = vpop.permute.xlu0 %3175
    %v3178 = vmul.f32 %v3168, %v3176
    %3180 = vrot.lane.b32.xlu0 %v3169, 64
    %v3181 = vpop.permute.xlu0 %3180
    %v3183 = vmul.f32 %v3168, %v3181
    %3185 = vrot.lane.b32.xlu0 %v3183, 32
    %v3186 = vpop.permute.xlu0 %3185
    %v3188 = vadd.f32 %v3178, %v3186
    %v3189 = vtanh.pop %v3188
    %3191 = vrot.lane.b32.xlu0 %v3189, 64
    %v3192 = vpop.permute.xlu0 %3191
    %v3194 = vmul.f32 %v3168, %v3192
    %3196 = vrot.lane.b32.xlu0 %v3161, 32
    %v3197 = vpop.permute.xlu0 %3196
    %3199 = vst.msk [vmem:[#allocation4] sm:$0x1] %vm297, %v3197
    %3201 = vrot.lane.b32.xlu0 %v3155, 96
    %v3202 = vpop.permute.xlu0 %3201
    %3204 = vst.msk [vmem:[#allocation6] sm:$0x1] %vm297, %v3202
    %3206 = vrot.lane.b32.xlu0 %v3194, 32
    %v3207 = vpop.permute.xlu0 %3206
    %3209 = vst.msk [vmem:[#allocation5] sm:$0x1] %vm297, %v3207
    %3211 = vrot.lane.b32.xlu0 %v3188, 96
    %v3212 = vpop.permute.xlu0 %3211
    %3214 = vst.msk [vmem:[#allocation7] sm:$0x1] %vm297, %v3212
    %3215 = vst.msk [vmem:[#allocation10 + $0x2] sm:$0x1] %vm297, %v3197
    %3216 = vst.msk [vmem:[#allocation11 + $0x5] sm:$0x1] %vm297, %v3207
    %v3217 = vld [vmem:[#allocation2 + $0x3] sm:$0x1]
    %v3218 = vld [vmem:[#allocation4] sm:$0x1]
    %v3219 = vld [vmem:[%s8] sm:$0xff]
    %v3220 = vld [vmem:[%s8 + $0x8] sm:$0xff]
    %v3221 = vld [vmem:[%s8 + $0x10] sm:$0xff]
    %v3222 = vld [vmem:[%s8 + $0x18] sm:$0xff]
    %v3224 = vsel %vm140, %v3218, 0
    %3226 = vmatprep.subr.mxu0 0.0
    %3227 = vmatpush1.msra.mxu0 %v3219
    %3228 = vmatprep.subr.mxu0 0.0
    %3229 = vmatpush1.msra.mxu0 %v3220
    %3230 = vmatprep.subr.mxu0 0.0
    %3231 = vmatpush1.msra.mxu0 %v3221
    %3232 = vmatprep.subr.mxu0 0.0
    %3233 = vmatpush1.msra.mxu0 %v3222
    %3234 = vmatprep.subr.mxu0 0.0
    %3235 = vmatpush1.msra.mxu0 0.0
    %3236 = vmatprep.subr.mxu0 0.0
    %3237 = vmatpush1.msra.mxu0 0.0
    %3238 = vmatprep.subr.mxu0 0.0
    %3239 = vmatpush1.msra.mxu0 0.0
    %3240 = vmatprep.subr.mxu0 0.0
    %3241 = vmatpush1.msra.mxu0 0.0
    %3242 = vmatprep.subr.mxu0 0.0
    %3243 = vmatpush1.msra.mxu0 0.0
    %3244 = vmatprep.subr.mxu0 0.0
    %3245 = vmatpush1.msra.mxu0 0.0
    %3246 = vmatprep.subr.mxu0 0.0
    %3247 = vmatpush1.msra.mxu0 0.0
    %3248 = vmatprep.subr.mxu0 0.0
    %3249 = vmatpush1.msra.mxu0 0.0
    %3250 = vmatprep.subr.mxu0 0.0
    %3251 = vmatpush1.msra.mxu0 0.0
    %3252 = vmatprep.subr.mxu0 0.0
    %3253 = vmatpush1.msra.mxu0 0.0
    %3254 = vmatprep.subr.mxu0 0.0
    %3255 = vmatpush1.msra.mxu0 0.0
    %3256 = vmatprep.subr.mxu0 0.0
    %3257 = vmatpush1.msra.mxu0 0.0
    %3258 = vmatprep.subr.mxu0 0.0
    %3259 = vmatpush1.msra.mxu0 0.0
    %3260 = vmatprep.subr.mxu0 0.0
    %3261 = vmatpush1.msra.mxu0 0.0
    %3262 = vmatprep.subr.mxu0 0.0
    %3263 = vmatpush1.msra.mxu0 0.0
    %3264 = vmatprep.subr.mxu0 0.0
    %3265 = vmatpush1.msra.mxu0 0.0
    %3266 = vmatprep.subr.mxu0 0.0
    %3267 = vmatpush1.msra.mxu0 0.0
    %3268 = vmatprep.subr.mxu0 0.0
    %3269 = vmatpush1.msra.mxu0 0.0
    %3270 = vmatprep.subr.mxu0 0.0
    %3271 = vmatpush1.msra.mxu0 0.0
    %3272 = vmatprep.subr.mxu0 0.0
    %3273 = vmatpush1.msra.mxu0 0.0
    %3274 = vmatprep.subr.mxu0 0.0
    %3275 = vmatpush1.msra.mxu0 0.0
    %3276 = vmatprep.subr.mxu0 0.0
    %3277 = vmatpush1.msra.mxu0 0.0
    %3278 = vmatprep.subr.mxu0 0.0
    %3279 = vmatpush1.msra.mxu0 0.0
    %3280 = vmatprep.subr.mxu0 0.0
    %3281 = vmatpush1.msra.mxu0 0.0
    %3282 = vmatprep.subr.mxu0 0.0
    %3283 = vmatpush1.msra.mxu0 0.0
    %3284 = vmatprep.subr.mxu0 0.0
    %3285 = vmatpush1.msra.mxu0 0.0
    %3286 = vmatprep.subr.mxu0 0.0
    %3287 = vmatpush1.msra.mxu0 0.0
    %3288 = vmatprep.subr.mxu0 0.0
    %3289 = vmatpush1.msra.mxu0 0.0
    %3290 = vmatprep.mubr.f32.mxu0 0.0
    %3291 = vmatmul.mubr.f32.gmra.mrb[0].mxu0 %v3224
    %v3292 = vpop.f32.mrb[0].mxu0
    %v3293 = vadd.f32 0.0, %v3292
    %v3294 = vpop.f32.mrb[0].mxu0
    %3295 = vdwg.mxu0
    %v3296 = vadd.f32 %v3217, %v3293
    %v3297 = vld [vmem:[#allocation3 + $0x4] sm:$0x1]
    %v3298 = vld [vmem:[#allocation5] sm:$0x1]
    %v3299 = vld [vmem:[#allocation21] sm:$0xff]
    %v3300 = vld [vmem:[#allocation21 + $0x8] sm:$0xff]
    %v3301 = vld [vmem:[#allocation21 + $0x10] sm:$0xff]
    %v3302 = vld [vmem:[#allocation21 + $0x18] sm:$0xff]
    %v3304 = vsel %vm140, %v3298, 0
    %3306 = vmatprep.subr.mxu0 0.0
    %3307 = vmatpush1.msra.mxu0 %v3299
    %3308 = vmatprep.subr.mxu0 0.0
    %3309 = vmatpush1.msra.mxu0 %v3300
    %3310 = vmatprep.subr.mxu0 0.0
    %3311 = vmatpush1.msra.mxu0 %v3301
    %3312 = vmatprep.subr.mxu0 0.0
    %3313 = vmatpush1.msra.mxu0 %v3302
    %3314 = vmatprep.subr.mxu0 0.0
    %3315 = vmatpush1.msra.mxu0 0.0
    %3316 = vmatprep.subr.mxu0 0.0
    %3317 = vmatpush1.msra.mxu0 0.0
    %3318 = vmatprep.subr.mxu0 0.0
    %3319 = vmatpush1.msra.mxu0 0.0
    %3320 = vmatprep.subr.mxu0 0.0
    %3321 = vmatpush1.msra.mxu0 0.0
    %3322 = vmatprep.subr.mxu0 0.0
    %3323 = vmatpush1.msra.mxu0 0.0
    %3324 = vmatprep.subr.mxu0 0.0
    %3325 = vmatpush1.msra.mxu0 0.0
    %3326 = vmatprep.subr.mxu0 0.0
    %3327 = vmatpush1.msra.mxu0 0.0
    %3328 = vmatprep.subr.mxu0 0.0
    %3329 = vmatpush1.msra.mxu0 0.0
    %3330 = vmatprep.subr.mxu0 0.0
    %3331 = vmatpush1.msra.mxu0 0.0
    %3332 = vmatprep.subr.mxu0 0.0
    %3333 = vmatpush1.msra.mxu0 0.0
    %3334 = vmatprep.subr.mxu0 0.0
    %3335 = vmatpush1.msra.mxu0 0.0
    %3336 = vmatprep.subr.mxu0 0.0
    %3337 = vmatpush1.msra.mxu0 0.0
    %3338 = vmatprep.subr.mxu0 0.0
    %3339 = vmatpush1.msra.mxu0 0.0
    %3340 = vmatprep.subr.mxu0 0.0
    %3341 = vmatpush1.msra.mxu0 0.0
    %3342 = vmatprep.subr.mxu0 0.0
    %3343 = vmatpush1.msra.mxu0 0.0
    %3344 = vmatprep.subr.mxu0 0.0
    %3345 = vmatpush1.msra.mxu0 0.0
    %3346 = vmatprep.subr.mxu0 0.0
    %3347 = vmatpush1.msra.mxu0 0.0
    %3348 = vmatprep.subr.mxu0 0.0
    %3349 = vmatpush1.msra.mxu0 0.0
    %3350 = vmatprep.subr.mxu0 0.0
    %3351 = vmatpush1.msra.mxu0 0.0
    %3352 = vmatprep.subr.mxu0 0.0
    %3353 = vmatpush1.msra.mxu0 0.0
    %3354 = vmatprep.subr.mxu0 0.0
    %3355 = vmatpush1.msra.mxu0 0.0
    %3356 = vmatprep.subr.mxu0 0.0
    %3357 = vmatpush1.msra.mxu0 0.0
    %3358 = vmatprep.subr.mxu0 0.0
    %3359 = vmatpush1.msra.mxu0 0.0
    %3360 = vmatprep.subr.mxu0 0.0
    %3361 = vmatpush1.msra.mxu0 0.0
    %3362 = vmatprep.subr.mxu0 0.0
    %3363 = vmatpush1.msra.mxu0 0.0
    %3364 = vmatprep.subr.mxu0 0.0
    %3365 = vmatpush1.msra.mxu0 0.0
    %3366 = vmatprep.subr.mxu0 0.0
    %3367 = vmatpush1.msra.mxu0 0.0
    %3368 = vmatprep.subr.mxu0 0.0
    %3369 = vmatpush1.msra.mxu0 0.0
    %3370 = vmatprep.mubr.f32.mxu0 0.0
    %3371 = vmatmul.mubr.f32.gmra.mrb[0].mxu0 %v3304
    %v3372 = vpop.f32.mrb[0].mxu0
    %v3373 = vadd.f32 0.0, %v3372
    %v3374 = vpop.f32.mrb[0].mxu0
    %3375 = vdwg.mxu0
    %v3376 = vadd.f32 %v3297, %v3373
    %v3377 = vld [vmem:[#allocation6] sm:$0x1]
    %v3378 = vxor.u32 %v3296, 2147483648
    %v3379 = vmul.f32 %v3378, 1.442695
    %v3380 = vpow.pop %v3379
    %v3381 = vadd.f32 %v3380, 1.0
    %v3382 = vrcp.pop %v3381
    %v3383 = vmul.f32 1.0, %v3382
    %v3384 = vtanh.pop %v3296
    %v3386 = vlaneseq
    %v3387 = vshrl.u32 %v3386, 7
    %v3388 = vsub.s32 0, %v3387
    %v3389 = vrot.slane %v3377, %v3388
    %3390 = vrot.lane.b32.xlu0 %v3389, 32
    %v3391 = vpop.permute.xlu0 %3390
    %v3393 = vmul.f32 %v3383, %v3391
    %3395 = vrot.lane.b32.xlu0 %v3384, 64
    %v3396 = vpop.permute.xlu0 %3395
    %v3398 = vmul.f32 %v3383, %v3396
    %3400 = vrot.lane.b32.xlu0 %v3398, 32
    %v3401 = vpop.permute.xlu0 %3400
    %v3403 = vadd.f32 %v3393, %v3401
    %v3404 = vtanh.pop %v3403
    %3406 = vrot.lane.b32.xlu0 %v3404, 64
    %v3407 = vpop.permute.xlu0 %3406
    %v3409 = vmul.f32 %v3383, %v3407
    %v3410 = vld [vmem:[#allocation7] sm:$0x1]
    %v3411 = vxor.u32 %v3376, 2147483648
    %v3412 = vmul.f32 %v3411, 1.442695
    %v3413 = vpow.pop %v3412
    %v3414 = vadd.f32 %v3413, 1.0
    %v3415 = vrcp.pop %v3414
    %v3416 = vmul.f32 1.0, %v3415
    %v3417 = vtanh.pop %v3376
    %v3419 = vlaneseq
    %v3420 = vshrl.u32 %v3419, 7
    %v3421 = vsub.s32 0, %v3420
    %v3422 = vrot.slane %v3410, %v3421
    %3423 = vrot.lane.b32.xlu0 %v3422, 32
    %v3424 = vpop.permute.xlu0 %3423
    %v3426 = vmul.f32 %v3416, %v3424
    %3428 = vrot.lane.b32.xlu0 %v3417, 64
    %v3429 = vpop.permute.xlu0 %3428
    %v3431 = vmul.f32 %v3416, %v3429
    %3433 = vrot.lane.b32.xlu0 %v3431, 32
    %v3434 = vpop.permute.xlu0 %3433
    %v3436 = vadd.f32 %v3426, %v3434
    %v3437 = vtanh.pop %v3436
    %3439 = vrot.lane.b32.xlu0 %v3437, 64
    %v3440 = vpop.permute.xlu0 %3439
    %v3442 = vmul.f32 %v3416, %v3440
    %3444 = vrot.lane.b32.xlu0 %v3409, 32
    %v3445 = vpop.permute.xlu0 %3444
    %3447 = vst.msk [vmem:[#allocation4] sm:$0x1] %vm297, %v3445
    %3449 = vrot.lane.b32.xlu0 %v3403, 96
    %v3450 = vpop.permute.xlu0 %3449
    %3452 = vst.msk [vmem:[#allocation6] sm:$0x1] %vm297, %v3450
    %3454 = vrot.lane.b32.xlu0 %v3442, 32
    %v3455 = vpop.permute.xlu0 %3454
    %3457 = vst.msk [vmem:[#allocation5] sm:$0x1] %vm297, %v3455
    %3459 = vrot.lane.b32.xlu0 %v3436, 96
    %v3460 = vpop.permute.xlu0 %3459
    %3462 = vst.msk [vmem:[#allocation7] sm:$0x1] %vm297, %v3460
    %3463 = vst.msk [vmem:[#allocation10 + $0x3] sm:$0x1] %vm297, %v3445
    %3464 = vst.msk [vmem:[#allocation11 + $0x4] sm:$0x1] %vm297, %v3455
    %v3465 = vld [vmem:[#allocation2 + $0x4] sm:$0x1]
    %v3466 = vld [vmem:[#allocation4] sm:$0x1]
    %v3467 = vld [vmem:[%s8] sm:$0xff]
    %v3468 = vld [vmem:[%s8 + $0x8] sm:$0xff]
    %v3469 = vld [vmem:[%s8 + $0x10] sm:$0xff]
    %v3470 = vld [vmem:[%s8 + $0x18] sm:$0xff]
    %v3472 = vsel %vm140, %v3466, 0
    %3474 = vmatprep.subr.mxu0 0.0
    %3475 = vmatpush1.msra.mxu0 %v3467
    %3476 = vmatprep.subr.mxu0 0.0
    %3477 = vmatpush1.msra.mxu0 %v3468
    %3478 = vmatprep.subr.mxu0 0.0
    %3479 = vmatpush1.msra.mxu0 %v3469
    %3480 = vmatprep.subr.mxu0 0.0
    %3481 = vmatpush1.msra.mxu0 %v3470
    %3482 = vmatprep.subr.mxu0 0.0
    %3483 = vmatpush1.msra.mxu0 0.0
    %3484 = vmatprep.subr.mxu0 0.0
    %3485 = vmatpush1.msra.mxu0 0.0
    %3486 = vmatprep.subr.mxu0 0.0
    %3487 = vmatpush1.msra.mxu0 0.0
    %3488 = vmatprep.subr.mxu0 0.0
    %3489 = vmatpush1.msra.mxu0 0.0
    %3490 = vmatprep.subr.mxu0 0.0
    %3491 = vmatpush1.msra.mxu0 0.0
    %3492 = vmatprep.subr.mxu0 0.0
    %3493 = vmatpush1.msra.mxu0 0.0
    %3494 = vmatprep.subr.mxu0 0.0
    %3495 = vmatpush1.msra.mxu0 0.0
    %3496 = vmatprep.subr.mxu0 0.0
    %3497 = vmatpush1.msra.mxu0 0.0
    %3498 = vmatprep.subr.mxu0 0.0
    %3499 = vmatpush1.msra.mxu0 0.0
    %3500 = vmatprep.subr.mxu0 0.0
    %3501 = vmatpush1.msra.mxu0 0.0
    %3502 = vmatprep.subr.mxu0 0.0
    %3503 = vmatpush1.msra.mxu0 0.0
    %3504 = vmatprep.subr.mxu0 0.0
    %3505 = vmatpush1.msra.mxu0 0.0
    %3506 = vmatprep.subr.mxu0 0.0
    %3507 = vmatpush1.msra.mxu0 0.0
    %3508 = vmatprep.subr.mxu0 0.0
    %3509 = vmatpush1.msra.mxu0 0.0
    %3510 = vmatprep.subr.mxu0 0.0
    %3511 = vmatpush1.msra.mxu0 0.0
    %3512 = vmatprep.subr.mxu0 0.0
    %3513 = vmatpush1.msra.mxu0 0.0
    %3514 = vmatprep.subr.mxu0 0.0
    %3515 = vmatpush1.msra.mxu0 0.0
    %3516 = vmatprep.subr.mxu0 0.0
    %3517 = vmatpush1.msra.mxu0 0.0
    %3518 = vmatprep.subr.mxu0 0.0
    %3519 = vmatpush1.msra.mxu0 0.0
    %3520 = vmatprep.subr.mxu0 0.0
    %3521 = vmatpush1.msra.mxu0 0.0
    %3522 = vmatprep.subr.mxu0 0.0
    %3523 = vmatpush1.msra.mxu0 0.0
    %3524 = vmatprep.subr.mxu0 0.0
    %3525 = vmatpush1.msra.mxu0 0.0
    %3526 = vmatprep.subr.mxu0 0.0
    %3527 = vmatpush1.msra.mxu0 0.0
    %3528 = vmatprep.subr.mxu0 0.0
    %3529 = vmatpush1.msra.mxu0 0.0
    %3530 = vmatprep.subr.mxu0 0.0
    %3531 = vmatpush1.msra.mxu0 0.0
    %3532 = vmatprep.subr.mxu0 0.0
    %3533 = vmatpush1.msra.mxu0 0.0
    %3534 = vmatprep.subr.mxu0 0.0
    %3535 = vmatpush1.msra.mxu0 0.0
    %3536 = vmatprep.subr.mxu0 0.0
    %3537 = vmatpush1.msra.mxu0 0.0
    %3538 = vmatprep.mubr.f32.mxu0 0.0
    %3539 = vmatmul.mubr.f32.gmra.mrb[0].mxu0 %v3472
    %v3540 = vpop.f32.mrb[0].mxu0
    %v3541 = vadd.f32 0.0, %v3540
    %v3542 = vpop.f32.mrb[0].mxu0
    %3543 = vdwg.mxu0
    %v3544 = vadd.f32 %v3465, %v3541
    %v3545 = vld [vmem:[#allocation3 + $0x3] sm:$0x1]
    %v3546 = vld [vmem:[#allocation5] sm:$0x1]
    %v3547 = vld [vmem:[#allocation21] sm:$0xff]
    %v3548 = vld [vmem:[#allocation21 + $0x8] sm:$0xff]
    %v3549 = vld [vmem:[#allocation21 + $0x10] sm:$0xff]
    %v3550 = vld [vmem:[#allocation21 + $0x18] sm:$0xff]
    %v3552 = vsel %vm140, %v3546, 0
    %3554 = vmatprep.subr.mxu0 0.0
    %3555 = vmatpush1.msra.mxu0 %v3547
    %3556 = vmatprep.subr.mxu0 0.0
    %3557 = vmatpush1.msra.mxu0 %v3548
    %3558 = vmatprep.subr.mxu0 0.0
    %3559 = vmatpush1.msra.mxu0 %v3549
    %3560 = vmatprep.subr.mxu0 0.0
    %3561 = vmatpush1.msra.mxu0 %v3550
    %3562 = vmatprep.subr.mxu0 0.0
    %3563 = vmatpush1.msra.mxu0 0.0
    %3564 = vmatprep.subr.mxu0 0.0
    %3565 = vmatpush1.msra.mxu0 0.0
    %3566 = vmatprep.subr.mxu0 0.0
    %3567 = vmatpush1.msra.mxu0 0.0
    %3568 = vmatprep.subr.mxu0 0.0
    %3569 = vmatpush1.msra.mxu0 0.0
    %3570 = vmatprep.subr.mxu0 0.0
    %3571 = vmatpush1.msra.mxu0 0.0
    %3572 = vmatprep.subr.mxu0 0.0
    %3573 = vmatpush1.msra.mxu0 0.0
    %3574 = vmatprep.subr.mxu0 0.0
    %3575 = vmatpush1.msra.mxu0 0.0
    %3576 = vmatprep.subr.mxu0 0.0
    %3577 = vmatpush1.msra.mxu0 0.0
    %3578 = vmatprep.subr.mxu0 0.0
    %3579 = vmatpush1.msra.mxu0 0.0
    %3580 = vmatprep.subr.mxu0 0.0
    %3581 = vmatpush1.msra.mxu0 0.0
    %3582 = vmatprep.subr.mxu0 0.0
    %3583 = vmatpush1.msra.mxu0 0.0
    %3584 = vmatprep.subr.mxu0 0.0
    %3585 = vmatpush1.msra.mxu0 0.0
    %3586 = vmatprep.subr.mxu0 0.0
    %3587 = vmatpush1.msra.mxu0 0.0
    %3588 = vmatprep.subr.mxu0 0.0
    %3589 = vmatpush1.msra.mxu0 0.0
    %3590 = vmatprep.subr.mxu0 0.0
    %3591 = vmatpush1.msra.mxu0 0.0
    %3592 = vmatprep.subr.mxu0 0.0
    %3593 = vmatpush1.msra.mxu0 0.0
    %3594 = vmatprep.subr.mxu0 0.0
    %3595 = vmatpush1.msra.mxu0 0.0
    %3596 = vmatprep.subr.mxu0 0.0
    %3597 = vmatpush1.msra.mxu0 0.0
    %3598 = vmatprep.subr.mxu0 0.0
    %3599 = vmatpush1.msra.mxu0 0.0
    %3600 = vmatprep.subr.mxu0 0.0
    %3601 = vmatpush1.msra.mxu0 0.0
    %3602 = vmatprep.subr.mxu0 0.0
    %3603 = vmatpush1.msra.mxu0 0.0
    %3604 = vmatprep.subr.mxu0 0.0
    %3605 = vmatpush1.msra.mxu0 0.0
    %3606 = vmatprep.subr.mxu0 0.0
    %3607 = vmatpush1.msra.mxu0 0.0
    %3608 = vmatprep.subr.mxu0 0.0
    %3609 = vmatpush1.msra.mxu0 0.0
    %3610 = vmatprep.subr.mxu0 0.0
    %3611 = vmatpush1.msra.mxu0 0.0
    %3612 = vmatprep.subr.mxu0 0.0
    %3613 = vmatpush1.msra.mxu0 0.0
    %3614 = vmatprep.subr.mxu0 0.0
    %3615 = vmatpush1.msra.mxu0 0.0
    %3616 = vmatprep.subr.mxu0 0.0
    %3617 = vmatpush1.msra.mxu0 0.0
    %3618 = vmatprep.mubr.f32.mxu0 0.0
    %3619 = vmatmul.mubr.f32.gmra.mrb[0].mxu0 %v3552
    %v3620 = vpop.f32.mrb[0].mxu0
    %v3621 = vadd.f32 0.0, %v3620
    %v3622 = vpop.f32.mrb[0].mxu0
    %3623 = vdwg.mxu0
    %v3624 = vadd.f32 %v3545, %v3621
    %v3625 = vld [vmem:[#allocation6] sm:$0x1]
    %v3626 = vxor.u32 %v3544, 2147483648
    %v3627 = vmul.f32 %v3626, 1.442695
    %v3628 = vpow.pop %v3627
    %v3629 = vadd.f32 %v3628, 1.0
    %v3630 = vrcp.pop %v3629
    %v3631 = vmul.f32 1.0, %v3630
    %v3632 = vtanh.pop %v3544
    %v3634 = vlaneseq
    %v3635 = vshrl.u32 %v3634, 7
    %v3636 = vsub.s32 0, %v3635
    %v3637 = vrot.slane %v3625, %v3636
    %3638 = vrot.lane.b32.xlu0 %v3637, 32
    %v3639 = vpop.permute.xlu0 %3638
    %v3641 = vmul.f32 %v3631, %v3639
    %3643 = vrot.lane.b32.xlu0 %v3632, 64
    %v3644 = vpop.permute.xlu0 %3643
    %v3646 = vmul.f32 %v3631, %v3644
    %3648 = vrot.lane.b32.xlu0 %v3646, 32
    %v3649 = vpop.permute.xlu0 %3648
    %v3651 = vadd.f32 %v3641, %v3649
    %v3652 = vtanh.pop %v3651
    %3654 = vrot.lane.b32.xlu0 %v3652, 64
    %v3655 = vpop.permute.xlu0 %3654
    %v3657 = vmul.f32 %v3631, %v3655
    %v3658 = vld [vmem:[#allocation7] sm:$0x1]
    %v3659 = vxor.u32 %v3624, 2147483648
    %v3660 = vmul.f32 %v3659, 1.442695
    %v3661 = vpow.pop %v3660
    %v3662 = vadd.f32 %v3661, 1.0
    %v3663 = vrcp.pop %v3662
    %v3664 = vmul.f32 1.0, %v3663
    %v3665 = vtanh.pop %v3624
    %v3667 = vlaneseq
    %v3668 = vshrl.u32 %v3667, 7
    %v3669 = vsub.s32 0, %v3668
    %v3670 = vrot.slane %v3658, %v3669
    %3671 = vrot.lane.b32.xlu0 %v3670, 32
    %v3672 = vpop.permute.xlu0 %3671
    %v3674 = vmul.f32 %v3664, %v3672
    %3676 = vrot.lane.b32.xlu0 %v3665, 64
    %v3677 = vpop.permute.xlu0 %3676
    %v3679 = vmul.f32 %v3664, %v3677
    %3681 = vrot.lane.b32.xlu0 %v3679, 32
    %v3682 = vpop.permute.xlu0 %3681
    %v3684 = vadd.f32 %v3674, %v3682
    %v3685 = vtanh.pop %v3684
    %3687 = vrot.lane.b32.xlu0 %v3685, 64
    %v3688 = vpop.permute.xlu0 %3687
    %v3690 = vmul.f32 %v3664, %v3688
    %3692 = vrot.lane.b32.xlu0 %v3657, 32
    %v3693 = vpop.permute.xlu0 %3692
    %3695 = vst.msk [vmem:[#allocation4] sm:$0x1] %vm297, %v3693
    %3697 = vrot.lane.b32.xlu0 %v3651, 96
    %v3698 = vpop.permute.xlu0 %3697
    %3700 = vst.msk [vmem:[#allocation6] sm:$0x1] %vm297, %v3698
    %3702 = vrot.lane.b32.xlu0 %v3690, 32
    %v3703 = vpop.permute.xlu0 %3702
    %3705 = vst.msk [vmem:[#allocation5] sm:$0x1] %vm297, %v3703
    %3707 = vrot.lane.b32.xlu0 %v3684, 96
    %v3708 = vpop.permute.xlu0 %3707
    %3710 = vst.msk [vmem:[#allocation7] sm:$0x1] %vm297, %v3708
    %3711 = vst.msk [vmem:[#allocation10 + $0x4] sm:$0x1] %vm297, %v3693
    %3712 = vst.msk [vmem:[#allocation11 + $0x3] sm:$0x1] %vm297, %v3703
    %v3713 = vld [vmem:[#allocation2 + $0x5] sm:$0x1]
    %v3714 = vld [vmem:[#allocation4] sm:$0x1]
    %v3715 = vld [vmem:[%s8] sm:$0xff]
    %v3716 = vld [vmem:[%s8 + $0x8] sm:$0xff]
    %v3717 = vld [vmem:[%s8 + $0x10] sm:$0xff]
    %v3718 = vld [vmem:[%s8 + $0x18] sm:$0xff]
    %v3720 = vsel %vm140, %v3714, 0
    %3722 = vmatprep.subr.mxu0 0.0
    %3723 = vmatpush1.msra.mxu0 %v3715
    %3724 = vmatprep.subr.mxu0 0.0
    %3725 = vmatpush1.msra.mxu0 %v3716
    %3726 = vmatprep.subr.mxu0 0.0
    %3727 = vmatpush1.msra.mxu0 %v3717
    %3728 = vmatprep.subr.mxu0 0.0
    %3729 = vmatpush1.msra.mxu0 %v3718
    %3730 = vmatprep.subr.mxu0 0.0
    %3731 = vmatpush1.msra.mxu0 0.0
    %3732 = vmatprep.subr.mxu0 0.0
    %3733 = vmatpush1.msra.mxu0 0.0
    %3734 = vmatprep.subr.mxu0 0.0
    %3735 = vmatpush1.msra.mxu0 0.0
    %3736 = vmatprep.subr.mxu0 0.0
    %3737 = vmatpush1.msra.mxu0 0.0
    %3738 = vmatprep.subr.mxu0 0.0
    %3739 = vmatpush1.msra.mxu0 0.0
    %3740 = vmatprep.subr.mxu0 0.0
    %3741 = vmatpush1.msra.mxu0 0.0
    %3742 = vmatprep.subr.mxu0 0.0
    %3743 = vmatpush1.msra.mxu0 0.0
    %3744 = vmatprep.subr.mxu0 0.0
    %3745 = vmatpush1.msra.mxu0 0.0
    %3746 = vmatprep.subr.mxu0 0.0
    %3747 = vmatpush1.msra.mxu0 0.0
    %3748 = vmatprep.subr.mxu0 0.0
    %3749 = vmatpush1.msra.mxu0 0.0
    %3750 = vmatprep.subr.mxu0 0.0
    %3751 = vmatpush1.msra.mxu0 0.0
    %3752 = vmatprep.subr.mxu0 0.0
    %3753 = vmatpush1.msra.mxu0 0.0
    %3754 = vmatprep.subr.mxu0 0.0
    %3755 = vmatpush1.msra.mxu0 0.0
    %3756 = vmatprep.subr.mxu0 0.0
    %3757 = vmatpush1.msra.mxu0 0.0
    %3758 = vmatprep.subr.mxu0 0.0
    %3759 = vmatpush1.msra.mxu0 0.0
    %3760 = vmatprep.subr.mxu0 0.0
    %3761 = vmatpush1.msra.mxu0 0.0
    %3762 = vmatprep.subr.mxu0 0.0
    %3763 = vmatpush1.msra.mxu0 0.0
    %3764 = vmatprep.subr.mxu0 0.0
    %3765 = vmatpush1.msra.mxu0 0.0
    %3766 = vmatprep.subr.mxu0 0.0
    %3767 = vmatpush1.msra.mxu0 0.0
    %3768 = vmatprep.subr.mxu0 0.0
    %3769 = vmatpush1.msra.mxu0 0.0
    %3770 = vmatprep.subr.mxu0 0.0
    %3771 = vmatpush1.msra.mxu0 0.0
    %3772 = vmatprep.subr.mxu0 0.0
    %3773 = vmatpush1.msra.mxu0 0.0
    %3774 = vmatprep.subr.mxu0 0.0
    %3775 = vmatpush1.msra.mxu0 0.0
    %3776 = vmatprep.subr.mxu0 0.0
    %3777 = vmatpush1.msra.mxu0 0.0
    %3778 = vmatprep.subr.mxu0 0.0
    %3779 = vmatpush1.msra.mxu0 0.0
    %3780 = vmatprep.subr.mxu0 0.0
    %3781 = vmatpush1.msra.mxu0 0.0
    %3782 = vmatprep.subr.mxu0 0.0
    %3783 = vmatpush1.msra.mxu0 0.0
    %3784 = vmatprep.subr.mxu0 0.0
    %3785 = vmatpush1.msra.mxu0 0.0
    %3786 = vmatprep.mubr.f32.mxu0 0.0
    %3787 = vmatmul.mubr.f32.gmra.mrb[0].mxu0 %v3720
    %v3788 = vpop.f32.mrb[0].mxu0
    %v3789 = vadd.f32 0.0, %v3788
    %v3790 = vpop.f32.mrb[0].mxu0
    %3791 = vdwg.mxu0
    %v3792 = vadd.f32 %v3713, %v3789
    %v3793 = vld [vmem:[#allocation3 + $0x2] sm:$0x1]
    %v3794 = vld [vmem:[#allocation5] sm:$0x1]
    %v3795 = vld [vmem:[#allocation21] sm:$0xff]
    %v3796 = vld [vmem:[#allocation21 + $0x8] sm:$0xff]
    %v3797 = vld [vmem:[#allocation21 + $0x10] sm:$0xff]
    %v3798 = vld [vmem:[#allocation21 + $0x18] sm:$0xff]
    %v3800 = vsel %vm140, %v3794, 0
    %3802 = vmatprep.subr.mxu0 0.0
    %3803 = vmatpush1.msra.mxu0 %v3795
    %3804 = vmatprep.subr.mxu0 0.0
    %3805 = vmatpush1.msra.mxu0 %v3796
    %3806 = vmatprep.subr.mxu0 0.0
    %3807 = vmatpush1.msra.mxu0 %v3797
    %3808 = vmatprep.subr.mxu0 0.0
    %3809 = vmatpush1.msra.mxu0 %v3798
    %3810 = vmatprep.subr.mxu0 0.0
    %3811 = vmatpush1.msra.mxu0 0.0
    %3812 = vmatprep.subr.mxu0 0.0
    %3813 = vmatpush1.msra.mxu0 0.0
    %3814 = vmatprep.subr.mxu0 0.0
    %3815 = vmatpush1.msra.mxu0 0.0
    %3816 = vmatprep.subr.mxu0 0.0
    %3817 = vmatpush1.msra.mxu0 0.0
    %3818 = vmatprep.subr.mxu0 0.0
    %3819 = vmatpush1.msra.mxu0 0.0
    %3820 = vmatprep.subr.mxu0 0.0
    %3821 = vmatpush1.msra.mxu0 0.0
    %3822 = vmatprep.subr.mxu0 0.0
    %3823 = vmatpush1.msra.mxu0 0.0
    %3824 = vmatprep.subr.mxu0 0.0
    %3825 = vmatpush1.msra.mxu0 0.0
    %3826 = vmatprep.subr.mxu0 0.0
    %3827 = vmatpush1.msra.mxu0 0.0
    %3828 = vmatprep.subr.mxu0 0.0
    %3829 = vmatpush1.msra.mxu0 0.0
    %3830 = vmatprep.subr.mxu0 0.0
    %3831 = vmatpush1.msra.mxu0 0.0
    %3832 = vmatprep.subr.mxu0 0.0
    %3833 = vmatpush1.msra.mxu0 0.0
    %3834 = vmatprep.subr.mxu0 0.0
    %3835 = vmatpush1.msra.mxu0 0.0
    %3836 = vmatprep.subr.mxu0 0.0
    %3837 = vmatpush1.msra.mxu0 0.0
    %3838 = vmatprep.subr.mxu0 0.0
    %3839 = vmatpush1.msra.mxu0 0.0
    %3840 = vmatprep.subr.mxu0 0.0
    %3841 = vmatpush1.msra.mxu0 0.0
    %3842 = vmatprep.subr.mxu0 0.0
    %3843 = vmatpush1.msra.mxu0 0.0
    %3844 = vmatprep.subr.mxu0 0.0
    %3845 = vmatpush1.msra.mxu0 0.0
    %3846 = vmatprep.subr.mxu0 0.0
    %3847 = vmatpush1.msra.mxu0 0.0
    %3848 = vmatprep.subr.mxu0 0.0
    %3849 = vmatpush1.msra.mxu0 0.0
    %3850 = vmatprep.subr.mxu0 0.0
    %3851 = vmatpush1.msra.mxu0 0.0
    %3852 = vmatprep.subr.mxu0 0.0
    %3853 = vmatpush1.msra.mxu0 0.0
    %3854 = vmatprep.subr.mxu0 0.0
    %3855 = vmatpush1.msra.mxu0 0.0
    %3856 = vmatprep.subr.mxu0 0.0
    %3857 = vmatpush1.msra.mxu0 0.0
    %3858 = vmatprep.subr.mxu0 0.0
    %3859 = vmatpush1.msra.mxu0 0.0
    %3860 = vmatprep.subr.mxu0 0.0
    %3861 = vmatpush1.msra.mxu0 0.0
    %3862 = vmatprep.subr.mxu0 0.0
    %3863 = vmatpush1.msra.mxu0 0.0
    %3864 = vmatprep.subr.mxu0 0.0
    %3865 = vmatpush1.msra.mxu0 0.0
    %3866 = vmatprep.mubr.f32.mxu0 0.0
    %3867 = vmatmul.mubr.f32.gmra.mrb[0].mxu0 %v3800
    %v3868 = vpop.f32.mrb[0].mxu0
    %v3869 = vadd.f32 0.0, %v3868
    %v3870 = vpop.f32.mrb[0].mxu0
    %3871 = vdwg.mxu0
    %v3872 = vadd.f32 %v3793, %v3869
    %v3873 = vld [vmem:[#allocation6] sm:$0x1]
    %v3874 = vxor.u32 %v3792, 2147483648
    %v3875 = vmul.f32 %v3874, 1.442695
    %v3876 = vpow.pop %v3875
    %v3877 = vadd.f32 %v3876, 1.0
    %v3878 = vrcp.pop %v3877
    %v3879 = vmul.f32 1.0, %v3878
    %v3880 = vtanh.pop %v3792
    %v3882 = vlaneseq
    %v3883 = vshrl.u32 %v3882, 7
    %v3884 = vsub.s32 0, %v3883
    %v3885 = vrot.slane %v3873, %v3884
    %3886 = vrot.lane.b32.xlu0 %v3885, 32
    %v3887 = vpop.permute.xlu0 %3886
    %v3889 = vmul.f32 %v3879, %v3887
    %3891 = vrot.lane.b32.xlu0 %v3880, 64
    %v3892 = vpop.permute.xlu0 %3891
    %v3894 = vmul.f32 %v3879, %v3892
    %3896 = vrot.lane.b32.xlu0 %v3894, 32
    %v3897 = vpop.permute.xlu0 %3896
    %v3899 = vadd.f32 %v3889, %v3897
    %v3900 = vtanh.pop %v3899
    %3902 = vrot.lane.b32.xlu0 %v3900, 64
    %v3903 = vpop.permute.xlu0 %3902
    %v3905 = vmul.f32 %v3879, %v3903
    %v3906 = vld [vmem:[#allocation7] sm:$0x1]
    %v3907 = vxor.u32 %v3872, 2147483648
    %v3908 = vmul.f32 %v3907, 1.442695
    %v3909 = vpow.pop %v3908
    %v3910 = vadd.f32 %v3909, 1.0
    %v3911 = vrcp.pop %v3910
    %v3912 = vmul.f32 1.0, %v3911
    %v3913 = vtanh.pop %v3872
    %v3915 = vlaneseq
    %v3916 = vshrl.u32 %v3915, 7
    %v3917 = vsub.s32 0, %v3916
    %v3918 = vrot.slane %v3906, %v3917
    %3919 = vrot.lane.b32.xlu0 %v3918, 32
    %v3920 = vpop.permute.xlu0 %3919
    %v3922 = vmul.f32 %v3912, %v3920
    %3924 = vrot.lane.b32.xlu0 %v3913, 64
    %v3925 = vpop.permute.xlu0 %3924
    %v3927 = vmul.f32 %v3912, %v3925
    %3929 = vrot.lane.b32.xlu0 %v3927, 32
    %v3930 = vpop.permute.xlu0 %3929
    %v3932 = vadd.f32 %v3922, %v3930
    %v3933 = vtanh.pop %v3932
    %3935 = vrot.lane.b32.xlu0 %v3933, 64
    %v3936 = vpop.permute.xlu0 %3935
    %v3938 = vmul.f32 %v3912, %v3936
    %3940 = vrot.lane.b32.xlu0 %v3905, 32
    %v3941 = vpop.permute.xlu0 %3940
    %3943 = vst.msk [vmem:[#allocation4] sm:$0x1] %vm297, %v3941
    %3945 = vrot.lane.b32.xlu0 %v3899, 96
    %v3946 = vpop.permute.xlu0 %3945
    %3948 = vst.msk [vmem:[#allocation6] sm:$0x1] %vm297, %v3946
    %3950 = vrot.lane.b32.xlu0 %v3938, 32
    %v3951 = vpop.permute.xlu0 %3950
    %3953 = vst.msk [vmem:[#allocation5] sm:$0x1] %vm297, %v3951
    %3955 = vrot.lane.b32.xlu0 %v3932, 96
    %v3956 = vpop.permute.xlu0 %3955
    %3958 = vst.msk [vmem:[#allocation7] sm:$0x1] %vm297, %v3956
    %3959 = vst.msk [vmem:[#allocation10 + $0x5] sm:$0x1] %vm297, %v3941
    %3960 = vst.msk [vmem:[#allocation11 + $0x2] sm:$0x1] %vm297, %v3951
    %v3961 = vld [vmem:[#allocation2 + $0x6] sm:$0x1]
    %v3962 = vld [vmem:[#allocation4] sm:$0x1]
    %v3963 = vld [vmem:[%s8] sm:$0xff]
    %v3964 = vld [vmem:[%s8 + $0x8] sm:$0xff]
    %v3965 = vld [vmem:[%s8 + $0x10] sm:$0xff]
    %v3966 = vld [vmem:[%s8 + $0x18] sm:$0xff]
    %v3968 = vsel %vm140, %v3962, 0
    %3970 = vmatprep.subr.mxu0 0.0
    %3971 = vmatpush1.msra.mxu0 %v3963
    %3972 = vmatprep.subr.mxu0 0.0
    %3973 = vmatpush1.msra.mxu0 %v3964
    %3974 = vmatprep.subr.mxu0 0.0
    %3975 = vmatpush1.msra.mxu0 %v3965
    %3976 = vmatprep.subr.mxu0 0.0
    %3977 = vmatpush1.msra.mxu0 %v3966
    %3978 = vmatprep.subr.mxu0 0.0
    %3979 = vmatpush1.msra.mxu0 0.0
    %3980 = vmatprep.subr.mxu0 0.0
    %3981 = vmatpush1.msra.mxu0 0.0
    %3982 = vmatprep.subr.mxu0 0.0
    %3983 = vmatpush1.msra.mxu0 0.0
    %3984 = vmatprep.subr.mxu0 0.0
    %3985 = vmatpush1.msra.mxu0 0.0
    %3986 = vmatprep.subr.mxu0 0.0
    %3987 = vmatpush1.msra.mxu0 0.0
    %3988 = vmatprep.subr.mxu0 0.0
    %3989 = vmatpush1.msra.mxu0 0.0
    %3990 = vmatprep.subr.mxu0 0.0
    %3991 = vmatpush1.msra.mxu0 0.0
    %3992 = vmatprep.subr.mxu0 0.0
    %3993 = vmatpush1.msra.mxu0 0.0
    %3994 = vmatprep.subr.mxu0 0.0
    %3995 = vmatpush1.msra.mxu0 0.0
    %3996 = vmatprep.subr.mxu0 0.0
    %3997 = vmatpush1.msra.mxu0 0.0
    %3998 = vmatprep.subr.mxu0 0.0
    %3999 = vmatpush1.msra.mxu0 0.0
    %4000 = vmatprep.subr.mxu0 0.0
    %4001 = vmatpush1.msra.mxu0 0.0
    %4002 = vmatprep.subr.mxu0 0.0
    %4003 = vmatpush1.msra.mxu0 0.0
    %4004 = vmatprep.subr.mxu0 0.0
    %4005 = vmatpush1.msra.mxu0 0.0
    %4006 = vmatprep.subr.mxu0 0.0
    %4007 = vmatpush1.msra.mxu0 0.0
    %4008 = vmatprep.subr.mxu0 0.0
    %4009 = vmatpush1.msra.mxu0 0.0
    %4010 = vmatprep.subr.mxu0 0.0
    %4011 = vmatpush1.msra.mxu0 0.0
    %4012 = vmatprep.subr.mxu0 0.0
    %4013 = vmatpush1.msra.mxu0 0.0
    %4014 = vmatprep.subr.mxu0 0.0
    %4015 = vmatpush1.msra.mxu0 0.0
    %4016 = vmatprep.subr.mxu0 0.0
    %4017 = vmatpush1.msra.mxu0 0.0
    %4018 = vmatprep.subr.mxu0 0.0
    %4019 = vmatpush1.msra.mxu0 0.0
    %4020 = vmatprep.subr.mxu0 0.0
    %4021 = vmatpush1.msra.mxu0 0.0
    %4022 = vmatprep.subr.mxu0 0.0
    %4023 = vmatpush1.msra.mxu0 0.0
    %4024 = vmatprep.subr.mxu0 0.0
    %4025 = vmatpush1.msra.mxu0 0.0
    %4026 = vmatprep.subr.mxu0 0.0
    %4027 = vmatpush1.msra.mxu0 0.0
    %4028 = vmatprep.subr.mxu0 0.0
    %4029 = vmatpush1.msra.mxu0 0.0
    %4030 = vmatprep.subr.mxu0 0.0
    %4031 = vmatpush1.msra.mxu0 0.0
    %4032 = vmatprep.subr.mxu0 0.0
    %4033 = vmatpush1.msra.mxu0 0.0
    %4034 = vmatprep.mubr.f32.mxu0 0.0
    %4035 = vmatmul.mubr.f32.gmra.mrb[0].mxu0 %v3968
    %v4036 = vpop.f32.mrb[0].mxu0
    %v4037 = vadd.f32 0.0, %v4036
    %v4038 = vpop.f32.mrb[0].mxu0
    %4039 = vdwg.mxu0
    %v4040 = vadd.f32 %v3961, %v4037
    %v4041 = vld [vmem:[#allocation3 + $0x1] sm:$0x1]
    %v4042 = vld [vmem:[#allocation5] sm:$0x1]
    %v4043 = vld [vmem:[#allocation21] sm:$0xff]
    %v4044 = vld [vmem:[#allocation21 + $0x8] sm:$0xff]
    %v4045 = vld [vmem:[#allocation21 + $0x10] sm:$0xff]
    %v4046 = vld [vmem:[#allocation21 + $0x18] sm:$0xff]
    %v4048 = vsel %vm140, %v4042, 0
    %4050 = vmatprep.subr.mxu0 0.0
    %4051 = vmatpush1.msra.mxu0 %v4043
    %4052 = vmatprep.subr.mxu0 0.0
    %4053 = vmatpush1.msra.mxu0 %v4044
    %4054 = vmatprep.subr.mxu0 0.0
    %4055 = vmatpush1.msra.mxu0 %v4045
    %4056 = vmatprep.subr.mxu0 0.0
    %4057 = vmatpush1.msra.mxu0 %v4046
    %4058 = vmatprep.subr.mxu0 0.0
    %4059 = vmatpush1.msra.mxu0 0.0
    %4060 = vmatprep.subr.mxu0 0.0
    %4061 = vmatpush1.msra.mxu0 0.0
    %4062 = vmatprep.subr.mxu0 0.0
    %4063 = vmatpush1.msra.mxu0 0.0
    %4064 = vmatprep.subr.mxu0 0.0
    %4065 = vmatpush1.msra.mxu0 0.0
    %4066 = vmatprep.subr.mxu0 0.0
    %4067 = vmatpush1.msra.mxu0 0.0
    %4068 = vmatprep.subr.mxu0 0.0
    %4069 = vmatpush1.msra.mxu0 0.0
    %4070 = vmatprep.subr.mxu0 0.0
    %4071 = vmatpush1.msra.mxu0 0.0
    %4072 = vmatprep.subr.mxu0 0.0
    %4073 = vmatpush1.msra.mxu0 0.0
    %4074 = vmatprep.subr.mxu0 0.0
    %4075 = vmatpush1.msra.mxu0 0.0
    %4076 = vmatprep.subr.mxu0 0.0
    %4077 = vmatpush1.msra.mxu0 0.0
    %4078 = vmatprep.subr.mxu0 0.0
    %4079 = vmatpush1.msra.mxu0 0.0
    %4080 = vmatprep.subr.mxu0 0.0
    %4081 = vmatpush1.msra.mxu0 0.0
    %4082 = vmatprep.subr.mxu0 0.0
    %4083 = vmatpush1.msra.mxu0 0.0
    %4084 = vmatprep.subr.mxu0 0.0
    %4085 = vmatpush1.msra.mxu0 0.0
    %4086 = vmatprep.subr.mxu0 0.0
    %4087 = vmatpush1.msra.mxu0 0.0
    %4088 = vmatprep.subr.mxu0 0.0
    %4089 = vmatpush1.msra.mxu0 0.0
    %4090 = vmatprep.subr.mxu0 0.0
    %4091 = vmatpush1.msra.mxu0 0.0
    %4092 = vmatprep.subr.mxu0 0.0
    %4093 = vmatpush1.msra.mxu0 0.0
    %4094 = vmatprep.subr.mxu0 0.0
    %4095 = vmatpush1.msra.mxu0 0.0
    %4096 = vmatprep.subr.mxu0 0.0
    %4097 = vmatpush1.msra.mxu0 0.0
    %4098 = vmatprep.subr.mxu0 0.0
    %4099 = vmatpush1.msra.mxu0 0.0
    %4100 = vmatprep.subr.mxu0 0.0
    %4101 = vmatpush1.msra.mxu0 0.0
    %4102 = vmatprep.subr.mxu0 0.0
    %4103 = vmatpush1.msra.mxu0 0.0
    %4104 = vmatprep.subr.mxu0 0.0
    %4105 = vmatpush1.msra.mxu0 0.0
    %4106 = vmatprep.subr.mxu0 0.0
    %4107 = vmatpush1.msra.mxu0 0.0
    %4108 = vmatprep.subr.mxu0 0.0
    %4109 = vmatpush1.msra.mxu0 0.0
    %4110 = vmatprep.subr.mxu0 0.0
    %4111 = vmatpush1.msra.mxu0 0.0
    %4112 = vmatprep.subr.mxu0 0.0
    %4113 = vmatpush1.msra.mxu0 0.0
    %4114 = vmatprep.mubr.f32.mxu0 0.0
    %4115 = vmatmul.mubr.f32.gmra.mrb[0].mxu0 %v4048
    %v4116 = vpop.f32.mrb[0].mxu0
    %v4117 = vadd.f32 0.0, %v4116
    %v4118 = vpop.f32.mrb[0].mxu0
    %4119 = vdwg.mxu0
    %v4120 = vadd.f32 %v4041, %v4117
    %v4121 = vld [vmem:[#allocation6] sm:$0x1]
    %v4122 = vxor.u32 %v4040, 2147483648
    %v4123 = vmul.f32 %v4122, 1.442695
    %v4124 = vpow.pop %v4123
    %v4125 = vadd.f32 %v4124, 1.0
    %v4126 = vrcp.pop %v4125
    %v4127 = vmul.f32 1.0, %v4126
    %v4128 = vtanh.pop %v4040
    %v4130 = vlaneseq
    %v4131 = vshrl.u32 %v4130, 7
    %v4132 = vsub.s32 0, %v4131
    %v4133 = vrot.slane %v4121, %v4132
    %4134 = vrot.lane.b32.xlu0 %v4133, 32
    %v4135 = vpop.permute.xlu0 %4134
    %v4137 = vmul.f32 %v4127, %v4135
    %4139 = vrot.lane.b32.xlu0 %v4128, 64
    %v4140 = vpop.permute.xlu0 %4139
    %v4142 = vmul.f32 %v4127, %v4140
    %4144 = vrot.lane.b32.xlu0 %v4142, 32
    %v4145 = vpop.permute.xlu0 %4144
    %v4147 = vadd.f32 %v4137, %v4145
    %v4148 = vtanh.pop %v4147
    %4150 = vrot.lane.b32.xlu0 %v4148, 64
    %v4151 = vpop.permute.xlu0 %4150
    %v4153 = vmul.f32 %v4127, %v4151
    %v4154 = vld [vmem:[#allocation7] sm:$0x1]
    %v4155 = vxor.u32 %v4120, 2147483648
    %v4156 = vmul.f32 %v4155, 1.442695
    %v4157 = vpow.pop %v4156
    %v4158 = vadd.f32 %v4157, 1.0
    %v4159 = vrcp.pop %v4158
    %v4160 = vmul.f32 1.0, %v4159
    %v4161 = vtanh.pop %v4120
    %v4163 = vlaneseq
    %v4164 = vshrl.u32 %v4163, 7
    %v4165 = vsub.s32 0, %v4164
    %v4166 = vrot.slane %v4154, %v4165
    %4167 = vrot.lane.b32.xlu0 %v4166, 32
    %v4168 = vpop.permute.xlu0 %4167
    %v4170 = vmul.f32 %v4160, %v4168
    %4172 = vrot.lane.b32.xlu0 %v4161, 64
    %v4173 = vpop.permute.xlu0 %4172
    %v4175 = vmul.f32 %v4160, %v4173
    %4177 = vrot.lane.b32.xlu0 %v4175, 32
    %v4178 = vpop.permute.xlu0 %4177
    %v4180 = vadd.f32 %v4170, %v4178
    %v4181 = vtanh.pop %v4180
    %4183 = vrot.lane.b32.xlu0 %v4181, 64
    %v4184 = vpop.permute.xlu0 %4183
    %v4186 = vmul.f32 %v4160, %v4184
    %4188 = vrot.lane.b32.xlu0 %v4153, 32
    %v4189 = vpop.permute.xlu0 %4188
    %4191 = vst.msk [vmem:[#allocation4] sm:$0x1] %vm297, %v4189
    %4193 = vrot.lane.b32.xlu0 %v4147, 96
    %v4194 = vpop.permute.xlu0 %4193
    %4196 = vst.msk [vmem:[#allocation6] sm:$0x1] %vm297, %v4194
    %4198 = vrot.lane.b32.xlu0 %v4186, 32
    %v4199 = vpop.permute.xlu0 %4198
    %4201 = vst.msk [vmem:[#allocation5] sm:$0x1] %vm297, %v4199
    %4203 = vrot.lane.b32.xlu0 %v4180, 96
    %v4204 = vpop.permute.xlu0 %4203
    %4206 = vst.msk [vmem:[#allocation7] sm:$0x1] %vm297, %v4204
    %4207 = vst.msk [vmem:[#allocation10 + $0x6] sm:$0x1] %vm297, %v4189
    %4208 = vst.msk [vmem:[#allocation11 + $0x1] sm:$0x1] %vm297, %v4199
    %v4209 = vld [vmem:[#allocation2 + $0x7] sm:$0x1]
    %v4210 = vld [vmem:[#allocation4] sm:$0x1]
    %v4211 = vld [vmem:[%s8] sm:$0xff]
    %v4212 = vld [vmem:[%s8 + $0x8] sm:$0xff]
    %v4213 = vld [vmem:[%s8 + $0x10] sm:$0xff]
    %v4214 = vld [vmem:[%s8 + $0x18] sm:$0xff]
    %v4216 = vsel %vm140, %v4210, 0
    %4218 = vmatprep.subr.mxu0 0.0
    %4219 = vmatpush1.msra.mxu0 %v4211
    %4220 = vmatprep.subr.mxu0 0.0
    %4221 = vmatpush1.msra.mxu0 %v4212
    %4222 = vmatprep.subr.mxu0 0.0
    %4223 = vmatpush1.msra.mxu0 %v4213
    %4224 = vmatprep.subr.mxu0 0.0
    %4225 = vmatpush1.msra.mxu0 %v4214
    %4226 = vmatprep.subr.mxu0 0.0
    %4227 = vmatpush1.msra.mxu0 0.0
    %4228 = vmatprep.subr.mxu0 0.0
    %4229 = vmatpush1.msra.mxu0 0.0
    %4230 = vmatprep.subr.mxu0 0.0
    %4231 = vmatpush1.msra.mxu0 0.0
    %4232 = vmatprep.subr.mxu0 0.0
    %4233 = vmatpush1.msra.mxu0 0.0
    %4234 = vmatprep.subr.mxu0 0.0
    %4235 = vmatpush1.msra.mxu0 0.0
    %4236 = vmatprep.subr.mxu0 0.0
    %4237 = vmatpush1.msra.mxu0 0.0
    %4238 = vmatprep.subr.mxu0 0.0
    %4239 = vmatpush1.msra.mxu0 0.0
    %4240 = vmatprep.subr.mxu0 0.0
    %4241 = vmatpush1.msra.mxu0 0.0
    %4242 = vmatprep.subr.mxu0 0.0
    %4243 = vmatpush1.msra.mxu0 0.0
    %4244 = vmatprep.subr.mxu0 0.0
    %4245 = vmatpush1.msra.mxu0 0.0
    %4246 = vmatprep.subr.mxu0 0.0
    %4247 = vmatpush1.msra.mxu0 0.0
    %4248 = vmatprep.subr.mxu0 0.0
    %4249 = vmatpush1.msra.mxu0 0.0
    %4250 = vmatprep.subr.mxu0 0.0
    %4251 = vmatpush1.msra.mxu0 0.0
    %4252 = vmatprep.subr.mxu0 0.0
    %4253 = vmatpush1.msra.mxu0 0.0
    %4254 = vmatprep.subr.mxu0 0.0
    %4255 = vmatpush1.msra.mxu0 0.0
    %4256 = vmatprep.subr.mxu0 0.0
    %4257 = vmatpush1.msra.mxu0 0.0
    %4258 = vmatprep.subr.mxu0 0.0
    %4259 = vmatpush1.msra.mxu0 0.0
    %4260 = vmatprep.subr.mxu0 0.0
    %4261 = vmatpush1.msra.mxu0 0.0
    %4262 = vmatprep.subr.mxu0 0.0
    %4263 = vmatpush1.msra.mxu0 0.0
    %4264 = vmatprep.subr.mxu0 0.0
    %4265 = vmatpush1.msra.mxu0 0.0
    %4266 = vmatprep.subr.mxu0 0.0
    %4267 = vmatpush1.msra.mxu0 0.0
    %4268 = vmatprep.subr.mxu0 0.0
    %4269 = vmatpush1.msra.mxu0 0.0
    %4270 = vmatprep.subr.mxu0 0.0
    %4271 = vmatpush1.msra.mxu0 0.0
    %4272 = vmatprep.subr.mxu0 0.0
    %4273 = vmatpush1.msra.mxu0 0.0
    %4274 = vmatprep.subr.mxu0 0.0
    %4275 = vmatpush1.msra.mxu0 0.0
    %4276 = vmatprep.subr.mxu0 0.0
    %4277 = vmatpush1.msra.mxu0 0.0
    %4278 = vmatprep.subr.mxu0 0.0
    %4279 = vmatpush1.msra.mxu0 0.0
    %4280 = vmatprep.subr.mxu0 0.0
    %4281 = vmatpush1.msra.mxu0 0.0
    %4282 = vmatprep.mubr.f32.mxu0 0.0
    %4283 = vmatmul.mubr.f32.gmra.mrb[0].mxu0 %v4216
    %v4284 = vpop.f32.mrb[0].mxu0
    %v4285 = vadd.f32 0.0, %v4284
    %v4286 = vpop.f32.mrb[0].mxu0
    %4287 = vdwg.mxu0
    %v4288 = vadd.f32 %v4209, %v4285
    %v4289 = vld [vmem:[#allocation3] sm:$0x1]
    %v4290 = vld [vmem:[#allocation5] sm:$0x1]
    %v4291 = vld [vmem:[#allocation21] sm:$0xff]
    %v4292 = vld [vmem:[#allocation21 + $0x8] sm:$0xff]
    %v4293 = vld [vmem:[#allocation21 + $0x10] sm:$0xff]
    %v4294 = vld [vmem:[#allocation21 + $0x18] sm:$0xff]
    %v4296 = vsel %vm140, %v4290, 0
    %4298 = vmatprep.subr.mxu0 0.0
    %4299 = vmatpush1.msra.mxu0 %v4291
    %4300 = vmatprep.subr.mxu0 0.0
    %4301 = vmatpush1.msra.mxu0 %v4292
    %4302 = vmatprep.subr.mxu0 0.0
    %4303 = vmatpush1.msra.mxu0 %v4293
    %4304 = vmatprep.subr.mxu0 0.0
    %4305 = vmatpush1.msra.mxu0 %v4294
    %4306 = vmatprep.subr.mxu0 0.0
    %4307 = vmatpush1.msra.mxu0 0.0
    %4308 = vmatprep.subr.mxu0 0.0
    %4309 = vmatpush1.msra.mxu0 0.0
    %4310 = vmatprep.subr.mxu0 0.0
    %4311 = vmatpush1.msra.mxu0 0.0
    %4312 = vmatprep.subr.mxu0 0.0
    %4313 = vmatpush1.msra.mxu0 0.0
    %4314 = vmatprep.subr.mxu0 0.0
    %4315 = vmatpush1.msra.mxu0 0.0
    %4316 = vmatprep.subr.mxu0 0.0
    %4317 = vmatpush1.msra.mxu0 0.0
    %4318 = vmatprep.subr.mxu0 0.0
    %4319 = vmatpush1.msra.mxu0 0.0
    %4320 = vmatprep.subr.mxu0 0.0
    %4321 = vmatpush1.msra.mxu0 0.0
    %4322 = vmatprep.subr.mxu0 0.0
    %4323 = vmatpush1.msra.mxu0 0.0
    %4324 = vmatprep.subr.mxu0 0.0
    %4325 = vmatpush1.msra.mxu0 0.0
    %4326 = vmatprep.subr.mxu0 0.0
    %4327 = vmatpush1.msra.mxu0 0.0
    %4328 = vmatprep.subr.mxu0 0.0
    %4329 = vmatpush1.msra.mxu0 0.0
    %4330 = vmatprep.subr.mxu0 0.0
    %4331 = vmatpush1.msra.mxu0 0.0
    %4332 = vmatprep.subr.mxu0 0.0
    %4333 = vmatpush1.msra.mxu0 0.0
    %4334 = vmatprep.subr.mxu0 0.0
    %4335 = vmatpush1.msra.mxu0 0.0
    %4336 = vmatprep.subr.mxu0 0.0
    %4337 = vmatpush1.msra.mxu0 0.0
    %4338 = vmatprep.subr.mxu0 0.0
    %4339 = vmatpush1.msra.mxu0 0.0
    %4340 = vmatprep.subr.mxu0 0.0
    %4341 = vmatpush1.msra.mxu0 0.0
    %4342 = vmatprep.subr.mxu0 0.0
    %4343 = vmatpush1.msra.mxu0 0.0
    %4344 = vmatprep.subr.mxu0 0.0
    %4345 = vmatpush1.msra.mxu0 0.0
    %4346 = vmatprep.subr.mxu0 0.0
    %4347 = vmatpush1.msra.mxu0 0.0
    %4348 = vmatprep.subr.mxu0 0.0
    %4349 = vmatpush1.msra.mxu0 0.0
    %4350 = vmatprep.subr.mxu0 0.0
    %4351 = vmatpush1.msra.mxu0 0.0
    %4352 = vmatprep.subr.mxu0 0.0
    %4353 = vmatpush1.msra.mxu0 0.0
    %4354 = vmatprep.subr.mxu0 0.0
    %4355 = vmatpush1.msra.mxu0 0.0
    %4356 = vmatprep.subr.mxu0 0.0
    %4357 = vmatpush1.msra.mxu0 0.0
    %4358 = vmatprep.subr.mxu0 0.0
    %4359 = vmatpush1.msra.mxu0 0.0
    %4360 = vmatprep.subr.mxu0 0.0
    %4361 = vmatpush1.msra.mxu0 0.0
    %4362 = vmatprep.mubr.f32.mxu0 0.0
    %4363 = vmatmul.mubr.f32.gmra.mrb[0].mxu0 %v4296
    %v4364 = vpop.f32.mrb[0].mxu0
    %v4365 = vadd.f32 0.0, %v4364
    %v4366 = vpop.f32.mrb[0].mxu0
    %4367 = vdwg.mxu0
    %v4368 = vadd.f32 %v4289, %v4365
    %v4369 = vld [vmem:[#allocation6] sm:$0x1]
    %v4370 = vxor.u32 %v4288, 2147483648
    %v4371 = vmul.f32 %v4370, 1.442695
    %v4372 = vpow.pop %v4371
    %v4373 = vadd.f32 %v4372, 1.0
    %v4374 = vrcp.pop %v4373
    %v4375 = vmul.f32 1.0, %v4374
    %v4376 = vtanh.pop %v4288
    %v4378 = vlaneseq
    %v4379 = vshrl.u32 %v4378, 7
    %v4380 = vsub.s32 0, %v4379
    %v4381 = vrot.slane %v4369, %v4380
    %4382 = vrot.lane.b32.xlu0 %v4381, 32
    %v4383 = vpop.permute.xlu0 %4382
    %v4385 = vmul.f32 %v4375, %v4383
    %4387 = vrot.lane.b32.xlu0 %v4376, 64
    %v4388 = vpop.permute.xlu0 %4387
    %v4390 = vmul.f32 %v4375, %v4388
    %4392 = vrot.lane.b32.xlu0 %v4390, 32
    %v4393 = vpop.permute.xlu0 %4392
    %v4395 = vadd.f32 %v4385, %v4393
    %v4396 = vtanh.pop %v4395
    %4398 = vrot.lane.b32.xlu0 %v4396, 64
    %v4399 = vpop.permute.xlu0 %4398
    %v4401 = vmul.f32 %v4375, %v4399
    %v4402 = vld [vmem:[#allocation7] sm:$0x1]
    %v4403 = vxor.u32 %v4368, 2147483648
    %v4404 = vmul.f32 %v4403, 1.442695
    %v4405 = vpow.pop %v4404
    %v4406 = vadd.f32 %v4405, 1.0
    %v4407 = vrcp.pop %v4406
    %v4408 = vmul.f32 1.0, %v4407
    %v4409 = vtanh.pop %v4368
    %v4411 = vlaneseq
    %v4412 = vshrl.u32 %v4411, 7
    %v4413 = vsub.s32 0, %v4412
    %v4414 = vrot.slane %v4402, %v4413
    %4415 = vrot.lane.b32.xlu0 %v4414, 32
    %v4416 = vpop.permute.xlu0 %4415
    %v4418 = vmul.f32 %v4408, %v4416
    %4420 = vrot.lane.b32.xlu0 %v4409, 64
    %v4421 = vpop.permute.xlu0 %4420
    %v4423 = vmul.f32 %v4408, %v4421
    %4425 = vrot.lane.b32.xlu0 %v4423, 32
    %v4426 = vpop.permute.xlu0 %4425
    %v4428 = vadd.f32 %v4418, %v4426
    %v4429 = vtanh.pop %v4428
    %4431 = vrot.lane.b32.xlu0 %v4429, 64
    %v4432 = vpop.permute.xlu0 %4431
    %v4434 = vmul.f32 %v4408, %v4432
    %4436 = vrot.lane.b32.xlu0 %v4401, 32
    %v4437 = vpop.permute.xlu0 %4436
    %4439 = vst.msk [vmem:[#allocation4] sm:$0x1] %vm297, %v4437
    %4441 = vrot.lane.b32.xlu0 %v4395, 96
    %v4442 = vpop.permute.xlu0 %4441
    %4444 = vst.msk [vmem:[#allocation6] sm:$0x1] %vm297, %v4442
    %4446 = vrot.lane.b32.xlu0 %v4434, 32
    %v4447 = vpop.permute.xlu0 %4446
    %4449 = vst.msk [vmem:[#allocation5] sm:$0x1] %vm297, %v4447
    %4451 = vrot.lane.b32.xlu0 %v4428, 96
    %v4452 = vpop.permute.xlu0 %4451
    %4454 = vst.msk [vmem:[#allocation7] sm:$0x1] %vm297, %v4452
    %4455 = vst.msk [vmem:[#allocation10 + $0x7] sm:$0x1] %vm297, %v4437
    %4456 = vst.msk [vmem:[#allocation11] sm:$0x1] %vm297, %v4447
    %v4457 = vld [vmem:[#allocation10] sm:$0xff]
    %v4458 = vld [vmem:[#allocation11] sm:$0xff]
    %4460 = vrot.lane.b32.xlu0 %v4458, 32
    %v4461 = vpop.permute.xlu0 %4460
    %v4463 = vsel %vm140, %v4457, %v4461
    %v4464 = vld [vmem:[%s13] sm:$0xff]
    %v4465 = vld [vmem:[%s13 + $0x8] sm:$0xff]
    %v4466 = vld [vmem:[%s13 + $0x10] sm:$0xff]
    %v4467 = vld [vmem:[%s13 + $0x18] sm:$0xff]
    %v4468 = vld [vmem:[%s13 + $0x20] sm:$0xff]
    %v4469 = vld [vmem:[%s13 + $0x28] sm:$0xff]
    %v4470 = vld [vmem:[%s13 + $0x30] sm:$0xff]
    %v4471 = vld [vmem:[%s13 + $0x38] sm:$0xff]
    %v4473 = vsel %vm2308, %v4463, 0
    %4475 = vmatprep.subr.mxu0 0.0
    %4476 = vmatpush1.msra.mxu0 %v4464
    %4477 = vmatprep.subr.mxu0 0.0
    %4478 = vmatpush1.msra.mxu0 %v4465
    %4479 = vmatprep.subr.mxu0 0.0
    %4480 = vmatpush1.msra.mxu0 %v4466
    %4481 = vmatprep.subr.mxu0 0.0
    %4482 = vmatpush1.msra.mxu0 %v4467
    %4483 = vmatprep.subr.mxu0 0.0
    %4484 = vmatpush1.msra.mxu0 %v4468
    %4485 = vmatprep.subr.mxu0 0.0
    %4486 = vmatpush1.msra.mxu0 %v4469
    %4487 = vmatprep.subr.mxu0 0.0
    %4488 = vmatpush1.msra.mxu0 %v4470
    %4489 = vmatprep.subr.mxu0 0.0
    %4490 = vmatpush1.msra.mxu0 %v4471
    %4491 = vmatprep.subr.mxu0 0.0
    %4492 = vmatpush1.msra.mxu0 0.0
    %4493 = vmatprep.subr.mxu0 0.0
    %4494 = vmatpush1.msra.mxu0 0.0
    %4495 = vmatprep.subr.mxu0 0.0
    %4496 = vmatpush1.msra.mxu0 0.0
    %4497 = vmatprep.subr.mxu0 0.0
    %4498 = vmatpush1.msra.mxu0 0.0
    %4499 = vmatprep.subr.mxu0 0.0
    %4500 = vmatpush1.msra.mxu0 0.0
    %4501 = vmatprep.subr.mxu0 0.0
    %4502 = vmatpush1.msra.mxu0 0.0
    %4503 = vmatprep.subr.mxu0 0.0
    %4504 = vmatpush1.msra.mxu0 0.0
    %4505 = vmatprep.subr.mxu0 0.0
    %4506 = vmatpush1.msra.mxu0 0.0
    %4507 = vmatprep.subr.mxu0 0.0
    %4508 = vmatpush1.msra.mxu0 0.0
    %4509 = vmatprep.subr.mxu0 0.0
    %4510 = vmatpush1.msra.mxu0 0.0
    %4511 = vmatprep.subr.mxu0 0.0
    %4512 = vmatpush1.msra.mxu0 0.0
    %4513 = vmatprep.subr.mxu0 0.0
    %4514 = vmatpush1.msra.mxu0 0.0
    %4515 = vmatprep.subr.mxu0 0.0
    %4516 = vmatpush1.msra.mxu0 0.0
    %4517 = vmatprep.subr.mxu0 0.0
    %4518 = vmatpush1.msra.mxu0 0.0
    %4519 = vmatprep.subr.mxu0 0.0
    %4520 = vmatpush1.msra.mxu0 0.0
    %4521 = vmatprep.subr.mxu0 0.0
    %4522 = vmatpush1.msra.mxu0 0.0
    %4523 = vmatprep.subr.mxu0 0.0
    %4524 = vmatpush1.msra.mxu0 0.0
    %4525 = vmatprep.subr.mxu0 0.0
    %4526 = vmatpush1.msra.mxu0 0.0
    %4527 = vmatprep.subr.mxu0 0.0
    %4528 = vmatpush1.msra.mxu0 0.0
    %4529 = vmatprep.subr.mxu0 0.0
    %4530 = vmatpush1.msra.mxu0 0.0
    %4531 = vmatprep.subr.mxu0 0.0
    %4532 = vmatpush1.msra.mxu0 0.0
    %4533 = vmatprep.subr.mxu0 0.0
    %4534 = vmatpush1.msra.mxu0 0.0
    %4535 = vmatprep.subr.mxu0 0.0
    %4536 = vmatpush1.msra.mxu0 0.0
    %4537 = vmatprep.subr.mxu0 0.0
    %4538 = vmatpush1.msra.mxu0 0.0
    %4539 = vmatprep.mubr.f32.mxu0 0.0
    %4540 = vmatmul.mubr.f32.gmra.mrb[0].mxu0 %v4473
    %v4541 = vpop.f32.mrb[0].mxu0
    %v4542 = vadd.f32 0.0, %v4541
    %v4543 = vpop.f32.mrb[0].mxu0
    %4544 = vdwg.mxu0
    %v4545 = vld [vmem:[%s14] sm:$0xff]
    %v4546 = vld [vmem:[%s14 + $0x8] sm:$0xff]
    %v4547 = vld [vmem:[%s14 + $0x10] sm:$0xff]
    %v4548 = vld [vmem:[%s14 + $0x18] sm:$0xff]
    %v4549 = vld [vmem:[%s14 + $0x20] sm:$0xff]
    %v4550 = vld [vmem:[%s14 + $0x28] sm:$0xff]
    %v4551 = vld [vmem:[%s14 + $0x30] sm:$0xff]
    %v4552 = vld [vmem:[%s14 + $0x38] sm:$0xff]
    %v4553 = vld [vmem:[%s15] sm:$0x1]
    %v4555 = vlaneseq
    %v4556 = vshrl.u32 %v4555, 7
    %v4557 = vsub.s32 0, %v4556
    %v4558 = vrot.slane %v4553, %v4557
    %4560 = vmatprep.subr.mxu0 0.0
    %4561 = vmatpush1.msra.mxu0 %v4545
    %4562 = vmatprep.subr.mxu0 0.0
    %4563 = vmatpush1.msra.mxu0 %v4546
    %4564 = vmatprep.subr.mxu0 0.0
    %4565 = vmatpush1.msra.mxu0 %v4547
    %4566 = vmatprep.subr.mxu0 0.0
    %4567 = vmatpush1.msra.mxu0 %v4548
    %4568 = vmatprep.subr.mxu0 0.0
    %4569 = vmatpush1.msra.mxu0 %v4549
    %4570 = vmatprep.subr.mxu0 0.0
    %4571 = vmatpush1.msra.mxu0 %v4550
    %4572 = vmatprep.subr.mxu0 0.0
    %4573 = vmatpush1.msra.mxu0 %v4551
    %4574 = vmatprep.subr.mxu0 0.0
    %4575 = vmatpush1.msra.mxu0 %v4552
    %4576 = vmatprep.subr.mxu0 0.0
    %4577 = vmatpush1.msra.mxu0 0.0
    %4578 = vmatprep.subr.mxu0 0.0
    %4579 = vmatpush1.msra.mxu0 0.0
    %4580 = vmatprep.subr.mxu0 0.0
    %4581 = vmatpush1.msra.mxu0 0.0
    %4582 = vmatprep.subr.mxu0 0.0
    %4583 = vmatpush1.msra.mxu0 0.0
    %4584 = vmatprep.subr.mxu0 0.0
    %4585 = vmatpush1.msra.mxu0 0.0
    %4586 = vmatprep.subr.mxu0 0.0
    %4587 = vmatpush1.msra.mxu0 0.0
    %4588 = vmatprep.subr.mxu0 0.0
    %4589 = vmatpush1.msra.mxu0 0.0
    %4590 = vmatprep.subr.mxu0 0.0
    %4591 = vmatpush1.msra.mxu0 0.0
    %4592 = vmatprep.subr.mxu0 0.0
    %4593 = vmatpush1.msra.mxu0 0.0
    %4594 = vmatprep.subr.mxu0 0.0
    %4595 = vmatpush1.msra.mxu0 0.0
    %4596 = vmatprep.subr.mxu0 0.0
    %4597 = vmatpush1.msra.mxu0 0.0
    %4598 = vmatprep.subr.mxu0 0.0
    %4599 = vmatpush1.msra.mxu0 0.0
    %4600 = vmatprep.subr.mxu0 0.0
    %4601 = vmatpush1.msra.mxu0 0.0
    %4602 = vmatprep.subr.mxu0 0.0
    %4603 = vmatpush1.msra.mxu0 0.0
    %4604 = vmatprep.subr.mxu0 0.0
    %4605 = vmatpush1.msra.mxu0 0.0
    %4606 = vmatprep.subr.mxu0 0.0
    %4607 = vmatpush1.msra.mxu0 0.0
    %4608 = vmatprep.subr.mxu0 0.0
    %4609 = vmatpush1.msra.mxu0 0.0
    %4610 = vmatprep.subr.mxu0 0.0
    %4611 = vmatpush1.msra.mxu0 0.0
    %4612 = vmatprep.subr.mxu0 0.0
    %4613 = vmatpush1.msra.mxu0 0.0
    %4614 = vmatprep.subr.mxu0 0.0
    %4615 = vmatpush1.msra.mxu0 0.0
    %4616 = vmatprep.subr.mxu0 0.0
    %4617 = vmatpush1.msra.mxu0 0.0
    %4618 = vmatprep.subr.mxu0 0.0
    %4619 = vmatpush1.msra.mxu0 0.0
    %4620 = vmatprep.subr.mxu0 0.0
    %4621 = vmatpush1.msra.mxu0 0.0
    %4622 = vmatprep.subr.mxu0 0.0
    %4623 = vmatpush1.msra.mxu0 0.0
    %4624 = vmatprep.mubr.f32.mxu0 0.0
    %4625 = vmatmul.mubr.f32.gmra.mrb[0].mxu0 %v4473
    %v4626 = vpop.f32.mrb[0].mxu0
    %v4627 = vadd.f32 %v4558, %v4626
    %v4628 = vpop.f32.mrb[0].mxu0
    %4629 = vdwg.mxu0
    %v4630 = vld [vmem:[%s16] sm:$0xff]
    %v4631 = vld [vmem:[%s16 + $0x8] sm:$0xff]
    %v4632 = vld [vmem:[%s16 + $0x10] sm:$0xff]
    %v4633 = vld [vmem:[%s16 + $0x18] sm:$0xff]
    %v4634 = vld [vmem:[#allocation12] sm:$0x1]
    %v4635 = vlaneseq
    %v4636 = vshrl.u32 %v4635, 7
    %v4637 = vsub.s32 0, %v4636
    %v4638 = vrot.slane %v4542, %v4637
    %v4639 = vadd.f32 %v4627, %v4638
    %v4640 = vtanh.pop %v4639
    %v4642 = vlaneseq
    %v4643 = vshrl.u32 %v4642, 7
    %v4644 = vsub.s32 0, %v4643
    %v4645 = vrot.slane %v4634, %v4644
    %v4648 = vsel %vm140, %v4640, 0
    %4650 = vmatprep.subr.mxu0 0.0
    %4651 = vmatpush1.msra.mxu0 %v4630
    %4652 = vmatprep.subr.mxu0 0.0
    %4653 = vmatpush1.msra.mxu0 %v4631
    %4654 = vmatprep.subr.mxu0 0.0
    %4655 = vmatpush1.msra.mxu0 %v4632
    %4656 = vmatprep.subr.mxu0 0.0
    %4657 = vmatpush1.msra.mxu0 %v4633
    %4658 = vmatprep.subr.mxu0 0.0
    %4659 = vmatpush1.msra.mxu0 0.0
    %4660 = vmatprep.subr.mxu0 0.0
    %4661 = vmatpush1.msra.mxu0 0.0
    %4662 = vmatprep.subr.mxu0 0.0
    %4663 = vmatpush1.msra.mxu0 0.0
    %4664 = vmatprep.subr.mxu0 0.0
    %4665 = vmatpush1.msra.mxu0 0.0
    %4666 = vmatprep.subr.mxu0 0.0
    %4667 = vmatpush1.msra.mxu0 0.0
    %4668 = vmatprep.subr.mxu0 0.0
    %4669 = vmatpush1.msra.mxu0 0.0
    %4670 = vmatprep.subr.mxu0 0.0
    %4671 = vmatpush1.msra.mxu0 0.0
    %4672 = vmatprep.subr.mxu0 0.0
    %4673 = vmatpush1.msra.mxu0 0.0
    %4674 = vmatprep.subr.mxu0 0.0
    %4675 = vmatpush1.msra.mxu0 0.0
    %4676 = vmatprep.subr.mxu0 0.0
    %4677 = vmatpush1.msra.mxu0 0.0
    %4678 = vmatprep.subr.mxu0 0.0
    %4679 = vmatpush1.msra.mxu0 0.0
    %4680 = vmatprep.subr.mxu0 0.0
    %4681 = vmatpush1.msra.mxu0 0.0
    %4682 = vmatprep.subr.mxu0 0.0
    %4683 = vmatpush1.msra.mxu0 0.0
    %4684 = vmatprep.subr.mxu0 0.0
    %4685 = vmatpush1.msra.mxu0 0.0
    %4686 = vmatprep.subr.mxu0 0.0
    %4687 = vmatpush1.msra.mxu0 0.0
    %4688 = vmatprep.subr.mxu0 0.0
    %4689 = vmatpush1.msra.mxu0 0.0
    %4690 = vmatprep.subr.mxu0 0.0
    %4691 = vmatpush1.msra.mxu0 0.0
    %4692 = vmatprep.subr.mxu0 0.0
    %4693 = vmatpush1.msra.mxu0 0.0
    %4694 = vmatprep.subr.mxu0 0.0
    %4695 = vmatpush1.msra.mxu0 0.0
    %4696 = vmatprep.subr.mxu0 0.0
    %4697 = vmatpush1.msra.mxu0 0.0
    %4698 = vmatprep.subr.mxu0 0.0
    %4699 = vmatpush1.msra.mxu0 0.0
    %4700 = vmatprep.subr.mxu0 0.0
    %4701 = vmatpush1.msra.mxu0 0.0
    %4702 = vmatprep.subr.mxu0 0.0
    %4703 = vmatpush1.msra.mxu0 0.0
    %4704 = vmatprep.subr.mxu0 0.0
    %4705 = vmatpush1.msra.mxu0 0.0
    %4706 = vmatprep.subr.mxu0 0.0
    %4707 = vmatpush1.msra.mxu0 0.0
    %4708 = vmatprep.subr.mxu0 0.0
    %4709 = vmatpush1.msra.mxu0 0.0
    %4710 = vmatprep.subr.mxu0 0.0
    %4711 = vmatpush1.msra.mxu0 0.0
    %4712 = vmatprep.subr.mxu0 0.0
    %4713 = vmatpush1.msra.mxu0 0.0
    %4714 = vmatprep.mubr.f32.mxu0 0.0
    %4715 = vmatmul.mubr.f32.gmra.mrb[0].mxu0 %v4648
    %v4716 = vpop.f32.mrb[0].mxu0
    %v4717 = vadd.f32 %v4645, %v4716
    %v4718 = vpop.f32.mrb[0].mxu0
    %4719 = vdwg.mxu0
    %vm4720 = vcmask 7168
    %4721 = vst.msk [vmem:[#allocation22] sm:$0xff] %vm4720, %v4717
    %v4722 = vlaneseq
    %v4723 = vshrl.u32 %v4722, 7
    %v4724 = vsub.s32 1, %v4723
    %v4725 = vrot.slane %v4542, %v4724
    %v4726 = vadd.f32 %v4627, %v4725
    %v4727 = vtanh.pop %v4726
    %v4729 = vsel %vm140, %v4727, 0
    %4731 = vmatprep.subr.mxu0 0.0
    %4732 = vmatpush1.msra.mxu0 %v4630
    %4733 = vmatprep.subr.mxu0 0.0
    %4734 = vmatpush1.msra.mxu0 %v4631
    %4735 = vmatprep.subr.mxu0 0.0
    %4736 = vmatpush1.msra.mxu0 %v4632
    %4737 = vmatprep.subr.mxu0 0.0
    %4738 = vmatpush1.msra.mxu0 %v4633
    %4739 = vmatprep.subr.mxu0 0.0
    %4740 = vmatpush1.msra.mxu0 0.0
    %4741 = vmatprep.subr.mxu0 0.0
    %4742 = vmatpush1.msra.mxu0 0.0
    %4743 = vmatprep.subr.mxu0 0.0
    %4744 = vmatpush1.msra.mxu0 0.0
    %4745 = vmatprep.subr.mxu0 0.0
    %4746 = vmatpush1.msra.mxu0 0.0
    %4747 = vmatprep.subr.mxu0 0.0
    %4748 = vmatpush1.msra.mxu0 0.0
    %4749 = vmatprep.subr.mxu0 0.0
    %4750 = vmatpush1.msra.mxu0 0.0
    %4751 = vmatprep.subr.mxu0 0.0
    %4752 = vmatpush1.msra.mxu0 0.0
    %4753 = vmatprep.subr.mxu0 0.0
    %4754 = vmatpush1.msra.mxu0 0.0
    %4755 = vmatprep.subr.mxu0 0.0
    %4756 = vmatpush1.msra.mxu0 0.0
    %4757 = vmatprep.subr.mxu0 0.0
    %4758 = vmatpush1.msra.mxu0 0.0
    %4759 = vmatprep.subr.mxu0 0.0
    %4760 = vmatpush1.msra.mxu0 0.0
    %4761 = vmatprep.subr.mxu0 0.0
    %4762 = vmatpush1.msra.mxu0 0.0
    %4763 = vmatprep.subr.mxu0 0.0
    %4764 = vmatpush1.msra.mxu0 0.0
    %4765 = vmatprep.subr.mxu0 0.0
    %4766 = vmatpush1.msra.mxu0 0.0
    %4767 = vmatprep.subr.mxu0 0.0
    %4768 = vmatpush1.msra.mxu0 0.0
    %4769 = vmatprep.subr.mxu0 0.0
    %4770 = vmatpush1.msra.mxu0 0.0
    %4771 = vmatprep.subr.mxu0 0.0
    %4772 = vmatpush1.msra.mxu0 0.0
    %4773 = vmatprep.subr.mxu0 0.0
    %4774 = vmatpush1.msra.mxu0 0.0
    %4775 = vmatprep.subr.mxu0 0.0
    %4776 = vmatpush1.msra.mxu0 0.0
    %4777 = vmatprep.subr.mxu0 0.0
    %4778 = vmatpush1.msra.mxu0 0.0
    %4779 = vmatprep.subr.mxu0 0.0
    %4780 = vmatpush1.msra.mxu0 0.0
    %4781 = vmatprep.subr.mxu0 0.0
    %4782 = vmatpush1.msra.mxu0 0.0
    %4783 = vmatprep.subr.mxu0 0.0
    %4784 = vmatpush1.msra.mxu0 0.0
    %4785 = vmatprep.subr.mxu0 0.0
    %4786 = vmatpush1.msra.mxu0 0.0
    %4787 = vmatprep.subr.mxu0 0.0
    %4788 = vmatpush1.msra.mxu0 0.0
    %4789 = vmatprep.subr.mxu0 0.0
    %4790 = vmatpush1.msra.mxu0 0.0
    %4791 = vmatprep.subr.mxu0 0.0
    %4792 = vmatpush1.msra.mxu0 0.0
    %4793 = vmatprep.subr.mxu0 0.0
    %4794 = vmatpush1.msra.mxu0 0.0
    %4795 = vmatprep.mubr.f32.mxu0 0.0
    %4796 = vmatmul.mubr.f32.gmra.mrb[0].mxu0 %v4729
    %v4797 = vpop.f32.mrb[0].mxu0
    %v4798 = vadd.f32 %v4645, %v4797
    %v4799 = vpop.f32.mrb[0].mxu0
    %4800 = vdwg.mxu0
    %4802 = vrot.lane.b32.xlu0 %v4798, 1
    %v4803 = vpop.permute.xlu0 %4802
    %vm4805 = vcmask 15368
    %4806 = vst.msk [vmem:[#allocation22] sm:$0xff] %vm4805, %v4803
    %v4807 = vlaneseq
    %v4808 = vshrl.u32 %v4807, 7
    %v4809 = vsub.s32 2, %v4808
    %v4810 = vrot.slane %v4542, %v4809
    %v4811 = vadd.f32 %v4627, %v4810
    %v4812 = vtanh.pop %v4811
    %v4814 = vsel %vm140, %v4812, 0
    %4816 = vmatprep.subr.mxu0 0.0
    %4817 = vmatpush1.msra.mxu0 %v4630
    %4818 = vmatprep.subr.mxu0 0.0
    %4819 = vmatpush1.msra.mxu0 %v4631
    %4820 = vmatprep.subr.mxu0 0.0
    %4821 = vmatpush1.msra.mxu0 %v4632
    %4822 = vmatprep.subr.mxu0 0.0
    %4823 = vmatpush1.msra.mxu0 %v4633
    %4824 = vmatprep.subr.mxu0 0.0
    %4825 = vmatpush1.msra.mxu0 0.0
    %4826 = vmatprep.subr.mxu0 0.0
    %4827 = vmatpush1.msra.mxu0 0.0
    %4828 = vmatprep.subr.mxu0 0.0
    %4829 = vmatpush1.msra.mxu0 0.0
    %4830 = vmatprep.subr.mxu0 0.0
    %4831 = vmatpush1.msra.mxu0 0.0
    %4832 = vmatprep.subr.mxu0 0.0
    %4833 = vmatpush1.msra.mxu0 0.0
    %4834 = vmatprep.subr.mxu0 0.0
    %4835 = vmatpush1.msra.mxu0 0.0
    %4836 = vmatprep.subr.mxu0 0.0
    %4837 = vmatpush1.msra.mxu0 0.0
    %4838 = vmatprep.subr.mxu0 0.0
    %4839 = vmatpush1.msra.mxu0 0.0
    %4840 = vmatprep.subr.mxu0 0.0
    %4841 = vmatpush1.msra.mxu0 0.0
    %4842 = vmatprep.subr.mxu0 0.0
    %4843 = vmatpush1.msra.mxu0 0.0
    %4844 = vmatprep.subr.mxu0 0.0
    %4845 = vmatpush1.msra.mxu0 0.0
    %4846 = vmatprep.subr.mxu0 0.0
    %4847 = vmatpush1.msra.mxu0 0.0
    %4848 = vmatprep.subr.mxu0 0.0
    %4849 = vmatpush1.msra.mxu0 0.0
    %4850 = vmatprep.subr.mxu0 0.0
    %4851 = vmatpush1.msra.mxu0 0.0
    %4852 = vmatprep.subr.mxu0 0.0
    %4853 = vmatpush1.msra.mxu0 0.0
    %4854 = vmatprep.subr.mxu0 0.0
    %4855 = vmatpush1.msra.mxu0 0.0
    %4856 = vmatprep.subr.mxu0 0.0
    %4857 = vmatpush1.msra.mxu0 0.0
    %4858 = vmatprep.subr.mxu0 0.0
    %4859 = vmatpush1.msra.mxu0 0.0
    %4860 = vmatprep.subr.mxu0 0.0
    %4861 = vmatpush1.msra.mxu0 0.0
    %4862 = vmatprep.subr.mxu0 0.0
    %4863 = vmatpush1.msra.mxu0 0.0
    %4864 = vmatprep.subr.mxu0 0.0
    %4865 = vmatpush1.msra.mxu0 0.0
    %4866 = vmatprep.subr.mxu0 0.0
    %4867 = vmatpush1.msra.mxu0 0.0
    %4868 = vmatprep.subr.mxu0 0.0
    %4869 = vmatpush1.msra.mxu0 0.0
    %4870 = vmatprep.subr.mxu0 0.0
    %4871 = vmatpush1.msra.mxu0 0.0
    %4872 = vmatprep.subr.mxu0 0.0
    %4873 = vmatpush1.msra.mxu0 0.0
    %4874 = vmatprep.subr.mxu0 0.0
    %4875 = vmatpush1.msra.mxu0 0.0
    %4876 = vmatprep.subr.mxu0 0.0
    %4877 = vmatpush1.msra.mxu0 0.0
    %4878 = vmatprep.subr.mxu0 0.0
    %4879 = vmatpush1.msra.mxu0 0.0
    %4880 = vmatprep.mubr.f32.mxu0 0.0
    %4881 = vmatmul.mubr.f32.gmra.mrb[0].mxu0 %v4814
    %v4882 = vpop.f32.mrb[0].mxu0
    %v4883 = vadd.f32 %v4645, %v4882
    %v4884 = vpop.f32.mrb[0].mxu0
    %4885 = vdwg.mxu0
    %4887 = vrot.lane.b32.xlu0 %v4883, 2
    %v4888 = vpop.permute.xlu0 %4887
    %vm4890 = vcmask 23568
    %4891 = vst.msk [vmem:[#allocation22] sm:$0xff] %vm4890, %v4888
    %v4892 = vlaneseq
    %v4893 = vshrl.u32 %v4892, 7
    %v4894 = vsub.s32 3, %v4893
    %v4895 = vrot.slane %v4542, %v4894
    %v4896 = vadd.f32 %v4627, %v4895
    %v4897 = vtanh.pop %v4896
    %v4899 = vsel %vm140, %v4897, 0
    %4901 = vmatprep.subr.mxu0 0.0
    %4902 = vmatpush1.msra.mxu0 %v4630
    %4903 = vmatprep.subr.mxu0 0.0
    %4904 = vmatpush1.msra.mxu0 %v4631
    %4905 = vmatprep.subr.mxu0 0.0
    %4906 = vmatpush1.msra.mxu0 %v4632
    %4907 = vmatprep.subr.mxu0 0.0
    %4908 = vmatpush1.msra.mxu0 %v4633
    %4909 = vmatprep.subr.mxu0 0.0
    %4910 = vmatpush1.msra.mxu0 0.0
    %4911 = vmatprep.subr.mxu0 0.0
    %4912 = vmatpush1.msra.mxu0 0.0
    %4913 = vmatprep.subr.mxu0 0.0
    %4914 = vmatpush1.msra.mxu0 0.0
    %4915 = vmatprep.subr.mxu0 0.0
    %4916 = vmatpush1.msra.mxu0 0.0
    %4917 = vmatprep.subr.mxu0 0.0
    %4918 = vmatpush1.msra.mxu0 0.0
    %4919 = vmatprep.subr.mxu0 0.0
    %4920 = vmatpush1.msra.mxu0 0.0
    %4921 = vmatprep.subr.mxu0 0.0
    %4922 = vmatpush1.msra.mxu0 0.0
    %4923 = vmatprep.subr.mxu0 0.0
    %4924 = vmatpush1.msra.mxu0 0.0
    %4925 = vmatprep.subr.mxu0 0.0
    %4926 = vmatpush1.msra.mxu0 0.0
    %4927 = vmatprep.subr.mxu0 0.0
    %4928 = vmatpush1.msra.mxu0 0.0
    %4929 = vmatprep.subr.mxu0 0.0
    %4930 = vmatpush1.msra.mxu0 0.0
    %4931 = vmatprep.subr.mxu0 0.0
    %4932 = vmatpush1.msra.mxu0 0.0
    %4933 = vmatprep.subr.mxu0 0.0
    %4934 = vmatpush1.msra.mxu0 0.0
    %4935 = vmatprep.subr.mxu0 0.0
    %4936 = vmatpush1.msra.mxu0 0.0
    %4937 = vmatprep.subr.mxu0 0.0
    %4938 = vmatpush1.msra.mxu0 0.0
    %4939 = vmatprep.subr.mxu0 0.0
    %4940 = vmatpush1.msra.mxu0 0.0
    %4941 = vmatprep.subr.mxu0 0.0
    %4942 = vmatpush1.msra.mxu0 0.0
    %4943 = vmatprep.subr.mxu0 0.0
    %4944 = vmatpush1.msra.mxu0 0.0
    %4945 = vmatprep.subr.mxu0 0.0
    %4946 = vmatpush1.msra.mxu0 0.0
    %4947 = vmatprep.subr.mxu0 0.0
    %4948 = vmatpush1.msra.mxu0 0.0
    %4949 = vmatprep.subr.mxu0 0.0
    %4950 = vmatpush1.msra.mxu0 0.0
    %4951 = vmatprep.subr.mxu0 0.0
    %4952 = vmatpush1.msra.mxu0 0.0
    %4953 = vmatprep.subr.mxu0 0.0
    %4954 = vmatpush1.msra.mxu0 0.0
    %4955 = vmatprep.subr.mxu0 0.0
    %4956 = vmatpush1.msra.mxu0 0.0
    %4957 = vmatprep.subr.mxu0 0.0
    %4958 = vmatpush1.msra.mxu0 0.0
    %4959 = vmatprep.subr.mxu0 0.0
    %4960 = vmatpush1.msra.mxu0 0.0
    %4961 = vmatprep.subr.mxu0 0.0
    %4962 = vmatpush1.msra.mxu0 0.0
    %4963 = vmatprep.subr.mxu0 0.0
    %4964 = vmatpush1.msra.mxu0 0.0
    %4965 = vmatprep.mubr.f32.mxu0 0.0
    %4966 = vmatmul.mubr.f32.gmra.mrb[0].mxu0 %v4899
    %v4967 = vpop.f32.mrb[0].mxu0
    %v4968 = vadd.f32 %v4645, %v4967
    %v4969 = vpop.f32.mrb[0].mxu0
    %4970 = vdwg.mxu0
    %4972 = vrot.lane.b32.xlu0 %v4968, 3
    %v4973 = vpop.permute.xlu0 %4972
    %vm4975 = vcmask 31768
    %4976 = vst.msk [vmem:[#allocation22] sm:$0xff] %vm4975, %v4973
    %v4977 = vlaneseq
    %v4978 = vshrl.u32 %v4977, 7
    %v4979 = vsub.s32 4, %v4978
    %v4980 = vrot.slane %v4542, %v4979
    %v4981 = vadd.f32 %v4627, %v4980
    %v4982 = vtanh.pop %v4981
    %v4984 = vsel %vm140, %v4982, 0
    %4986 = vmatprep.subr.mxu0 0.0
    %4987 = vmatpush1.msra.mxu0 %v4630
    %4988 = vmatprep.subr.mxu0 0.0
    %4989 = vmatpush1.msra.mxu0 %v4631
    %4990 = vmatprep.subr.mxu0 0.0
    %4991 = vmatpush1.msra.mxu0 %v4632
    %4992 = vmatprep.subr.mxu0 0.0
    %4993 = vmatpush1.msra.mxu0 %v4633
    %4994 = vmatprep.subr.mxu0 0.0
    %4995 = vmatpush1.msra.mxu0 0.0
    %4996 = vmatprep.subr.mxu0 0.0
    %4997 = vmatpush1.msra.mxu0 0.0
    %4998 = vmatprep.subr.mxu0 0.0
    %4999 = vmatpush1.msra.mxu0 0.0
    %5000 = vmatprep.subr.mxu0 0.0
    %5001 = vmatpush1.msra.mxu0 0.0
    %5002 = vmatprep.subr.mxu0 0.0
    %5003 = vmatpush1.msra.mxu0 0.0
    %5004 = vmatprep.subr.mxu0 0.0
    %5005 = vmatpush1.msra.mxu0 0.0
    %5006 = vmatprep.subr.mxu0 0.0
    %5007 = vmatpush1.msra.mxu0 0.0
    %5008 = vmatprep.subr.mxu0 0.0
    %5009 = vmatpush1.msra.mxu0 0.0
    %5010 = vmatprep.subr.mxu0 0.0
    %5011 = vmatpush1.msra.mxu0 0.0
    %5012 = vmatprep.subr.mxu0 0.0
    %5013 = vmatpush1.msra.mxu0 0.0
    %5014 = vmatprep.subr.mxu0 0.0
    %5015 = vmatpush1.msra.mxu0 0.0
    %5016 = vmatprep.subr.mxu0 0.0
    %5017 = vmatpush1.msra.mxu0 0.0
    %5018 = vmatprep.subr.mxu0 0.0
    %5019 = vmatpush1.msra.mxu0 0.0
    %5020 = vmatprep.subr.mxu0 0.0
    %5021 = vmatpush1.msra.mxu0 0.0
    %5022 = vmatprep.subr.mxu0 0.0
    %5023 = vmatpush1.msra.mxu0 0.0
    %5024 = vmatprep.subr.mxu0 0.0
    %5025 = vmatpush1.msra.mxu0 0.0
    %5026 = vmatprep.subr.mxu0 0.0
    %5027 = vmatpush1.msra.mxu0 0.0
    %5028 = vmatprep.subr.mxu0 0.0
    %5029 = vmatpush1.msra.mxu0 0.0
    %5030 = vmatprep.subr.mxu0 0.0
    %5031 = vmatpush1.msra.mxu0 0.0
    %5032 = vmatprep.subr.mxu0 0.0
    %5033 = vmatpush1.msra.mxu0 0.0
    %5034 = vmatprep.subr.mxu0 0.0
    %5035 = vmatpush1.msra.mxu0 0.0
    %5036 = vmatprep.subr.mxu0 0.0
    %5037 = vmatpush1.msra.mxu0 0.0
    %5038 = vmatprep.subr.mxu0 0.0
    %5039 = vmatpush1.msra.mxu0 0.0
    %5040 = vmatprep.subr.mxu0 0.0
    %5041 = vmatpush1.msra.mxu0 0.0
    %5042 = vmatprep.subr.mxu0 0.0
    %5043 = vmatpush1.msra.mxu0 0.0
    %5044 = vmatprep.subr.mxu0 0.0
    %5045 = vmatpush1.msra.mxu0 0.0
    %5046 = vmatprep.subr.mxu0 0.0
    %5047 = vmatpush1.msra.mxu0 0.0
    %5048 = vmatprep.subr.mxu0 0.0
    %5049 = vmatpush1.msra.mxu0 0.0
    %5050 = vmatprep.mubr.f32.mxu0 0.0
    %5051 = vmatmul.mubr.f32.gmra.mrb[0].mxu0 %v4984
    %v5052 = vpop.f32.mrb[0].mxu0
    %v5053 = vadd.f32 %v4645, %v5052
    %v5054 = vpop.f32.mrb[0].mxu0
    %5055 = vdwg.mxu0
    %5057 = vrot.lane.b32.xlu0 %v5053, 4
    %v5058 = vpop.permute.xlu0 %5057
    %vm5060 = vcmask 39968
    %5061 = vst.msk [vmem:[#allocation22] sm:$0xff] %vm5060, %v5058
    %v5062 = vlaneseq
    %v5063 = vshrl.u32 %v5062, 7
    %v5064 = vsub.s32 5, %v5063
    %v5065 = vrot.slane %v4542, %v5064
    %v5066 = vadd.f32 %v4627, %v5065
    %v5067 = vtanh.pop %v5066
    %v5069 = vsel %vm140, %v5067, 0
    %5071 = vmatprep.subr.mxu0 0.0
    %5072 = vmatpush1.msra.mxu0 %v4630
    %5073 = vmatprep.subr.mxu0 0.0
    %5074 = vmatpush1.msra.mxu0 %v4631
    %5075 = vmatprep.subr.mxu0 0.0
    %5076 = vmatpush1.msra.mxu0 %v4632
    %5077 = vmatprep.subr.mxu0 0.0
    %5078 = vmatpush1.msra.mxu0 %v4633
    %5079 = vmatprep.subr.mxu0 0.0
    %5080 = vmatpush1.msra.mxu0 0.0
    %5081 = vmatprep.subr.mxu0 0.0
    %5082 = vmatpush1.msra.mxu0 0.0
    %5083 = vmatprep.subr.mxu0 0.0
    %5084 = vmatpush1.msra.mxu0 0.0
    %5085 = vmatprep.subr.mxu0 0.0
    %5086 = vmatpush1.msra.mxu0 0.0
    %5087 = vmatprep.subr.mxu0 0.0
    %5088 = vmatpush1.msra.mxu0 0.0
    %5089 = vmatprep.subr.mxu0 0.0
    %5090 = vmatpush1.msra.mxu0 0.0
    %5091 = vmatprep.subr.mxu0 0.0
    %5092 = vmatpush1.msra.mxu0 0.0
    %5093 = vmatprep.subr.mxu0 0.0
    %5094 = vmatpush1.msra.mxu0 0.0
    %5095 = vmatprep.subr.mxu0 0.0
    %5096 = vmatpush1.msra.mxu0 0.0
    %5097 = vmatprep.subr.mxu0 0.0
    %5098 = vmatpush1.msra.mxu0 0.0
    %5099 = vmatprep.subr.mxu0 0.0
    %5100 = vmatpush1.msra.mxu0 0.0
    %5101 = vmatprep.subr.mxu0 0.0
    %5102 = vmatpush1.msra.mxu0 0.0
    %5103 = vmatprep.subr.mxu0 0.0
    %5104 = vmatpush1.msra.mxu0 0.0
    %5105 = vmatprep.subr.mxu0 0.0
    %5106 = vmatpush1.msra.mxu0 0.0
    %5107 = vmatprep.subr.mxu0 0.0
    %5108 = vmatpush1.msra.mxu0 0.0
    %5109 = vmatprep.subr.mxu0 0.0
    %5110 = vmatpush1.msra.mxu0 0.0
    %5111 = vmatprep.subr.mxu0 0.0
    %5112 = vmatpush1.msra.mxu0 0.0
    %5113 = vmatprep.subr.mxu0 0.0
    %5114 = vmatpush1.msra.mxu0 0.0
    %5115 = vmatprep.subr.mxu0 0.0
    %5116 = vmatpush1.msra.mxu0 0.0
    %5117 = vmatprep.subr.mxu0 0.0
    %5118 = vmatpush1.msra.mxu0 0.0
    %5119 = vmatprep.subr.mxu0 0.0
    %5120 = vmatpush1.msra.mxu0 0.0
    %5121 = vmatprep.subr.mxu0 0.0
    %5122 = vmatpush1.msra.mxu0 0.0
    %5123 = vmatprep.subr.mxu0 0.0
    %5124 = vmatpush1.msra.mxu0 0.0
    %5125 = vmatprep.subr.mxu0 0.0
    %5126 = vmatpush1.msra.mxu0 0.0
    %5127 = vmatprep.subr.mxu0 0.0
    %5128 = vmatpush1.msra.mxu0 0.0
    %5129 = vmatprep.subr.mxu0 0.0
    %5130 = vmatpush1.msra.mxu0 0.0
    %5131 = vmatprep.subr.mxu0 0.0
    %5132 = vmatpush1.msra.mxu0 0.0
    %5133 = vmatprep.subr.mxu0 0.0
    %5134 = vmatpush1.msra.mxu0 0.0
    %5135 = vmatprep.mubr.f32.mxu0 0.0
    %5136 = vmatmul.mubr.f32.gmra.mrb[0].mxu0 %v5069
    %v5137 = vpop.f32.mrb[0].mxu0
    %v5138 = vadd.f32 %v4645, %v5137
    %v5139 = vpop.f32.mrb[0].mxu0
    %5140 = vdwg.mxu0
    %5142 = vrot.lane.b32.xlu0 %v5138, 5
    %v5143 = vpop.permute.xlu0 %5142
    %vm5145 = vcmask 48168
    %5146 = vst.msk [vmem:[#allocation22] sm:$0xff] %vm5145, %v5143
    %v5147 = vlaneseq
    %v5148 = vshrl.u32 %v5147, 7
    %v5149 = vsub.s32 6, %v5148
    %v5150 = vrot.slane %v4542, %v5149
    %v5151 = vadd.f32 %v4627, %v5150
    %v5152 = vtanh.pop %v5151
    %v5154 = vsel %vm140, %v5152, 0
    %5156 = vmatprep.subr.mxu0 0.0
    %5157 = vmatpush1.msra.mxu0 %v4630
    %5158 = vmatprep.subr.mxu0 0.0
    %5159 = vmatpush1.msra.mxu0 %v4631
    %5160 = vmatprep.subr.mxu0 0.0
    %5161 = vmatpush1.msra.mxu0 %v4632
    %5162 = vmatprep.subr.mxu0 0.0
    %5163 = vmatpush1.msra.mxu0 %v4633
    %5164 = vmatprep.subr.mxu0 0.0
    %5165 = vmatpush1.msra.mxu0 0.0
    %5166 = vmatprep.subr.mxu0 0.0
    %5167 = vmatpush1.msra.mxu0 0.0
    %5168 = vmatprep.subr.mxu0 0.0
    %5169 = vmatpush1.msra.mxu0 0.0
    %5170 = vmatprep.subr.mxu0 0.0
    %5171 = vmatpush1.msra.mxu0 0.0
    %5172 = vmatprep.subr.mxu0 0.0
    %5173 = vmatpush1.msra.mxu0 0.0
    %5174 = vmatprep.subr.mxu0 0.0
    %5175 = vmatpush1.msra.mxu0 0.0
    %5176 = vmatprep.subr.mxu0 0.0
    %5177 = vmatpush1.msra.mxu0 0.0
    %5178 = vmatprep.subr.mxu0 0.0
    %5179 = vmatpush1.msra.mxu0 0.0
    %5180 = vmatprep.subr.mxu0 0.0
    %5181 = vmatpush1.msra.mxu0 0.0
    %5182 = vmatprep.subr.mxu0 0.0
    %5183 = vmatpush1.msra.mxu0 0.0
    %5184 = vmatprep.subr.mxu0 0.0
    %5185 = vmatpush1.msra.mxu0 0.0
    %5186 = vmatprep.subr.mxu0 0.0
    %5187 = vmatpush1.msra.mxu0 0.0
    %5188 = vmatprep.subr.mxu0 0.0
    %5189 = vmatpush1.msra.mxu0 0.0
    %5190 = vmatprep.subr.mxu0 0.0
    %5191 = vmatpush1.msra.mxu0 0.0
    %5192 = vmatprep.subr.mxu0 0.0
    %5193 = vmatpush1.msra.mxu0 0.0
    %5194 = vmatprep.subr.mxu0 0.0
    %5195 = vmatpush1.msra.mxu0 0.0
    %5196 = vmatprep.subr.mxu0 0.0
    %5197 = vmatpush1.msra.mxu0 0.0
    %5198 = vmatprep.subr.mxu0 0.0
    %5199 = vmatpush1.msra.mxu0 0.0
    %5200 = vmatprep.subr.mxu0 0.0
    %5201 = vmatpush1.msra.mxu0 0.0
    %5202 = vmatprep.subr.mxu0 0.0
    %5203 = vmatpush1.msra.mxu0 0.0
    %5204 = vmatprep.subr.mxu0 0.0
    %5205 = vmatpush1.msra.mxu0 0.0
    %5206 = vmatprep.subr.mxu0 0.0
    %5207 = vmatpush1.msra.mxu0 0.0
    %5208 = vmatprep.subr.mxu0 0.0
    %5209 = vmatpush1.msra.mxu0 0.0
    %5210 = vmatprep.subr.mxu0 0.0
    %5211 = vmatpush1.msra.mxu0 0.0
    %5212 = vmatprep.subr.mxu0 0.0
    %5213 = vmatpush1.msra.mxu0 0.0
    %5214 = vmatprep.subr.mxu0 0.0
    %5215 = vmatpush1.msra.mxu0 0.0
    %5216 = vmatprep.subr.mxu0 0.0
    %5217 = vmatpush1.msra.mxu0 0.0
    %5218 = vmatprep.subr.mxu0 0.0
    %5219 = vmatpush1.msra.mxu0 0.0
    %5220 = vmatprep.mubr.f32.mxu0 0.0
    %5221 = vmatmul.mubr.f32.gmra.mrb[0].mxu0 %v5154
    %v5222 = vpop.f32.mrb[0].mxu0
    %v5223 = vadd.f32 %v4645, %v5222
    %v5224 = vpop.f32.mrb[0].mxu0
    %5225 = vdwg.mxu0
    %5227 = vrot.lane.b32.xlu0 %v5223, 6
    %v5228 = vpop.permute.xlu0 %5227
    %vm5230 = vcmask 56368
    %5231 = vst.msk [vmem:[#allocation22] sm:$0xff] %vm5230, %v5228
    %v5232 = vlaneseq
    %v5233 = vshrl.u32 %v5232, 7
    %v5234 = vsub.s32 7, %v5233
    %v5235 = vrot.slane %v4542, %v5234
    %v5236 = vadd.f32 %v4627, %v5235
    %v5237 = vtanh.pop %v5236
    %v5239 = vsel %vm140, %v5237, 0
    %5241 = vmatprep.subr.mxu0 0.0
    %5242 = vmatpush1.msra.mxu0 %v4630
    %5243 = vmatprep.subr.mxu0 0.0
    %5244 = vmatpush1.msra.mxu0 %v4631
    %5245 = vmatprep.subr.mxu0 0.0
    %5246 = vmatpush1.msra.mxu0 %v4632
    %5247 = vmatprep.subr.mxu0 0.0
    %5248 = vmatpush1.msra.mxu0 %v4633
    %5249 = vmatprep.subr.mxu0 0.0
    %5250 = vmatpush1.msra.mxu0 0.0
    %5251 = vmatprep.subr.mxu0 0.0
    %5252 = vmatpush1.msra.mxu0 0.0
    %5253 = vmatprep.subr.mxu0 0.0
    %5254 = vmatpush1.msra.mxu0 0.0
    %5255 = vmatprep.subr.mxu0 0.0
    %5256 = vmatpush1.msra.mxu0 0.0
    %5257 = vmatprep.subr.mxu0 0.0
    %5258 = vmatpush1.msra.mxu0 0.0
    %5259 = vmatprep.subr.mxu0 0.0
    %5260 = vmatpush1.msra.mxu0 0.0
    %5261 = vmatprep.subr.mxu0 0.0
    %5262 = vmatpush1.msra.mxu0 0.0
    %5263 = vmatprep.subr.mxu0 0.0
    %5264 = vmatpush1.msra.mxu0 0.0
    %5265 = vmatprep.subr.mxu0 0.0
    %5266 = vmatpush1.msra.mxu0 0.0
    %5267 = vmatprep.subr.mxu0 0.0
    %5268 = vmatpush1.msra.mxu0 0.0
    %5269 = vmatprep.subr.mxu0 0.0
    %5270 = vmatpush1.msra.mxu0 0.0
    %5271 = vmatprep.subr.mxu0 0.0
    %5272 = vmatpush1.msra.mxu0 0.0
    %5273 = vmatprep.subr.mxu0 0.0
    %5274 = vmatpush1.msra.mxu0 0.0
    %5275 = vmatprep.subr.mxu0 0.0
    %5276 = vmatpush1.msra.mxu0 0.0
    %5277 = vmatprep.subr.mxu0 0.0
    %5278 = vmatpush1.msra.mxu0 0.0
    %5279 = vmatprep.subr.mxu0 0.0
    %5280 = vmatpush1.msra.mxu0 0.0
    %5281 = vmatprep.subr.mxu0 0.0
    %5282 = vmatpush1.msra.mxu0 0.0
    %5283 = vmatprep.subr.mxu0 0.0
    %5284 = vmatpush1.msra.mxu0 0.0
    %5285 = vmatprep.subr.mxu0 0.0
    %5286 = vmatpush1.msra.mxu0 0.0
    %5287 = vmatprep.subr.mxu0 0.0
    %5288 = vmatpush1.msra.mxu0 0.0
    %5289 = vmatprep.subr.mxu0 0.0
    %5290 = vmatpush1.msra.mxu0 0.0
    %5291 = vmatprep.subr.mxu0 0.0
    %5292 = vmatpush1.msra.mxu0 0.0
    %5293 = vmatprep.subr.mxu0 0.0
    %5294 = vmatpush1.msra.mxu0 0.0
    %5295 = vmatprep.subr.mxu0 0.0
    %5296 = vmatpush1.msra.mxu0 0.0
    %5297 = vmatprep.subr.mxu0 0.0
    %5298 = vmatpush1.msra.mxu0 0.0
    %5299 = vmatprep.subr.mxu0 0.0
    %5300 = vmatpush1.msra.mxu0 0.0
    %5301 = vmatprep.subr.mxu0 0.0
    %5302 = vmatpush1.msra.mxu0 0.0
    %5303 = vmatprep.subr.mxu0 0.0
    %5304 = vmatpush1.msra.mxu0 0.0
    %5305 = vmatprep.mubr.f32.mxu0 0.0
    %5306 = vmatmul.mubr.f32.gmra.mrb[0].mxu0 %v5239
    %v5307 = vpop.f32.mrb[0].mxu0
    %v5308 = vadd.f32 %v4645, %v5307
    %v5309 = vpop.f32.mrb[0].mxu0
    %5310 = vdwg.mxu0
    %5312 = vrot.lane.b32.xlu0 %v5308, 7
    %v5313 = vpop.permute.xlu0 %5312
    %vm5315 = vcmask 64568
    %5316 = vst.msk [vmem:[#allocation22] sm:$0xff] %vm5315, %v5313
    // Predicated region
    $region94: #{tpu_custom_call.1} parent=1 // pred_check
      _
    $region95: #{tpu_custom_call.1} parent=1 // pred_check_branch
      %5318 = sbr.rel (0) target = $region97
    $region96: #{tpu_custom_call.1} parent=1 // pred_region
      %s5320 = ssub.s32 128, 128
      %5321 = vsyncadd [#allocation15], %s5320
      %s5323 = sshll.u32 [#allocation22], 4
      %s5324 = int_to_ptr.vmem [resolvable:$true] %s5323
      %5326 = dma.vmem_to_hbm [thread:$0]  %s5324, 128, %s18, [#allocation15]
    $region97: #{tpu_custom_call.1} parent=1 // pred_fallthru
      _
    // Predicated region
    $region98: #{tpu_custom_call.1} parent=1 // pred_check
      _
    $region99: #{tpu_custom_call.1} parent=1 // pred_check_branch
      %5328 = sbr.rel (0) target = $region101
    $region100: #{tpu_custom_call.1} parent=1 // pred_region
      %5329 = dma.done [#allocation15], 128
    $region101: #{tpu_custom_call.1} parent=1 // pred_fallthru
      _
    %5330 = vsyncpa [#allocation14], 1
    %5331 = vsyncpa [#allocation17], 1
    %5332 = vsyncpa [#allocation20], 1
    %5333 = vsyncpa [#allocation15], 1

</llo_original>
